<compile_context>
chip_gen: v5e
topology: v5e:2x2
jax: 0.10.0
libtpu: 0.0.40
codegen_flags: <defaults>
</compile_context>

<pallas_src>
import functools

import jax
import jax.numpy as jnp
from jax import lax
from jax.experimental import pallas as pl
from jax.experimental.pallas import tpu as pltpu

BN_EPS = 1e-5
LANE = 128
SUBLANE = 8


def _round_up(x, m):
    return ((x + m - 1) // m) * m


def _pad_last(a, target):
    pad = target - a.shape[-1]
    if pad == 0:
        return a
    cfg = [(0, 0)] * (a.ndim - 1) + [(0, pad)]
    return jnp.pad(a, cfg)


def _vmem_limit_bytes():
    """~3/4 of the chip's physical VMEM (96 MiB on v5e/v6e, 48 MiB on v7x)."""
    cap = 128 * 1024 * 1024
    try:
        cap = int(getattr(pltpu.get_tpu_info(), "vmem_capacity_bytes", cap))
    except Exception:
        pass
    return int(min(cap * 3 // 4, 96 * 1024 * 1024))


def _pick_block_h(h, wp, cin_b, cout_p, vmem_limit):
    """Largest row tile TH dividing H whose working set fits the VMEM budget."""
    budget = vmem_limit // 3
    best = 1
    for th in range(1, h + 1):
        if h % th or th > 512:
            continue
        per_step = (2 * (th + 2) * wp * cin_b * 2          # input tile, 2 bufs (bf16)
                    + 2 * th * wp * cout_p * 2             # z tile, 2 bufs (bf16)
                    + th * wp * cout_p * 4                 # f32 accumulator scratch
                    + 6 * th * wp * max(cin_b, cout_p) * 4)  # in-kernel temporaries
        if per_step <= budget:
            best = th
    return best


# ---------------------------------------------------------------------------
# Conv 3x3 (+ optional fused BN+ReLU of the previous block on the input tile)
# + per-tile partial BN statistics.
# ---------------------------------------------------------------------------
def _make_conv_kernel(th, wp, valid_w, cin_b, cout_p, fuse_affine):
    m = th * wp

    def kernel(*refs):
        if fuse_affine:
            (top_ref, main_ref, bot_ref, scale_ref, bias_ref, w_ref,
             z_ref, stats_ref, acc_ref) = refs
        else:
            (top_ref, main_ref, bot_ref, w_ref,
             z_ref, stats_ref, acc_ref) = refs
            scale_ref = bias_ref = None

        j = pl.program_id(1)
        nj = pl.num_programs(1)

        # (TH+2, Wp, Cin): row tile with its 1-row halos stacked above/below.
        # Concatenation along the leading (untiled) axis is cheap.
        xfull = jnp.concatenate([top_ref[0], main_ref[0], bot_ref[0]], axis=0)

        rowi = lax.broadcasted_iota(jnp.int32, (th + 2, wp, cin_b), 0)
        coli = lax.broadcasted_iota(jnp.int32, (th + 2, wp, cin_b), 1)
        valid = (coli >= 1) & (coli <= valid_w)           # conv zero-halo in W
        valid &= (rowi > 0) | (j > 0)                     # top halo at image edge
        valid &= (rowi < th + 1) | (j < nj - 1)           # bottom halo at image edge

        if fuse_affine:
            # Previous block's BatchNorm + ReLU, fused into this conv's input.
            a = jnp.maximum(
                xfull.astype(jnp.float32) * scale_ref[...] + bias_ref[...], 0.0)
            xq = jnp.where(valid, a, 0.0).astype(jnp.bfloat16)
        else:
            xq = jnp.where(valid, xfull, jnp.zeros_like(xfull))

        # Flatten rows: Wp % 8 == 0, so this reshape is layout-preserving, the
        # per-dy slabs below are sublane-aligned slices, and the dx = +-1 taps
        # are two shared single-sublane shifts (no strided 2-D window gathers).
        xflat = xq.reshape((th + 2) * wp, cin_b)
        zrow = jnp.zeros((1, cin_b), xflat.dtype)
        shifted = (
            jnp.concatenate([zrow, xflat[:-1]], axis=0),   # dx = 0 : x[m - 1]
            xflat,                                          # dx = 1 : x[m]
            jnp.concatenate([xflat[1:], zrow], axis=0),     # dx = 2 : x[m + 1]
        )

        first = True
        for dy in range(3):
            base = dy * wp                                  # multiple of 8
            for dx in range(3):
                lhs = shifted[dx][base:base + m]
                prod = jnp.dot(lhs, w_ref[3 * dy + dx],
                               preferred_element_type=jnp.float32)
                if first:
                    acc_ref[...] = prod
                    first = False
                else:
                    acc_ref[...] += prod

        # Zero the junk columns (W halo), store z as bf16 and emit per-tile
        # BN partial sums from the f32 accumulator (single sweep).
        acc3 = acc_ref[...].reshape(th, wp, cout_p)
        colo = lax.broadcasted_iota(jnp.int32, (th, wp, cout_p), 1)
        keep = (colo >= 1) & (colo <= valid_w)
        zval = jnp.where(keep, acc3, 0.0)
        z_ref[0] = zval.astype(z_ref.dtype)

        s = jnp.sum(jnp.sum(zval, axis=0), axis=0, keepdims=True)
        ss = jnp.sum(jnp.sum(zval * zval, axis=0), axis=0, keepdims=True)
        stats_ref[0, 0] = jnp.concatenate([s, ss], axis=0)

    return kernel


def _conv_bn_stats_pass(x, w9, scale_in, bias_in, *, valid_w, block_h,
                        vmem_limit):
    """One 3x3 conv over a W-halo-padded NHWC activation, optionally with the
    previous block's BN+ReLU fused into the input read.  Returns the pre-BN
    conv output z (bf16, Wp-wide) and per-(image, row-tile) partial BN sums."""
    n, h, wp, cin_b = x.shape
    cout_p = w9.shape[-1]
    th = block_h
    assert h % th == 0, "block_h must divide H"
    nj = h // th
    fuse_affine = scale_in is not None

    kernel = _make_conv_kernel(th, wp, valid_w, cin_b, cout_p, fuse_affine)

    in_specs = [
        # 1-row top halo: row j*TH - 1, clamped (zero-masked in-kernel at j==0)
        pl.BlockSpec((1, 1, wp, cin_b),
                     lambda i, j: (i, jnp.maximum(j * th - 1, 0), 0, 0)),
        # main row tile
        pl.BlockSpec((1, th, wp, cin_b), lambda i, j: (i, j, 0, 0)),
        # 1-row bottom halo: row (j+1)*TH, clamped (zero-masked at j==nj-1)
        pl.BlockSpec((1, 1, wp, cin_b),
                     lambda i, j: (i, jnp.minimum((j + 1) * th, h - 1), 0, 0)),
    ]
    operands = [x, x, x]
    if fuse_affine:
        in_specs += [pl.BlockSpec((1, cin_b), lambda i, j: (0, 0)),
                     pl.BlockSpec((1, cin_b), lambda i, j: (0, 0))]
        operands += [scale_in, bias_in]
    in_specs.append(pl.BlockSpec((9, cin_b, cout_p), lambda i, j: (0, 0, 0)))
    operands.append(w9)

    flops = 2 * n * h * wp * 9 * cin_b * cout_p
    bytes_accessed = (x.size * 2 * (th + 2) / th          # main tile + halo refetch
                      + w9.size * 2
                      + n * h * wp * cout_p * 2
                      + n * nj * 2 * cout_p * 4)
    cost = pl.CostEstimate(flops=int(flops), transcendentals=0,
                           bytes_accessed=int(bytes_accessed))

    z, stats = pl.pallas_call(
        kernel,
        out_shape=(jax.ShapeDtypeStruct((n, h, wp, cout_p), jnp.bfloat16),
                   jax.ShapeDtypeStruct((n, nj, 2, cout_p), jnp.float32)),
        grid_spec=pltpu.PrefetchScalarGridSpec(
            num_scalar_prefetch=0,
            grid=(n, nj),
            in_specs=in_specs,
            out_specs=[
                pl.BlockSpec((1, th, wp, cout_p), lambda i, j: (i, j, 0, 0)),
                pl.BlockSpec((1, 1, 2, cout_p), lambda i, j: (i, j, 0, 0)),
            ],
            scratch_shapes=[pltpu.VMEM((th * wp, cout_p), jnp.float32)]),
        compiler_params=pltpu.CompilerParams(
            dimension_semantics=("parallel", "parallel"),
            vmem_limit_bytes=vmem_limit),
        cost_estimate=cost,
    )(*operands)
    return z, stats


# ---------------------------------------------------------------------------
# Final folded BatchNorm (scale/bias) + ReLU epilogue.
# ---------------------------------------------------------------------------
def _bn_relu_kernel(z_ref, scale_ref, bias_ref, o_ref):
    z = z_ref[...].astype(jnp.float32)
    o_ref[...] = jnp.maximum(z * scale_ref[...] + bias_ref[...], 0.0)


def _bn_relu_pass(z, scale, bias, *, block_h, vmem_limit):
    n, h, wp, cp = z.shape
    th = block_h
    nj = h // th
    cost = pl.CostEstimate(flops=3 * z.size, transcendentals=0,
                           bytes_accessed=int(z.size * 2 + z.size * 4 + 2 * cp * 4))
    return pl.pallas_call(
        _bn_relu_kernel,
        out_shape=jax.ShapeDtypeStruct((n, h, wp, cp), jnp.float32),
        grid_spec=pltpu.PrefetchScalarGridSpec(
            num_scalar_prefetch=0,
            grid=(n, nj),
            in_specs=[pl.BlockSpec((1, th, wp, cp), lambda i, j: (i, j, 0, 0)),
                      pl.BlockSpec((1, cp), lambda i, j: (0, 0)),
                      pl.BlockSpec((1, cp), lambda i, j: (0, 0))],
            out_specs=pl.BlockSpec((1, th, wp, cp), lambda i, j: (i, j, 0, 0))),
        compiler_params=pltpu.CompilerParams(
            dimension_semantics=("parallel", "parallel"),
            vmem_limit_bytes=vmem_limit),
        cost_estimate=cost,
    )(z, scale, bias)


def _fold_bn(stats, gamma_p, beta_p, count):
    """Combine per-tile partial sums into folded BN scale/bias (training-mode
    batch statistics, biased variance, matching nn.BatchNorm2d's forward)."""
    # TODO(synk): E[z^2]-mean^2 in f32 is fine at these sizes; use a
    # mean-centered / Welford combine for very large N*H*W.
    s = jnp.sum(stats[:, :, 0, :], axis=(0, 1))
    ss = jnp.sum(stats[:, :, 1, :], axis=(0, 1))
    mean = s / count
    var = jnp.maximum(ss / count - mean * mean, 0.0)
    scale = gamma_p * lax.rsqrt(var + BN_EPS)
    bias = beta_p - mean * scale
    return scale.reshape(1, -1), bias.reshape(1, -1)


def double_conv(x_nchw, params, block_h=None):
    """DoubleConv forward: [N, Cin, H, W] -> [N, Cout, H, W] (f32)."""
    w1, g1, b1 = params["w1"], params["g1"], params["b1"]
    w2, g2, b2 = params["w2"], params["g2"], params["b2"]
    n, cin, h, w = x_nchw.shape
    cmid, cout = w1.shape[-1], w2.shape[-1]

    cin_p = _round_up(cin, SUBLANE)   # tiny first-layer Cin: sublane pad, NOT 128
    cmid_p = _round_up(cmid, LANE)
    cout_p = _round_up(cout, LANE)
    wp = _round_up(w + 2, SUBLANE)    # width + conv halo, sublane multiple

    vmem_limit = _vmem_limit_bytes()
    th = block_h if block_h is not None else _pick_block_h(
        h, wp, max(cin_p, cmid_p), max(cmid_p, cout_p), vmem_limit)
    assert h % th == 0, "block_h must divide H"

    # NCHW -> NHWC; real pixels live in columns [1, W] of the Wp-wide layout
    # (columns 0 and W+1.. are the conv zero-halo).  Single fused pad+cast; no
    # per-block spatially padded HBM copy and no 9x im2col expansion.
    x = jnp.transpose(x_nchw, (0, 2, 3, 1))
    x = jnp.pad(x, ((0, 0), (0, 0), (1, wp - w - 1), (0, cin_p - cin))
                ).astype(jnp.bfloat16)

    # Weights HWIO [3,3,Ci,Co] -> zero-padded [9, Ci_p, Co_p], bf16.
    w1p = jnp.pad(w1, ((0, 0), (0, 0), (0, cin_p - cin), (0, cmid_p - cmid))
                  ).reshape(9, cin_p, cmid_p).astype(jnp.bfloat16)
    w2p = jnp.pad(w2, ((0, 0), (0, 0), (0, cmid_p - cmid), (0, cout_p - cout))
                  ).reshape(9, cmid_p, cout_p).astype(jnp.bfloat16)

    count = n * h * w

    # conv1 + partial BN sums (BN1 + ReLU1 are fused into the next pass).
    z1, st1 = _conv_bn_stats_pass(x, w1p, None, None, valid_w=w,
                                  block_h=th, vmem_limit=vmem_limit)
    scale1, bias1 = _fold_bn(st1, _pad_last(g1, cmid_p), _pad_last(b1, cmid_p),
                             count)

    # (BN1 + ReLU1 applied to the VMEM input tile) + conv2 + partial BN sums.
    z2, st2 = _conv_bn_stats_pass(z1, w2p, scale1, bias1, valid_w=w,
                                  block_h=th, vmem_limit=vmem_limit)
    scale2, bias2 = _fold_bn(st2, _pad_last(g2, cout_p), _pad_last(b2, cout_p),
                             count)

    # Final BN2 + ReLU2 epilogue.
    y = _bn_relu_pass(z2, scale2, bias2, block_h=th, vmem_limit=vmem_limit)

    # TODO(synk): if the surrounding model is NHWC, these boundary transposes
    # (full HBM relayouts done by XLA) can be dropped.
    return jnp.transpose(y[:, :, 1:w + 1, :cout], (0, 3, 1, 2))


def init_params(key, in_channels, out_channels):
    """Deterministic synthetic params.  Conv weights stored HWIO [3,3,Ci,Co]."""
    k1, k2, k3, k4, k5, k6 = jax.random.split(key, 6)
    return {
        "w1": 0.1 * jax.random.normal(k1, (3, 3, in_channels, out_channels), jnp.float32),
        "g1": 1.0 + 0.1 * jax.random.normal(k3, (out_channels,), jnp.float32),
        "b1": 0.1 * jax.random.normal(k4, (out_channels,), jnp.float32),
        "w2": 0.1 * jax.random.normal(k2, (3, 3, out_channels, out_channels), jnp.float32),
        "g2": 1.0 + 0.1 * jax.random.normal(k5, (out_channels,), jnp.float32),
        "b2": 0.1 * jax.random.normal(k6, (out_channels,), jnp.float32),
    }


def _reference(x_nchw, params):
    """Pure-JAX reference mirroring the kernel's precision choices exactly:
    bf16 conv operands, f32 accumulation, f32 BN math, bf16-stored z."""
    def conv(x, w):
        return lax.conv_general_dilated(
            x.astype(jnp.bfloat16), w.astype(jnp.bfloat16), (1, 1), "SAME",
            dimension_numbers=("NHWC", "HWIO", "NHWC"),
            preferred_element_type=jnp.float32)

    def fold(z, g, b):
        mean = jnp.mean(z, axis=(0, 1, 2))
        var = jnp.maximum(jnp.mean(z * z, axis=(0, 1, 2)) - mean * mean, 0.0)
        scale = g * lax.rsqrt(var + BN_EPS)
        return scale, b - mean * scale

    x = jnp.transpose(x_nchw, (0, 2, 3, 1))
    z1 = conv(x, params["w1"])
    s1, c1 = fold(z1, params["g1"], params["b1"])
    a1 = jnp.maximum(z1.astype(jnp.bfloat16).astype(jnp.float32) * s1 + c1, 0.0)
    z2 = conv(a1, params["w2"])
    s2, c2 = fold(z2, params["g2"], params["b2"])
    y = jnp.maximum(z2.astype(jnp.bfloat16).astype(jnp.float32) * s2 + c2, 0.0)
    return jnp.transpose(y, (0, 3, 1, 2))


if __name__ == "__main__":
    # TODO(synk): BatchNorm running-stat buffer updates (momentum bookkeeping)
    # are stateful training state and do not affect the forward output.
    N, CIN, COUT, H, W = 2, 4, 8, 16, 16

    key = jax.random.PRNGKey(0)
    kx, kp = jax.random.split(key)
    x = jax.random.normal(kx, (N, CIN, H, W), jnp.float32)
    params = init_params(kp, CIN, COUT)

    # block_h=8 exercises the multi-row-tile + halo path (grid = (2, 2)).
    fwd = jax.jit(functools.partial(double_conv, block_h=8))
    out = jax.block_until_ready(fwd(x, params))
    assert out.shape == (N, COUT, H, W), out.shape

    ref = _reference(x, params)
    err = float(jnp.max(jnp.abs(out - ref)))
    assert jnp.allclose(out, ref, rtol=2e-2, atol=2e-2), f"max abs err {err}"

    print("KERNEL_OK")
</pallas_src>

<mosaic_0001>
module attributes {stable_mosaic.version = 11 : i64} {
  func.func @kernel(%arg0: i32, %arg1: i32, %arg2: memref<1x1x24x8xbf16, #tpu.memory_space<vmem>>, %arg3: memref<1x8x24x8xbf16, #tpu.memory_space<vmem>>, %arg4: memref<1x1x24x8xbf16, #tpu.memory_space<vmem>>, %arg5: memref<9x8x128xbf16, #tpu.memory_space<vmem>>, %arg6: memref<1x8x24x128xbf16, #tpu.memory_space<vmem>>, %arg7: memref<1x1x2x128xf32, #tpu.memory_space<vmem>>, %arg8: memref<192x128xf32, #tpu.memory_space<vmem>>) attributes {dimension_semantics = [#tpu.dimension_semantics<parallel>, #tpu.dimension_semantics<parallel>], iteration_bounds = array<i64: 2, 2>, scalar_prefetch = 0 : i64, scratch_operands = 1 : i64, tpu.core_type = #tpu.core_type<tc>, window_params = [{transform_indices = @transform_0, window_bounds = array<i64: 1, 1, 24, 8>}, {transform_indices = @transform_1, window_bounds = array<i64: 1, 8, 24, 8>}, {transform_indices = @transform_2, window_bounds = array<i64: 1, 1, 24, 8>}, {pipeline_mode = #tpu.pipeline_mode<synchronous>, transform_indices = @transform_3, window_bounds = array<i64: 9, 8, 128>}, {transform_indices = @transform_4, window_bounds = array<i64: 1, 8, 24, 128>}, {transform_indices = @transform_5, window_bounds = array<i64: 1, 1, 2, 128>}]} {
    %c0 = arith.constant 0 : index
    %c0_0 = arith.constant 0 : index
    %c0_1 = arith.constant 0 : index
    %c0_2 = arith.constant 0 : index
    %0 = vector.load %arg2[%c0, %c0_0, %c0_1, %c0_2] : memref<1x1x24x8xbf16, #tpu.memory_space<vmem>>, vector<1x1x24x8xbf16>
    %1 = vector.shape_cast %0 : vector<1x1x24x8xbf16> to vector<1x24x8xbf16>
    %c0_3 = arith.constant 0 : index
    %c0_4 = arith.constant 0 : index
    %c0_5 = arith.constant 0 : index
    %c0_6 = arith.constant 0 : index
    %2 = vector.load %arg3[%c0_3, %c0_4, %c0_5, %c0_6] : memref<1x8x24x8xbf16, #tpu.memory_space<vmem>>, vector<1x8x24x8xbf16>
    %3 = vector.shape_cast %2 : vector<1x8x24x8xbf16> to vector<8x24x8xbf16>
    %c0_7 = arith.constant 0 : index
    %c0_8 = arith.constant 0 : index
    %c0_9 = arith.constant 0 : index
    %c0_10 = arith.constant 0 : index
    %4 = vector.load %arg4[%c0_7, %c0_8, %c0_9, %c0_10] : memref<1x1x24x8xbf16, #tpu.memory_space<vmem>>, vector<1x1x24x8xbf16>
    %5 = vector.shape_cast %4 : vector<1x1x24x8xbf16> to vector<1x24x8xbf16>
    %6 = tpu.concatenate %1, %3, %5 in 0 : vector<1x24x8xbf16>, vector<8x24x8xbf16>, vector<1x24x8xbf16> -> vector<10x24x8xbf16>
    %7 = tpu.iota {dimensions = array<i32: 0>} : vector<10x24x8xi32>
    %8 = tpu.iota {dimensions = array<i32: 1>} : vector<10x24x8xi32>
    %c1_i32 = arith.constant 1 : i32
    %9 = vector.broadcast %c1_i32 : i32 to vector<10x24x8xi32>
    %10 = arith.cmpi sge, %8, %9 : vector<10x24x8xi32>
    %c16_i32 = arith.constant 16 : i32
    %11 = vector.broadcast %c16_i32 : i32 to vector<10x24x8xi32>
    %12 = arith.cmpi sle, %8, %11 : vector<10x24x8xi32>
    %13 = arith.andi %10, %12 : vector<10x24x8xi1>
    %c0_i32 = arith.constant 0 : i32
    %14 = vector.broadcast %c0_i32 : i32 to vector<10x24x8xi32>
    %15 = arith.cmpi sgt, %7, %14 : vector<10x24x8xi32>
    %c0_i32_11 = arith.constant 0 : i32
    %16 = arith.cmpi sgt, %arg1, %c0_i32_11 : i32
    %17 = vector.broadcast %16 : i1 to vector<10x24x8xi1>
    %18 = arith.ori %15, %17 : vector<10x24x8xi1>
    %19 = arith.andi %13, %18 : vector<10x24x8xi1>
    %c9_i32 = arith.constant 9 : i32
    %20 = vector.broadcast %c9_i32 : i32 to vector<10x24x8xi32>
    %21 = arith.cmpi slt, %7, %20 : vector<10x24x8xi32>
    %c1_i32_12 = arith.constant 1 : i32
    %22 = arith.cmpi slt, %arg1, %c1_i32_12 : i32
    %23 = vector.broadcast %22 : i1 to vector<10x24x8xi1>
    %24 = arith.ori %21, %23 : vector<10x24x8xi1>
    %25 = arith.andi %19, %24 : vector<10x24x8xi1>
    %cst = arith.constant 0.000000e+00 : bf16
    %26 = vector.broadcast %cst : bf16 to vector<10x24x8xbf16>
    %27 = arith.select %25, %6, %26 : vector<10x24x8xi1>, vector<10x24x8xbf16>
    %28 = vector.shape_cast %27 : vector<10x24x8xbf16> to vector<240x8xbf16>
    %cst_13 = arith.constant 0.000000e+00 : bf16
    %29 = vector.broadcast %cst_13 : bf16 to vector<1x8xbf16>
    %30 = vector.extract_strided_slice %28 {offsets = [0, 0], sizes = [239, 8], strides = [1, 1]} : vector<240x8xbf16> to vector<239x8xbf16>
    %31 = tpu.concatenate %29, %30 in 0 : vector<1x8xbf16>, vector<239x8xbf16> -> vector<240x8xbf16>
    %32 = vector.extract_strided_slice %28 {offsets = [1, 0], sizes = [239, 8], strides = [1, 1]} : vector<240x8xbf16> to vector<239x8xbf16>
    %33 = tpu.concatenate %32, %29 in 0 : vector<239x8xbf16>, vector<1x8xbf16> -> vector<240x8xbf16>
    %34 = vector.extract_strided_slice %31 {offsets = [0, 0], sizes = [192, 8], strides = [1, 1]} : vector<240x8xbf16> to vector<192x8xbf16>
    %c0_14 = arith.constant 0 : index
    %c0_15 = arith.constant 0 : index
    %c0_16 = arith.constant 0 : index
    %35 = vector.load %arg5[%c0_14, %c0_15, %c0_16] : memref<9x8x128xbf16, #tpu.memory_space<vmem>>, vector<1x8x128xbf16>
    %36 = vector.shape_cast %35 : vector<1x8x128xbf16> to vector<8x128xbf16>
    %cst_17 = arith.constant dense<0.000000e+00> : vector<192x128xf32>
    %37 = tpu.matmul %34, %36, %cst_17 {dimension_numbers = #tpu.dot_dimension_numbers<[1], [0], [0], [1], [0, 0, 1, 1], [], []>} : vector<192x8xbf16>, vector<8x128xbf16>, vector<192x128xf32> -> vector<192x128xf32>
    %c0_18 = arith.constant 0 : index
    %c0_19 = arith.constant 0 : index
    %38 = vector.load %arg8[%c0_18, %c0_19] : memref<192x128xf32, #tpu.memory_space<vmem>>, vector<192x128xf32>
    tpu.vector_store %arg8[%c0_18, %c0_19], %37 {strides = array<i32>} : memref<192x128xf32, #tpu.memory_space<vmem>>, vector<192x128xf32>,
    %39 = vector.extract_strided_slice %28 {offsets = [0, 0], sizes = [192, 8], strides = [1, 1]} : vector<240x8xbf16> to vector<192x8xbf16>
    %c1 = arith.constant 1 : index
    %c0_20 = arith.constant 0 : index
    %c0_21 = arith.constant 0 : index
    %40 = vector.load %arg5[%c1, %c0_20, %c0_21] : memref<9x8x128xbf16, #tpu.memory_space<vmem>>, vector<1x8x128xbf16>
    %41 = vector.shape_cast %40 : vector<1x8x128xbf16> to vector<8x128xbf16>
    %cst_22 = arith.constant dense<0.000000e+00> : vector<192x128xf32>
    %42 = tpu.matmul %39, %41, %cst_22 {dimension_numbers = #tpu.dot_dimension_numbers<[1], [0], [0], [1], [0, 0, 1, 1], [], []>} : vector<192x8xbf16>, vector<8x128xbf16>, vector<192x128xf32> -> vector<192x128xf32>
    %c0_23 = arith.constant 0 : index
    %c0_24 = arith.constant 0 : index
    %43 = vector.load %arg8[%c0_23, %c0_24] : memref<192x128xf32, #tpu.memory_space<vmem>>, vector<192x128xf32>
    %44 = arith.addf %43, %42 : vector<192x128xf32>
    %c0_25 = arith.constant 0 : index
    %c0_26 = arith.constant 0 : index
    %45 = vector.load %arg8[%c0_25, %c0_26] : memref<192x128xf32, #tpu.memory_space<vmem>>, vector<192x128xf32>
    tpu.vector_store %arg8[%c0_25, %c0_26], %44 {strides = array<i32>} : memref<192x128xf32, #tpu.memory_space<vmem>>, vector<192x128xf32>,
    %46 = vector.extract_strided_slice %33 {offsets = [0, 0], sizes = [192, 8], strides = [1, 1]} : vector<240x8xbf16> to vector<192x8xbf16>
    %c2 = arith.constant 2 : index
    %c0_27 = arith.constant 0 : index
    %c0_28 = arith.constant 0 : index
    %47 = vector.load %arg5[%c2, %c0_27, %c0_28] : memref<9x8x128xbf16, #tpu.memory_space<vmem>>, vector<1x8x128xbf16>
    %48 = vector.shape_cast %47 : vector<1x8x128xbf16> to vector<8x128xbf16>
    %cst_29 = arith.constant dense<0.000000e+00> : vector<192x128xf32>
    %49 = tpu.matmul %46, %48, %cst_29 {dimension_numbers = #tpu.dot_dimension_numbers<[1], [0], [0], [1], [0, 0, 1, 1], [], []>} : vector<192x8xbf16>, vector<8x128xbf16>, vector<192x128xf32> -> vector<192x128xf32>
    %c0_30 = arith.constant 0 : index
    %c0_31 = arith.constant 0 : index
    %50 = vector.load %arg8[%c0_30, %c0_31] : memref<192x128xf32, #tpu.memory_space<vmem>>, vector<192x128xf32>
    %51 = arith.addf %50, %49 : vector<192x128xf32>
    %c0_32 = arith.constant 0 : index
    %c0_33 = arith.constant 0 : index
    %52 = vector.load %arg8[%c0_32, %c0_33] : memref<192x128xf32, #tpu.memory_space<vmem>>, vector<192x128xf32>
    tpu.vector_store %arg8[%c0_32, %c0_33], %51 {strides = array<i32>} : memref<192x128xf32, #tpu.memory_space<vmem>>, vector<192x128xf32>,
    %53 = vector.extract_strided_slice %31 {offsets = [24, 0], sizes = [192, 8], strides = [1, 1]} : vector<240x8xbf16> to vector<192x8xbf16>
    %c3 = arith.constant 3 : index
    %c0_34 = arith.constant 0 : index
    %c0_35 = arith.constant 0 : index
    %54 = vector.load %arg5[%c3, %c0_34, %c0_35] : memref<9x8x128xbf16, #tpu.memory_space<vmem>>, vector<1x8x128xbf16>
    %55 = vector.shape_cast %54 : vector<1x8x128xbf16> to vector<8x128xbf16>
    %cst_36 = arith.constant dense<0.000000e+00> : vector<192x128xf32>
    %56 = tpu.matmul %53, %55, %cst_36 {dimension_numbers = #tpu.dot_dimension_numbers<[1], [0], [0], [1], [0, 0, 1, 1], [], []>} : vector<192x8xbf16>, vector<8x128xbf16>, vector<192x128xf32> -> vector<192x128xf32>
    %c0_37 = arith.constant 0 : index
    %c0_38 = arith.constant 0 : index
    %57 = vector.load %arg8[%c0_37, %c0_38] : memref<192x128xf32, #tpu.memory_space<vmem>>, vector<192x128xf32>
    %58 = arith.addf %57, %56 : vector<192x128xf32>
    %c0_39 = arith.constant 0 : index
    %c0_40 = arith.constant 0 : index
    %59 = vector.load %arg8[%c0_39, %c0_40] : memref<192x128xf32, #tpu.memory_space<vmem>>, vector<192x128xf32>
    tpu.vector_store %arg8[%c0_39, %c0_40], %58 {strides = array<i32>} : memref<192x128xf32, #tpu.memory_space<vmem>>, vector<192x128xf32>,
    %60 = vector.extract_strided_slice %28 {offsets = [24, 0], sizes = [192, 8], strides = [1, 1]} : vector<240x8xbf16> to vector<192x8xbf16>
    %c4 = arith.constant 4 : index
    %c0_41 = arith.constant 0 : index
    %c0_42 = arith.constant 0 : index
    %61 = vector.load %arg5[%c4, %c0_41, %c0_42] : memref<9x8x128xbf16, #tpu.memory_space<vmem>>, vector<1x8x128xbf16>
    %62 = vector.shape_cast %61 : vector<1x8x128xbf16> to vector<8x128xbf16>
    %cst_43 = arith.constant dense<0.000000e+00> : vector<192x128xf32>
    %63 = tpu.matmul %60, %62, %cst_43 {dimension_numbers = #tpu.dot_dimension_numbers<[1], [0], [0], [1], [0, 0, 1, 1], [], []>} : vector<192x8xbf16>, vector<8x128xbf16>, vector<192x128xf32> -> vector<192x128xf32>
    %c0_44 = arith.constant 0 : index
    %c0_45 = arith.constant 0 : index
    %64 = vector.load %arg8[%c0_44, %c0_45] : memref<192x128xf32, #tpu.memory_space<vmem>>, vector<192x128xf32>
    %65 = arith.addf %64, %63 : vector<192x128xf32>
    %c0_46 = arith.constant 0 : index
    %c0_47 = arith.constant 0 : index
    %66 = vector.load %arg8[%c0_46, %c0_47] : memref<192x128xf32, #tpu.memory_space<vmem>>, vector<192x128xf32>
    tpu.vector_store %arg8[%c0_46, %c0_47], %65 {strides = array<i32>} : memref<192x128xf32, #tpu.memory_space<vmem>>, vector<192x128xf32>,
    %67 = vector.extract_strided_slice %33 {offsets = [24, 0], sizes = [192, 8], strides = [1, 1]} : vector<240x8xbf16> to vector<192x8xbf16>
    %c5 = arith.constant 5 : index
    %c0_48 = arith.constant 0 : index
    %c0_49 = arith.constant 0 : index
    %68 = vector.load %arg5[%c5, %c0_48, %c0_49] : memref<9x8x128xbf16, #tpu.memory_space<vmem>>, vector<1x8x128xbf16>
    %69 = vector.shape_cast %68 : vector<1x8x128xbf16> to vector<8x128xbf16>
    %cst_50 = arith.constant dense<0.000000e+00> : vector<192x128xf32>
    %70 = tpu.matmul %67, %69, %cst_50 {dimension_numbers = #tpu.dot_dimension_numbers<[1], [0], [0], [1], [0, 0, 1, 1], [], []>} : vector<192x8xbf16>, vector<8x128xbf16>, vector<192x128xf32> -> vector<192x128xf32>
    %c0_51 = arith.constant 0 : index
    %c0_52 = arith.constant 0 : index
    %71 = vector.load %arg8[%c0_51, %c0_52] : memref<192x128xf32, #tpu.memory_space<vmem>>, vector<192x128xf32>
    %72 = arith.addf %71, %70 : vector<192x128xf32>
    %c0_53 = arith.constant 0 : index
    %c0_54 = arith.constant 0 : index
    %73 = vector.load %arg8[%c0_53, %c0_54] : memref<192x128xf32, #tpu.memory_space<vmem>>, vector<192x128xf32>
    tpu.vector_store %arg8[%c0_53, %c0_54], %72 {strides = array<i32>} : memref<192x128xf32, #tpu.memory_space<vmem>>, vector<192x128xf32>,
    %74 = vector.extract_strided_slice %31 {offsets = [48, 0], sizes = [192, 8], strides = [1, 1]} : vector<240x8xbf16> to vector<192x8xbf16>
    %c6 = arith.constant 6 : index
    %c0_55 = arith.constant 0 : index
    %c0_56 = arith.constant 0 : index
    %75 = vector.load %arg5[%c6, %c0_55, %c0_56] : memref<9x8x128xbf16, #tpu.memory_space<vmem>>, vector<1x8x128xbf16>
    %76 = vector.shape_cast %75 : vector<1x8x128xbf16> to vector<8x128xbf16>
    %cst_57 = arith.constant dense<0.000000e+00> : vector<192x128xf32>
    %77 = tpu.matmul %74, %76, %cst_57 {dimension_numbers = #tpu.dot_dimension_numbers<[1], [0], [0], [1], [0, 0, 1, 1], [], []>} : vector<192x8xbf16>, vector<8x128xbf16>, vector<192x128xf32> -> vector<192x128xf32>
    %c0_58 = arith.constant 0 : index
    %c0_59 = arith.constant 0 : index
    %78 = vector.load %arg8[%c0_58, %c0_59] : memref<192x128xf32, #tpu.memory_space<vmem>>, vector<192x128xf32>
    %79 = arith.addf %78, %77 : vector<192x128xf32>
    %c0_60 = arith.constant 0 : index
    %c0_61 = arith.constant 0 : index
    %80 = vector.load %arg8[%c0_60, %c0_61] : memref<192x128xf32, #tpu.memory_space<vmem>>, vector<192x128xf32>
    tpu.vector_store %arg8[%c0_60, %c0_61], %79 {strides = array<i32>} : memref<192x128xf32, #tpu.memory_space<vmem>>, vector<192x128xf32>,
    %81 = vector.extract_strided_slice %28 {offsets = [48, 0], sizes = [192, 8], strides = [1, 1]} : vector<240x8xbf16> to vector<192x8xbf16>
    %c7 = arith.constant 7 : index
    %c0_62 = arith.constant 0 : index
    %c0_63 = arith.constant 0 : index
    %82 = vector.load %arg5[%c7, %c0_62, %c0_63] : memref<9x8x128xbf16, #tpu.memory_space<vmem>>, vector<1x8x128xbf16>
    %83 = vector.shape_cast %82 : vector<1x8x128xbf16> to vector<8x128xbf16>
    %cst_64 = arith.constant dense<0.000000e+00> : vector<192x128xf32>
    %84 = tpu.matmul %81, %83, %cst_64 {dimension_numbers = #tpu.dot_dimension_numbers<[1], [0], [0], [1], [0, 0, 1, 1], [], []>} : vector<192x8xbf16>, vector<8x128xbf16>, vector<192x128xf32> -> vector<192x128xf32>
    %c0_65 = arith.constant 0 : index
    %c0_66 = arith.constant 0 : index
    %85 = vector.load %arg8[%c0_65, %c0_66] : memref<192x128xf32, #tpu.memory_space<vmem>>, vector<192x128xf32>
    %86 = arith.addf %85, %84 : vector<192x128xf32>
    %c0_67 = arith.constant 0 : index
    %c0_68 = arith.constant 0 : index
    %87 = vector.load %arg8[%c0_67, %c0_68] : memref<192x128xf32, #tpu.memory_space<vmem>>, vector<192x128xf32>
    tpu.vector_store %arg8[%c0_67, %c0_68], %86 {strides = array<i32>} : memref<192x128xf32, #tpu.memory_space<vmem>>, vector<192x128xf32>,
    %88 = vector.extract_strided_slice %33 {offsets = [48, 0], sizes = [192, 8], strides = [1, 1]} : vector<240x8xbf16> to vector<192x8xbf16>
    %c8 = arith.constant 8 : index
    %c0_69 = arith.constant 0 : index
    %c0_70 = arith.constant 0 : index
    %89 = vector.load %arg5[%c8, %c0_69, %c0_70] : memref<9x8x128xbf16, #tpu.memory_space<vmem>>, vector<1x8x128xbf16>
    %90 = vector.shape_cast %89 : vector<1x8x128xbf16> to vector<8x128xbf16>
    %cst_71 = arith.constant dense<0.000000e+00> : vector<192x128xf32>
    %91 = tpu.matmul %88, %90, %cst_71 {dimension_numbers = #tpu.dot_dimension_numbers<[1], [0], [0], [1], [0, 0, 1, 1], [], []>} : vector<192x8xbf16>, vector<8x128xbf16>, vector<192x128xf32> -> vector<192x128xf32>
    %c0_72 = arith.constant 0 : index
    %c0_73 = arith.constant 0 : index
    %92 = vector.load %arg8[%c0_72, %c0_73] : memref<192x128xf32, #tpu.memory_space<vmem>>, vector<192x128xf32>
    %93 = arith.addf %92, %91 : vector<192x128xf32>
    %c0_74 = arith.constant 0 : index
    %c0_75 = arith.constant 0 : index
    %94 = vector.load %arg8[%c0_74, %c0_75] : memref<192x128xf32, #tpu.memory_space<vmem>>, vector<192x128xf32>
    tpu.vector_store %arg8[%c0_74, %c0_75], %93 {strides = array<i32>} : memref<192x128xf32, #tpu.memory_space<vmem>>, vector<192x128xf32>,
    %c0_76 = arith.constant 0 : index
    %c0_77 = arith.constant 0 : index
    %95 = vector.load %arg8[%c0_76, %c0_77] : memref<192x128xf32, #tpu.memory_space<vmem>>, vector<192x128xf32>
    %96 = vector.shape_cast %95 : vector<192x128xf32> to vector<8x24x128xf32>
    %97 = tpu.iota {dimensions = array<i32: 1>} : vector<8x24x128xi32>
    %c1_i32_78 = arith.constant 1 : i32
    %98 = vector.broadcast %c1_i32_78 : i32 to vector<8x24x128xi32>
    %99 = arith.cmpi sge, %97, %98 : vector<8x24x128xi32>
    %c16_i32_79 = arith.constant 16 : i32
    %100 = vector.broadcast %c16_i32_79 : i32 to vector<8x24x128xi32>
    %101 = arith.cmpi sle, %97, %100 : vector<8x24x128xi32>
    %102 = arith.andi %99, %101 : vector<8x24x128xi1>
    %cst_80 = arith.constant 0.000000e+00 : f32
    %103 = vector.broadcast %cst_80 : f32 to vector<8x24x128xf32>
    %104 = arith.select %102, %96, %103 : vector<8x24x128xi1>, vector<8x24x128xf32>
    %105 = arith.truncf %104 : vector<8x24x128xf32> to vector<8x24x128xbf16>
    %c0_81 = arith.constant 0 : index
    %c0_82 = arith.constant 0 : index
    %c0_83 = arith.constant 0 : index
    %c0_84 = arith.constant 0 : index
    %106 = vector.load %arg6[%c0_81, %c0_82, %c0_83, %c0_84] : memref<1x8x24x128xbf16, #tpu.memory_space<vmem>>, vector<1x8x24x128xbf16>
    %107 = vector.shape_cast %106 : vector<1x8x24x128xbf16> to vector<8x24x128xbf16>
    %108 = vector.shape_cast %105 : vector<8x24x128xbf16> to vector<1x8x24x128xbf16>
    tpu.vector_store %arg6[%c0_81, %c0_82, %c0_83, %c0_84], %108 {strides = array<i32>} : memref<1x8x24x128xbf16, #tpu.memory_space<vmem>>, vector<1x8x24x128xbf16>,
    %cst_85 = arith.constant dense<0.000000e+00> : vector<24x128xf32>
    %109 = vector.multi_reduction <add>, %104, %cst_85 [0] : vector<8x24x128xf32> to vector<24x128xf32>
    %cst_86 = arith.constant dense<0.000000e+00> : vector<128xf32>
    %110 = vector.multi_reduction <add>, %109, %cst_86 [0] : vector<24x128xf32> to vector<128xf32>
    %111 = vector.shape_cast %110 : vector<128xf32> to vector<1x128xf32>
    %112 = arith.mulf %104, %104 : vector<8x24x128xf32>
    %cst_87 = arith.constant dense<0.000000e+00> : vector<24x128xf32>
    %113 = vector.multi_reduction <add>, %112, %cst_87 [0] : vector<8x24x128xf32> to vector<24x128xf32>
    %cst_88 = arith.constant dense<0.000000e+00> : vector<128xf32>
    %114 = vector.multi_reduction <add>, %113, %cst_88 [0] : vector<24x128xf32> to vector<128xf32>
    %115 = vector.shape_cast %114 : vector<128xf32> to vector<1x128xf32>
    %116 = tpu.concatenate %111, %115 in 0 : vector<1x128xf32>, vector<1x128xf32> -> vector<2x128xf32>
    %c0_89 = arith.constant 0 : index
    %c0_90 = arith.constant 0 : index
    %c0_91 = arith.constant 0 : index
    %c0_92 = arith.constant 0 : index
    %117 = vector.load %arg7[%c0_89, %c0_90, %c0_91, %c0_92] : memref<1x1x2x128xf32, #tpu.memory_space<vmem>>, vector<1x1x2x128xf32>
    %118 = vector.shape_cast %117 : vector<1x1x2x128xf32> to vector<2x128xf32>
    %119 = vector.shape_cast %116 : vector<2x128xf32> to vector<1x1x2x128xf32>
    tpu.vector_store %arg7[%c0_89, %c0_90, %c0_91, %c0_92], %119 {strides = array<i32>} : memref<1x1x2x128xf32, #tpu.memory_space<vmem>>, vector<1x1x2x128xf32>,
    return
  }
  func.func @transform_0(%arg0: i32, %arg1: i32) -> (i32, i32, i32, i32) {
    %c8_i32 = arith.constant 8 : i32
    %0 = arith.muli %arg1, %c8_i32 : i32
    %c1_i32 = arith.constant 1 : i32
    %1 = arith.subi %0, %c1_i32 : i32
    %c0_i32 = arith.constant 0 : i32
    %2 = arith.maxsi %1, %c0_i32 : i32
    %c0_i32_0 = arith.constant 0 : i32
    %c0_i32_1 = arith.constant 0 : i32
    %c0_i32_2 = arith.constant 0 : i32
    return %arg0, %2, %c0_i32_0, %c0_i32_1 : i32, i32, i32, i32
  }
  func.func @transform_1(%arg0: i32, %arg1: i32) -> (i32, i32, i32, i32) {
    %c0_i32 = arith.constant 0 : i32
    %c0_i32_0 = arith.constant 0 : i32
    %c0_i32_1 = arith.constant 0 : i32
    return %arg0, %arg1, %c0_i32, %c0_i32_0 : i32, i32, i32, i32
  }
  func.func @transform_2(%arg0: i32, %arg1: i32) -> (i32, i32, i32, i32) {
    %c1_i32 = arith.constant 1 : i32
    %0 = arith.addi %arg1, %c1_i32 : i32
    %c8_i32 = arith.constant 8 : i32
    %1 = arith.muli %0, %c8_i32 : i32
    %c15_i32 = arith.constant 15 : i32
    %2 = arith.minsi %1, %c15_i32 : i32
    %c0_i32 = arith.constant 0 : i32
    %c0_i32_0 = arith.constant 0 : i32
    %c0_i32_1 = arith.constant 0 : i32
    return %arg0, %2, %c0_i32, %c0_i32_0 : i32, i32, i32, i32
  }
  func.func @transform_3(%arg0: i32, %arg1: i32) -> (i32, i32, i32) {
    %c0_i32 = arith.constant 0 : i32
    %c0_i32_0 = arith.constant 0 : i32
    %c0_i32_1 = arith.constant 0 : i32
    %c0_i32_2 = arith.constant 0 : i32
    return %c0_i32, %c0_i32_0, %c0_i32_1 : i32, i32, i32
  }
  func.func @transform_4(%arg0: i32, %arg1: i32) -> (i32, i32, i32, i32) {
    %c0_i32 = arith.constant 0 : i32
    %c0_i32_0 = arith.constant 0 : i32
    %c0_i32_1 = arith.constant 0 : i32
    return %arg0, %arg1, %c0_i32, %c0_i32_0 : i32, i32, i32, i32
  }
  func.func @transform_5(%arg0: i32, %arg1: i32) -> (i32, i32, i32, i32) {
    %c0_i32 = arith.constant 0 : i32
    %c0_i32_0 = arith.constant 0 : i32
    %c0_i32_1 = arith.constant 0 : i32
    return %arg0, %arg1, %c0_i32, %c0_i32_0 : i32, i32, i32, i32
  }
}

module attributes {stable_mosaic.version = 11 : i64} {
  func.func @kernel(%arg0: i32, %arg1: i32, %arg2: memref<1x1x24x128xbf16, #tpu.memory_space<vmem>>, %arg3: memref<1x8x24x128xbf16, #tpu.memory_space<vmem>>, %arg4: memref<1x1x24x128xbf16, #tpu.memory_space<vmem>>, %arg5: memref<1x128xf32, #tpu.memory_space<vmem>>, %arg6: memref<1x128xf32, #tpu.memory_space<vmem>>, %arg7: memref<9x128x128xbf16, #tpu.memory_space<vmem>>, %arg8: memref<1x8x24x128xbf16, #tpu.memory_space<vmem>>, %arg9: memref<1x1x2x128xf32, #tpu.memory_space<vmem>>, %arg10: memref<192x128xf32, #tpu.memory_space<vmem>>) attributes {dimension_semantics = [#tpu.dimension_semantics<parallel>, #tpu.dimension_semantics<parallel>], iteration_bounds = array<i64: 2, 2>, scalar_prefetch = 0 : i64, scratch_operands = 1 : i64, tpu.core_type = #tpu.core_type<tc>, window_params = [{transform_indices = @transform_0, window_bounds = array<i64: 1, 1, 24, 128>}, {transform_indices = @transform_1, window_bounds = array<i64: 1, 8, 24, 128>}, {transform_indices = @transform_2, window_bounds = array<i64: 1, 1, 24, 128>}, {pipeline_mode = #tpu.pipeline_mode<synchronous>, transform_indices = @transform_3, window_bounds = array<i64: 1, 128>}, {pipeline_mode = #tpu.pipeline_mode<synchronous>, transform_indices = @transform_4, window_bounds = array<i64: 1, 128>}, {pipeline_mode = #tpu.pipeline_mode<synchronous>, transform_indices = @transform_5, window_bounds = array<i64: 9, 128, 128>}, {transform_indices = @transform_6, window_bounds = array<i64: 1, 8, 24, 128>}, {transform_indices = @transform_7, window_bounds = array<i64: 1, 1, 2, 128>}]} {
    %c0 = arith.constant 0 : index
    %c0_0 = arith.constant 0 : index
    %c0_1 = arith.constant 0 : index
    %c0_2 = arith.constant 0 : index
    %0 = vector.load %arg2[%c0, %c0_0, %c0_1, %c0_2] : memref<1x1x24x128xbf16, #tpu.memory_space<vmem>>, vector<1x1x24x128xbf16>
    %1 = vector.shape_cast %0 : vector<1x1x24x128xbf16> to vector<1x24x128xbf16>
    %c0_3 = arith.constant 0 : index
    %c0_4 = arith.constant 0 : index
    %c0_5 = arith.constant 0 : index
    %c0_6 = arith.constant 0 : index
    %2 = vector.load %arg3[%c0_3, %c0_4, %c0_5, %c0_6] : memref<1x8x24x128xbf16, #tpu.memory_space<vmem>>, vector<1x8x24x128xbf16>
    %3 = vector.shape_cast %2 : vector<1x8x24x128xbf16> to vector<8x24x128xbf16>
    %c0_7 = arith.constant 0 : index
    %c0_8 = arith.constant 0 : index
    %c0_9 = arith.constant 0 : index
    %c0_10 = arith.constant 0 : index
    %4 = vector.load %arg4[%c0_7, %c0_8, %c0_9, %c0_10] : memref<1x1x24x128xbf16, #tpu.memory_space<vmem>>, vector<1x1x24x128xbf16>
    %5 = vector.shape_cast %4 : vector<1x1x24x128xbf16> to vector<1x24x128xbf16>
    %6 = tpu.concatenate %1, %3, %5 in 0 : vector<1x24x128xbf16>, vector<8x24x128xbf16>, vector<1x24x128xbf16> -> vector<10x24x128xbf16>
    %7 = tpu.iota {dimensions = array<i32: 0>} : vector<10x24x128xi32>
    %8 = tpu.iota {dimensions = array<i32: 1>} : vector<10x24x128xi32>
    %c1_i32 = arith.constant 1 : i32
    %9 = vector.broadcast %c1_i32 : i32 to vector<10x24x128xi32>
    %10 = arith.cmpi sge, %8, %9 : vector<10x24x128xi32>
    %c16_i32 = arith.constant 16 : i32
    %11 = vector.broadcast %c16_i32 : i32 to vector<10x24x128xi32>
    %12 = arith.cmpi sle, %8, %11 : vector<10x24x128xi32>
    %13 = arith.andi %10, %12 : vector<10x24x128xi1>
    %c0_i32 = arith.constant 0 : i32
    %14 = vector.broadcast %c0_i32 : i32 to vector<10x24x128xi32>
    %15 = arith.cmpi sgt, %7, %14 : vector<10x24x128xi32>
    %c0_i32_11 = arith.constant 0 : i32
    %16 = arith.cmpi sgt, %arg1, %c0_i32_11 : i32
    %17 = vector.broadcast %16 : i1 to vector<10x24x128xi1>
    %18 = arith.ori %15, %17 : vector<10x24x128xi1>
    %19 = arith.andi %13, %18 : vector<10x24x128xi1>
    %c9_i32 = arith.constant 9 : i32
    %20 = vector.broadcast %c9_i32 : i32 to vector<10x24x128xi32>
    %21 = arith.cmpi slt, %7, %20 : vector<10x24x128xi32>
    %c1_i32_12 = arith.constant 1 : i32
    %22 = arith.cmpi slt, %arg1, %c1_i32_12 : i32
    %23 = vector.broadcast %22 : i1 to vector<10x24x128xi1>
    %24 = arith.ori %21, %23 : vector<10x24x128xi1>
    %25 = arith.andi %19, %24 : vector<10x24x128xi1>
    %26 = arith.extf %6 : vector<10x24x128xbf16> to vector<10x24x128xf32>
    %c0_13 = arith.constant 0 : index
    %c0_14 = arith.constant 0 : index
    %27 = vector.load %arg5[%c0_13, %c0_14] : memref<1x128xf32, #tpu.memory_space<vmem>>, vector<1x128xf32>
    %28 = vector.shape_cast %27 : vector<1x128xf32> to vector<1x1x128xf32>
    %29 = vector.broadcast %28 : vector<1x1x128xf32> to vector<10x24x128xf32>
    %30 = arith.mulf %26, %29 : vector<10x24x128xf32>
    %c0_15 = arith.constant 0 : index
    %c0_16 = arith.constant 0 : index
    %31 = vector.load %arg6[%c0_15, %c0_16] : memref<1x128xf32, #tpu.memory_space<vmem>>, vector<1x128xf32>
    %32 = vector.shape_cast %31 : vector<1x128xf32> to vector<1x1x128xf32>
    %33 = vector.broadcast %32 : vector<1x1x128xf32> to vector<10x24x128xf32>
    %34 = arith.addf %30, %33 : vector<10x24x128xf32>
    %cst = arith.constant 0.000000e+00 : f32
    %35 = vector.broadcast %cst : f32 to vector<10x24x128xf32>
    %36 = arith.maximumf %34, %35 : vector<10x24x128xf32>
    %cst_17 = arith.constant 0.000000e+00 : f32
    %37 = vector.broadcast %cst_17 : f32 to vector<10x24x128xf32>
    %38 = arith.select %25, %36, %37 : vector<10x24x128xi1>, vector<10x24x128xf32>
    %39 = arith.truncf %38 : vector<10x24x128xf32> to vector<10x24x128xbf16>
    %40 = vector.shape_cast %39 : vector<10x24x128xbf16> to vector<240x128xbf16>
    %cst_18 = arith.constant 0.000000e+00 : bf16
    %41 = vector.broadcast %cst_18 : bf16 to vector<1x128xbf16>
    %42 = vector.extract_strided_slice %40 {offsets = [0, 0], sizes = [239, 128], strides = [1, 1]} : vector<240x128xbf16> to vector<239x128xbf16>
    %43 = tpu.concatenate %41, %42 in 0 : vector<1x128xbf16>, vector<239x128xbf16> -> vector<240x128xbf16>
    %44 = vector.extract_strided_slice %40 {offsets = [1, 0], sizes = [239, 128], strides = [1, 1]} : vector<240x128xbf16> to vector<239x128xbf16>
    %45 = tpu.concatenate %44, %41 in 0 : vector<239x128xbf16>, vector<1x128xbf16> -> vector<240x128xbf16>
    %46 = vector.extract_strided_slice %43 {offsets = [0, 0], sizes = [192, 128], strides = [1, 1]} : vector<240x128xbf16> to vector<192x128xbf16>
    %c0_19 = arith.constant 0 : index
    %c0_20 = arith.constant 0 : index
    %c0_21 = arith.constant 0 : index
    %47 = vector.load %arg7[%c0_19, %c0_20, %c0_21] : memref<9x128x128xbf16, #tpu.memory_space<vmem>>, vector<1x128x128xbf16>
    %48 = vector.shape_cast %47 : vector<1x128x128xbf16> to vector<128x128xbf16>
    %cst_22 = arith.constant dense<0.000000e+00> : vector<192x128xf32>
    %49 = tpu.matmul %46, %48, %cst_22 {dimension_numbers = #tpu.dot_dimension_numbers<[1], [0], [0], [1], [0, 0, 1, 1], [], []>} : vector<192x128xbf16>, vector<128x128xbf16>, vector<192x128xf32> -> vector<192x128xf32>
    %c0_23 = arith.constant 0 : index
    %c0_24 = arith.constant 0 : index
    %50 = vector.load %arg10[%c0_23, %c0_24] : memref<192x128xf32, #tpu.memory_space<vmem>>, vector<192x128xf32>
    tpu.vector_store %arg10[%c0_23, %c0_24], %49 {strides = array<i32>} : memref<192x128xf32, #tpu.memory_space<vmem>>, vector<192x128xf32>,
    %51 = vector.extract_strided_slice %40 {offsets = [0, 0], sizes = [192, 128], strides = [1, 1]} : vector<240x128xbf16> to vector<192x128xbf16>
    %c1 = arith.constant 1 : index
    %c0_25 = arith.constant 0 : index
    %c0_26 = arith.constant 0 : index
    %52 = vector.load %arg7[%c1, %c0_25, %c0_26] : memref<9x128x128xbf16, #tpu.memory_space<vmem>>, vector<1x128x128xbf16>
    %53 = vector.shape_cast %52 : vector<1x128x128xbf16> to vector<128x128xbf16>
    %cst_27 = arith.constant dense<0.000000e+00> : vector<192x128xf32>
    %54 = tpu.matmul %51, %53, %cst_27 {dimension_numbers = #tpu.dot_dimension_numbers<[1], [0], [0], [1], [0, 0, 1, 1], [], []>} : vector<192x128xbf16>, vector<128x128xbf16>, vector<192x128xf32> -> vector<192x128xf32>
    %c0_28 = arith.constant 0 : index
    %c0_29 = arith.constant 0 : index
    %55 = vector.load %arg10[%c0_28, %c0_29] : memref<192x128xf32, #tpu.memory_space<vmem>>, vector<192x128xf32>
    %56 = arith.addf %55, %54 : vector<192x128xf32>
    %c0_30 = arith.constant 0 : index
    %c0_31 = arith.constant 0 : index
    %57 = vector.load %arg10[%c0_30, %c0_31] : memref<192x128xf32, #tpu.memory_space<vmem>>, vector<192x128xf32>
    tpu.vector_store %arg10[%c0_30, %c0_31], %56 {strides = array<i32>} : memref<192x128xf32, #tpu.memory_space<vmem>>, vector<192x128xf32>,
    %58 = vector.extract_strided_slice %45 {offsets = [0, 0], sizes = [192, 128], strides = [1, 1]} : vector<240x128xbf16> to vector<192x128xbf16>
    %c2 = arith.constant 2 : index
    %c0_32 = arith.constant 0 : index
    %c0_33 = arith.constant 0 : index
    %59 = vector.load %arg7[%c2, %c0_32, %c0_33] : memref<9x128x128xbf16, #tpu.memory_space<vmem>>, vector<1x128x128xbf16>
    %60 = vector.shape_cast %59 : vector<1x128x128xbf16> to vector<128x128xbf16>
    %cst_34 = arith.constant dense<0.000000e+00> : vector<192x128xf32>
    %61 = tpu.matmul %58, %60, %cst_34 {dimension_numbers = #tpu.dot_dimension_numbers<[1], [0], [0], [1], [0, 0, 1, 1], [], []>} : vector<192x128xbf16>, vector<128x128xbf16>, vector<192x128xf32> -> vector<192x128xf32>
    %c0_35 = arith.constant 0 : index
    %c0_36 = arith.constant 0 : index
    %62 = vector.load %arg10[%c0_35, %c0_36] : memref<192x128xf32, #tpu.memory_space<vmem>>, vector<192x128xf32>
    %63 = arith.addf %62, %61 : vector<192x128xf32>
    %c0_37 = arith.constant 0 : index
    %c0_38 = arith.constant 0 : index
    %64 = vector.load %arg10[%c0_37, %c0_38] : memref<192x128xf32, #tpu.memory_space<vmem>>, vector<192x128xf32>
    tpu.vector_store %arg10[%c0_37, %c0_38], %63 {strides = array<i32>} : memref<192x128xf32, #tpu.memory_space<vmem>>, vector<192x128xf32>,
    %65 = vector.extract_strided_slice %43 {offsets = [24, 0], sizes = [192, 128], strides = [1, 1]} : vector<240x128xbf16> to vector<192x128xbf16>
    %c3 = arith.constant 3 : index
    %c0_39 = arith.constant 0 : index
    %c0_40 = arith.constant 0 : index
    %66 = vector.load %arg7[%c3, %c0_39, %c0_40] : memref<9x128x128xbf16, #tpu.memory_space<vmem>>, vector<1x128x128xbf16>
    %67 = vector.shape_cast %66 : vector<1x128x128xbf16> to vector<128x128xbf16>
    %cst_41 = arith.constant dense<0.000000e+00> : vector<192x128xf32>
    %68 = tpu.matmul %65, %67, %cst_41 {dimension_numbers = #tpu.dot_dimension_numbers<[1], [0], [0], [1], [0, 0, 1, 1], [], []>} : vector<192x128xbf16>, vector<128x128xbf16>, vector<192x128xf32> -> vector<192x128xf32>
    %c0_42 = arith.constant 0 : index
    %c0_43 = arith.constant 0 : index
    %69 = vector.load %arg10[%c0_42, %c0_43] : memref<192x128xf32, #tpu.memory_space<vmem>>, vector<192x128xf32>
    %70 = arith.addf %69, %68 : vector<192x128xf32>
    %c0_44 = arith.constant 0 : index
    %c0_45 = arith.constant 0 : index
    %71 = vector.load %arg10[%c0_44, %c0_45] : memref<192x128xf32, #tpu.memory_space<vmem>>, vector<192x128xf32>
    tpu.vector_store %arg10[%c0_44, %c0_45], %70 {strides = array<i32>} : memref<192x128xf32, #tpu.memory_space<vmem>>, vector<192x128xf32>,
    %72 = vector.extract_strided_slice %40 {offsets = [24, 0], sizes = [192, 128], strides = [1, 1]} : vector<240x128xbf16> to vector<192x128xbf16>
    %c4 = arith.constant 4 : index
    %c0_46 = arith.constant 0 : index
    %c0_47 = arith.constant 0 : index
    %73 = vector.load %arg7[%c4, %c0_46, %c0_47] : memref<9x128x128xbf16, #tpu.memory_space<vmem>>, vector<1x128x128xbf16>
    %74 = vector.shape_cast %73 : vector<1x128x128xbf16> to vector<128x128xbf16>
    %cst_48 = arith.constant dense<0.000000e+00> : vector<192x128xf32>
    %75 = tpu.matmul %72, %74, %cst_48 {dimension_numbers = #tpu.dot_dimension_numbers<[1], [0], [0], [1], [0, 0, 1, 1], [], []>} : vector<192x128xbf16>, vector<128x128xbf16>, vector<192x128xf32> -> vector<192x128xf32>
    %c0_49 = arith.constant 0 : index
    %c0_50 = arith.constant 0 : index
    %76 = vector.load %arg10[%c0_49, %c0_50] : memref<192x128xf32, #tpu.memory_space<vmem>>, vector<192x128xf32>
    %77 = arith.addf %76, %75 : vector<192x128xf32>
    %c0_51 = arith.constant 0 : index
    %c0_52 = arith.constant 0 : index
    %78 = vector.load %arg10[%c0_51, %c0_52] : memref<192x128xf32, #tpu.memory_space<vmem>>, vector<192x128xf32>
    tpu.vector_store %arg10[%c0_51, %c0_52], %77 {strides = array<i32>} : memref<192x128xf32, #tpu.memory_space<vmem>>, vector<192x128xf32>,
    %79 = vector.extract_strided_slice %45 {offsets = [24, 0], sizes = [192, 128], strides = [1, 1]} : vector<240x128xbf16> to vector<192x128xbf16>
    %c5 = arith.constant 5 : index
    %c0_53 = arith.constant 0 : index
    %c0_54 = arith.constant 0 : index
    %80 = vector.load %arg7[%c5, %c0_53, %c0_54] : memref<9x128x128xbf16, #tpu.memory_space<vmem>>, vector<1x128x128xbf16>
    %81 = vector.shape_cast %80 : vector<1x128x128xbf16> to vector<128x128xbf16>
    %cst_55 = arith.constant dense<0.000000e+00> : vector<192x128xf32>
    %82 = tpu.matmul %79, %81, %cst_55 {dimension_numbers = #tpu.dot_dimension_numbers<[1], [0], [0], [1], [0, 0, 1, 1], [], []>} : vector<192x128xbf16>, vector<128x128xbf16>, vector<192x128xf32> -> vector<192x128xf32>
    %c0_56 = arith.constant 0 : index
    %c0_57 = arith.constant 0 : index
    %83 = vector.load %arg10[%c0_56, %c0_57] : memref<192x128xf32, #tpu.memory_space<vmem>>, vector<192x128xf32>
    %84 = arith.addf %83, %82 : vector<192x128xf32>
    %c0_58 = arith.constant 0 : index
    %c0_59 = arith.constant 0 : index
    %85 = vector.load %arg10[%c0_58, %c0_59] : memref<192x128xf32, #tpu.memory_space<vmem>>, vector<192x128xf32>
    tpu.vector_store %arg10[%c0_58, %c0_59], %84 {strides = array<i32>} : memref<192x128xf32, #tpu.memory_space<vmem>>, vector<192x128xf32>,
    %86 = vector.extract_strided_slice %43 {offsets = [48, 0], sizes = [192, 128], strides = [1, 1]} : vector<240x128xbf16> to vector<192x128xbf16>
    %c6 = arith.constant 6 : index
    %c0_60 = arith.constant 0 : index
    %c0_61 = arith.constant 0 : index
    %87 = vector.load %arg7[%c6, %c0_60, %c0_61] : memref<9x128x128xbf16, #tpu.memory_space<vmem>>, vector<1x128x128xbf16>
    %88 = vector.shape_cast %87 : vector<1x128x128xbf16> to vector<128x128xbf16>
    %cst_62 = arith.constant dense<0.000000e+00> : vector<192x128xf32>
    %89 = tpu.matmul %86, %88, %cst_62 {dimension_numbers = #tpu.dot_dimension_numbers<[1], [0], [0], [1], [0, 0, 1, 1], [], []>} : vector<192x128xbf16>, vector<128x128xbf16>, vector<192x128xf32> -> vector<192x128xf32>
    %c0_63 = arith.constant 0 : index
    %c0_64 = arith.constant 0 : index
    %90 = vector.load %arg10[%c0_63, %c0_64] : memref<192x128xf32, #tpu.memory_space<vmem>>, vector<192x128xf32>
    %91 = arith.addf %90, %89 : vector<192x128xf32>
    %c0_65 = arith.constant 0 : index
    %c0_66 = arith.constant 0 : index
    %92 = vector.load %arg10[%c0_65, %c0_66] : memref<192x128xf32, #tpu.memory_space<vmem>>, vector<192x128xf32>
    tpu.vector_store %arg10[%c0_65, %c0_66], %91 {strides = array<i32>} : memref<192x128xf32, #tpu.memory_space<vmem>>, vector<192x128xf32>,
    %93 = vector.extract_strided_slice %40 {offsets = [48, 0], sizes = [192, 128], strides = [1, 1]} : vector<240x128xbf16> to vector<192x128xbf16>
    %c7 = arith.constant 7 : index
    %c0_67 = arith.constant 0 : index
    %c0_68 = arith.constant 0 : index
    %94 = vector.load %arg7[%c7, %c0_67, %c0_68] : memref<9x128x128xbf16, #tpu.memory_space<vmem>>, vector<1x128x128xbf16>
    %95 = vector.shape_cast %94 : vector<1x128x128xbf16> to vector<128x128xbf16>
    %cst_69 = arith.constant dense<0.000000e+00> : vector<192x128xf32>
    %96 = tpu.matmul %93, %95, %cst_69 {dimension_numbers = #tpu.dot_dimension_numbers<[1], [0], [0], [1], [0, 0, 1, 1], [], []>} : vector<192x128xbf16>, vector<128x128xbf16>, vector<192x128xf32> -> vector<192x128xf32>
    %c0_70 = arith.constant 0 : index
    %c0_71 = arith.constant 0 : index
    %97 = vector.load %arg10[%c0_70, %c0_71] : memref<192x128xf32, #tpu.memory_space<vmem>>, vector<192x128xf32>
    %98 = arith.addf %97, %96 : vector<192x128xf32>
    %c0_72 = arith.constant 0 : index
    %c0_73 = arith.constant 0 : index
    %99 = vector.load %arg10[%c0_72, %c0_73] : memref<192x128xf32, #tpu.memory_space<vmem>>, vector<192x128xf32>
    tpu.vector_store %arg10[%c0_72, %c0_73], %98 {strides = array<i32>} : memref<192x128xf32, #tpu.memory_space<vmem>>, vector<192x128xf32>,
    %100 = vector.extract_strided_slice %45 {offsets = [48, 0], sizes = [192, 128], strides = [1, 1]} : vector<240x128xbf16> to vector<192x128xbf16>
    %c8 = arith.constant 8 : index
    %c0_74 = arith.constant 0 : index
    %c0_75 = arith.constant 0 : index
    %101 = vector.load %arg7[%c8, %c0_74, %c0_75] : memref<9x128x128xbf16, #tpu.memory_space<vmem>>, vector<1x128x128xbf16>
    %102 = vector.shape_cast %101 : vector<1x128x128xbf16> to vector<128x128xbf16>
    %cst_76 = arith.constant dense<0.000000e+00> : vector<192x128xf32>
    %103 = tpu.matmul %100, %102, %cst_76 {dimension_numbers = #tpu.dot_dimension_numbers<[1], [0], [0], [1], [0, 0, 1, 1], [], []>} : vector<192x128xbf16>, vector<128x128xbf16>, vector<192x128xf32> -> vector<192x128xf32>
    %c0_77 = arith.constant 0 : index
    %c0_78 = arith.constant 0 : index
    %104 = vector.load %arg10[%c0_77, %c0_78] : memref<192x128xf32, #tpu.memory_space<vmem>>, vector<192x128xf32>
    %105 = arith.addf %104, %103 : vector<192x128xf32>
    %c0_79 = arith.constant 0 : index
    %c0_80 = arith.constant 0 : index
    %106 = vector.load %arg10[%c0_79, %c0_80] : memref<192x128xf32, #tpu.memory_space<vmem>>, vector<192x128xf32>
    tpu.vector_store %arg10[%c0_79, %c0_80], %105 {strides = array<i32>} : memref<192x128xf32, #tpu.memory_space<vmem>>, vector<192x128xf32>,
    %c0_81 = arith.constant 0 : index
    %c0_82 = arith.constant 0 : index
    %107 = vector.load %arg10[%c0_81, %c0_82] : memref<192x128xf32, #tpu.memory_space<vmem>>, vector<192x128xf32>
    %108 = vector.shape_cast %107 : vector<192x128xf32> to vector<8x24x128xf32>
    %109 = tpu.iota {dimensions = array<i32: 1>} : vector<8x24x128xi32>
    %c1_i32_83 = arith.constant 1 : i32
    %110 = vector.broadcast %c1_i32_83 : i32 to vector<8x24x128xi32>
    %111 = arith.cmpi sge, %109, %110 : vector<8x24x128xi32>
    %c16_i32_84 = arith.constant 16 : i32
    %112 = vector.broadcast %c16_i32_84 : i32 to vector<8x24x128xi32>
    %113 = arith.cmpi sle, %109, %112 : vector<8x24x128xi32>
    %114 = arith.andi %111, %113 : vector<8x24x128xi1>
    %cst_85 = arith.constant 0.000000e+00 : f32
    %115 = vector.broadcast %cst_85 : f32 to vector<8x24x128xf32>
    %116 = arith.select %114, %108, %115 : vector<8x24x128xi1>, vector<8x24x128xf32>
    %117 = arith.truncf %116 : vector<8x24x128xf32> to vector<8x24x128xbf16>
    %c0_86 = arith.constant 0 : index
    %c0_87 = arith.constant 0 : index
    %c0_88 = arith.constant 0 : index
    %c0_89 = arith.constant 0 : index
    %118 = vector.load %arg8[%c0_86, %c0_87, %c0_88, %c0_89] : memref<1x8x24x128xbf16, #tpu.memory_space<vmem>>, vector<1x8x24x128xbf16>
    %119 = vector.shape_cast %118 : vector<1x8x24x128xbf16> to vector<8x24x128xbf16>
    %120 = vector.shape_cast %117 : vector<8x24x128xbf16> to vector<1x8x24x128xbf16>
    tpu.vector_store %arg8[%c0_86, %c0_87, %c0_88, %c0_89], %120 {strides = array<i32>} : memref<1x8x24x128xbf16, #tpu.memory_space<vmem>>, vector<1x8x24x128xbf16>,
    %cst_90 = arith.constant dense<0.000000e+00> : vector<24x128xf32>
    %121 = vector.multi_reduction <add>, %116, %cst_90 [0] : vector<8x24x128xf32> to vector<24x128xf32>
    %cst_91 = arith.constant dense<0.000000e+00> : vector<128xf32>
    %122 = vector.multi_reduction <add>, %121, %cst_91 [0] : vector<24x128xf32> to vector<128xf32>
    %123 = vector.shape_cast %122 : vector<128xf32> to vector<1x128xf32>
    %124 = arith.mulf %116, %116 : vector<8x24x128xf32>
    %cst_92 = arith.constant dense<0.000000e+00> : vector<24x128xf32>
    %125 = vector.multi_reduction <add>, %124, %cst_92 [0] : vector<8x24x128xf32> to vector<24x128xf32>
    %cst_93 = arith.constant dense<0.000000e+00> : vector<128xf32>
    %126 = vector.multi_reduction <add>, %125, %cst_93 [0] : vector<24x128xf32> to vector<128xf32>
    %127 = vector.shape_cast %126 : vector<128xf32> to vector<1x128xf32>
    %128 = tpu.concatenate %123, %127 in 0 : vector<1x128xf32>, vector<1x128xf32> -> vector<2x128xf32>
    %c0_94 = arith.constant 0 : index
    %c0_95 = arith.constant 0 : index
    %c0_96 = arith.constant 0 : index
    %c0_97 = arith.constant 0 : index
    %129 = vector.load %arg9[%c0_94, %c0_95, %c0_96, %c0_97] : memref<1x1x2x128xf32, #tpu.memory_space<vmem>>, vector<1x1x2x128xf32>
    %130 = vector.shape_cast %129 : vector<1x1x2x128xf32> to vector<2x128xf32>
    %131 = vector.shape_cast %128 : vector<2x128xf32> to vector<1x1x2x128xf32>
    tpu.vector_store %arg9[%c0_94, %c0_95, %c0_96, %c0_97], %131 {strides = array<i32>} : memref<1x1x2x128xf32, #tpu.memory_space<vmem>>, vector<1x1x2x128xf32>,
    return
  }
  func.func @transform_0(%arg0: i32, %arg1: i32) -> (i32, i32, i32, i32) {
    %c8_i32 = arith.constant 8 : i32
    %0 = arith.muli %arg1, %c8_i32 : i32
    %c1_i32 = arith.constant 1 : i32
    %1 = arith.subi %0, %c1_i32 : i32
    %c0_i32 = arith.constant 0 : i32
    %2 = arith.maxsi %1, %c0_i32 : i32
    %c0_i32_0 = arith.constant 0 : i32
    %c0_i32_1 = arith.constant 0 : i32
    %c0_i32_2 = arith.constant 0 : i32
    return %arg0, %2, %c0_i32_0, %c0_i32_1 : i32, i32, i32, i32
  }
  func.func @transform_1(%arg0: i32, %arg1: i32) -> (i32, i32, i32, i32) {
    %c0_i32 = arith.constant 0 : i32
    %c0_i32_0 = arith.constant 0 : i32
    %c0_i32_1 = arith.constant 0 : i32
    return %arg0, %arg1, %c0_i32, %c0_i32_0 : i32, i32, i32, i32
  }
  func.func @transform_2(%arg0: i32, %arg1: i32) -> (i32, i32, i32, i32) {
    %c1_i32 = arith.constant 1 : i32
    %0 = arith.addi %arg1, %c1_i32 : i32
    %c8_i32 = arith.constant 8 : i32
    %1 = arith.muli %0, %c8_i32 : i32
    %c15_i32 = arith.constant 15 : i32
    %2 = arith.minsi %1, %c15_i32 : i32
    %c0_i32 = arith.constant 0 : i32
    %c0_i32_0 = arith.constant 0 : i32
    %c0_i32_1 = arith.constant 0 : i32
    return %arg0, %2, %c0_i32, %c0_i32_0 : i32, i32, i32, i32
  }
  func.func @transform_3(%arg0: i32, %arg1: i32) -> (i32, i32) {
    %c0_i32 = arith.constant 0 : i32
    %c0_i32_0 = arith.constant 0 : i32
    %c0_i32_1 = arith.constant 0 : i32
    return %c0_i32, %c0_i32_0 : i32, i32
  }
  func.func @transform_4(%arg0: i32, %arg1: i32) -> (i32, i32) {
    %c0_i32 = arith.constant 0 : i32
    %c0_i32_0 = arith.constant 0 : i32
    %c0_i32_1 = arith.constant 0 : i32
    return %c0_i32, %c0_i32_0 : i32, i32
  }
  func.func @transform_5(%arg0: i32, %arg1: i32) -> (i32, i32, i32) {
    %c0_i32 = arith.constant 0 : i32
    %c0_i32_0 = arith.constant 0 : i32
    %c0_i32_1 = arith.constant 0 : i32
    %c0_i32_2 = arith.constant 0 : i32
    return %c0_i32, %c0_i32_0, %c0_i32_1 : i32, i32, i32
  }
  func.func @transform_6(%arg0: i32, %arg1: i32) -> (i32, i32, i32, i32) {
    %c0_i32 = arith.constant 0 : i32
    %c0_i32_0 = arith.constant 0 : i32
    %c0_i32_1 = arith.constant 0 : i32
    return %arg0, %arg1, %c0_i32, %c0_i32_0 : i32, i32, i32, i32
  }
  func.func @transform_7(%arg0: i32, %arg1: i32) -> (i32, i32, i32, i32) {
    %c0_i32 = arith.constant 0 : i32
    %c0_i32_0 = arith.constant 0 : i32
    %c0_i32_1 = arith.constant 0 : i32
    return %arg0, %arg1, %c0_i32, %c0_i32_0 : i32, i32, i32, i32
  }
}

module attributes {stable_mosaic.version = 11 : i64} {
  func.func @_bn_relu_kernel(%arg0: i32, %arg1: i32, %arg2: memref<1x8x24x128xbf16, #tpu.memory_space<vmem>>, %arg3: memref<1x128xf32, #tpu.memory_space<vmem>>, %arg4: memref<1x128xf32, #tpu.memory_space<vmem>>, %arg5: memref<1x8x24x128xf32, #tpu.memory_space<vmem>>) attributes {dimension_semantics = [#tpu.dimension_semantics<parallel>, #tpu.dimension_semantics<parallel>], iteration_bounds = array<i64: 2, 2>, scalar_prefetch = 0 : i64, scratch_operands = 0 : i64, tpu.core_type = #tpu.core_type<tc>, window_params = [{transform_indices = @transform_0, window_bounds = array<i64: 1, 8, 24, 128>}, {pipeline_mode = #tpu.pipeline_mode<synchronous>, transform_indices = @transform_1, window_bounds = array<i64: 1, 128>}, {pipeline_mode = #tpu.pipeline_mode<synchronous>, transform_indices = @transform_2, window_bounds = array<i64: 1, 128>}, {transform_indices = @transform_3, window_bounds = array<i64: 1, 8, 24, 128>}]} {
    %c0 = arith.constant 0 : index
    %c0_0 = arith.constant 0 : index
    %c0_1 = arith.constant 0 : index
    %c0_2 = arith.constant 0 : index
    %0 = vector.load %arg2[%c0, %c0_0, %c0_1, %c0_2] : memref<1x8x24x128xbf16, #tpu.memory_space<vmem>>, vector<1x8x24x128xbf16>
    %1 = arith.extf %0 : vector<1x8x24x128xbf16> to vector<1x8x24x128xf32>
    %c0_3 = arith.constant 0 : index
    %c0_4 = arith.constant 0 : index
    %2 = vector.load %arg3[%c0_3, %c0_4] : memref<1x128xf32, #tpu.memory_space<vmem>>, vector<1x128xf32>
    %3 = vector.shape_cast %2 : vector<1x128xf32> to vector<1x1x1x128xf32>
    %4 = vector.broadcast %3 : vector<1x1x1x128xf32> to vector<1x8x24x128xf32>
    %5 = arith.mulf %1, %4 : vector<1x8x24x128xf32>
    %c0_5 = arith.constant 0 : index
    %c0_6 = arith.constant 0 : index
    %6 = vector.load %arg4[%c0_5, %c0_6] : memref<1x128xf32, #tpu.memory_space<vmem>>, vector<1x128xf32>
    %7 = vector.shape_cast %6 : vector<1x128xf32> to vector<1x1x1x128xf32>
    %8 = vector.broadcast %7 : vector<1x1x1x128xf32> to vector<1x8x24x128xf32>
    %9 = arith.addf %5, %8 : vector<1x8x24x128xf32>
    %cst = arith.constant 0.000000e+00 : f32
    %10 = vector.broadcast %cst : f32 to vector<1x8x24x128xf32>
    %11 = arith.maximumf %9, %10 : vector<1x8x24x128xf32>
    %c0_7 = arith.constant 0 : index
    %c0_8 = arith.constant 0 : index
    %c0_9 = arith.constant 0 : index
    %c0_10 = arith.constant 0 : index
    %12 = vector.load %arg5[%c0_7, %c0_8, %c0_9, %c0_10] : memref<1x8x24x128xf32, #tpu.memory_space<vmem>>, vector<1x8x24x128xf32>
    tpu.vector_store %arg5[%c0_7, %c0_8, %c0_9, %c0_10], %11 {strides = array<i32>} : memref<1x8x24x128xf32, #tpu.memory_space<vmem>>, vector<1x8x24x128xf32>,
    return
  }
  func.func @transform_0(%arg0: i32, %arg1: i32) -> (i32, i32, i32, i32) {
    %c0_i32 = arith.constant 0 : i32
    %c0_i32_0 = arith.constant 0 : i32
    %c0_i32_1 = arith.constant 0 : i32
    return %arg0, %arg1, %c0_i32, %c0_i32_0 : i32, i32, i32, i32
  }
  func.func @transform_1(%arg0: i32, %arg1: i32) -> (i32, i32) {
    %c0_i32 = arith.constant 0 : i32
    %c0_i32_0 = arith.constant 0 : i32
    %c0_i32_1 = arith.constant 0 : i32
    return %c0_i32, %c0_i32_0 : i32, i32
  }
  func.func @transform_2(%arg0: i32, %arg1: i32) -> (i32, i32) {
    %c0_i32 = arith.constant 0 : i32
    %c0_i32_0 = arith.constant 0 : i32
    %c0_i32_1 = arith.constant 0 : i32
    return %c0_i32, %c0_i32_0 : i32, i32
  }
  func.func @transform_3(%arg0: i32, %arg1: i32) -> (i32, i32, i32, i32) {
    %c0_i32 = arith.constant 0 : i32
    %c0_i32_0 = arith.constant 0 : i32
    %c0_i32_1 = arith.constant 0 : i32
    return %arg0, %arg1, %c0_i32, %c0_i32_0 : i32, i32, i32, i32
  }
}

</mosaic_0001>

<llo_original>
// kernel: double_conv.5
$region0: #{double_conv.5}
  #allocation0 [shape = 'u32[]', space=smem, size = 0x4, offset = 0x4, fixed_abs, tag = 'smem constant byte address 0x4 - core index']
  #allocation1 [shape = 'u32[72,128]{1,0:T(1,128)}', space=vmem, size = 0x9000, scoped, tag = 'internal scratch']
  %s0 = inlined_call_operand.vmem [shape: bf16[2,16,24,128], index: 0, kind: input, shape index: {}]
  %s1 = inlined_call_operand.vmem [shape: f32[1,128], index: 1, kind: input, shape index: {}]
  %s2 = inlined_call_operand.vmem [shape: f32[1,128], index: 2, kind: input, shape index: {}]
  %s3 = inlined_call_operand.vmem [shape: f32[2,16,24,128], index: 3, kind: output, shape index: {}]
  %s4 = sld [smem:[#allocation0]]
  $region45: #{double_conv.5} parent=0
    _
  %s6 = ssub.s32 1, %s4
  %s7 = scalar_select 0, %s6, %s4
  loop: start=0, step=1, limit=6
  $region2: #{double_conv.5} parent=0 // loop_pre_header
    _
  $region3: #{double_conv.5} parent=0 // loop_header
    %s9 = sphi 0, %s13
    %p10 = scmp.ge.s32.totalorder %s9, 6
    %s16 = sphi 0, %s28
    %s17 = sphi 0, %s24
    %s18 = sphi 0, %s16
    %s19 = sphi 0, %s17
    %s20 = sphi 0, %s18
    %s21 = sphi 0, %s19
    %s33 = sphi 0, %s35
    %s36 = sphi 0, %s33
    %s37 = sphi 0, %s36
    %s53 = sphi 0, %s37
    %s57 = sphi 0, %s57
    %s59 = sphi 0, %s57
    %s60 = sphi 0, %s59
    %s74 = sphi 0, %s60
    %s78 = sphi 0, %s78
    %s80 = sphi 0, %s78
    %s81 = sphi 0, %s80
    %s95 = sphi 0, %s81
    %s103 = sphi 0, %s105
    %s106 = sphi 0, %s103
    %s107 = sphi 0, %s106
    %s123 = sphi 0, %s107
  $region4: #{double_conv.5} parent=0 // loop_header_branch
    %12 = sbr.rel (%p10) target = $region8
  $region5: #{double_conv.5} parent=0 // loop_body
    %s14 = ssub.s32 %s9, 1
    %s15 = ssub.s32 %s9, 2
    %s22 = sadd.s32 1, %s17
    %p23 = scmp.ge.s32.totalorder %s22, 2
    %s24 = scalar_select %p23, 0, %s22
    %s25 = sadd.s32 1, %s16
    %s26 = scalar_select %p23, %s25, %s16
    %p27 = scmp.ge.s32.totalorder %s26, 2
    %s28 = scalar_select %p27, 0, %s26
    %s29 = ssub.s32 %s16, %s28
    %s30 = ssub.s32 %s17, %s24
    %s31 = sor.u32 %s29, %s30
    %p32 = scmp.eq.s32.totalorder %s31, 0
    %s34 = sadd.s32 %s33, 1
    %s35 = scalar_select %p32, %s33, %s34
    %p38 = pneg %p32
    %p39 = scmp.eq.s32.totalorder %s9, 3
    %p40 = por %p38, %p39
    %p41 = scmp.ne.s32.totalorder %s33, %s36
    %p42 = scmp.eq.s32.totalorder %s9, 0
    %p43 = por %p41, %p42
    %p44 = scmp.ne.s32.totalorder %s33, %s36
    %p45 = scmp.eq.s32.totalorder %s14, 3
    %p46 = por %p44, %p45
    %p47 = scmp.ne.s32.totalorder %s36, %s37
    %p48 = scmp.eq.s32.totalorder %s14, 0
    %p49 = por %p47, %p48
    %p50 = scmp.ne.s32.totalorder %s36, %s37
    %p51 = scmp.eq.s32.totalorder %s15, 3
    %p52 = por %p50, %p51
    %p54 = scmp.ne.s32.totalorder %s37, %s53
    %p55 = scmp.eq.s32.totalorder %s15, 0
    %p56 = por %p54, %p55
    %s58 = sadd.s32 %s57, 1
    %p61 = scmp.eq.s32.totalorder %s9, 3
    %p62 = scmp.ne.s32.totalorder %s57, %s59
    %p63 = scmp.eq.s32.totalorder %s9, 0
    %p64 = por %p62, %p63
    %p65 = scmp.ne.s32.totalorder %s57, %s59
    %p66 = scmp.eq.s32.totalorder %s14, 3
    %p67 = por %p65, %p66
    %p68 = scmp.ne.s32.totalorder %s59, %s60
    %p69 = scmp.eq.s32.totalorder %s14, 0
    %p70 = por %p68, %p69
    %p71 = scmp.ne.s32.totalorder %s59, %s60
    %p72 = scmp.eq.s32.totalorder %s15, 3
    %p73 = por %p71, %p72
    %p75 = scmp.ne.s32.totalorder %s60, %s74
    %p76 = scmp.eq.s32.totalorder %s15, 0
    %p77 = por %p75, %p76
    %s79 = sadd.s32 %s78, 1
    %p82 = scmp.eq.s32.totalorder %s9, 3
    %p83 = scmp.ne.s32.totalorder %s78, %s80
    %p84 = scmp.eq.s32.totalorder %s9, 0
    %p85 = por %p83, %p84
    %p86 = scmp.ne.s32.totalorder %s78, %s80
    %p87 = scmp.eq.s32.totalorder %s14, 3
    %p88 = por %p86, %p87
    %p89 = scmp.ne.s32.totalorder %s80, %s81
    %p90 = scmp.eq.s32.totalorder %s14, 0
    %p91 = por %p89, %p90
    %p92 = scmp.ne.s32.totalorder %s80, %s81
    %p93 = scmp.eq.s32.totalorder %s15, 3
    %p94 = por %p92, %p93
    %p96 = scmp.ne.s32.totalorder %s81, %s95
    %p97 = scmp.eq.s32.totalorder %s15, 0
    %p98 = por %p96, %p97
    %s99 = ssub.s32 %s16, %s28
    %s100 = ssub.s32 %s17, %s24
    %s101 = sor.u32 %s99, %s100
    %p102 = scmp.eq.s32.totalorder %s101, 0
    %s104 = sadd.s32 %s103, 1
    %s105 = scalar_select %p102, %s103, %s104
    %p108 = pneg %p102
    %p109 = scmp.eq.s32.totalorder %s9, 3
    %p110 = por %p108, %p109
    %p111 = scmp.ne.s32.totalorder %s103, %s106
    %p112 = scmp.eq.s32.totalorder %s9, 0
    %p113 = por %p111, %p112
    %p114 = scmp.ne.s32.totalorder %s103, %s106
    %p115 = scmp.eq.s32.totalorder %s14, 3
    %p116 = por %p114, %p115
    %p117 = scmp.ne.s32.totalorder %s106, %s107
    %p118 = scmp.eq.s32.totalorder %s14, 0
    %p119 = por %p117, %p118
    %p120 = scmp.ne.s32.totalorder %s106, %s107
    %p121 = scmp.eq.s32.totalorder %s15, 3
    %p122 = por %p120, %p121
    %p124 = scmp.ne.s32.totalorder %s107, %s123
    %p125 = scmp.eq.s32.totalorder %s15, 0
    %p126 = por %p124, %p125
    %p127 = scmp.le.s32.totalorder 1, %s9
    %p128 = scmp.lt.s32.totalorder %s9, 5
    %p129 = pnand %p127, %p128
    %p130 = pneg %p129
    // Predicated region
    $region9: #{double_conv.5} parent=5 // pred_check
      _
    $region10: #{double_conv.5} parent=5 // pred_check_branch
      %132 = sbr.rel (%p129) target = $region12
    $region11: #{double_conv.5} parent=5 // pred_region
      %s133 = ssub.s32 %s9, 1
      // Predicated region
      $region13: #{double_conv.5} parent=11 // pred_check
        %p134 = pneg %p70
      $region14: #{double_conv.5} parent=11 // pred_check_branch
        %136 = sbr.rel (%p134) target = $region16
      $region15: #{double_conv.5} parent=11 // pred_region
        _
      $region16: #{double_conv.5} parent=11 // pred_fallthru
        _
      // Predicated region
      $region17: #{double_conv.5} parent=11 // pred_check
        %p137 = pneg %p91
      $region18: #{double_conv.5} parent=11 // pred_check_branch
        %139 = sbr.rel (%p137) target = $region20
      $region19: #{double_conv.5} parent=11 // pred_region
        _
      $region20: #{double_conv.5} parent=11 // pred_fallthru
        _
    $region12: #{double_conv.5} parent=5 // pred_fallthru
      _
    %p140 = scmp.lt.s32.totalorder %s9, 4
    // Predicated region
    $region21: #{double_conv.5} parent=5 // pred_check
      %p141 = pneg %p140
    $region22: #{double_conv.5} parent=5 // pred_check_branch
      %143 = sbr.rel (%p141) target = $region24
    $region23: #{double_conv.5} parent=5 // pred_region
      // Predicated region
      $region25: #{double_conv.5} parent=23 // pred_check
        %p144 = pneg %p43
      $region26: #{double_conv.5} parent=23 // pred_check_branch
        %146 = sbr.rel (%p144) target = $region28
      $region27: #{double_conv.5} parent=23 // pred_region
        %s147 = smul.u32 8, %s17
        %p148 = scmp.lt.s32.totalorder %s16, 1
        %s149 = scalar_select %p148, %s16, 1
        %p150 = scmp.lt.s32.totalorder %s147, 15
        %s151 = scalar_select %p150, %s147, 15
        %s152 = smul.addr %s151, 3
        %s153 = smul.addr %s149, 48
        %s154 = sadd.s32 %s152, %s153
        %s155 = smul.addr %s154, 4
        %s156 = scalar_lea.vmem %s0, %s155
        %s157 = smul.u32 8, %s17
      $region28: #{double_conv.5} parent=23 // pred_fallthru
        _
    $region24: #{double_conv.5} parent=5 // pred_fallthru
      _
    %p158 = scmp.le.s32.totalorder 1, %s9
    %p159 = scmp.lt.s32.totalorder %s9, 5
    %p160 = pnand %p158, %p159
    %p161 = pneg %p160
    // Predicated region
    $region29: #{double_conv.5} parent=5 // pred_check
      _
    $region30: #{double_conv.5} parent=5 // pred_check_branch
      %163 = sbr.rel (%p160) target = $region32
    $region31: #{double_conv.5} parent=5 // pred_region
      %s164 = ssub.s32 %s9, 1
      %s165 = smul.u32 8, %s19
      %p166 = scmp.lt.s32.totalorder %s18, 1
      %s167 = scalar_select %p166, %s18, 1
      %p168 = scmp.lt.s32.totalorder %s165, 15
      %s169 = scalar_select %p168, %s165, 15
      %s170 = smul.addr %s169, 3
      %s171 = smul.addr %s167, 48
      %s172 = sadd.s32 %s170, %s171
      %s173 = smul.addr %s172, 4
      %s174 = scalar_lea.vmem %s0, %s173
      %p175 = pneg %p49
      %p176 = pneg %p46
      %p177 = pneg %p70
      %p178 = pneg %p67
      %p179 = pneg %p91
      %p180 = pneg %p88
      %p181 = pneg %p119
      %p182 = pneg %p116
      %s183 = smul.u32 8, %s19
      %p184 = scmp.lt.s32.totalorder %s18, 1
      %s185 = scalar_select %p184, %s18, 1
      %p186 = scmp.lt.s32.totalorder %s183, 15
      %s187 = scalar_select %p186, %s183, 15
      %s188 = smul.addr %s187, 3
      %s189 = smul.addr %s185, 48
      %s190 = sadd.s32 %s188, %s189
      %s191 = smul.addr %s190, 8
      %s192 = scalar_lea.vmem %s3, %s191
      %s193 = smul.u32 8, %s19
      %p194 = scmp.lt.s32.totalorder %s18, 1
      %s195 = scalar_select %p194, %s18, 1
      %p196 = scmp.lt.s32.totalorder %s193, 15
      %s197 = scalar_select %p196, %s193, 15
      %s198 = smul.addr %s197, 3
      %s199 = smul.addr %s195, 48
      %s200 = sadd.s32 %s198, %s199
      %s201 = smul.addr %s200, 4
      %s202 = scalar_lea.vmem %s0, %s201
      %s203 = smul.u32 8, %s19
      %s204 = smul.u32 8, %s19
      %p205 = scmp.lt.s32.totalorder %s18, 1
      %s206 = scalar_select %p205, %s18, 1
      %p207 = scmp.lt.s32.totalorder %s204, 15
      %s208 = scalar_select %p207, %s204, 15
      %s209 = smul.addr %s208, 3
      %s210 = smul.addr %s206, 48
      %s211 = sadd.s32 %s209, %s210
      %s212 = smul.addr %s211, 8
      %s213 = scalar_lea.vmem %s3, %s212
      %s214 = smul.u32 8, %s19
      %v215 = vld [vmem:[%s202] sm:$0xf]
      %v216 = vld [vmem:[%s202 + $0x4] sm:$0xf]
      %v217 = vld [vmem:[%s202 + $0x8] sm:$0xf]
      %v218 = vld [vmem:[%s202 + $0xc] sm:$0xf]
      %v219 = vld [vmem:[%s202 + $0x10] sm:$0xf]
      %v220 = vld [vmem:[%s202 + $0x14] sm:$0xf]
      %v221 = vld [vmem:[%s202 + $0x18] sm:$0xf]
      %v222 = vld [vmem:[%s202 + $0x1c] sm:$0xf]
      %v223 = vld [vmem:[%s202 + $0x20] sm:$0xf]
      %v224 = vld [vmem:[%s202 + $0x24] sm:$0xf]
      %v225 = vld [vmem:[%s202 + $0x28] sm:$0xf]
      %v226 = vld [vmem:[%s202 + $0x2c] sm:$0xf]
      %v227 = vld [vmem:[%s202 + $0x30] sm:$0xf]
      %v228 = vld [vmem:[%s202 + $0x34] sm:$0xf]
      %v229 = vld [vmem:[%s202 + $0x38] sm:$0xf]
      %v230 = vld [vmem:[%s202 + $0x3c] sm:$0xf]
      %v231 = vld [vmem:[%s202 + $0x40] sm:$0xf]
      %v232 = vld [vmem:[%s202 + $0x44] sm:$0xf]
      %v233 = vld [vmem:[%s202 + $0x48] sm:$0xf]
      %v234 = vld [vmem:[%s202 + $0x4c] sm:$0xf]
      %v235 = vld [vmem:[%s202 + $0x50] sm:$0xf]
      %v236 = vld [vmem:[%s202 + $0x54] sm:$0xf]
      %v237 = vld [vmem:[%s202 + $0x58] sm:$0xf]
      %v238 = vld [vmem:[%s202 + $0x5c] sm:$0xf]
      %v239 = vunpack.c.l.bf16 %v215
      %v240 = vunpack.c.l.bf16 %v216
      %v241 = vunpack.c.l.bf16 %v217
      %v242 = vunpack.c.l.bf16 %v218
      %v243 = vunpack.c.l.bf16 %v219
      %v244 = vunpack.c.l.bf16 %v220
      %v245 = vunpack.c.l.bf16 %v221
      %v246 = vunpack.c.l.bf16 %v222
      %v247 = vunpack.c.l.bf16 %v223
      %v248 = vunpack.c.l.bf16 %v224
      %v249 = vunpack.c.l.bf16 %v225
      %v250 = vunpack.c.l.bf16 %v226
      %v251 = vunpack.c.l.bf16 %v227
      %v252 = vunpack.c.l.bf16 %v228
      %v253 = vunpack.c.l.bf16 %v229
      %v254 = vunpack.c.l.bf16 %v230
      %v255 = vunpack.c.l.bf16 %v231
      %v256 = vunpack.c.l.bf16 %v232
      %v257 = vunpack.c.l.bf16 %v233
      %v258 = vunpack.c.l.bf16 %v234
      %v259 = vunpack.c.l.bf16 %v235
      %v260 = vunpack.c.l.bf16 %v236
      %v261 = vunpack.c.l.bf16 %v237
      %v262 = vunpack.c.l.bf16 %v238
      %v263 = vld [vmem:[%s1] sm:$0x1]
      %v265 = vperm.slane %v263, 0
      %v267 = vmul.f32 %v239, %v265
      %v268 = vmul.f32 %v240, %v265
      %v269 = vmul.f32 %v241, %v265
      %v270 = vmul.f32 %v242, %v265
      %v271 = vmul.f32 %v243, %v265
      %v272 = vmul.f32 %v244, %v265
      %v273 = vmul.f32 %v245, %v265
      %v274 = vmul.f32 %v246, %v265
      %v275 = vmul.f32 %v247, %v265
      %v276 = vmul.f32 %v248, %v265
      %v277 = vmul.f32 %v249, %v265
      %v278 = vmul.f32 %v250, %v265
      %v279 = vmul.f32 %v251, %v265
      %v280 = vmul.f32 %v252, %v265
      %v281 = vmul.f32 %v253, %v265
      %v282 = vmul.f32 %v254, %v265
      %v283 = vmul.f32 %v255, %v265
      %v284 = vmul.f32 %v256, %v265
      %v285 = vmul.f32 %v257, %v265
      %v286 = vmul.f32 %v258, %v265
      %v287 = vmul.f32 %v259, %v265
      %v288 = vmul.f32 %v260, %v265
      %v289 = vmul.f32 %v261, %v265
      %v290 = vmul.f32 %v262, %v265
      %v291 = vld [vmem:[%s2] sm:$0x1]
      %v293 = vperm.slane %v291, 0
      %v295 = vadd.f32 %v267, %v293
      %v296 = vadd.f32 %v268, %v293
      %v297 = vadd.f32 %v269, %v293
      %v298 = vadd.f32 %v270, %v293
      %v299 = vadd.f32 %v271, %v293
      %v300 = vadd.f32 %v272, %v293
      %v301 = vadd.f32 %v273, %v293
      %v302 = vadd.f32 %v274, %v293
      %v303 = vadd.f32 %v275, %v293
      %v304 = vadd.f32 %v276, %v293
      %v305 = vadd.f32 %v277, %v293
      %v306 = vadd.f32 %v278, %v293
      %v307 = vadd.f32 %v279, %v293
      %v308 = vadd.f32 %v280, %v293
      %v309 = vadd.f32 %v281, %v293
      %v310 = vadd.f32 %v282, %v293
      %v311 = vadd.f32 %v283, %v293
      %v312 = vadd.f32 %v284, %v293
      %v313 = vadd.f32 %v285, %v293
      %v314 = vadd.f32 %v286, %v293
      %v315 = vadd.f32 %v287, %v293
      %v316 = vadd.f32 %v288, %v293
      %v317 = vadd.f32 %v289, %v293
      %v318 = vadd.f32 %v290, %v293
      %v319 = vmax.f32 %v295, 0.0
      %v320 = vmax.f32 %v296, 0.0
      %v321 = vmax.f32 %v297, 0.0
      %v322 = vmax.f32 %v298, 0.0
      %v323 = vmax.f32 %v299, 0.0
      %v324 = vmax.f32 %v300, 0.0
      %v325 = vmax.f32 %v301, 0.0
      %v326 = vmax.f32 %v302, 0.0
      %v327 = vmax.f32 %v303, 0.0
      %v328 = vmax.f32 %v304, 0.0
      %v329 = vmax.f32 %v305, 0.0
      %v330 = vmax.f32 %v306, 0.0
      %v331 = vmax.f32 %v307, 0.0
      %v332 = vmax.f32 %v308, 0.0
      %v333 = vmax.f32 %v309, 0.0
      %v334 = vmax.f32 %v310, 0.0
      %v335 = vmax.f32 %v311, 0.0
      %v336 = vmax.f32 %v312, 0.0
      %v337 = vmax.f32 %v313, 0.0
      %v338 = vmax.f32 %v314, 0.0
      %v339 = vmax.f32 %v315, 0.0
      %v340 = vmax.f32 %v316, 0.0
      %v341 = vmax.f32 %v317, 0.0
      %v342 = vmax.f32 %v318, 0.0
      %343 = vst [vmem:[%s213] sm:$0xff] %v319
      %344 = vst [vmem:[%s213 + $0x8] sm:$0xff] %v320
      %345 = vst [vmem:[%s213 + $0x10] sm:$0xff] %v321
      %346 = vst [vmem:[%s213 + $0x18] sm:$0xff] %v322
      %347 = vst [vmem:[%s213 + $0x20] sm:$0xff] %v323
      %348 = vst [vmem:[%s213 + $0x28] sm:$0xff] %v324
      %349 = vst [vmem:[%s213 + $0x30] sm:$0xff] %v325
      %350 = vst [vmem:[%s213 + $0x38] sm:$0xff] %v326
      %351 = vst [vmem:[%s213 + $0x40] sm:$0xff] %v327
      %352 = vst [vmem:[%s213 + $0x48] sm:$0xff] %v328
      %353 = vst [vmem:[%s213 + $0x50] sm:$0xff] %v329
      %354 = vst [vmem:[%s213 + $0x58] sm:$0xff] %v330
      %355 = vst [vmem:[%s213 + $0x60] sm:$0xff] %v331
      %356 = vst [vmem:[%s213 + $0x68] sm:$0xff] %v332
      %357 = vst [vmem:[%s213 + $0x70] sm:$0xff] %v333
      %358 = vst [vmem:[%s213 + $0x78] sm:$0xff] %v334
      %359 = vst [vmem:[%s213 + $0x80] sm:$0xff] %v335
      %360 = vst [vmem:[%s213 + $0x88] sm:$0xff] %v336
      %361 = vst [vmem:[%s213 + $0x90] sm:$0xff] %v337
      %362 = vst [vmem:[%s213 + $0x98] sm:$0xff] %v338
      %363 = vst [vmem:[%s213 + $0xa0] sm:$0xff] %v339
      %364 = vst [vmem:[%s213 + $0xa8] sm:$0xff] %v340
      %365 = vst [vmem:[%s213 + $0xb0] sm:$0xff] %v341
      %366 = vst [vmem:[%s213 + $0xb8] sm:$0xff] %v342
      %s367 = smul.u32 8, %s19
      %p368 = scmp.lt.s32.totalorder %s18, 1
      %s369 = scalar_select %p368, %s18, 1
      %p370 = scmp.lt.s32.totalorder %s367, 15
      %s371 = scalar_select %p370, %s367, 15
      %s372 = smul.addr %s371, 3
      %s373 = smul.addr %s369, 48
      %s374 = sadd.s32 %s372, %s373
      %s375 = smul.addr %s374, 8
      %s376 = scalar_lea.vmem %s3, %s375
      // Predicated region
      $region33: #{double_conv.5} parent=31 // pred_check
        %p377 = pneg %p116
      $region34: #{double_conv.5} parent=31 // pred_check_branch
        %379 = sbr.rel (%p377) target = $region36
      $region35: #{double_conv.5} parent=31 // pred_region
        %s380 = smul.u32 8, %s19
      $region36: #{double_conv.5} parent=31 // pred_fallthru
        _
    $region32: #{double_conv.5} parent=5 // pred_fallthru
      _
    %p381 = scmp.le.s32.totalorder 2, %s9
    // Predicated region
    $region37: #{double_conv.5} parent=5 // pred_check
      %p382 = pneg %p381
    $region38: #{double_conv.5} parent=5 // pred_check_branch
      %384 = sbr.rel (%p382) target = $region40
    $region39: #{double_conv.5} parent=5 // pred_region
      %s385 = ssub.s32 %s9, 2
      // Predicated region
      $region41: #{double_conv.5} parent=39 // pred_check
        %p386 = pneg %p122
      $region42: #{double_conv.5} parent=39 // pred_check_branch
        %388 = sbr.rel (%p386) target = $region44
      $region43: #{double_conv.5} parent=39 // pred_region
        %s389 = smul.u32 8, %s21
        %p390 = scmp.lt.s32.totalorder %s20, 1
        %s391 = scalar_select %p390, %s20, 1
        %p392 = scmp.lt.s32.totalorder %s389, 15
        %s393 = scalar_select %p392, %s389, 15
        %s394 = smul.addr %s393, 3
        %s395 = smul.addr %s391, 48
        %s396 = sadd.s32 %s394, %s395
        %s397 = smul.addr %s396, 8
        %s398 = scalar_lea.vmem %s3, %s397
      $region44: #{double_conv.5} parent=39 // pred_fallthru
        _
    $region40: #{double_conv.5} parent=5 // pred_fallthru
      _
  $region6: #{double_conv.5} parent=0 // loop_footer
    %s13 = sadd.s32 1, %s9
  $region7: #{double_conv.5} parent=0 // loop_footer_branch
    %8 = sbr.rel target = $region3
  $region8: #{double_conv.5} parent=0 // loop_exit
    _

// kernel: double_conv.3
$region0: #{double_conv.3}
  #allocation0 [shape = 'u32[]', space=smem, size = 0x4, offset = 0x4, fixed_abs, tag = 'smem constant byte address 0x4 - core index']
  #allocation1 [shape = 'u32[72,128]{1,0:T(1,128)}', space=vmem, size = 0x9000, scoped, tag = 'internal scratch']
  #allocation2 [shape = 'f32[192,128]{1,0:T(8,128)}', space=vmem, size = 0x18000, scoped, tag = 'scratch operand']
  %s0 = inlined_call_operand.vmem [shape: bf16[2,16,24,8], index: 0, kind: input, shape index: {}, may-alias: {0,1,2}]
  %s1 = inlined_call_operand.vmem [shape: bf16[2,16,24,8], index: 1, kind: input, shape index: {}, may-alias: {0,1,2}]
  %s2 = inlined_call_operand.vmem [shape: bf16[2,16,24,8], index: 2, kind: input, shape index: {}, may-alias: {0,1,2}]
  %s3 = inlined_call_operand.vmem [shape: bf16[9,8,128], index: 3, kind: input, shape index: {}]
  %s4 = inlined_call_operand.vmem [shape: bf16[2,16,24,128], index: 4, kind: output, shape index: {0}]
  %s5 = inlined_call_operand.vmem [shape: f32[2,2,2,128], index: 5, kind: output, shape index: {1}]
  %6 = xla_tuple %s4, %s5
  %s7 = sld [smem:[#allocation0]]
  $region57: #{double_conv.3} parent=0
    _
  %s9 = ssub.s32 1, %s7
  %s10 = scalar_select 0, %s9, %s7
  loop: start=0, step=1, limit=6
  $region2: #{double_conv.3} parent=0 // loop_pre_header
    _
  $region3: #{double_conv.3} parent=0 // loop_header
    %s12 = sphi 0, %s16
    %p13 = scmp.ge.s32.totalorder %s12, 6
    %s19 = sphi 0, %s31
    %s20 = sphi 0, %s27
    %s21 = sphi 0, %s19
    %s22 = sphi 0, %s20
    %s23 = sphi 0, %s21
    %s24 = sphi 0, %s22
    %s44 = sphi 0, %s46
    %s47 = sphi 0, %s44
    %s48 = sphi 0, %s47
    %s64 = sphi 0, %s48
    %s72 = sphi 0, %s74
    %s75 = sphi 0, %s72
    %s76 = sphi 0, %s75
    %s92 = sphi 0, %s76
    %s108 = sphi 0, %s110
    %s111 = sphi 0, %s108
    %s112 = sphi 0, %s111
    %s128 = sphi 0, %s112
    %s132 = sphi 0, %s132
    %s134 = sphi 0, %s132
    %s135 = sphi 0, %s134
    %s149 = sphi 0, %s135
    %s157 = sphi 0, %s159
    %s160 = sphi 0, %s157
    %s161 = sphi 0, %s160
    %s177 = sphi 0, %s161
    %s185 = sphi 0, %s187
    %s188 = sphi 0, %s185
    %s189 = sphi 0, %s188
    %s205 = sphi 0, %s189
  $region4: #{double_conv.3} parent=0 // loop_header_branch
    %15 = sbr.rel (%p13) target = $region8
  $region5: #{double_conv.3} parent=0 // loop_body
    %s17 = ssub.s32 %s12, 1
    %s18 = ssub.s32 %s12, 2
    %s25 = sadd.s32 1, %s20
    %p26 = scmp.ge.s32.totalorder %s25, 2
    %s27 = scalar_select %p26, 0, %s25
    %s28 = sadd.s32 1, %s19
    %s29 = scalar_select %p26, %s28, %s19
    %p30 = scmp.ge.s32.totalorder %s29, 2
    %s31 = scalar_select %p30, 0, %s29
    %s32 = smul.u32 %s20, 8
    %s33 = ssub.s32 %s32, 1
    %p34 = scmp.gt.s32.totalorder %s33, 0
    %s35 = scalar_select %p34, %s33, 0
    %s36 = smul.u32 %s27, 8
    %s37 = ssub.s32 %s36, 1
    %p38 = scmp.gt.s32.totalorder %s37, 0
    %s39 = scalar_select %p38, %s37, 0
    %s40 = ssub.s32 %s19, %s31
    %s41 = ssub.s32 %s35, %s39
    %s42 = sor.u32 %s40, %s41
    %p43 = scmp.eq.s32.totalorder %s42, 0
    %s45 = sadd.s32 %s44, 1
    %s46 = scalar_select %p43, %s44, %s45
    %p49 = pneg %p43
    %p50 = scmp.eq.s32.totalorder %s12, 3
    %p51 = por %p49, %p50
    %p52 = scmp.ne.s32.totalorder %s44, %s47
    %p53 = scmp.eq.s32.totalorder %s12, 0
    %p54 = por %p52, %p53
    %p55 = scmp.ne.s32.totalorder %s44, %s47
    %p56 = scmp.eq.s32.totalorder %s17, 3
    %p57 = por %p55, %p56
    %p58 = scmp.ne.s32.totalorder %s47, %s48
    %p59 = scmp.eq.s32.totalorder %s17, 0
    %p60 = por %p58, %p59
    %p61 = scmp.ne.s32.totalorder %s47, %s48
    %p62 = scmp.eq.s32.totalorder %s18, 3
    %p63 = por %p61, %p62
    %p65 = scmp.ne.s32.totalorder %s48, %s64
    %p66 = scmp.eq.s32.totalorder %s18, 0
    %p67 = por %p65, %p66
    %s68 = ssub.s32 %s19, %s31
    %s69 = ssub.s32 %s20, %s27
    %s70 = sor.u32 %s68, %s69
    %p71 = scmp.eq.s32.totalorder %s70, 0
    %s73 = sadd.s32 %s72, 1
    %s74 = scalar_select %p71, %s72, %s73
    %p77 = pneg %p71
    %p78 = scmp.eq.s32.totalorder %s12, 3
    %p79 = por %p77, %p78
    %p80 = scmp.ne.s32.totalorder %s72, %s75
    %p81 = scmp.eq.s32.totalorder %s12, 0
    %p82 = por %p80, %p81
    %p83 = scmp.ne.s32.totalorder %s72, %s75
    %p84 = scmp.eq.s32.totalorder %s17, 3
    %p85 = por %p83, %p84
    %p86 = scmp.ne.s32.totalorder %s75, %s76
    %p87 = scmp.eq.s32.totalorder %s17, 0
    %p88 = por %p86, %p87
    %p89 = scmp.ne.s32.totalorder %s75, %s76
    %p90 = scmp.eq.s32.totalorder %s18, 3
    %p91 = por %p89, %p90
    %p93 = scmp.ne.s32.totalorder %s76, %s92
    %p94 = scmp.eq.s32.totalorder %s18, 0
    %p95 = por %p93, %p94
    %s96 = sadd.s32 %s20, 1
    %s97 = smul.u32 %s96, 8
    %p98 = scmp.lt.s32.totalorder %s97, 15
    %s99 = scalar_select %p98, %s97, 15
    %s100 = sadd.s32 %s27, 1
    %s101 = smul.u32 %s100, 8
    %p102 = scmp.lt.s32.totalorder %s101, 15
    %s103 = scalar_select %p102, %s101, 15
    %s104 = ssub.s32 %s19, %s31
    %s105 = ssub.s32 %s99, %s103
    %s106 = sor.u32 %s104, %s105
    %p107 = scmp.eq.s32.totalorder %s106, 0
    %s109 = sadd.s32 %s108, 1
    %s110 = scalar_select %p107, %s108, %s109
    %p113 = pneg %p107
    %p114 = scmp.eq.s32.totalorder %s12, 3
    %p115 = por %p113, %p114
    %p116 = scmp.ne.s32.totalorder %s108, %s111
    %p117 = scmp.eq.s32.totalorder %s12, 0
    %p118 = por %p116, %p117
    %p119 = scmp.ne.s32.totalorder %s108, %s111
    %p120 = scmp.eq.s32.totalorder %s17, 3
    %p121 = por %p119, %p120
    %p122 = scmp.ne.s32.totalorder %s111, %s112
    %p123 = scmp.eq.s32.totalorder %s17, 0
    %p124 = por %p122, %p123
    %p125 = scmp.ne.s32.totalorder %s111, %s112
    %p126 = scmp.eq.s32.totalorder %s18, 3
    %p127 = por %p125, %p126
    %p129 = scmp.ne.s32.totalorder %s112, %s128
    %p130 = scmp.eq.s32.totalorder %s18, 0
    %p131 = por %p129, %p130
    %s133 = sadd.s32 %s132, 1
    %p136 = scmp.eq.s32.totalorder %s12, 3
    %p137 = scmp.ne.s32.totalorder %s132, %s134
    %p138 = scmp.eq.s32.totalorder %s12, 0
    %p139 = por %p137, %p138
    %p140 = scmp.ne.s32.totalorder %s132, %s134
    %p141 = scmp.eq.s32.totalorder %s17, 3
    %p142 = por %p140, %p141
    %p143 = scmp.ne.s32.totalorder %s134, %s135
    %p144 = scmp.eq.s32.totalorder %s17, 0
    %p145 = por %p143, %p144
    %p146 = scmp.ne.s32.totalorder %s134, %s135
    %p147 = scmp.eq.s32.totalorder %s18, 3
    %p148 = por %p146, %p147
    %p150 = scmp.ne.s32.totalorder %s135, %s149
    %p151 = scmp.eq.s32.totalorder %s18, 0
    %p152 = por %p150, %p151
    %s153 = ssub.s32 %s19, %s31
    %s154 = ssub.s32 %s20, %s27
    %s155 = sor.u32 %s153, %s154
    %p156 = scmp.eq.s32.totalorder %s155, 0
    %s158 = sadd.s32 %s157, 1
    %s159 = scalar_select %p156, %s157, %s158
    %p162 = pneg %p156
    %p163 = scmp.eq.s32.totalorder %s12, 3
    %p164 = por %p162, %p163
    %p165 = scmp.ne.s32.totalorder %s157, %s160
    %p166 = scmp.eq.s32.totalorder %s12, 0
    %p167 = por %p165, %p166
    %p168 = scmp.ne.s32.totalorder %s157, %s160
    %p169 = scmp.eq.s32.totalorder %s17, 3
    %p170 = por %p168, %p169
    %p171 = scmp.ne.s32.totalorder %s160, %s161
    %p172 = scmp.eq.s32.totalorder %s17, 0
    %p173 = por %p171, %p172
    %p174 = scmp.ne.s32.totalorder %s160, %s161
    %p175 = scmp.eq.s32.totalorder %s18, 3
    %p176 = por %p174, %p175
    %p178 = scmp.ne.s32.totalorder %s161, %s177
    %p179 = scmp.eq.s32.totalorder %s18, 0
    %p180 = por %p178, %p179
    %s181 = ssub.s32 %s19, %s31
    %s182 = ssub.s32 %s20, %s27
    %s183 = sor.u32 %s181, %s182
    %p184 = scmp.eq.s32.totalorder %s183, 0
    %s186 = sadd.s32 %s185, 1
    %s187 = scalar_select %p184, %s185, %s186
    %p190 = pneg %p184
    %p191 = scmp.eq.s32.totalorder %s12, 3
    %p192 = por %p190, %p191
    %p193 = scmp.ne.s32.totalorder %s185, %s188
    %p194 = scmp.eq.s32.totalorder %s12, 0
    %p195 = por %p193, %p194
    %p196 = scmp.ne.s32.totalorder %s185, %s188
    %p197 = scmp.eq.s32.totalorder %s17, 3
    %p198 = por %p196, %p197
    %p199 = scmp.ne.s32.totalorder %s188, %s189
    %p200 = scmp.eq.s32.totalorder %s17, 0
    %p201 = por %p199, %p200
    %p202 = scmp.ne.s32.totalorder %s188, %s189
    %p203 = scmp.eq.s32.totalorder %s18, 3
    %p204 = por %p202, %p203
    %p206 = scmp.ne.s32.totalorder %s189, %s205
    %p207 = scmp.eq.s32.totalorder %s18, 0
    %p208 = por %p206, %p207
    %p209 = scmp.le.s32.totalorder 1, %s12
    %p210 = scmp.lt.s32.totalorder %s12, 5
    %p211 = pnand %p209, %p210
    %p212 = pneg %p211
    // Predicated region
    $region9: #{double_conv.3} parent=5 // pred_check
      _
    $region10: #{double_conv.3} parent=5 // pred_check_branch
      %214 = sbr.rel (%p211) target = $region12
    $region11: #{double_conv.3} parent=5 // pred_region
      %s215 = ssub.s32 %s12, 1
      // Predicated region
      $region13: #{double_conv.3} parent=11 // pred_check
        %p216 = pneg %p145
      $region14: #{double_conv.3} parent=11 // pred_check_branch
        %218 = sbr.rel (%p216) target = $region16
      $region15: #{double_conv.3} parent=11 // pred_region
        _
      $region16: #{double_conv.3} parent=11 // pred_fallthru
        _
    $region12: #{double_conv.3} parent=5 // pred_fallthru
      _
    %p219 = scmp.lt.s32.totalorder %s12, 4
    // Predicated region
    $region17: #{double_conv.3} parent=5 // pred_check
      %p220 = pneg %p219
    $region18: #{double_conv.3} parent=5 // pred_check_branch
      %222 = sbr.rel (%p220) target = $region20
    $region19: #{double_conv.3} parent=5 // pred_region
      // Predicated region
      $region21: #{double_conv.3} parent=19 // pred_check
        %p223 = pneg %p54
      $region22: #{double_conv.3} parent=19 // pred_check_branch
        %225 = sbr.rel (%p223) target = $region24
      $region23: #{double_conv.3} parent=19 // pred_region
        %s226 = smul.u32 %s20, 8
        %s227 = ssub.s32 %s226, 1
        %p228 = scmp.gt.s32.totalorder %s227, 0
        %s229 = scalar_select %p228, %s227, 0
        %p230 = scmp.lt.s32.totalorder %s19, 1
        %s231 = scalar_select %p230, %s19, 1
        %p232 = scmp.lt.s32.totalorder %s229, 15
        %s233 = scalar_select %p232, %s229, 15
        %s234 = smul.addr %s233, 3
        %s235 = smul.addr %s231, 48
        %s236 = sadd.s32 %s234, %s235
        %s237 = smul.addr %s236, 4
        %s238 = scalar_lea.vmem %s0, %s237
        %s239 = smul.u32 %s20, 8
        %s240 = ssub.s32 %s239, 1
        %p241 = scmp.gt.s32.totalorder %s240, 0
        %s242 = scalar_select %p241, %s240, 0
      $region24: #{double_conv.3} parent=19 // pred_fallthru
        _
      // Predicated region
      $region25: #{double_conv.3} parent=19 // pred_check
        %p243 = pneg %p82
      $region26: #{double_conv.3} parent=19 // pred_check_branch
        %245 = sbr.rel (%p243) target = $region28
      $region27: #{double_conv.3} parent=19 // pred_region
        %s246 = smul.u32 8, %s20
        %p247 = scmp.lt.s32.totalorder %s19, 1
        %s248 = scalar_select %p247, %s19, 1
        %p249 = scmp.lt.s32.totalorder %s246, 15
        %s250 = scalar_select %p249, %s246, 15
        %s251 = smul.addr %s250, 3
        %s252 = smul.addr %s248, 48
        %s253 = sadd.s32 %s251, %s252
        %s254 = smul.addr %s253, 4
        %s255 = scalar_lea.vmem %s1, %s254
        %s256 = smul.u32 8, %s20
      $region28: #{double_conv.3} parent=19 // pred_fallthru
        _
      // Predicated region
      $region29: #{double_conv.3} parent=19 // pred_check
        %p257 = pneg %p118
      $region30: #{double_conv.3} parent=19 // pred_check_branch
        %259 = sbr.rel (%p257) target = $region32
      $region31: #{double_conv.3} parent=19 // pred_region
        %s260 = sadd.s32 %s20, 1
        %s261 = smul.u32 %s260, 8
        %p262 = scmp.lt.s32.totalorder %s261, 15
        %s263 = scalar_select %p262, %s261, 15
        %p264 = scmp.lt.s32.totalorder %s19, 1
        %s265 = scalar_select %p264, %s19, 1
        %p266 = scmp.lt.s32.totalorder %s263, 15
        %s267 = scalar_select %p266, %s263, 15
        %s268 = smul.addr %s267, 3
        %s269 = smul.addr %s265, 48
        %s270 = sadd.s32 %s268, %s269
        %s271 = smul.addr %s270, 4
        %s272 = scalar_lea.vmem %s2, %s271
        %s273 = sadd.s32 %s20, 1
        %s274 = smul.u32 %s273, 8
        %p275 = scmp.lt.s32.totalorder %s274, 15
        %s276 = scalar_select %p275, %s274, 15
      $region32: #{double_conv.3} parent=19 // pred_fallthru
        _
    $region20: #{double_conv.3} parent=5 // pred_fallthru
      _
    %p277 = scmp.le.s32.totalorder 1, %s12
    %p278 = scmp.lt.s32.totalorder %s12, 5
    %p279 = pnand %p277, %p278
    %p280 = pneg %p279
    // Predicated region
    $region33: #{double_conv.3} parent=5 // pred_check
      _
    $region34: #{double_conv.3} parent=5 // pred_check_branch
      %282 = sbr.rel (%p279) target = $region36
    $region35: #{double_conv.3} parent=5 // pred_region
      %s283 = ssub.s32 %s12, 1
      %s284 = smul.u32 %s22, 8
      %s285 = ssub.s32 %s284, 1
      %p286 = scmp.gt.s32.totalorder %s285, 0
      %s287 = scalar_select %p286, %s285, 0
      %p288 = scmp.lt.s32.totalorder %s21, 1
      %s289 = scalar_select %p288, %s21, 1
      %p290 = scmp.lt.s32.totalorder %s287, 15
      %s291 = scalar_select %p290, %s287, 15
      %s292 = smul.addr %s291, 3
      %s293 = smul.addr %s289, 48
      %s294 = sadd.s32 %s292, %s293
      %s295 = smul.addr %s294, 4
      %s296 = scalar_lea.vmem %s0, %s295
      %p297 = pneg %p60
      %p298 = pneg %p57
      %s299 = smul.u32 8, %s22
      %p300 = scmp.lt.s32.totalorder %s21, 1
      %s301 = scalar_select %p300, %s21, 1
      %p302 = scmp.lt.s32.totalorder %s299, 15
      %s303 = scalar_select %p302, %s299, 15
      %s304 = smul.addr %s303, 3
      %s305 = smul.addr %s301, 48
      %s306 = sadd.s32 %s304, %s305
      %s307 = smul.addr %s306, 4
      %s308 = scalar_lea.vmem %s1, %s307
      %p309 = pneg %p88
      %p310 = pneg %p85
      %s311 = sadd.s32 %s22, 1
      %s312 = smul.u32 %s311, 8
      %p313 = scmp.lt.s32.totalorder %s312, 15
      %s314 = scalar_select %p313, %s312, 15
      %p315 = scmp.lt.s32.totalorder %s21, 1
      %s316 = scalar_select %p315, %s21, 1
      %p317 = scmp.lt.s32.totalorder %s314, 15
      %s318 = scalar_select %p317, %s314, 15
      %s319 = smul.addr %s318, 3
      %s320 = smul.addr %s316, 48
      %s321 = sadd.s32 %s319, %s320
      %s322 = smul.addr %s321, 4
      %s323 = scalar_lea.vmem %s2, %s322
      %p324 = pneg %p124
      %p325 = pneg %p121
      %p326 = pneg %p145
      %p327 = pneg %p142
      %p328 = pneg %p173
      %p329 = pneg %p170
      %s330 = smul.u32 8, %s22
      %p331 = scmp.lt.s32.totalorder %s21, 1
      %s332 = scalar_select %p331, %s21, 1
      %p333 = scmp.lt.s32.totalorder %s330, 15
      %s334 = scalar_select %p333, %s330, 15
      %s335 = smul.addr %s334, 3
      %s336 = smul.addr %s332, 48
      %s337 = sadd.s32 %s335, %s336
      %s338 = smul.addr %s337, 4
      %s339 = scalar_lea.vmem %s4, %s338
      %p340 = pneg %p201
      %p341 = pneg %p198
      %p342 = scmp.lt.s32.totalorder %s21, 1
      %s343 = scalar_select %p342, %s21, 1
      %p344 = scmp.lt.s32.totalorder %s22, 1
      %s345 = scalar_select %p344, %s22, 1
      %s346 = smul.addr %s343, 2
      %s347 = sadd.s32 %s345, %s346
      %s348 = smul.addr %s347, 2
      %s349 = scalar_lea.vmem %s5, %s348
      %s350 = smul.u32 %s22, 8
      %s351 = ssub.s32 %s350, 1
      %p352 = scmp.gt.s32.totalorder %s351, 0
      %s353 = scalar_select %p352, %s351, 0
      %p354 = scmp.lt.s32.totalorder %s21, 1
      %s355 = scalar_select %p354, %s21, 1
      %p356 = scmp.lt.s32.totalorder %s353, 15
      %s357 = scalar_select %p356, %s353, 15
      %s358 = smul.addr %s357, 3
      %s359 = smul.addr %s355, 48
      %s360 = sadd.s32 %s358, %s359
      %s361 = smul.addr %s360, 4
      %s362 = scalar_lea.vmem %s0, %s361
      %s363 = smul.u32 %s22, 8
      %s364 = ssub.s32 %s363, 1
      %p365 = scmp.gt.s32.totalorder %s364, 0
      %s366 = scalar_select %p365, %s364, 0
      %s367 = smul.u32 8, %s22
      %p368 = scmp.lt.s32.totalorder %s21, 1
      %s369 = scalar_select %p368, %s21, 1
      %p370 = scmp.lt.s32.totalorder %s367, 15
      %s371 = scalar_select %p370, %s367, 15
      %s372 = smul.addr %s371, 3
      %s373 = smul.addr %s369, 48
      %s374 = sadd.s32 %s372, %s373
      %s375 = smul.addr %s374, 4
      %s376 = scalar_lea.vmem %s1, %s375
      %s377 = smul.u32 8, %s22
      %s378 = sadd.s32 %s22, 1
      %s379 = smul.u32 %s378, 8
      %p380 = scmp.lt.s32.totalorder %s379, 15
      %s381 = scalar_select %p380, %s379, 15
      %p382 = scmp.lt.s32.totalorder %s21, 1
      %s383 = scalar_select %p382, %s21, 1
      %p384 = scmp.lt.s32.totalorder %s381, 15
      %s385 = scalar_select %p384, %s381, 15
      %s386 = smul.addr %s385, 3
      %s387 = smul.addr %s383, 48
      %s388 = sadd.s32 %s386, %s387
      %s389 = smul.addr %s388, 4
      %s390 = scalar_lea.vmem %s2, %s389
      %s391 = sadd.s32 %s22, 1
      %s392 = smul.u32 %s391, 8
      %p393 = scmp.lt.s32.totalorder %s392, 15
      %s394 = scalar_select %p393, %s392, 15
      %s395 = smul.u32 8, %s22
      %p396 = scmp.lt.s32.totalorder %s21, 1
      %s397 = scalar_select %p396, %s21, 1
      %p398 = scmp.lt.s32.totalorder %s395, 15
      %s399 = scalar_select %p398, %s395, 15
      %s400 = smul.addr %s399, 3
      %s401 = smul.addr %s397, 48
      %s402 = sadd.s32 %s400, %s401
      %s403 = smul.addr %s402, 4
      %s404 = scalar_lea.vmem %s4, %s403
      %s405 = smul.u32 8, %s22
      %p406 = scmp.lt.s32.totalorder %s21, 1
      %s407 = scalar_select %p406, %s21, 1
      %p408 = scmp.lt.s32.totalorder %s22, 1
      %s409 = scalar_select %p408, %s22, 1
      %s410 = smul.addr %s407, 2
      %s411 = sadd.s32 %s409, %s410
      %s412 = smul.addr %s411, 2
      %s413 = scalar_lea.vmem %s5, %s412
      %v415 = vld [vmem:[%s362] sm:$0xf]
      %v416 = vld [vmem:[%s362 + $0x4] sm:$0xf]
      %v417 = vld [vmem:[%s362 + $0x8] sm:$0xf]
      %v418 = vld [vmem:[%s376] sm:$0xf]
      %v419 = vld [vmem:[%s376 + $0x4] sm:$0xf]
      %v420 = vld [vmem:[%s376 + $0x8] sm:$0xf]
      %v421 = vld [vmem:[%s376 + $0xc] sm:$0xf]
      %v422 = vld [vmem:[%s376 + $0x10] sm:$0xf]
      %v423 = vld [vmem:[%s376 + $0x14] sm:$0xf]
      %v424 = vld [vmem:[%s376 + $0x18] sm:$0xf]
      %v425 = vld [vmem:[%s376 + $0x1c] sm:$0xf]
      %v426 = vld [vmem:[%s376 + $0x20] sm:$0xf]
      %v427 = vld [vmem:[%s376 + $0x24] sm:$0xf]
      %v428 = vld [vmem:[%s376 + $0x28] sm:$0xf]
      %v429 = vld [vmem:[%s376 + $0x2c] sm:$0xf]
      %v430 = vld [vmem:[%s376 + $0x30] sm:$0xf]
      %v431 = vld [vmem:[%s376 + $0x34] sm:$0xf]
      %v432 = vld [vmem:[%s376 + $0x38] sm:$0xf]
      %v433 = vld [vmem:[%s376 + $0x3c] sm:$0xf]
      %v434 = vld [vmem:[%s376 + $0x40] sm:$0xf]
      %v435 = vld [vmem:[%s376 + $0x44] sm:$0xf]
      %v436 = vld [vmem:[%s376 + $0x48] sm:$0xf]
      %v437 = vld [vmem:[%s376 + $0x4c] sm:$0xf]
      %v438 = vld [vmem:[%s376 + $0x50] sm:$0xf]
      %v439 = vld [vmem:[%s376 + $0x54] sm:$0xf]
      %v440 = vld [vmem:[%s376 + $0x58] sm:$0xf]
      %v441 = vld [vmem:[%s376 + $0x5c] sm:$0xf]
      %v442 = vld [vmem:[%s390] sm:$0xf]
      %v443 = vld [vmem:[%s390 + $0x4] sm:$0xf]
      %v444 = vld [vmem:[%s390 + $0x8] sm:$0xf]
      %v445 = vlaneseq
      %v446 = vshrl.u32 %v445, 7
      %v447 = vadd.s32 %v446, 8
      %v448 = vadd.s32 %v446, 16
      %vm449 = vcmp.ge.s32.totalorder %v446, 1
      %vm450 = vcmp.ge.s32.totalorder %v447, 1
      %vm451 = vcmp.ge.s32.totalorder %v448, 1
      %vm452 = vcmp.le.s32.totalorder %v446, 16
      %vm453 = vcmp.le.s32.totalorder %v447, 16
      %vm454 = vcmp.le.s32.totalorder %v448, 16
      %vm455 = vmand %vm449, %vm452
      %vm456 = vmand %vm450, %vm453
      %vm457 = vmand %vm451, %vm454
      %p458 = scmp.gt.s32.totalorder %s22, 0
      %s459 = scalar_select %p458, 1, 0
      %v460 = vstv %s459
      %vm461 = vcmp.eq.s32.totalorder %v460, 1
      %vm462 = vmand %vm455, %vm461
      %vm463 = vmand %vm456, %vm461
      %vm464 = vmand %vm457, %vm461
      %vm465 = vmand %vm455, 1
      %vm466 = vmand %vm456, 1
      %vm467 = vmand %vm457, 1
      %p468 = scmp.lt.s32.totalorder %s22, 1
      %s469 = scalar_select %p468, 1, 0
      %v470 = vstv %s469
      %vm471 = vcmp.eq.s32.totalorder %v470, 1
      %vm472 = vmand %vm462, 1
      %vm473 = vmand %vm463, 1
      %vm474 = vmand %vm464, 1
      %vm475 = vmand %vm465, %vm471
      %vm476 = vmand %vm466, %vm471
      %vm477 = vmand %vm467, %vm471
      %vm478 = vmpackc.low %vm472, %vm472
      %vm479 = vmpackc.low %vm473, %vm473
      %vm480 = vmpackc.low %vm474, %vm474
      %vm481 = vmpackc.low %vm465, %vm465
      %vm482 = vmpackc.low %vm466, %vm466
      %vm483 = vmpackc.low %vm467, %vm467
      %vm484 = vmpackc.low %vm475, %vm475
      %vm485 = vmpackc.low %vm476, %vm476
      %vm486 = vmpackc.low %vm477, %vm477
      %v487 = vsel %vm478, %v415, 0
      %v488 = vsel %vm479, %v416, 0
      %v489 = vsel %vm480, %v417, 0
      %v490 = vsel %vm481, %v418, 0
      %v491 = vsel %vm482, %v419, 0
      %v492 = vsel %vm483, %v420, 0
      %v493 = vsel %vm481, %v421, 0
      %v494 = vsel %vm482, %v422, 0
      %v495 = vsel %vm483, %v423, 0
      %v496 = vsel %vm481, %v424, 0
      %v497 = vsel %vm482, %v425, 0
      %v498 = vsel %vm483, %v426, 0
      %v499 = vsel %vm481, %v427, 0
      %v500 = vsel %vm482, %v428, 0
      %v501 = vsel %vm483, %v429, 0
      %v502 = vsel %vm481, %v430, 0
      %v503 = vsel %vm482, %v431, 0
      %v504 = vsel %vm483, %v432, 0
      %v505 = vsel %vm481, %v433, 0
      %v506 = vsel %vm482, %v434, 0
      %v507 = vsel %vm483, %v435, 0
      %v508 = vsel %vm481, %v436, 0
      %v509 = vsel %vm482, %v437, 0
      %v510 = vsel %vm483, %v438, 0
      %v511 = vsel %vm481, %v439, 0
      %v512 = vsel %vm482, %v440, 0
      %v513 = vsel %vm483, %v441, 0
      %v514 = vsel %vm484, %v442, 0
      %v515 = vsel %vm485, %v443, 0
      %v516 = vsel %vm486, %v444, 0
      %v547 = vunpack.c.l.b16 %v487
      %v548 = vunpack.c.l.b16 %v488
      %v549 = vunpack.c.l.b16 %v489
      %v550 = vunpack.c.l.b16 %v490
      %v551 = vunpack.c.l.b16 %v491
      %v552 = vunpack.c.l.b16 %v492
      %v553 = vunpack.c.l.b16 %v493
      %v554 = vunpack.c.l.b16 %v494
      %v555 = vunpack.c.l.b16 %v495
      %v556 = vunpack.c.l.b16 %v496
      %v557 = vunpack.c.l.b16 %v497
      %v558 = vunpack.c.l.b16 %v498
      %v559 = vunpack.c.l.b16 %v499
      %v560 = vunpack.c.l.b16 %v500
      %v561 = vunpack.c.l.b16 %v501
      %v562 = vunpack.c.l.b16 %v502
      %v563 = vunpack.c.l.b16 %v503
      %v564 = vunpack.c.l.b16 %v504
      %v565 = vunpack.c.l.b16 %v505
      %v566 = vunpack.c.l.b16 %v506
      %v567 = vunpack.c.l.b16 %v507
      %v568 = vunpack.c.l.b16 %v508
      %v569 = vunpack.c.l.b16 %v509
      %v570 = vunpack.c.l.b16 %v510
      %v571 = vunpack.c.l.b16 %v511
      %v572 = vunpack.c.l.b16 %v512
      %v573 = vunpack.c.l.b16 %v513
      %v574 = vunpack.c.l.b16 %v514
      %v575 = vunpack.c.l.b16 %v515
      %v576 = vunpack.c.l.b16 %v516
      %v577 = vpack.c.b16 %v548, %v547
      %v578 = vpack.c.b16 %v550, %v549
      %v579 = vpack.c.b16 %v552, %v551
      %v580 = vpack.c.b16 %v554, %v553
      %v581 = vpack.c.b16 %v556, %v555
      %v582 = vpack.c.b16 %v558, %v557
      %v583 = vpack.c.b16 %v560, %v559
      %v584 = vpack.c.b16 %v562, %v561
      %v585 = vpack.c.b16 %v564, %v563
      %v586 = vpack.c.b16 %v566, %v565
      %v587 = vpack.c.b16 %v568, %v567
      %v588 = vpack.c.b16 %v570, %v569
      %v589 = vpack.c.b16 %v572, %v571
      %v590 = vpack.c.b16 %v574, %v573
      %v591 = vpack.c.b16 %v576, %v575
      %vm592 = vsmask.f32 256
      %v594 = vshrl.u32 %v577, 16
      %v596 = vrot.slane %v594, 7
      %v597 = vshll.u32 %v577, 16
      %v599 = vor.u32 %v596, %v597
      %v601 = vshrl.u32 %v578, 16
      %v603 = vrot.slane %v601, 7
      %v604 = vshll.u32 %v578, 16
      %v606 = vor.u32 %v603, %v604
      %v607 = vsel %vm592, %v596, %v606
      %v609 = vshrl.u32 %v579, 16
      %v611 = vrot.slane %v609, 7
      %v612 = vshll.u32 %v579, 16
      %v614 = vor.u32 %v611, %v612
      %v615 = vsel %vm592, %v603, %v614
      %v617 = vshrl.u32 %v580, 16
      %v619 = vrot.slane %v617, 7
      %v620 = vshll.u32 %v580, 16
      %v622 = vor.u32 %v619, %v620
      %v623 = vsel %vm592, %v611, %v622
      %v625 = vshrl.u32 %v581, 16
      %v627 = vrot.slane %v625, 7
      %v628 = vshll.u32 %v581, 16
      %v630 = vor.u32 %v627, %v628
      %v631 = vsel %vm592, %v619, %v630
      %v633 = vshrl.u32 %v582, 16
      %v635 = vrot.slane %v633, 7
      %v636 = vshll.u32 %v582, 16
      %v638 = vor.u32 %v635, %v636
      %v639 = vsel %vm592, %v627, %v638
      %v641 = vshrl.u32 %v583, 16
      %v643 = vrot.slane %v641, 7
      %v644 = vshll.u32 %v583, 16
      %v646 = vor.u32 %v643, %v644
      %v647 = vsel %vm592, %v635, %v646
      %v649 = vshrl.u32 %v584, 16
      %v651 = vrot.slane %v649, 7
      %v652 = vshll.u32 %v584, 16
      %v654 = vor.u32 %v651, %v652
      %v655 = vsel %vm592, %v643, %v654
      %v657 = vshrl.u32 %v585, 16
      %v659 = vrot.slane %v657, 7
      %v660 = vshll.u32 %v585, 16
      %v662 = vor.u32 %v659, %v660
      %v663 = vsel %vm592, %v651, %v662
      %v665 = vshrl.u32 %v586, 16
      %v667 = vrot.slane %v665, 7
      %v668 = vshll.u32 %v586, 16
      %v670 = vor.u32 %v667, %v668
      %v671 = vsel %vm592, %v659, %v670
      %v673 = vshrl.u32 %v587, 16
      %v675 = vrot.slane %v673, 7
      %v676 = vshll.u32 %v587, 16
      %v678 = vor.u32 %v675, %v676
      %v679 = vsel %vm592, %v667, %v678
      %v681 = vshrl.u32 %v588, 16
      %v683 = vrot.slane %v681, 7
      %v684 = vshll.u32 %v588, 16
      %v686 = vor.u32 %v683, %v684
      %v687 = vsel %vm592, %v675, %v686
      %v689 = vshrl.u32 %v589, 16
      %v691 = vrot.slane %v689, 7
      %v692 = vshll.u32 %v589, 16
      %v694 = vor.u32 %v691, %v692
      %v695 = vsel %vm592, %v683, %v694
      %v697 = vshrl.u32 %v590, 16
      %v699 = vrot.slane %v697, 7
      %v700 = vshll.u32 %v590, 16
      %v702 = vor.u32 %v699, %v700
      %v703 = vsel %vm592, %v691, %v702
      %v705 = vshrl.u32 %v591, 16
      %v707 = vrot.slane %v705, 7
      %v708 = vshll.u32 %v591, 16
      %v710 = vor.u32 %v707, %v708
      %v711 = vsel %vm592, %v699, %v710
      %vm713 = vcmask 1040384
      %vm714 = vmand %vm713, %vm592
      %v715 = vsel %vm714, 0, %v599
      %vm716 = vsmask.f32 7424
      %v717 = vrot.slane %v597, 1
      %v718 = vor.u32 %v594, %v717
      %v719 = vrot.slane %v604, 1
      %v720 = vsel %vm716, %v718, %v719
      %v721 = vor.u32 %v601, %v719
      %v722 = vrot.slane %v612, 1
      %v723 = vsel %vm716, %v721, %v722
      %v724 = vor.u32 %v609, %v722
      %v725 = vrot.slane %v620, 1
      %v726 = vsel %vm716, %v724, %v725
      %v727 = vor.u32 %v617, %v725
      %v728 = vrot.slane %v628, 1
      %v729 = vsel %vm716, %v727, %v728
      %v730 = vor.u32 %v625, %v728
      %v731 = vrot.slane %v636, 1
      %v732 = vsel %vm716, %v730, %v731
      %v733 = vor.u32 %v633, %v731
      %v734 = vrot.slane %v644, 1
      %v735 = vsel %vm716, %v733, %v734
      %v736 = vor.u32 %v641, %v734
      %v737 = vrot.slane %v652, 1
      %v738 = vsel %vm716, %v736, %v737
      %v739 = vor.u32 %v649, %v737
      %v740 = vrot.slane %v660, 1
      %v741 = vsel %vm716, %v739, %v740
      %v742 = vor.u32 %v657, %v740
      %v743 = vrot.slane %v668, 1
      %v744 = vsel %vm716, %v742, %v743
      %v745 = vor.u32 %v665, %v743
      %v746 = vrot.slane %v676, 1
      %v747 = vsel %vm716, %v745, %v746
      %v748 = vor.u32 %v673, %v746
      %v749 = vrot.slane %v684, 1
      %v750 = vsel %vm716, %v748, %v749
      %v751 = vor.u32 %v681, %v749
      %v752 = vrot.slane %v692, 1
      %v753 = vsel %vm716, %v751, %v752
      %v754 = vor.u32 %v689, %v752
      %v755 = vrot.slane %v700, 1
      %v756 = vsel %vm716, %v754, %v755
      %v757 = vor.u32 %v697, %v755
      %v758 = vrot.slane %v708, 1
      %v759 = vsel %vm716, %v757, %v758
      %v760 = vor.u32 %v705, %v758
      %vm762 = vcmask 1047552
      %vm763 = vmand %vm762, %vm716
      %v764 = vsel %vm763, %v760, 0
      %v765 = vld [vmem:[%s3] sm:$0xf]
      %vm766 = vcmask 64512
      %v768 = vsel %vm766, %v715, 0
      %v771 = vsel %vm766, %v607, 0
      %v774 = vsel %vm766, %v615, 0
      %v777 = vsel %vm766, %v623, 0
      %v780 = vsel %vm766, %v631, 0
      %v783 = vsel %vm766, %v639, 0
      %v786 = vsel %vm766, %v647, 0
      %v789 = vsel %vm766, %v655, 0
      %v792 = vsel %vm766, %v663, 0
      %v795 = vsel %vm766, %v671, 0
      %v798 = vsel %vm766, %v679, 0
      %v801 = vsel %vm766, %v687, 0
      %vm803 = vcmask 1043456
      %v805 = vsel %vm803, %v765, 0
      %807 = vmatpush.bf16.msra.mxu0 0
      %808 = vmatpush.bf16.msra.mxu0 0
      %809 = vmatpush.bf16.msra.mxu0 0
      %810 = vmatpush.bf16.msra.mxu0 0
      %811 = vmatpush.bf16.msra.mxu0 0
      %812 = vmatpush.bf16.msra.mxu0 0
      %813 = vmatpush.bf16.msra.mxu0 0
      %814 = vmatpush.bf16.msra.mxu0 %v805
      %815 = vmatmul.bf16.gmra.mxu0 %v768
      %v816 = vpop.f32.mrf.mxu0
      %v817 = vadd.f32 0.0, %v816
      %v818 = vpop.f32.mrf.mxu0
      %v819 = vadd.f32 0.0, %v818
      %820 = vmatmul.bf16.gmra.mxu0 %v771
      %v821 = vpop.f32.mrf.mxu0
      %v822 = vadd.f32 0.0, %v821
      %v823 = vpop.f32.mrf.mxu0
      %v824 = vadd.f32 0.0, %v823
      %825 = vmatmul.bf16.gmra.mxu0 %v774
      %v826 = vpop.f32.mrf.mxu0
      %v827 = vadd.f32 0.0, %v826
      %v828 = vpop.f32.mrf.mxu0
      %v829 = vadd.f32 0.0, %v828
      %830 = vmatmul.bf16.gmra.mxu0 %v777
      %v831 = vpop.f32.mrf.mxu0
      %v832 = vadd.f32 0.0, %v831
      %v833 = vpop.f32.mrf.mxu0
      %v834 = vadd.f32 0.0, %v833
      %835 = vmatmul.bf16.gmra.mxu0 %v780
      %v836 = vpop.f32.mrf.mxu0
      %v837 = vadd.f32 0.0, %v836
      %v838 = vpop.f32.mrf.mxu0
      %v839 = vadd.f32 0.0, %v838
      %840 = vmatmul.bf16.gmra.mxu0 %v783
      %v841 = vpop.f32.mrf.mxu0
      %v842 = vadd.f32 0.0, %v841
      %v843 = vpop.f32.mrf.mxu0
      %v844 = vadd.f32 0.0, %v843
      %845 = vmatmul.bf16.gmra.mxu0 %v786
      %v846 = vpop.f32.mrf.mxu0
      %v847 = vadd.f32 0.0, %v846
      %v848 = vpop.f32.mrf.mxu0
      %v849 = vadd.f32 0.0, %v848
      %850 = vmatmul.bf16.gmra.mxu0 %v789
      %v851 = vpop.f32.mrf.mxu0
      %v852 = vadd.f32 0.0, %v851
      %v853 = vpop.f32.mrf.mxu0
      %v854 = vadd.f32 0.0, %v853
      %855 = vmatmul.bf16.gmra.mxu0 %v792
      %v856 = vpop.f32.mrf.mxu0
      %v857 = vadd.f32 0.0, %v856
      %v858 = vpop.f32.mrf.mxu0
      %v859 = vadd.f32 0.0, %v858
      %860 = vmatmul.bf16.gmra.mxu0 %v795
      %v861 = vpop.f32.mrf.mxu0
      %v862 = vadd.f32 0.0, %v861
      %v863 = vpop.f32.mrf.mxu0
      %v864 = vadd.f32 0.0, %v863
      %865 = vmatmul.bf16.gmra.mxu0 %v798
      %v866 = vpop.f32.mrf.mxu0
      %v867 = vadd.f32 0.0, %v866
      %v868 = vpop.f32.mrf.mxu0
      %v869 = vadd.f32 0.0, %v868
      %870 = vmatmul.bf16.gmra.mxu0 %v801
      %v871 = vpop.f32.mrf.mxu0
      %v872 = vadd.f32 0.0, %v871
      %v873 = vpop.f32.mrf.mxu0
      %v874 = vadd.f32 0.0, %v873
      %875 = vdwg.mxu0
      %876 = vst [vmem:[#allocation2] sm:$0xff] %v817
      %877 = vst [vmem:[#allocation2 + $0x8] sm:$0xff] %v819
      %878 = vst [vmem:[#allocation2 + $0x10] sm:$0xff] %v822
      %879 = vst [vmem:[#allocation2 + $0x18] sm:$0xff] %v824
      %880 = vst [vmem:[#allocation2 + $0x20] sm:$0xff] %v827
      %881 = vst [vmem:[#allocation2 + $0x28] sm:$0xff] %v829
      %882 = vst [vmem:[#allocation2 + $0x30] sm:$0xff] %v832
      %883 = vst [vmem:[#allocation2 + $0x38] sm:$0xff] %v834
      %884 = vst [vmem:[#allocation2 + $0x40] sm:$0xff] %v837
      %885 = vst [vmem:[#allocation2 + $0x48] sm:$0xff] %v839
      %886 = vst [vmem:[#allocation2 + $0x50] sm:$0xff] %v842
      %887 = vst [vmem:[#allocation2 + $0x58] sm:$0xff] %v844
      %888 = vst [vmem:[#allocation2 + $0x60] sm:$0xff] %v847
      %889 = vst [vmem:[#allocation2 + $0x68] sm:$0xff] %v849
      %890 = vst [vmem:[#allocation2 + $0x70] sm:$0xff] %v852
      %891 = vst [vmem:[#allocation2 + $0x78] sm:$0xff] %v854
      %892 = vst [vmem:[#allocation2 + $0x80] sm:$0xff] %v857
      %893 = vst [vmem:[#allocation2 + $0x88] sm:$0xff] %v859
      %894 = vst [vmem:[#allocation2 + $0x90] sm:$0xff] %v862
      %895 = vst [vmem:[#allocation2 + $0x98] sm:$0xff] %v864
      %896 = vst [vmem:[#allocation2 + $0xa0] sm:$0xff] %v867
      %897 = vst [vmem:[#allocation2 + $0xa8] sm:$0xff] %v869
      %898 = vst [vmem:[#allocation2 + $0xb0] sm:$0xff] %v872
      %899 = vst [vmem:[#allocation2 + $0xb8] sm:$0xff] %v874
      %s900 = scalar_lea.vmem %s3, 4
      %v901 = vld [vmem:[%s900] sm:$0xf]
      %v902 = vsel %vm766, %v577, 0
      %v904 = vsel %vm766, %v578, 0
      %v906 = vsel %vm766, %v579, 0
      %v908 = vsel %vm766, %v580, 0
      %v910 = vsel %vm766, %v581, 0
      %v912 = vsel %vm766, %v582, 0
      %v914 = vsel %vm766, %v583, 0
      %v916 = vsel %vm766, %v584, 0
      %v918 = vsel %vm766, %v585, 0
      %v920 = vsel %vm766, %v586, 0
      %v922 = vsel %vm766, %v587, 0
      %v924 = vsel %vm766, %v588, 0
      %v927 = vsel %vm803, %v901, 0
      %929 = vmatpush.bf16.msra.mxu0 0
      %930 = vmatpush.bf16.msra.mxu0 0
      %931 = vmatpush.bf16.msra.mxu0 0
      %932 = vmatpush.bf16.msra.mxu0 0
      %933 = vmatpush.bf16.msra.mxu0 0
      %934 = vmatpush.bf16.msra.mxu0 0
      %935 = vmatpush.bf16.msra.mxu0 0
      %936 = vmatpush.bf16.msra.mxu0 %v927
      %937 = vmatmul.bf16.gmra.mxu0 %v902
      %v938 = vpop.f32.mrf.mxu0
      %v939 = vadd.f32 0.0, %v938
      %v940 = vpop.f32.mrf.mxu0
      %v941 = vadd.f32 0.0, %v940
      %942 = vmatmul.bf16.gmra.mxu0 %v904
      %v943 = vpop.f32.mrf.mxu0
      %v944 = vadd.f32 0.0, %v943
      %v945 = vpop.f32.mrf.mxu0
      %v946 = vadd.f32 0.0, %v945
      %947 = vmatmul.bf16.gmra.mxu0 %v906
      %v948 = vpop.f32.mrf.mxu0
      %v949 = vadd.f32 0.0, %v948
      %v950 = vpop.f32.mrf.mxu0
      %v951 = vadd.f32 0.0, %v950
      %952 = vmatmul.bf16.gmra.mxu0 %v908
      %v953 = vpop.f32.mrf.mxu0
      %v954 = vadd.f32 0.0, %v953
      %v955 = vpop.f32.mrf.mxu0
      %v956 = vadd.f32 0.0, %v955
      %957 = vmatmul.bf16.gmra.mxu0 %v910
      %v958 = vpop.f32.mrf.mxu0
      %v959 = vadd.f32 0.0, %v958
      %v960 = vpop.f32.mrf.mxu0
      %v961 = vadd.f32 0.0, %v960
      %962 = vmatmul.bf16.gmra.mxu0 %v912
      %v963 = vpop.f32.mrf.mxu0
      %v964 = vadd.f32 0.0, %v963
      %v965 = vpop.f32.mrf.mxu0
      %v966 = vadd.f32 0.0, %v965
      %967 = vmatmul.bf16.gmra.mxu0 %v914
      %v968 = vpop.f32.mrf.mxu0
      %v969 = vadd.f32 0.0, %v968
      %v970 = vpop.f32.mrf.mxu0
      %v971 = vadd.f32 0.0, %v970
      %972 = vmatmul.bf16.gmra.mxu0 %v916
      %v973 = vpop.f32.mrf.mxu0
      %v974 = vadd.f32 0.0, %v973
      %v975 = vpop.f32.mrf.mxu0
      %v976 = vadd.f32 0.0, %v975
      %977 = vmatmul.bf16.gmra.mxu0 %v918
      %v978 = vpop.f32.mrf.mxu0
      %v979 = vadd.f32 0.0, %v978
      %v980 = vpop.f32.mrf.mxu0
      %v981 = vadd.f32 0.0, %v980
      %982 = vmatmul.bf16.gmra.mxu0 %v920
      %v983 = vpop.f32.mrf.mxu0
      %v984 = vadd.f32 0.0, %v983
      %v985 = vpop.f32.mrf.mxu0
      %v986 = vadd.f32 0.0, %v985
      %987 = vmatmul.bf16.gmra.mxu0 %v922
      %v988 = vpop.f32.mrf.mxu0
      %v989 = vadd.f32 0.0, %v988
      %v990 = vpop.f32.mrf.mxu0
      %v991 = vadd.f32 0.0, %v990
      %992 = vmatmul.bf16.gmra.mxu0 %v924
      %v993 = vpop.f32.mrf.mxu0
      %v994 = vadd.f32 0.0, %v993
      %v995 = vpop.f32.mrf.mxu0
      %v996 = vadd.f32 0.0, %v995
      %997 = vdwg.mxu0
      %v998 = vld [vmem:[#allocation2] sm:$0xff]
      %v999 = vld [vmem:[#allocation2 + $0x8] sm:$0xff]
      %v1000 = vld [vmem:[#allocation2 + $0x10] sm:$0xff]
      %v1001 = vld [vmem:[#allocation2 + $0x18] sm:$0xff]
      %v1002 = vld [vmem:[#allocation2 + $0x20] sm:$0xff]
      %v1003 = vld [vmem:[#allocation2 + $0x28] sm:$0xff]
      %v1004 = vld [vmem:[#allocation2 + $0x30] sm:$0xff]
      %v1005 = vld [vmem:[#allocation2 + $0x38] sm:$0xff]
      %v1006 = vld [vmem:[#allocation2 + $0x40] sm:$0xff]
      %v1007 = vld [vmem:[#allocation2 + $0x48] sm:$0xff]
      %v1008 = vld [vmem:[#allocation2 + $0x50] sm:$0xff]
      %v1009 = vld [vmem:[#allocation2 + $0x58] sm:$0xff]
      %v1010 = vld [vmem:[#allocation2 + $0x60] sm:$0xff]
      %v1011 = vld [vmem:[#allocation2 + $0x68] sm:$0xff]
      %v1012 = vld [vmem:[#allocation2 + $0x70] sm:$0xff]
      %v1013 = vld [vmem:[#allocation2 + $0x78] sm:$0xff]
      %v1014 = vld [vmem:[#allocation2 + $0x80] sm:$0xff]
      %v1015 = vld [vmem:[#allocation2 + $0x88] sm:$0xff]
      %v1016 = vld [vmem:[#allocation2 + $0x90] sm:$0xff]
      %v1017 = vld [vmem:[#allocation2 + $0x98] sm:$0xff]
      %v1018 = vld [vmem:[#allocation2 + $0xa0] sm:$0xff]
      %v1019 = vld [vmem:[#allocation2 + $0xa8] sm:$0xff]
      %v1020 = vld [vmem:[#allocation2 + $0xb0] sm:$0xff]
      %v1021 = vld [vmem:[#allocation2 + $0xb8] sm:$0xff]
      %v1022 = vadd.f32 %v998, %v939
      %v1023 = vadd.f32 %v999, %v941
      %v1024 = vadd.f32 %v1000, %v944
      %v1025 = vadd.f32 %v1001, %v946
      %v1026 = vadd.f32 %v1002, %v949
      %v1027 = vadd.f32 %v1003, %v951
      %v1028 = vadd.f32 %v1004, %v954
      %v1029 = vadd.f32 %v1005, %v956
      %v1030 = vadd.f32 %v1006, %v959
      %v1031 = vadd.f32 %v1007, %v961
      %v1032 = vadd.f32 %v1008, %v964
      %v1033 = vadd.f32 %v1009, %v966
      %v1034 = vadd.f32 %v1010, %v969
      %v1035 = vadd.f32 %v1011, %v971
      %v1036 = vadd.f32 %v1012, %v974
      %v1037 = vadd.f32 %v1013, %v976
      %v1038 = vadd.f32 %v1014, %v979
      %v1039 = vadd.f32 %v1015, %v981
      %v1040 = vadd.f32 %v1016, %v984
      %v1041 = vadd.f32 %v1017, %v986
      %v1042 = vadd.f32 %v1018, %v989
      %v1043 = vadd.f32 %v1019, %v991
      %v1044 = vadd.f32 %v1020, %v994
      %v1045 = vadd.f32 %v1021, %v996
      %1046 = vst [vmem:[#allocation2] sm:$0xff] %v1022
      %1047 = vst [vmem:[#allocation2 + $0x8] sm:$0xff] %v1023
      %1048 = vst [vmem:[#allocation2 + $0x10] sm:$0xff] %v1024
      %1049 = vst [vmem:[#allocation2 + $0x18] sm:$0xff] %v1025
      %1050 = vst [vmem:[#allocation2 + $0x20] sm:$0xff] %v1026
      %1051 = vst [vmem:[#allocation2 + $0x28] sm:$0xff] %v1027
      %1052 = vst [vmem:[#allocation2 + $0x30] sm:$0xff] %v1028
      %1053 = vst [vmem:[#allocation2 + $0x38] sm:$0xff] %v1029
      %1054 = vst [vmem:[#allocation2 + $0x40] sm:$0xff] %v1030
      %1055 = vst [vmem:[#allocation2 + $0x48] sm:$0xff] %v1031
      %1056 = vst [vmem:[#allocation2 + $0x50] sm:$0xff] %v1032
      %1057 = vst [vmem:[#allocation2 + $0x58] sm:$0xff] %v1033
      %1058 = vst [vmem:[#allocation2 + $0x60] sm:$0xff] %v1034
      %1059 = vst [vmem:[#allocation2 + $0x68] sm:$0xff] %v1035
      %1060 = vst [vmem:[#allocation2 + $0x70] sm:$0xff] %v1036
      %1061 = vst [vmem:[#allocation2 + $0x78] sm:$0xff] %v1037
      %1062 = vst [vmem:[#allocation2 + $0x80] sm:$0xff] %v1038
      %1063 = vst [vmem:[#allocation2 + $0x88] sm:$0xff] %v1039
      %1064 = vst [vmem:[#allocation2 + $0x90] sm:$0xff] %v1040
      %1065 = vst [vmem:[#allocation2 + $0x98] sm:$0xff] %v1041
      %1066 = vst [vmem:[#allocation2 + $0xa0] sm:$0xff] %v1042
      %1067 = vst [vmem:[#allocation2 + $0xa8] sm:$0xff] %v1043
      %1068 = vst [vmem:[#allocation2 + $0xb0] sm:$0xff] %v1044
      %1069 = vst [vmem:[#allocation2 + $0xb8] sm:$0xff] %v1045
      %s1070 = scalar_lea.vmem %s3, 8
      %v1071 = vld [vmem:[%s1070] sm:$0xf]
      %v1073 = vsel %vm766, %v720, 0
      %v1076 = vsel %vm766, %v723, 0
      %v1079 = vsel %vm766, %v726, 0
      %v1082 = vsel %vm766, %v729, 0
      %v1085 = vsel %vm766, %v732, 0
      %v1088 = vsel %vm766, %v735, 0
      %v1091 = vsel %vm766, %v738, 0
      %v1094 = vsel %vm766, %v741, 0
      %v1097 = vsel %vm766, %v744, 0
      %v1100 = vsel %vm766, %v747, 0
      %v1103 = vsel %vm766, %v750, 0
      %v1106 = vsel %vm766, %v753, 0
      %v1109 = vsel %vm803, %v1071, 0
      %1111 = vmatpush.bf16.msra.mxu0 0
      %1112 = vmatpush.bf16.msra.mxu0 0
      %1113 = vmatpush.bf16.msra.mxu0 0
      %1114 = vmatpush.bf16.msra.mxu0 0
      %1115 = vmatpush.bf16.msra.mxu0 0
      %1116 = vmatpush.bf16.msra.mxu0 0
      %1117 = vmatpush.bf16.msra.mxu0 0
      %1118 = vmatpush.bf16.msra.mxu0 %v1109
      %1119 = vmatmul.bf16.gmra.mxu0 %v1073
      %v1120 = vpop.f32.mrf.mxu0
      %v1121 = vadd.f32 0.0, %v1120
      %v1122 = vpop.f32.mrf.mxu0
      %v1123 = vadd.f32 0.0, %v1122
      %1124 = vmatmul.bf16.gmra.mxu0 %v1076
      %v1125 = vpop.f32.mrf.mxu0
      %v1126 = vadd.f32 0.0, %v1125
      %v1127 = vpop.f32.mrf.mxu0
      %v1128 = vadd.f32 0.0, %v1127
      %1129 = vmatmul.bf16.gmra.mxu0 %v1079
      %v1130 = vpop.f32.mrf.mxu0
      %v1131 = vadd.f32 0.0, %v1130
      %v1132 = vpop.f32.mrf.mxu0
      %v1133 = vadd.f32 0.0, %v1132
      %1134 = vmatmul.bf16.gmra.mxu0 %v1082
      %v1135 = vpop.f32.mrf.mxu0
      %v1136 = vadd.f32 0.0, %v1135
      %v1137 = vpop.f32.mrf.mxu0
      %v1138 = vadd.f32 0.0, %v1137
      %1139 = vmatmul.bf16.gmra.mxu0 %v1085
      %v1140 = vpop.f32.mrf.mxu0
      %v1141 = vadd.f32 0.0, %v1140
      %v1142 = vpop.f32.mrf.mxu0
      %v1143 = vadd.f32 0.0, %v1142
      %1144 = vmatmul.bf16.gmra.mxu0 %v1088
      %v1145 = vpop.f32.mrf.mxu0
      %v1146 = vadd.f32 0.0, %v1145
      %v1147 = vpop.f32.mrf.mxu0
      %v1148 = vadd.f32 0.0, %v1147
      %1149 = vmatmul.bf16.gmra.mxu0 %v1091
      %v1150 = vpop.f32.mrf.mxu0
      %v1151 = vadd.f32 0.0, %v1150
      %v1152 = vpop.f32.mrf.mxu0
      %v1153 = vadd.f32 0.0, %v1152
      %1154 = vmatmul.bf16.gmra.mxu0 %v1094
      %v1155 = vpop.f32.mrf.mxu0
      %v1156 = vadd.f32 0.0, %v1155
      %v1157 = vpop.f32.mrf.mxu0
      %v1158 = vadd.f32 0.0, %v1157
      %1159 = vmatmul.bf16.gmra.mxu0 %v1097
      %v1160 = vpop.f32.mrf.mxu0
      %v1161 = vadd.f32 0.0, %v1160
      %v1162 = vpop.f32.mrf.mxu0
      %v1163 = vadd.f32 0.0, %v1162
      %1164 = vmatmul.bf16.gmra.mxu0 %v1100
      %v1165 = vpop.f32.mrf.mxu0
      %v1166 = vadd.f32 0.0, %v1165
      %v1167 = vpop.f32.mrf.mxu0
      %v1168 = vadd.f32 0.0, %v1167
      %1169 = vmatmul.bf16.gmra.mxu0 %v1103
      %v1170 = vpop.f32.mrf.mxu0
      %v1171 = vadd.f32 0.0, %v1170
      %v1172 = vpop.f32.mrf.mxu0
      %v1173 = vadd.f32 0.0, %v1172
      %1174 = vmatmul.bf16.gmra.mxu0 %v1106
      %v1175 = vpop.f32.mrf.mxu0
      %v1176 = vadd.f32 0.0, %v1175
      %v1177 = vpop.f32.mrf.mxu0
      %v1178 = vadd.f32 0.0, %v1177
      %1179 = vdwg.mxu0
      %v1180 = vld [vmem:[#allocation2] sm:$0xff]
      %v1181 = vld [vmem:[#allocation2 + $0x8] sm:$0xff]
      %v1182 = vld [vmem:[#allocation2 + $0x10] sm:$0xff]
      %v1183 = vld [vmem:[#allocation2 + $0x18] sm:$0xff]
      %v1184 = vld [vmem:[#allocation2 + $0x20] sm:$0xff]
      %v1185 = vld [vmem:[#allocation2 + $0x28] sm:$0xff]
      %v1186 = vld [vmem:[#allocation2 + $0x30] sm:$0xff]
      %v1187 = vld [vmem:[#allocation2 + $0x38] sm:$0xff]
      %v1188 = vld [vmem:[#allocation2 + $0x40] sm:$0xff]
      %v1189 = vld [vmem:[#allocation2 + $0x48] sm:$0xff]
      %v1190 = vld [vmem:[#allocation2 + $0x50] sm:$0xff]
      %v1191 = vld [vmem:[#allocation2 + $0x58] sm:$0xff]
      %v1192 = vld [vmem:[#allocation2 + $0x60] sm:$0xff]
      %v1193 = vld [vmem:[#allocation2 + $0x68] sm:$0xff]
      %v1194 = vld [vmem:[#allocation2 + $0x70] sm:$0xff]
      %v1195 = vld [vmem:[#allocation2 + $0x78] sm:$0xff]
      %v1196 = vld [vmem:[#allocation2 + $0x80] sm:$0xff]
      %v1197 = vld [vmem:[#allocation2 + $0x88] sm:$0xff]
      %v1198 = vld [vmem:[#allocation2 + $0x90] sm:$0xff]
      %v1199 = vld [vmem:[#allocation2 + $0x98] sm:$0xff]
      %v1200 = vld [vmem:[#allocation2 + $0xa0] sm:$0xff]
      %v1201 = vld [vmem:[#allocation2 + $0xa8] sm:$0xff]
      %v1202 = vld [vmem:[#allocation2 + $0xb0] sm:$0xff]
      %v1203 = vld [vmem:[#allocation2 + $0xb8] sm:$0xff]
      %v1204 = vadd.f32 %v1180, %v1121
      %v1205 = vadd.f32 %v1181, %v1123
      %v1206 = vadd.f32 %v1182, %v1126
      %v1207 = vadd.f32 %v1183, %v1128
      %v1208 = vadd.f32 %v1184, %v1131
      %v1209 = vadd.f32 %v1185, %v1133
      %v1210 = vadd.f32 %v1186, %v1136
      %v1211 = vadd.f32 %v1187, %v1138
      %v1212 = vadd.f32 %v1188, %v1141
      %v1213 = vadd.f32 %v1189, %v1143
      %v1214 = vadd.f32 %v1190, %v1146
      %v1215 = vadd.f32 %v1191, %v1148
      %v1216 = vadd.f32 %v1192, %v1151
      %v1217 = vadd.f32 %v1193, %v1153
      %v1218 = vadd.f32 %v1194, %v1156
      %v1219 = vadd.f32 %v1195, %v1158
      %v1220 = vadd.f32 %v1196, %v1161
      %v1221 = vadd.f32 %v1197, %v1163
      %v1222 = vadd.f32 %v1198, %v1166
      %v1223 = vadd.f32 %v1199, %v1168
      %v1224 = vadd.f32 %v1200, %v1171
      %v1225 = vadd.f32 %v1201, %v1173
      %v1226 = vadd.f32 %v1202, %v1176
      %v1227 = vadd.f32 %v1203, %v1178
      %1228 = vst [vmem:[#allocation2] sm:$0xff] %v1204
      %1229 = vst [vmem:[#allocation2 + $0x8] sm:$0xff] %v1205
      %1230 = vst [vmem:[#allocation2 + $0x10] sm:$0xff] %v1206
      %1231 = vst [vmem:[#allocation2 + $0x18] sm:$0xff] %v1207
      %1232 = vst [vmem:[#allocation2 + $0x20] sm:$0xff] %v1208
      %1233 = vst [vmem:[#allocation2 + $0x28] sm:$0xff] %v1209
      %1234 = vst [vmem:[#allocation2 + $0x30] sm:$0xff] %v1210
      %1235 = vst [vmem:[#allocation2 + $0x38] sm:$0xff] %v1211
      %1236 = vst [vmem:[#allocation2 + $0x40] sm:$0xff] %v1212
      %1237 = vst [vmem:[#allocation2 + $0x48] sm:$0xff] %v1213
      %1238 = vst [vmem:[#allocation2 + $0x50] sm:$0xff] %v1214
      %1239 = vst [vmem:[#allocation2 + $0x58] sm:$0xff] %v1215
      %1240 = vst [vmem:[#allocation2 + $0x60] sm:$0xff] %v1216
      %1241 = vst [vmem:[#allocation2 + $0x68] sm:$0xff] %v1217
      %1242 = vst [vmem:[#allocation2 + $0x70] sm:$0xff] %v1218
      %1243 = vst [vmem:[#allocation2 + $0x78] sm:$0xff] %v1219
      %1244 = vst [vmem:[#allocation2 + $0x80] sm:$0xff] %v1220
      %1245 = vst [vmem:[#allocation2 + $0x88] sm:$0xff] %v1221
      %1246 = vst [vmem:[#allocation2 + $0x90] sm:$0xff] %v1222
      %1247 = vst [vmem:[#allocation2 + $0x98] sm:$0xff] %v1223
      %1248 = vst [vmem:[#allocation2 + $0xa0] sm:$0xff] %v1224
      %1249 = vst [vmem:[#allocation2 + $0xa8] sm:$0xff] %v1225
      %1250 = vst [vmem:[#allocation2 + $0xb0] sm:$0xff] %v1226
      %1251 = vst [vmem:[#allocation2 + $0xb8] sm:$0xff] %v1227
      %s1252 = scalar_lea.vmem %s3, 12
      %v1253 = vld [vmem:[%s1252] sm:$0xf]
      %vm1254 = vcmask 1043456
      %v1255 = vrot.slane %v607, 4
      %v1256 = vrot.slane %v615, 4
      %v1257 = vsel %vm1254, %v1255, %v1256
      %v1258 = vrot.slane %v623, 4
      %v1259 = vsel %vm1254, %v1256, %v1258
      %v1260 = vrot.slane %v631, 4
      %v1261 = vsel %vm1254, %v1258, %v1260
      %v1262 = vrot.slane %v639, 4
      %v1263 = vsel %vm1254, %v1260, %v1262
      %v1264 = vrot.slane %v647, 4
      %v1265 = vsel %vm1254, %v1262, %v1264
      %v1266 = vrot.slane %v655, 4
      %v1267 = vsel %vm1254, %v1264, %v1266
      %v1268 = vrot.slane %v663, 4
      %v1269 = vsel %vm1254, %v1266, %v1268
      %v1270 = vrot.slane %v671, 4
      %v1271 = vsel %vm1254, %v1268, %v1270
      %v1272 = vrot.slane %v679, 4
      %v1273 = vsel %vm1254, %v1270, %v1272
      %v1274 = vrot.slane %v687, 4
      %v1275 = vsel %vm1254, %v1272, %v1274
      %v1276 = vrot.slane %v695, 4
      %v1277 = vsel %vm1254, %v1274, %v1276
      %v1278 = vrot.slane %v703, 4
      %v1279 = vsel %vm1254, %v1276, %v1278
      %v1281 = vsel %vm766, %v1257, 0
      %v1284 = vsel %vm766, %v1259, 0
      %v1287 = vsel %vm766, %v1261, 0
      %v1290 = vsel %vm766, %v1263, 0
      %v1293 = vsel %vm766, %v1265, 0
      %v1296 = vsel %vm766, %v1267, 0
      %v1299 = vsel %vm766, %v1269, 0
      %v1302 = vsel %vm766, %v1271, 0
      %v1305 = vsel %vm766, %v1273, 0
      %v1308 = vsel %vm766, %v1275, 0
      %v1311 = vsel %vm766, %v1277, 0
      %v1314 = vsel %vm766, %v1279, 0
      %v1317 = vsel %vm803, %v1253, 0
      %1319 = vmatpush.bf16.msra.mxu0 0
      %1320 = vmatpush.bf16.msra.mxu0 0
      %1321 = vmatpush.bf16.msra.mxu0 0
      %1322 = vmatpush.bf16.msra.mxu0 0
      %1323 = vmatpush.bf16.msra.mxu0 0
      %1324 = vmatpush.bf16.msra.mxu0 0
      %1325 = vmatpush.bf16.msra.mxu0 0
      %1326 = vmatpush.bf16.msra.mxu0 %v1317
      %1327 = vmatmul.bf16.gmra.mxu0 %v1281
      %v1328 = vpop.f32.mrf.mxu0
      %v1329 = vadd.f32 0.0, %v1328
      %v1330 = vpop.f32.mrf.mxu0
      %v1331 = vadd.f32 0.0, %v1330
      %1332 = vmatmul.bf16.gmra.mxu0 %v1284
      %v1333 = vpop.f32.mrf.mxu0
      %v1334 = vadd.f32 0.0, %v1333
      %v1335 = vpop.f32.mrf.mxu0
      %v1336 = vadd.f32 0.0, %v1335
      %1337 = vmatmul.bf16.gmra.mxu0 %v1287
      %v1338 = vpop.f32.mrf.mxu0
      %v1339 = vadd.f32 0.0, %v1338
      %v1340 = vpop.f32.mrf.mxu0
      %v1341 = vadd.f32 0.0, %v1340
      %1342 = vmatmul.bf16.gmra.mxu0 %v1290
      %v1343 = vpop.f32.mrf.mxu0
      %v1344 = vadd.f32 0.0, %v1343
      %v1345 = vpop.f32.mrf.mxu0
      %v1346 = vadd.f32 0.0, %v1345
      %1347 = vmatmul.bf16.gmra.mxu0 %v1293
      %v1348 = vpop.f32.mrf.mxu0
      %v1349 = vadd.f32 0.0, %v1348
      %v1350 = vpop.f32.mrf.mxu0
      %v1351 = vadd.f32 0.0, %v1350
      %1352 = vmatmul.bf16.gmra.mxu0 %v1296
      %v1353 = vpop.f32.mrf.mxu0
      %v1354 = vadd.f32 0.0, %v1353
      %v1355 = vpop.f32.mrf.mxu0
      %v1356 = vadd.f32 0.0, %v1355
      %1357 = vmatmul.bf16.gmra.mxu0 %v1299
      %v1358 = vpop.f32.mrf.mxu0
      %v1359 = vadd.f32 0.0, %v1358
      %v1360 = vpop.f32.mrf.mxu0
      %v1361 = vadd.f32 0.0, %v1360
      %1362 = vmatmul.bf16.gmra.mxu0 %v1302
      %v1363 = vpop.f32.mrf.mxu0
      %v1364 = vadd.f32 0.0, %v1363
      %v1365 = vpop.f32.mrf.mxu0
      %v1366 = vadd.f32 0.0, %v1365
      %1367 = vmatmul.bf16.gmra.mxu0 %v1305
      %v1368 = vpop.f32.mrf.mxu0
      %v1369 = vadd.f32 0.0, %v1368
      %v1370 = vpop.f32.mrf.mxu0
      %v1371 = vadd.f32 0.0, %v1370
      %1372 = vmatmul.bf16.gmra.mxu0 %v1308
      %v1373 = vpop.f32.mrf.mxu0
      %v1374 = vadd.f32 0.0, %v1373
      %v1375 = vpop.f32.mrf.mxu0
      %v1376 = vadd.f32 0.0, %v1375
      %1377 = vmatmul.bf16.gmra.mxu0 %v1311
      %v1378 = vpop.f32.mrf.mxu0
      %v1379 = vadd.f32 0.0, %v1378
      %v1380 = vpop.f32.mrf.mxu0
      %v1381 = vadd.f32 0.0, %v1380
      %1382 = vmatmul.bf16.gmra.mxu0 %v1314
      %v1383 = vpop.f32.mrf.mxu0
      %v1384 = vadd.f32 0.0, %v1383
      %v1385 = vpop.f32.mrf.mxu0
      %v1386 = vadd.f32 0.0, %v1385
      %1387 = vdwg.mxu0
      %v1388 = vld [vmem:[#allocation2] sm:$0xff]
      %v1389 = vld [vmem:[#allocation2 + $0x8] sm:$0xff]
      %v1390 = vld [vmem:[#allocation2 + $0x10] sm:$0xff]
      %v1391 = vld [vmem:[#allocation2 + $0x18] sm:$0xff]
      %v1392 = vld [vmem:[#allocation2 + $0x20] sm:$0xff]
      %v1393 = vld [vmem:[#allocation2 + $0x28] sm:$0xff]
      %v1394 = vld [vmem:[#allocation2 + $0x30] sm:$0xff]
      %v1395 = vld [vmem:[#allocation2 + $0x38] sm:$0xff]
      %v1396 = vld [vmem:[#allocation2 + $0x40] sm:$0xff]
      %v1397 = vld [vmem:[#allocation2 + $0x48] sm:$0xff]
      %v1398 = vld [vmem:[#allocation2 + $0x50] sm:$0xff]
      %v1399 = vld [vmem:[#allocation2 + $0x58] sm:$0xff]
      %v1400 = vld [vmem:[#allocation2 + $0x60] sm:$0xff]
      %v1401 = vld [vmem:[#allocation2 + $0x68] sm:$0xff]
      %v1402 = vld [vmem:[#allocation2 + $0x70] sm:$0xff]
      %v1403 = vld [vmem:[#allocation2 + $0x78] sm:$0xff]
      %v1404 = vld [vmem:[#allocation2 + $0x80] sm:$0xff]
      %v1405 = vld [vmem:[#allocation2 + $0x88] sm:$0xff]
      %v1406 = vld [vmem:[#allocation2 + $0x90] sm:$0xff]
      %v1407 = vld [vmem:[#allocation2 + $0x98] sm:$0xff]
      %v1408 = vld [vmem:[#allocation2 + $0xa0] sm:$0xff]
      %v1409 = vld [vmem:[#allocation2 + $0xa8] sm:$0xff]
      %v1410 = vld [vmem:[#allocation2 + $0xb0] sm:$0xff]
      %v1411 = vld [vmem:[#allocation2 + $0xb8] sm:$0xff]
      %v1412 = vadd.f32 %v1388, %v1329
      %v1413 = vadd.f32 %v1389, %v1331
      %v1414 = vadd.f32 %v1390, %v1334
      %v1415 = vadd.f32 %v1391, %v1336
      %v1416 = vadd.f32 %v1392, %v1339
      %v1417 = vadd.f32 %v1393, %v1341
      %v1418 = vadd.f32 %v1394, %v1344
      %v1419 = vadd.f32 %v1395, %v1346
      %v1420 = vadd.f32 %v1396, %v1349
      %v1421 = vadd.f32 %v1397, %v1351
      %v1422 = vadd.f32 %v1398, %v1354
      %v1423 = vadd.f32 %v1399, %v1356
      %v1424 = vadd.f32 %v1400, %v1359
      %v1425 = vadd.f32 %v1401, %v1361
      %v1426 = vadd.f32 %v1402, %v1364
      %v1427 = vadd.f32 %v1403, %v1366
      %v1428 = vadd.f32 %v1404, %v1369
      %v1429 = vadd.f32 %v1405, %v1371
      %v1430 = vadd.f32 %v1406, %v1374
      %v1431 = vadd.f32 %v1407, %v1376
      %v1432 = vadd.f32 %v1408, %v1379
      %v1433 = vadd.f32 %v1409, %v1381
      %v1434 = vadd.f32 %v1410, %v1384
      %v1435 = vadd.f32 %v1411, %v1386
      %1436 = vst [vmem:[#allocation2] sm:$0xff] %v1412
      %1437 = vst [vmem:[#allocation2 + $0x8] sm:$0xff] %v1413
      %1438 = vst [vmem:[#allocation2 + $0x10] sm:$0xff] %v1414
      %1439 = vst [vmem:[#allocation2 + $0x18] sm:$0xff] %v1415
      %1440 = vst [vmem:[#allocation2 + $0x20] sm:$0xff] %v1416
      %1441 = vst [vmem:[#allocation2 + $0x28] sm:$0xff] %v1417
      %1442 = vst [vmem:[#allocation2 + $0x30] sm:$0xff] %v1418
      %1443 = vst [vmem:[#allocation2 + $0x38] sm:$0xff] %v1419
      %1444 = vst [vmem:[#allocation2 + $0x40] sm:$0xff] %v1420
      %1445 = vst [vmem:[#allocation2 + $0x48] sm:$0xff] %v1421
      %1446 = vst [vmem:[#allocation2 + $0x50] sm:$0xff] %v1422
      %1447 = vst [vmem:[#allocation2 + $0x58] sm:$0xff] %v1423
      %1448 = vst [vmem:[#allocation2 + $0x60] sm:$0xff] %v1424
      %1449 = vst [vmem:[#allocation2 + $0x68] sm:$0xff] %v1425
      %1450 = vst [vmem:[#allocation2 + $0x70] sm:$0xff] %v1426
      %1451 = vst [vmem:[#allocation2 + $0x78] sm:$0xff] %v1427
      %1452 = vst [vmem:[#allocation2 + $0x80] sm:$0xff] %v1428
      %1453 = vst [vmem:[#allocation2 + $0x88] sm:$0xff] %v1429
      %1454 = vst [vmem:[#allocation2 + $0x90] sm:$0xff] %v1430
      %1455 = vst [vmem:[#allocation2 + $0x98] sm:$0xff] %v1431
      %1456 = vst [vmem:[#allocation2 + $0xa0] sm:$0xff] %v1432
      %1457 = vst [vmem:[#allocation2 + $0xa8] sm:$0xff] %v1433
      %1458 = vst [vmem:[#allocation2 + $0xb0] sm:$0xff] %v1434
      %1459 = vst [vmem:[#allocation2 + $0xb8] sm:$0xff] %v1435
      %s1460 = scalar_lea.vmem %s3, 16
      %v1461 = vld [vmem:[%s1460] sm:$0xf]
      %v1462 = vpack.c.b16 %v551, %v550
      %v1463 = vpack.c.b16 %v553, %v552
      %v1464 = vpack.c.b16 %v555, %v554
      %v1465 = vpack.c.b16 %v557, %v556
      %v1466 = vpack.c.b16 %v559, %v558
      %v1467 = vpack.c.b16 %v561, %v560
      %v1468 = vpack.c.b16 %v563, %v562
      %v1469 = vpack.c.b16 %v565, %v564
      %v1470 = vpack.c.b16 %v567, %v566
      %v1471 = vpack.c.b16 %v569, %v568
      %v1472 = vpack.c.b16 %v571, %v570
      %v1473 = vpack.c.b16 %v573, %v572
      %v1475 = vsel %vm766, %v1462, 0
      %v1478 = vsel %vm766, %v1463, 0
      %v1481 = vsel %vm766, %v1464, 0
      %v1484 = vsel %vm766, %v1465, 0
      %v1487 = vsel %vm766, %v1466, 0
      %v1490 = vsel %vm766, %v1467, 0
      %v1493 = vsel %vm766, %v1468, 0
      %v1496 = vsel %vm766, %v1469, 0
      %v1499 = vsel %vm766, %v1470, 0
      %v1502 = vsel %vm766, %v1471, 0
      %v1505 = vsel %vm766, %v1472, 0
      %v1508 = vsel %vm766, %v1473, 0
      %v1511 = vsel %vm803, %v1461, 0
      %1513 = vmatpush.bf16.msra.mxu0 0
      %1514 = vmatpush.bf16.msra.mxu0 0
      %1515 = vmatpush.bf16.msra.mxu0 0
      %1516 = vmatpush.bf16.msra.mxu0 0
      %1517 = vmatpush.bf16.msra.mxu0 0
      %1518 = vmatpush.bf16.msra.mxu0 0
      %1519 = vmatpush.bf16.msra.mxu0 0
      %1520 = vmatpush.bf16.msra.mxu0 %v1511
      %1521 = vmatmul.bf16.gmra.mxu0 %v1475
      %v1522 = vpop.f32.mrf.mxu0
      %v1523 = vadd.f32 0.0, %v1522
      %v1524 = vpop.f32.mrf.mxu0
      %v1525 = vadd.f32 0.0, %v1524
      %1526 = vmatmul.bf16.gmra.mxu0 %v1478
      %v1527 = vpop.f32.mrf.mxu0
      %v1528 = vadd.f32 0.0, %v1527
      %v1529 = vpop.f32.mrf.mxu0
      %v1530 = vadd.f32 0.0, %v1529
      %1531 = vmatmul.bf16.gmra.mxu0 %v1481
      %v1532 = vpop.f32.mrf.mxu0
      %v1533 = vadd.f32 0.0, %v1532
      %v1534 = vpop.f32.mrf.mxu0
      %v1535 = vadd.f32 0.0, %v1534
      %1536 = vmatmul.bf16.gmra.mxu0 %v1484
      %v1537 = vpop.f32.mrf.mxu0
      %v1538 = vadd.f32 0.0, %v1537
      %v1539 = vpop.f32.mrf.mxu0
      %v1540 = vadd.f32 0.0, %v1539
      %1541 = vmatmul.bf16.gmra.mxu0 %v1487
      %v1542 = vpop.f32.mrf.mxu0
      %v1543 = vadd.f32 0.0, %v1542
      %v1544 = vpop.f32.mrf.mxu0
      %v1545 = vadd.f32 0.0, %v1544
      %1546 = vmatmul.bf16.gmra.mxu0 %v1490
      %v1547 = vpop.f32.mrf.mxu0
      %v1548 = vadd.f32 0.0, %v1547
      %v1549 = vpop.f32.mrf.mxu0
      %v1550 = vadd.f32 0.0, %v1549
      %1551 = vmatmul.bf16.gmra.mxu0 %v1493
      %v1552 = vpop.f32.mrf.mxu0
      %v1553 = vadd.f32 0.0, %v1552
      %v1554 = vpop.f32.mrf.mxu0
      %v1555 = vadd.f32 0.0, %v1554
      %1556 = vmatmul.bf16.gmra.mxu0 %v1496
      %v1557 = vpop.f32.mrf.mxu0
      %v1558 = vadd.f32 0.0, %v1557
      %v1559 = vpop.f32.mrf.mxu0
      %v1560 = vadd.f32 0.0, %v1559
      %1561 = vmatmul.bf16.gmra.mxu0 %v1499
      %v1562 = vpop.f32.mrf.mxu0
      %v1563 = vadd.f32 0.0, %v1562
      %v1564 = vpop.f32.mrf.mxu0
      %v1565 = vadd.f32 0.0, %v1564
      %1566 = vmatmul.bf16.gmra.mxu0 %v1502
      %v1567 = vpop.f32.mrf.mxu0
      %v1568 = vadd.f32 0.0, %v1567
      %v1569 = vpop.f32.mrf.mxu0
      %v1570 = vadd.f32 0.0, %v1569
      %1571 = vmatmul.bf16.gmra.mxu0 %v1505
      %v1572 = vpop.f32.mrf.mxu0
      %v1573 = vadd.f32 0.0, %v1572
      %v1574 = vpop.f32.mrf.mxu0
      %v1575 = vadd.f32 0.0, %v1574
      %1576 = vmatmul.bf16.gmra.mxu0 %v1508
      %v1577 = vpop.f32.mrf.mxu0
      %v1578 = vadd.f32 0.0, %v1577
      %v1579 = vpop.f32.mrf.mxu0
      %v1580 = vadd.f32 0.0, %v1579
      %1581 = vdwg.mxu0
      %v1582 = vld [vmem:[#allocation2] sm:$0xff]
      %v1583 = vld [vmem:[#allocation2 + $0x8] sm:$0xff]
      %v1584 = vld [vmem:[#allocation2 + $0x10] sm:$0xff]
      %v1585 = vld [vmem:[#allocation2 + $0x18] sm:$0xff]
      %v1586 = vld [vmem:[#allocation2 + $0x20] sm:$0xff]
      %v1587 = vld [vmem:[#allocation2 + $0x28] sm:$0xff]
      %v1588 = vld [vmem:[#allocation2 + $0x30] sm:$0xff]
      %v1589 = vld [vmem:[#allocation2 + $0x38] sm:$0xff]
      %v1590 = vld [vmem:[#allocation2 + $0x40] sm:$0xff]
      %v1591 = vld [vmem:[#allocation2 + $0x48] sm:$0xff]
      %v1592 = vld [vmem:[#allocation2 + $0x50] sm:$0xff]
      %v1593 = vld [vmem:[#allocation2 + $0x58] sm:$0xff]
      %v1594 = vld [vmem:[#allocation2 + $0x60] sm:$0xff]
      %v1595 = vld [vmem:[#allocation2 + $0x68] sm:$0xff]
      %v1596 = vld [vmem:[#allocation2 + $0x70] sm:$0xff]
      %v1597 = vld [vmem:[#allocation2 + $0x78] sm:$0xff]
      %v1598 = vld [vmem:[#allocation2 + $0x80] sm:$0xff]
      %v1599 = vld [vmem:[#allocation2 + $0x88] sm:$0xff]
      %v1600 = vld [vmem:[#allocation2 + $0x90] sm:$0xff]
      %v1601 = vld [vmem:[#allocation2 + $0x98] sm:$0xff]
      %v1602 = vld [vmem:[#allocation2 + $0xa0] sm:$0xff]
      %v1603 = vld [vmem:[#allocation2 + $0xa8] sm:$0xff]
      %v1604 = vld [vmem:[#allocation2 + $0xb0] sm:$0xff]
      %v1605 = vld [vmem:[#allocation2 + $0xb8] sm:$0xff]
      %v1606 = vadd.f32 %v1582, %v1523
      %v1607 = vadd.f32 %v1583, %v1525
      %v1608 = vadd.f32 %v1584, %v1528
      %v1609 = vadd.f32 %v1585, %v1530
      %v1610 = vadd.f32 %v1586, %v1533
      %v1611 = vadd.f32 %v1587, %v1535
      %v1612 = vadd.f32 %v1588, %v1538
      %v1613 = vadd.f32 %v1589, %v1540
      %v1614 = vadd.f32 %v1590, %v1543
      %v1615 = vadd.f32 %v1591, %v1545
      %v1616 = vadd.f32 %v1592, %v1548
      %v1617 = vadd.f32 %v1593, %v1550
      %v1618 = vadd.f32 %v1594, %v1553
      %v1619 = vadd.f32 %v1595, %v1555
      %v1620 = vadd.f32 %v1596, %v1558
      %v1621 = vadd.f32 %v1597, %v1560
      %v1622 = vadd.f32 %v1598, %v1563
      %v1623 = vadd.f32 %v1599, %v1565
      %v1624 = vadd.f32 %v1600, %v1568
      %v1625 = vadd.f32 %v1601, %v1570
      %v1626 = vadd.f32 %v1602, %v1573
      %v1627 = vadd.f32 %v1603, %v1575
      %v1628 = vadd.f32 %v1604, %v1578
      %v1629 = vadd.f32 %v1605, %v1580
      %1630 = vst [vmem:[#allocation2] sm:$0xff] %v1606
      %1631 = vst [vmem:[#allocation2 + $0x8] sm:$0xff] %v1607
      %1632 = vst [vmem:[#allocation2 + $0x10] sm:$0xff] %v1608
      %1633 = vst [vmem:[#allocation2 + $0x18] sm:$0xff] %v1609
      %1634 = vst [vmem:[#allocation2 + $0x20] sm:$0xff] %v1610
      %1635 = vst [vmem:[#allocation2 + $0x28] sm:$0xff] %v1611
      %1636 = vst [vmem:[#allocation2 + $0x30] sm:$0xff] %v1612
      %1637 = vst [vmem:[#allocation2 + $0x38] sm:$0xff] %v1613
      %1638 = vst [vmem:[#allocation2 + $0x40] sm:$0xff] %v1614
      %1639 = vst [vmem:[#allocation2 + $0x48] sm:$0xff] %v1615
      %1640 = vst [vmem:[#allocation2 + $0x50] sm:$0xff] %v1616
      %1641 = vst [vmem:[#allocation2 + $0x58] sm:$0xff] %v1617
      %1642 = vst [vmem:[#allocation2 + $0x60] sm:$0xff] %v1618
      %1643 = vst [vmem:[#allocation2 + $0x68] sm:$0xff] %v1619
      %1644 = vst [vmem:[#allocation2 + $0x70] sm:$0xff] %v1620
      %1645 = vst [vmem:[#allocation2 + $0x78] sm:$0xff] %v1621
      %1646 = vst [vmem:[#allocation2 + $0x80] sm:$0xff] %v1622
      %1647 = vst [vmem:[#allocation2 + $0x88] sm:$0xff] %v1623
      %1648 = vst [vmem:[#allocation2 + $0x90] sm:$0xff] %v1624
      %1649 = vst [vmem:[#allocation2 + $0x98] sm:$0xff] %v1625
      %1650 = vst [vmem:[#allocation2 + $0xa0] sm:$0xff] %v1626
      %1651 = vst [vmem:[#allocation2 + $0xa8] sm:$0xff] %v1627
      %1652 = vst [vmem:[#allocation2 + $0xb0] sm:$0xff] %v1628
      %1653 = vst [vmem:[#allocation2 + $0xb8] sm:$0xff] %v1629
      %s1654 = scalar_lea.vmem %s3, 20
      %v1655 = vld [vmem:[%s1654] sm:$0xf]
      %v1656 = vrot.slane %v723, 4
      %v1657 = vrot.slane %v726, 4
      %v1658 = vsel %vm1254, %v1656, %v1657
      %v1659 = vrot.slane %v729, 4
      %v1660 = vsel %vm1254, %v1657, %v1659
      %v1661 = vrot.slane %v732, 4
      %v1662 = vsel %vm1254, %v1659, %v1661
      %v1663 = vrot.slane %v735, 4
      %v1664 = vsel %vm1254, %v1661, %v1663
      %v1665 = vrot.slane %v738, 4
      %v1666 = vsel %vm1254, %v1663, %v1665
      %v1667 = vrot.slane %v741, 4
      %v1668 = vsel %vm1254, %v1665, %v1667
      %v1669 = vrot.slane %v744, 4
      %v1670 = vsel %vm1254, %v1667, %v1669
      %v1671 = vrot.slane %v747, 4
      %v1672 = vsel %vm1254, %v1669, %v1671
      %v1673 = vrot.slane %v750, 4
      %v1674 = vsel %vm1254, %v1671, %v1673
      %v1675 = vrot.slane %v753, 4
      %v1676 = vsel %vm1254, %v1673, %v1675
      %v1677 = vrot.slane %v756, 4
      %v1678 = vsel %vm1254, %v1675, %v1677
      %v1679 = vrot.slane %v759, 4
      %v1680 = vsel %vm1254, %v1677, %v1679
      %v1682 = vsel %vm766, %v1658, 0
      %v1685 = vsel %vm766, %v1660, 0
      %v1688 = vsel %vm766, %v1662, 0
      %v1691 = vsel %vm766, %v1664, 0
      %v1694 = vsel %vm766, %v1666, 0
      %v1697 = vsel %vm766, %v1668, 0
      %v1700 = vsel %vm766, %v1670, 0
      %v1703 = vsel %vm766, %v1672, 0
      %v1706 = vsel %vm766, %v1674, 0
      %v1709 = vsel %vm766, %v1676, 0
      %v1712 = vsel %vm766, %v1678, 0
      %v1715 = vsel %vm766, %v1680, 0
      %v1718 = vsel %vm803, %v1655, 0
      %1720 = vmatpush.bf16.msra.mxu0 0
      %1721 = vmatpush.bf16.msra.mxu0 0
      %1722 = vmatpush.bf16.msra.mxu0 0
      %1723 = vmatpush.bf16.msra.mxu0 0
      %1724 = vmatpush.bf16.msra.mxu0 0
      %1725 = vmatpush.bf16.msra.mxu0 0
      %1726 = vmatpush.bf16.msra.mxu0 0
      %1727 = vmatpush.bf16.msra.mxu0 %v1718
      %1728 = vmatmul.bf16.gmra.mxu0 %v1682
      %v1729 = vpop.f32.mrf.mxu0
      %v1730 = vadd.f32 0.0, %v1729
      %v1731 = vpop.f32.mrf.mxu0
      %v1732 = vadd.f32 0.0, %v1731
      %1733 = vmatmul.bf16.gmra.mxu0 %v1685
      %v1734 = vpop.f32.mrf.mxu0
      %v1735 = vadd.f32 0.0, %v1734
      %v1736 = vpop.f32.mrf.mxu0
      %v1737 = vadd.f32 0.0, %v1736
      %1738 = vmatmul.bf16.gmra.mxu0 %v1688
      %v1739 = vpop.f32.mrf.mxu0
      %v1740 = vadd.f32 0.0, %v1739
      %v1741 = vpop.f32.mrf.mxu0
      %v1742 = vadd.f32 0.0, %v1741
      %1743 = vmatmul.bf16.gmra.mxu0 %v1691
      %v1744 = vpop.f32.mrf.mxu0
      %v1745 = vadd.f32 0.0, %v1744
      %v1746 = vpop.f32.mrf.mxu0
      %v1747 = vadd.f32 0.0, %v1746
      %1748 = vmatmul.bf16.gmra.mxu0 %v1694
      %v1749 = vpop.f32.mrf.mxu0
      %v1750 = vadd.f32 0.0, %v1749
      %v1751 = vpop.f32.mrf.mxu0
      %v1752 = vadd.f32 0.0, %v1751
      %1753 = vmatmul.bf16.gmra.mxu0 %v1697
      %v1754 = vpop.f32.mrf.mxu0
      %v1755 = vadd.f32 0.0, %v1754
      %v1756 = vpop.f32.mrf.mxu0
      %v1757 = vadd.f32 0.0, %v1756
      %1758 = vmatmul.bf16.gmra.mxu0 %v1700
      %v1759 = vpop.f32.mrf.mxu0
      %v1760 = vadd.f32 0.0, %v1759
      %v1761 = vpop.f32.mrf.mxu0
      %v1762 = vadd.f32 0.0, %v1761
      %1763 = vmatmul.bf16.gmra.mxu0 %v1703
      %v1764 = vpop.f32.mrf.mxu0
      %v1765 = vadd.f32 0.0, %v1764
      %v1766 = vpop.f32.mrf.mxu0
      %v1767 = vadd.f32 0.0, %v1766
      %1768 = vmatmul.bf16.gmra.mxu0 %v1706
      %v1769 = vpop.f32.mrf.mxu0
      %v1770 = vadd.f32 0.0, %v1769
      %v1771 = vpop.f32.mrf.mxu0
      %v1772 = vadd.f32 0.0, %v1771
      %1773 = vmatmul.bf16.gmra.mxu0 %v1709
      %v1774 = vpop.f32.mrf.mxu0
      %v1775 = vadd.f32 0.0, %v1774
      %v1776 = vpop.f32.mrf.mxu0
      %v1777 = vadd.f32 0.0, %v1776
      %1778 = vmatmul.bf16.gmra.mxu0 %v1712
      %v1779 = vpop.f32.mrf.mxu0
      %v1780 = vadd.f32 0.0, %v1779
      %v1781 = vpop.f32.mrf.mxu0
      %v1782 = vadd.f32 0.0, %v1781
      %1783 = vmatmul.bf16.gmra.mxu0 %v1715
      %v1784 = vpop.f32.mrf.mxu0
      %v1785 = vadd.f32 0.0, %v1784
      %v1786 = vpop.f32.mrf.mxu0
      %v1787 = vadd.f32 0.0, %v1786
      %1788 = vdwg.mxu0
      %v1789 = vld [vmem:[#allocation2] sm:$0xff]
      %v1790 = vld [vmem:[#allocation2 + $0x8] sm:$0xff]
      %v1791 = vld [vmem:[#allocation2 + $0x10] sm:$0xff]
      %v1792 = vld [vmem:[#allocation2 + $0x18] sm:$0xff]
      %v1793 = vld [vmem:[#allocation2 + $0x20] sm:$0xff]
      %v1794 = vld [vmem:[#allocation2 + $0x28] sm:$0xff]
      %v1795 = vld [vmem:[#allocation2 + $0x30] sm:$0xff]
      %v1796 = vld [vmem:[#allocation2 + $0x38] sm:$0xff]
      %v1797 = vld [vmem:[#allocation2 + $0x40] sm:$0xff]
      %v1798 = vld [vmem:[#allocation2 + $0x48] sm:$0xff]
      %v1799 = vld [vmem:[#allocation2 + $0x50] sm:$0xff]
      %v1800 = vld [vmem:[#allocation2 + $0x58] sm:$0xff]
      %v1801 = vld [vmem:[#allocation2 + $0x60] sm:$0xff]
      %v1802 = vld [vmem:[#allocation2 + $0x68] sm:$0xff]
      %v1803 = vld [vmem:[#allocation2 + $0x70] sm:$0xff]
      %v1804 = vld [vmem:[#allocation2 + $0x78] sm:$0xff]
      %v1805 = vld [vmem:[#allocation2 + $0x80] sm:$0xff]
      %v1806 = vld [vmem:[#allocation2 + $0x88] sm:$0xff]
      %v1807 = vld [vmem:[#allocation2 + $0x90] sm:$0xff]
      %v1808 = vld [vmem:[#allocation2 + $0x98] sm:$0xff]
      %v1809 = vld [vmem:[#allocation2 + $0xa0] sm:$0xff]
      %v1810 = vld [vmem:[#allocation2 + $0xa8] sm:$0xff]
      %v1811 = vld [vmem:[#allocation2 + $0xb0] sm:$0xff]
      %v1812 = vld [vmem:[#allocation2 + $0xb8] sm:$0xff]
      %v1813 = vadd.f32 %v1789, %v1730
      %v1814 = vadd.f32 %v1790, %v1732
      %v1815 = vadd.f32 %v1791, %v1735
      %v1816 = vadd.f32 %v1792, %v1737
      %v1817 = vadd.f32 %v1793, %v1740
      %v1818 = vadd.f32 %v1794, %v1742
      %v1819 = vadd.f32 %v1795, %v1745
      %v1820 = vadd.f32 %v1796, %v1747
      %v1821 = vadd.f32 %v1797, %v1750
      %v1822 = vadd.f32 %v1798, %v1752
      %v1823 = vadd.f32 %v1799, %v1755
      %v1824 = vadd.f32 %v1800, %v1757
      %v1825 = vadd.f32 %v1801, %v1760
      %v1826 = vadd.f32 %v1802, %v1762
      %v1827 = vadd.f32 %v1803, %v1765
      %v1828 = vadd.f32 %v1804, %v1767
      %v1829 = vadd.f32 %v1805, %v1770
      %v1830 = vadd.f32 %v1806, %v1772
      %v1831 = vadd.f32 %v1807, %v1775
      %v1832 = vadd.f32 %v1808, %v1777
      %v1833 = vadd.f32 %v1809, %v1780
      %v1834 = vadd.f32 %v1810, %v1782
      %v1835 = vadd.f32 %v1811, %v1785
      %v1836 = vadd.f32 %v1812, %v1787
      %1837 = vst [vmem:[#allocation2] sm:$0xff] %v1813
      %1838 = vst [vmem:[#allocation2 + $0x8] sm:$0xff] %v1814
      %1839 = vst [vmem:[#allocation2 + $0x10] sm:$0xff] %v1815
      %1840 = vst [vmem:[#allocation2 + $0x18] sm:$0xff] %v1816
      %1841 = vst [vmem:[#allocation2 + $0x20] sm:$0xff] %v1817
      %1842 = vst [vmem:[#allocation2 + $0x28] sm:$0xff] %v1818
      %1843 = vst [vmem:[#allocation2 + $0x30] sm:$0xff] %v1819
      %1844 = vst [vmem:[#allocation2 + $0x38] sm:$0xff] %v1820
      %1845 = vst [vmem:[#allocation2 + $0x40] sm:$0xff] %v1821
      %1846 = vst [vmem:[#allocation2 + $0x48] sm:$0xff] %v1822
      %1847 = vst [vmem:[#allocation2 + $0x50] sm:$0xff] %v1823
      %1848 = vst [vmem:[#allocation2 + $0x58] sm:$0xff] %v1824
      %1849 = vst [vmem:[#allocation2 + $0x60] sm:$0xff] %v1825
      %1850 = vst [vmem:[#allocation2 + $0x68] sm:$0xff] %v1826
      %1851 = vst [vmem:[#allocation2 + $0x70] sm:$0xff] %v1827
      %1852 = vst [vmem:[#allocation2 + $0x78] sm:$0xff] %v1828
      %1853 = vst [vmem:[#allocation2 + $0x80] sm:$0xff] %v1829
      %1854 = vst [vmem:[#allocation2 + $0x88] sm:$0xff] %v1830
      %1855 = vst [vmem:[#allocation2 + $0x90] sm:$0xff] %v1831
      %1856 = vst [vmem:[#allocation2 + $0x98] sm:$0xff] %v1832
      %1857 = vst [vmem:[#allocation2 + $0xa0] sm:$0xff] %v1833
      %1858 = vst [vmem:[#allocation2 + $0xa8] sm:$0xff] %v1834
      %1859 = vst [vmem:[#allocation2 + $0xb0] sm:$0xff] %v1835
      %1860 = vst [vmem:[#allocation2 + $0xb8] sm:$0xff] %v1836
      %s1861 = scalar_lea.vmem %s3, 24
      %v1862 = vld [vmem:[%s1861] sm:$0xf]
      %v1864 = vsel %vm766, %v695, 0
      %v1867 = vsel %vm766, %v703, 0
      %v1870 = vsel %vm766, %v711, 0
      %v1873 = vsel %vm803, %v1862, 0
      %1875 = vmatpush.bf16.msra.mxu0 0
      %1876 = vmatpush.bf16.msra.mxu0 0
      %1877 = vmatpush.bf16.msra.mxu0 0
      %1878 = vmatpush.bf16.msra.mxu0 0
      %1879 = vmatpush.bf16.msra.mxu0 0
      %1880 = vmatpush.bf16.msra.mxu0 0
      %1881 = vmatpush.bf16.msra.mxu0 0
      %1882 = vmatpush.bf16.msra.mxu0 %v1873
      %1883 = vmatmul.bf16.gmra.mxu0 %v777
      %v1884 = vpop.f32.mrf.mxu0
      %v1885 = vadd.f32 0.0, %v1884
      %v1886 = vpop.f32.mrf.mxu0
      %v1887 = vadd.f32 0.0, %v1886
      %1888 = vmatmul.bf16.gmra.mxu0 %v780
      %v1889 = vpop.f32.mrf.mxu0
      %v1890 = vadd.f32 0.0, %v1889
      %v1891 = vpop.f32.mrf.mxu0
      %v1892 = vadd.f32 0.0, %v1891
      %1893 = vmatmul.bf16.gmra.mxu0 %v783
      %v1894 = vpop.f32.mrf.mxu0
      %v1895 = vadd.f32 0.0, %v1894
      %v1896 = vpop.f32.mrf.mxu0
      %v1897 = vadd.f32 0.0, %v1896
      %1898 = vmatmul.bf16.gmra.mxu0 %v786
      %v1899 = vpop.f32.mrf.mxu0
      %v1900 = vadd.f32 0.0, %v1899
      %v1901 = vpop.f32.mrf.mxu0
      %v1902 = vadd.f32 0.0, %v1901
      %1903 = vmatmul.bf16.gmra.mxu0 %v789
      %v1904 = vpop.f32.mrf.mxu0
      %v1905 = vadd.f32 0.0, %v1904
      %v1906 = vpop.f32.mrf.mxu0
      %v1907 = vadd.f32 0.0, %v1906
      %1908 = vmatmul.bf16.gmra.mxu0 %v792
      %v1909 = vpop.f32.mrf.mxu0
      %v1910 = vadd.f32 0.0, %v1909
      %v1911 = vpop.f32.mrf.mxu0
      %v1912 = vadd.f32 0.0, %v1911
      %1913 = vmatmul.bf16.gmra.mxu0 %v795
      %v1914 = vpop.f32.mrf.mxu0
      %v1915 = vadd.f32 0.0, %v1914
      %v1916 = vpop.f32.mrf.mxu0
      %v1917 = vadd.f32 0.0, %v1916
      %1918 = vmatmul.bf16.gmra.mxu0 %v798
      %v1919 = vpop.f32.mrf.mxu0
      %v1920 = vadd.f32 0.0, %v1919
      %v1921 = vpop.f32.mrf.mxu0
      %v1922 = vadd.f32 0.0, %v1921
      %1923 = vmatmul.bf16.gmra.mxu0 %v801
      %v1924 = vpop.f32.mrf.mxu0
      %v1925 = vadd.f32 0.0, %v1924
      %v1926 = vpop.f32.mrf.mxu0
      %v1927 = vadd.f32 0.0, %v1926
      %1928 = vmatmul.bf16.gmra.mxu0 %v1864
      %v1929 = vpop.f32.mrf.mxu0
      %v1930 = vadd.f32 0.0, %v1929
      %v1931 = vpop.f32.mrf.mxu0
      %v1932 = vadd.f32 0.0, %v1931
      %1933 = vmatmul.bf16.gmra.mxu0 %v1867
      %v1934 = vpop.f32.mrf.mxu0
      %v1935 = vadd.f32 0.0, %v1934
      %v1936 = vpop.f32.mrf.mxu0
      %v1937 = vadd.f32 0.0, %v1936
      %1938 = vmatmul.bf16.gmra.mxu0 %v1870
      %v1939 = vpop.f32.mrf.mxu0
      %v1940 = vadd.f32 0.0, %v1939
      %v1941 = vpop.f32.mrf.mxu0
      %v1942 = vadd.f32 0.0, %v1941
      %1943 = vdwg.mxu0
      %v1944 = vld [vmem:[#allocation2] sm:$0xff]
      %v1945 = vld [vmem:[#allocation2 + $0x8] sm:$0xff]
      %v1946 = vld [vmem:[#allocation2 + $0x10] sm:$0xff]
      %v1947 = vld [vmem:[#allocation2 + $0x18] sm:$0xff]
      %v1948 = vld [vmem:[#allocation2 + $0x20] sm:$0xff]
      %v1949 = vld [vmem:[#allocation2 + $0x28] sm:$0xff]
      %v1950 = vld [vmem:[#allocation2 + $0x30] sm:$0xff]
      %v1951 = vld [vmem:[#allocation2 + $0x38] sm:$0xff]
      %v1952 = vld [vmem:[#allocation2 + $0x40] sm:$0xff]
      %v1953 = vld [vmem:[#allocation2 + $0x48] sm:$0xff]
      %v1954 = vld [vmem:[#allocation2 + $0x50] sm:$0xff]
      %v1955 = vld [vmem:[#allocation2 + $0x58] sm:$0xff]
      %v1956 = vld [vmem:[#allocation2 + $0x60] sm:$0xff]
      %v1957 = vld [vmem:[#allocation2 + $0x68] sm:$0xff]
      %v1958 = vld [vmem:[#allocation2 + $0x70] sm:$0xff]
      %v1959 = vld [vmem:[#allocation2 + $0x78] sm:$0xff]
      %v1960 = vld [vmem:[#allocation2 + $0x80] sm:$0xff]
      %v1961 = vld [vmem:[#allocation2 + $0x88] sm:$0xff]
      %v1962 = vld [vmem:[#allocation2 + $0x90] sm:$0xff]
      %v1963 = vld [vmem:[#allocation2 + $0x98] sm:$0xff]
      %v1964 = vld [vmem:[#allocation2 + $0xa0] sm:$0xff]
      %v1965 = vld [vmem:[#allocation2 + $0xa8] sm:$0xff]
      %v1966 = vld [vmem:[#allocation2 + $0xb0] sm:$0xff]
      %v1967 = vld [vmem:[#allocation2 + $0xb8] sm:$0xff]
      %v1968 = vadd.f32 %v1944, %v1885
      %v1969 = vadd.f32 %v1945, %v1887
      %v1970 = vadd.f32 %v1946, %v1890
      %v1971 = vadd.f32 %v1947, %v1892
      %v1972 = vadd.f32 %v1948, %v1895
      %v1973 = vadd.f32 %v1949, %v1897
      %v1974 = vadd.f32 %v1950, %v1900
      %v1975 = vadd.f32 %v1951, %v1902
      %v1976 = vadd.f32 %v1952, %v1905
      %v1977 = vadd.f32 %v1953, %v1907
      %v1978 = vadd.f32 %v1954, %v1910
      %v1979 = vadd.f32 %v1955, %v1912
      %v1980 = vadd.f32 %v1956, %v1915
      %v1981 = vadd.f32 %v1957, %v1917
      %v1982 = vadd.f32 %v1958, %v1920
      %v1983 = vadd.f32 %v1959, %v1922
      %v1984 = vadd.f32 %v1960, %v1925
      %v1985 = vadd.f32 %v1961, %v1927
      %v1986 = vadd.f32 %v1962, %v1930
      %v1987 = vadd.f32 %v1963, %v1932
      %v1988 = vadd.f32 %v1964, %v1935
      %v1989 = vadd.f32 %v1965, %v1937
      %v1990 = vadd.f32 %v1966, %v1940
      %v1991 = vadd.f32 %v1967, %v1942
      %1992 = vst [vmem:[#allocation2] sm:$0xff] %v1968
      %1993 = vst [vmem:[#allocation2 + $0x8] sm:$0xff] %v1969
      %1994 = vst [vmem:[#allocation2 + $0x10] sm:$0xff] %v1970
      %1995 = vst [vmem:[#allocation2 + $0x18] sm:$0xff] %v1971
      %1996 = vst [vmem:[#allocation2 + $0x20] sm:$0xff] %v1972
      %1997 = vst [vmem:[#allocation2 + $0x28] sm:$0xff] %v1973
      %1998 = vst [vmem:[#allocation2 + $0x30] sm:$0xff] %v1974
      %1999 = vst [vmem:[#allocation2 + $0x38] sm:$0xff] %v1975
      %2000 = vst [vmem:[#allocation2 + $0x40] sm:$0xff] %v1976
      %2001 = vst [vmem:[#allocation2 + $0x48] sm:$0xff] %v1977
      %2002 = vst [vmem:[#allocation2 + $0x50] sm:$0xff] %v1978
      %2003 = vst [vmem:[#allocation2 + $0x58] sm:$0xff] %v1979
      %2004 = vst [vmem:[#allocation2 + $0x60] sm:$0xff] %v1980
      %2005 = vst [vmem:[#allocation2 + $0x68] sm:$0xff] %v1981
      %2006 = vst [vmem:[#allocation2 + $0x70] sm:$0xff] %v1982
      %2007 = vst [vmem:[#allocation2 + $0x78] sm:$0xff] %v1983
      %2008 = vst [vmem:[#allocation2 + $0x80] sm:$0xff] %v1984
      %2009 = vst [vmem:[#allocation2 + $0x88] sm:$0xff] %v1985
      %2010 = vst [vmem:[#allocation2 + $0x90] sm:$0xff] %v1986
      %2011 = vst [vmem:[#allocation2 + $0x98] sm:$0xff] %v1987
      %2012 = vst [vmem:[#allocation2 + $0xa0] sm:$0xff] %v1988
      %2013 = vst [vmem:[#allocation2 + $0xa8] sm:$0xff] %v1989
      %2014 = vst [vmem:[#allocation2 + $0xb0] sm:$0xff] %v1990
      %2015 = vst [vmem:[#allocation2 + $0xb8] sm:$0xff] %v1991
      %s2016 = scalar_lea.vmem %s3, 28
      %v2017 = vld [vmem:[%s2016] sm:$0xf]
      %v2018 = vsel %vm766, %v589, 0
      %v2020 = vsel %vm766, %v590, 0
      %v2022 = vsel %vm766, %v591, 0
      %v2025 = vsel %vm803, %v2017, 0
      %2027 = vmatpush.bf16.msra.mxu0 0
      %2028 = vmatpush.bf16.msra.mxu0 0
      %2029 = vmatpush.bf16.msra.mxu0 0
      %2030 = vmatpush.bf16.msra.mxu0 0
      %2031 = vmatpush.bf16.msra.mxu0 0
      %2032 = vmatpush.bf16.msra.mxu0 0
      %2033 = vmatpush.bf16.msra.mxu0 0
      %2034 = vmatpush.bf16.msra.mxu0 %v2025
      %2035 = vmatmul.bf16.gmra.mxu0 %v908
      %v2036 = vpop.f32.mrf.mxu0
      %v2037 = vadd.f32 0.0, %v2036
      %v2038 = vpop.f32.mrf.mxu0
      %v2039 = vadd.f32 0.0, %v2038
      %2040 = vmatmul.bf16.gmra.mxu0 %v910
      %v2041 = vpop.f32.mrf.mxu0
      %v2042 = vadd.f32 0.0, %v2041
      %v2043 = vpop.f32.mrf.mxu0
      %v2044 = vadd.f32 0.0, %v2043
      %2045 = vmatmul.bf16.gmra.mxu0 %v912
      %v2046 = vpop.f32.mrf.mxu0
      %v2047 = vadd.f32 0.0, %v2046
      %v2048 = vpop.f32.mrf.mxu0
      %v2049 = vadd.f32 0.0, %v2048
      %2050 = vmatmul.bf16.gmra.mxu0 %v914
      %v2051 = vpop.f32.mrf.mxu0
      %v2052 = vadd.f32 0.0, %v2051
      %v2053 = vpop.f32.mrf.mxu0
      %v2054 = vadd.f32 0.0, %v2053
      %2055 = vmatmul.bf16.gmra.mxu0 %v916
      %v2056 = vpop.f32.mrf.mxu0
      %v2057 = vadd.f32 0.0, %v2056
      %v2058 = vpop.f32.mrf.mxu0
      %v2059 = vadd.f32 0.0, %v2058
      %2060 = vmatmul.bf16.gmra.mxu0 %v918
      %v2061 = vpop.f32.mrf.mxu0
      %v2062 = vadd.f32 0.0, %v2061
      %v2063 = vpop.f32.mrf.mxu0
      %v2064 = vadd.f32 0.0, %v2063
      %2065 = vmatmul.bf16.gmra.mxu0 %v920
      %v2066 = vpop.f32.mrf.mxu0
      %v2067 = vadd.f32 0.0, %v2066
      %v2068 = vpop.f32.mrf.mxu0
      %v2069 = vadd.f32 0.0, %v2068
      %2070 = vmatmul.bf16.gmra.mxu0 %v922
      %v2071 = vpop.f32.mrf.mxu0
      %v2072 = vadd.f32 0.0, %v2071
      %v2073 = vpop.f32.mrf.mxu0
      %v2074 = vadd.f32 0.0, %v2073
      %2075 = vmatmul.bf16.gmra.mxu0 %v924
      %v2076 = vpop.f32.mrf.mxu0
      %v2077 = vadd.f32 0.0, %v2076
      %v2078 = vpop.f32.mrf.mxu0
      %v2079 = vadd.f32 0.0, %v2078
      %2080 = vmatmul.bf16.gmra.mxu0 %v2018
      %v2081 = vpop.f32.mrf.mxu0
      %v2082 = vadd.f32 0.0, %v2081
      %v2083 = vpop.f32.mrf.mxu0
      %v2084 = vadd.f32 0.0, %v2083
      %2085 = vmatmul.bf16.gmra.mxu0 %v2020
      %v2086 = vpop.f32.mrf.mxu0
      %v2087 = vadd.f32 0.0, %v2086
      %v2088 = vpop.f32.mrf.mxu0
      %v2089 = vadd.f32 0.0, %v2088
      %2090 = vmatmul.bf16.gmra.mxu0 %v2022
      %v2091 = vpop.f32.mrf.mxu0
      %v2092 = vadd.f32 0.0, %v2091
      %v2093 = vpop.f32.mrf.mxu0
      %v2094 = vadd.f32 0.0, %v2093
      %2095 = vdwg.mxu0
      %v2096 = vld [vmem:[#allocation2] sm:$0xff]
      %v2097 = vld [vmem:[#allocation2 + $0x8] sm:$0xff]
      %v2098 = vld [vmem:[#allocation2 + $0x10] sm:$0xff]
      %v2099 = vld [vmem:[#allocation2 + $0x18] sm:$0xff]
      %v2100 = vld [vmem:[#allocation2 + $0x20] sm:$0xff]
      %v2101 = vld [vmem:[#allocation2 + $0x28] sm:$0xff]
      %v2102 = vld [vmem:[#allocation2 + $0x30] sm:$0xff]
      %v2103 = vld [vmem:[#allocation2 + $0x38] sm:$0xff]
      %v2104 = vld [vmem:[#allocation2 + $0x40] sm:$0xff]
      %v2105 = vld [vmem:[#allocation2 + $0x48] sm:$0xff]
      %v2106 = vld [vmem:[#allocation2 + $0x50] sm:$0xff]
      %v2107 = vld [vmem:[#allocation2 + $0x58] sm:$0xff]
      %v2108 = vld [vmem:[#allocation2 + $0x60] sm:$0xff]
      %v2109 = vld [vmem:[#allocation2 + $0x68] sm:$0xff]
      %v2110 = vld [vmem:[#allocation2 + $0x70] sm:$0xff]
      %v2111 = vld [vmem:[#allocation2 + $0x78] sm:$0xff]
      %v2112 = vld [vmem:[#allocation2 + $0x80] sm:$0xff]
      %v2113 = vld [vmem:[#allocation2 + $0x88] sm:$0xff]
      %v2114 = vld [vmem:[#allocation2 + $0x90] sm:$0xff]
      %v2115 = vld [vmem:[#allocation2 + $0x98] sm:$0xff]
      %v2116 = vld [vmem:[#allocation2 + $0xa0] sm:$0xff]
      %v2117 = vld [vmem:[#allocation2 + $0xa8] sm:$0xff]
      %v2118 = vld [vmem:[#allocation2 + $0xb0] sm:$0xff]
      %v2119 = vld [vmem:[#allocation2 + $0xb8] sm:$0xff]
      %v2120 = vadd.f32 %v2096, %v2037
      %v2121 = vadd.f32 %v2097, %v2039
      %v2122 = vadd.f32 %v2098, %v2042
      %v2123 = vadd.f32 %v2099, %v2044
      %v2124 = vadd.f32 %v2100, %v2047
      %v2125 = vadd.f32 %v2101, %v2049
      %v2126 = vadd.f32 %v2102, %v2052
      %v2127 = vadd.f32 %v2103, %v2054
      %v2128 = vadd.f32 %v2104, %v2057
      %v2129 = vadd.f32 %v2105, %v2059
      %v2130 = vadd.f32 %v2106, %v2062
      %v2131 = vadd.f32 %v2107, %v2064
      %v2132 = vadd.f32 %v2108, %v2067
      %v2133 = vadd.f32 %v2109, %v2069
      %v2134 = vadd.f32 %v2110, %v2072
      %v2135 = vadd.f32 %v2111, %v2074
      %v2136 = vadd.f32 %v2112, %v2077
      %v2137 = vadd.f32 %v2113, %v2079
      %v2138 = vadd.f32 %v2114, %v2082
      %v2139 = vadd.f32 %v2115, %v2084
      %v2140 = vadd.f32 %v2116, %v2087
      %v2141 = vadd.f32 %v2117, %v2089
      %v2142 = vadd.f32 %v2118, %v2092
      %v2143 = vadd.f32 %v2119, %v2094
      %2144 = vst [vmem:[#allocation2] sm:$0xff] %v2120
      %2145 = vst [vmem:[#allocation2 + $0x8] sm:$0xff] %v2121
      %2146 = vst [vmem:[#allocation2 + $0x10] sm:$0xff] %v2122
      %2147 = vst [vmem:[#allocation2 + $0x18] sm:$0xff] %v2123
      %2148 = vst [vmem:[#allocation2 + $0x20] sm:$0xff] %v2124
      %2149 = vst [vmem:[#allocation2 + $0x28] sm:$0xff] %v2125
      %2150 = vst [vmem:[#allocation2 + $0x30] sm:$0xff] %v2126
      %2151 = vst [vmem:[#allocation2 + $0x38] sm:$0xff] %v2127
      %2152 = vst [vmem:[#allocation2 + $0x40] sm:$0xff] %v2128
      %2153 = vst [vmem:[#allocation2 + $0x48] sm:$0xff] %v2129
      %2154 = vst [vmem:[#allocation2 + $0x50] sm:$0xff] %v2130
      %2155 = vst [vmem:[#allocation2 + $0x58] sm:$0xff] %v2131
      %2156 = vst [vmem:[#allocation2 + $0x60] sm:$0xff] %v2132
      %2157 = vst [vmem:[#allocation2 + $0x68] sm:$0xff] %v2133
      %2158 = vst [vmem:[#allocation2 + $0x70] sm:$0xff] %v2134
      %2159 = vst [vmem:[#allocation2 + $0x78] sm:$0xff] %v2135
      %2160 = vst [vmem:[#allocation2 + $0x80] sm:$0xff] %v2136
      %2161 = vst [vmem:[#allocation2 + $0x88] sm:$0xff] %v2137
      %2162 = vst [vmem:[#allocation2 + $0x90] sm:$0xff] %v2138
      %2163 = vst [vmem:[#allocation2 + $0x98] sm:$0xff] %v2139
      %2164 = vst [vmem:[#allocation2 + $0xa0] sm:$0xff] %v2140
      %2165 = vst [vmem:[#allocation2 + $0xa8] sm:$0xff] %v2141
      %2166 = vst [vmem:[#allocation2 + $0xb0] sm:$0xff] %v2142
      %2167 = vst [vmem:[#allocation2 + $0xb8] sm:$0xff] %v2143
      %s2168 = scalar_lea.vmem %s3, 32
      %v2169 = vld [vmem:[%s2168] sm:$0xf]
      %v2171 = vsel %vm766, %v756, 0
      %v2174 = vsel %vm766, %v759, 0
      %v2177 = vsel %vm766, %v764, 0
      %v2180 = vsel %vm803, %v2169, 0
      %2182 = vmatpush.bf16.msra.mxu0 0
      %2183 = vmatpush.bf16.msra.mxu0 0
      %2184 = vmatpush.bf16.msra.mxu0 0
      %2185 = vmatpush.bf16.msra.mxu0 0
      %2186 = vmatpush.bf16.msra.mxu0 0
      %2187 = vmatpush.bf16.msra.mxu0 0
      %2188 = vmatpush.bf16.msra.mxu0 0
      %2189 = vmatpush.bf16.msra.mxu0 %v2180
      %2190 = vmatmul.bf16.gmra.mxu0 %v1082
      %v2191 = vpop.f32.mrf.mxu0
      %v2192 = vadd.f32 0.0, %v2191
      %v2193 = vpop.f32.mrf.mxu0
      %v2194 = vadd.f32 0.0, %v2193
      %2195 = vmatmul.bf16.gmra.mxu0 %v1085
      %v2196 = vpop.f32.mrf.mxu0
      %v2197 = vadd.f32 0.0, %v2196
      %v2198 = vpop.f32.mrf.mxu0
      %v2199 = vadd.f32 0.0, %v2198
      %2200 = vmatmul.bf16.gmra.mxu0 %v1088
      %v2201 = vpop.f32.mrf.mxu0
      %v2202 = vadd.f32 0.0, %v2201
      %v2203 = vpop.f32.mrf.mxu0
      %v2204 = vadd.f32 0.0, %v2203
      %2205 = vmatmul.bf16.gmra.mxu0 %v1091
      %v2206 = vpop.f32.mrf.mxu0
      %v2207 = vadd.f32 0.0, %v2206
      %v2208 = vpop.f32.mrf.mxu0
      %v2209 = vadd.f32 0.0, %v2208
      %2210 = vmatmul.bf16.gmra.mxu0 %v1094
      %v2211 = vpop.f32.mrf.mxu0
      %v2212 = vadd.f32 0.0, %v2211
      %v2213 = vpop.f32.mrf.mxu0
      %v2214 = vadd.f32 0.0, %v2213
      %2215 = vmatmul.bf16.gmra.mxu0 %v1097
      %v2216 = vpop.f32.mrf.mxu0
      %v2217 = vadd.f32 0.0, %v2216
      %v2218 = vpop.f32.mrf.mxu0
      %v2219 = vadd.f32 0.0, %v2218
      %2220 = vmatmul.bf16.gmra.mxu0 %v1100
      %v2221 = vpop.f32.mrf.mxu0
      %v2222 = vadd.f32 0.0, %v2221
      %v2223 = vpop.f32.mrf.mxu0
      %v2224 = vadd.f32 0.0, %v2223
      %2225 = vmatmul.bf16.gmra.mxu0 %v1103
      %v2226 = vpop.f32.mrf.mxu0
      %v2227 = vadd.f32 0.0, %v2226
      %v2228 = vpop.f32.mrf.mxu0
      %v2229 = vadd.f32 0.0, %v2228
      %2230 = vmatmul.bf16.gmra.mxu0 %v1106
      %v2231 = vpop.f32.mrf.mxu0
      %v2232 = vadd.f32 0.0, %v2231
      %v2233 = vpop.f32.mrf.mxu0
      %v2234 = vadd.f32 0.0, %v2233
      %2235 = vmatmul.bf16.gmra.mxu0 %v2171
      %v2236 = vpop.f32.mrf.mxu0
      %v2237 = vadd.f32 0.0, %v2236
      %v2238 = vpop.f32.mrf.mxu0
      %v2239 = vadd.f32 0.0, %v2238
      %2240 = vmatmul.bf16.gmra.mxu0 %v2174
      %v2241 = vpop.f32.mrf.mxu0
      %v2242 = vadd.f32 0.0, %v2241
      %v2243 = vpop.f32.mrf.mxu0
      %v2244 = vadd.f32 0.0, %v2243
      %2245 = vmatmul.bf16.gmra.mxu0 %v2177
      %v2246 = vpop.f32.mrf.mxu0
      %v2247 = vadd.f32 0.0, %v2246
      %v2248 = vpop.f32.mrf.mxu0
      %v2249 = vadd.f32 0.0, %v2248
      %2250 = vdwg.mxu0
      %v2251 = vld [vmem:[#allocation2] sm:$0xff]
      %v2252 = vld [vmem:[#allocation2 + $0x8] sm:$0xff]
      %v2253 = vld [vmem:[#allocation2 + $0x10] sm:$0xff]
      %v2254 = vld [vmem:[#allocation2 + $0x18] sm:$0xff]
      %v2255 = vld [vmem:[#allocation2 + $0x20] sm:$0xff]
      %v2256 = vld [vmem:[#allocation2 + $0x28] sm:$0xff]
      %v2257 = vld [vmem:[#allocation2 + $0x30] sm:$0xff]
      %v2258 = vld [vmem:[#allocation2 + $0x38] sm:$0xff]
      %v2259 = vld [vmem:[#allocation2 + $0x40] sm:$0xff]
      %v2260 = vld [vmem:[#allocation2 + $0x48] sm:$0xff]
      %v2261 = vld [vmem:[#allocation2 + $0x50] sm:$0xff]
      %v2262 = vld [vmem:[#allocation2 + $0x58] sm:$0xff]
      %v2263 = vld [vmem:[#allocation2 + $0x60] sm:$0xff]
      %v2264 = vld [vmem:[#allocation2 + $0x68] sm:$0xff]
      %v2265 = vld [vmem:[#allocation2 + $0x70] sm:$0xff]
      %v2266 = vld [vmem:[#allocation2 + $0x78] sm:$0xff]
      %v2267 = vld [vmem:[#allocation2 + $0x80] sm:$0xff]
      %v2268 = vld [vmem:[#allocation2 + $0x88] sm:$0xff]
      %v2269 = vld [vmem:[#allocation2 + $0x90] sm:$0xff]
      %v2270 = vld [vmem:[#allocation2 + $0x98] sm:$0xff]
      %v2271 = vld [vmem:[#allocation2 + $0xa0] sm:$0xff]
      %v2272 = vld [vmem:[#allocation2 + $0xa8] sm:$0xff]
      %v2273 = vld [vmem:[#allocation2 + $0xb0] sm:$0xff]
      %v2274 = vld [vmem:[#allocation2 + $0xb8] sm:$0xff]
      %v2275 = vadd.f32 %v2251, %v2192
      %v2276 = vadd.f32 %v2252, %v2194
      %v2277 = vadd.f32 %v2253, %v2197
      %v2278 = vadd.f32 %v2254, %v2199
      %v2279 = vadd.f32 %v2255, %v2202
      %v2280 = vadd.f32 %v2256, %v2204
      %v2281 = vadd.f32 %v2257, %v2207
      %v2282 = vadd.f32 %v2258, %v2209
      %v2283 = vadd.f32 %v2259, %v2212
      %v2284 = vadd.f32 %v2260, %v2214
      %v2285 = vadd.f32 %v2261, %v2217
      %v2286 = vadd.f32 %v2262, %v2219
      %v2287 = vadd.f32 %v2263, %v2222
      %v2288 = vadd.f32 %v2264, %v2224
      %v2289 = vadd.f32 %v2265, %v2227
      %v2290 = vadd.f32 %v2266, %v2229
      %v2291 = vadd.f32 %v2267, %v2232
      %v2292 = vadd.f32 %v2268, %v2234
      %v2293 = vadd.f32 %v2269, %v2237
      %v2294 = vadd.f32 %v2270, %v2239
      %v2295 = vadd.f32 %v2271, %v2242
      %v2296 = vadd.f32 %v2272, %v2244
      %v2297 = vadd.f32 %v2273, %v2247
      %v2298 = vadd.f32 %v2274, %v2249
      %2299 = vst [vmem:[#allocation2] sm:$0xff] %v2275
      %2300 = vst [vmem:[#allocation2 + $0x8] sm:$0xff] %v2276
      %2301 = vst [vmem:[#allocation2 + $0x10] sm:$0xff] %v2277
      %2302 = vst [vmem:[#allocation2 + $0x18] sm:$0xff] %v2278
      %2303 = vst [vmem:[#allocation2 + $0x20] sm:$0xff] %v2279
      %2304 = vst [vmem:[#allocation2 + $0x28] sm:$0xff] %v2280
      %2305 = vst [vmem:[#allocation2 + $0x30] sm:$0xff] %v2281
      %2306 = vst [vmem:[#allocation2 + $0x38] sm:$0xff] %v2282
      %2307 = vst [vmem:[#allocation2 + $0x40] sm:$0xff] %v2283
      %2308 = vst [vmem:[#allocation2 + $0x48] sm:$0xff] %v2284
      %2309 = vst [vmem:[#allocation2 + $0x50] sm:$0xff] %v2285
      %2310 = vst [vmem:[#allocation2 + $0x58] sm:$0xff] %v2286
      %2311 = vst [vmem:[#allocation2 + $0x60] sm:$0xff] %v2287
      %2312 = vst [vmem:[#allocation2 + $0x68] sm:$0xff] %v2288
      %2313 = vst [vmem:[#allocation2 + $0x70] sm:$0xff] %v2289
      %2314 = vst [vmem:[#allocation2 + $0x78] sm:$0xff] %v2290
      %2315 = vst [vmem:[#allocation2 + $0x80] sm:$0xff] %v2291
      %2316 = vst [vmem:[#allocation2 + $0x88] sm:$0xff] %v2292
      %2317 = vst [vmem:[#allocation2 + $0x90] sm:$0xff] %v2293
      %2318 = vst [vmem:[#allocation2 + $0x98] sm:$0xff] %v2294
      %2319 = vst [vmem:[#allocation2 + $0xa0] sm:$0xff] %v2295
      %2320 = vst [vmem:[#allocation2 + $0xa8] sm:$0xff] %v2296
      %2321 = vst [vmem:[#allocation2 + $0xb0] sm:$0xff] %v2297
      %2322 = vst [vmem:[#allocation2 + $0xb8] sm:$0xff] %v2298
      %v2323 = vld [vmem:[#allocation2] sm:$0xff]
      %v2324 = vld [vmem:[#allocation2 + $0x8] sm:$0xff]
      %v2325 = vld [vmem:[#allocation2 + $0x10] sm:$0xff]
      %v2326 = vld [vmem:[#allocation2 + $0x18] sm:$0xff]
      %v2327 = vld [vmem:[#allocation2 + $0x20] sm:$0xff]
      %v2328 = vld [vmem:[#allocation2 + $0x28] sm:$0xff]
      %v2329 = vld [vmem:[#allocation2 + $0x30] sm:$0xff]
      %v2330 = vld [vmem:[#allocation2 + $0x38] sm:$0xff]
      %v2331 = vld [vmem:[#allocation2 + $0x40] sm:$0xff]
      %v2332 = vld [vmem:[#allocation2 + $0x48] sm:$0xff]
      %v2333 = vld [vmem:[#allocation2 + $0x50] sm:$0xff]
      %v2334 = vld [vmem:[#allocation2 + $0x58] sm:$0xff]
      %v2335 = vld [vmem:[#allocation2 + $0x60] sm:$0xff]
      %v2336 = vld [vmem:[#allocation2 + $0x68] sm:$0xff]
      %v2337 = vld [vmem:[#allocation2 + $0x70] sm:$0xff]
      %v2338 = vld [vmem:[#allocation2 + $0x78] sm:$0xff]
      %v2339 = vld [vmem:[#allocation2 + $0x80] sm:$0xff]
      %v2340 = vld [vmem:[#allocation2 + $0x88] sm:$0xff]
      %v2341 = vld [vmem:[#allocation2 + $0x90] sm:$0xff]
      %v2342 = vld [vmem:[#allocation2 + $0x98] sm:$0xff]
      %v2343 = vld [vmem:[#allocation2 + $0xa0] sm:$0xff]
      %v2344 = vld [vmem:[#allocation2 + $0xa8] sm:$0xff]
      %v2345 = vld [vmem:[#allocation2 + $0xb0] sm:$0xff]
      %v2346 = vld [vmem:[#allocation2 + $0xb8] sm:$0xff]
      %v2347 = vsel %vm455, %v2323, 0.0
      %v2348 = vsel %vm456, %v2324, 0.0
      %v2349 = vsel %vm457, %v2325, 0.0
      %v2350 = vsel %vm455, %v2326, 0.0
      %v2351 = vsel %vm456, %v2327, 0.0
      %v2352 = vsel %vm457, %v2328, 0.0
      %v2353 = vsel %vm455, %v2329, 0.0
      %v2354 = vsel %vm456, %v2330, 0.0
      %v2355 = vsel %vm457, %v2331, 0.0
      %v2356 = vsel %vm455, %v2332, 0.0
      %v2357 = vsel %vm456, %v2333, 0.0
      %v2358 = vsel %vm457, %v2334, 0.0
      %v2359 = vsel %vm455, %v2335, 0.0
      %v2360 = vsel %vm456, %v2336, 0.0
      %v2361 = vsel %vm457, %v2337, 0.0
      %v2362 = vsel %vm455, %v2338, 0.0
      %v2363 = vsel %vm456, %v2339, 0.0
      %v2364 = vsel %vm457, %v2340, 0.0
      %v2365 = vsel %vm455, %v2341, 0.0
      %v2366 = vsel %vm456, %v2342, 0.0
      %v2367 = vsel %vm457, %v2343, 0.0
      %v2368 = vsel %vm455, %v2344, 0.0
      %v2369 = vsel %vm456, %v2345, 0.0
      %v2370 = vsel %vm457, %v2346, 0.0
      %v2371 = vpack.c.bf16 %v2347, %v2347
      %v2372 = vpack.c.bf16 %v2348, %v2348
      %v2373 = vpack.c.bf16 %v2349, %v2349
      %v2374 = vpack.c.bf16 %v2350, %v2350
      %v2375 = vpack.c.bf16 %v2351, %v2351
      %v2376 = vpack.c.bf16 %v2352, %v2352
      %v2377 = vpack.c.bf16 %v2353, %v2353
      %v2378 = vpack.c.bf16 %v2354, %v2354
      %v2379 = vpack.c.bf16 %v2355, %v2355
      %v2380 = vpack.c.bf16 %v2356, %v2356
      %v2381 = vpack.c.bf16 %v2357, %v2357
      %v2382 = vpack.c.bf16 %v2358, %v2358
      %v2383 = vpack.c.bf16 %v2359, %v2359
      %v2384 = vpack.c.bf16 %v2360, %v2360
      %v2385 = vpack.c.bf16 %v2361, %v2361
      %v2386 = vpack.c.bf16 %v2362, %v2362
      %v2387 = vpack.c.bf16 %v2363, %v2363
      %v2388 = vpack.c.bf16 %v2364, %v2364
      %v2389 = vpack.c.bf16 %v2365, %v2365
      %v2390 = vpack.c.bf16 %v2366, %v2366
      %v2391 = vpack.c.bf16 %v2367, %v2367
      %v2392 = vpack.c.bf16 %v2368, %v2368
      %v2393 = vpack.c.bf16 %v2369, %v2369
      %v2394 = vpack.c.bf16 %v2370, %v2370
      %2395 = vst [vmem:[%s404] sm:$0xf] %v2371
      %2396 = vst [vmem:[%s404 + $0x4] sm:$0xf] %v2372
      %2397 = vst [vmem:[%s404 + $0x8] sm:$0xf] %v2373
      %2398 = vst [vmem:[%s404 + $0xc] sm:$0xf] %v2374
      %2399 = vst [vmem:[%s404 + $0x10] sm:$0xf] %v2375
      %2400 = vst [vmem:[%s404 + $0x14] sm:$0xf] %v2376
      %2401 = vst [vmem:[%s404 + $0x18] sm:$0xf] %v2377
      %2402 = vst [vmem:[%s404 + $0x1c] sm:$0xf] %v2378
      %2403 = vst [vmem:[%s404 + $0x20] sm:$0xf] %v2379
      %2404 = vst [vmem:[%s404 + $0x24] sm:$0xf] %v2380
      %2405 = vst [vmem:[%s404 + $0x28] sm:$0xf] %v2381
      %2406 = vst [vmem:[%s404 + $0x2c] sm:$0xf] %v2382
      %2407 = vst [vmem:[%s404 + $0x30] sm:$0xf] %v2383
      %2408 = vst [vmem:[%s404 + $0x34] sm:$0xf] %v2384
      %2409 = vst [vmem:[%s404 + $0x38] sm:$0xf] %v2385
      %2410 = vst [vmem:[%s404 + $0x3c] sm:$0xf] %v2386
      %2411 = vst [vmem:[%s404 + $0x40] sm:$0xf] %v2387
      %2412 = vst [vmem:[%s404 + $0x44] sm:$0xf] %v2388
      %2413 = vst [vmem:[%s404 + $0x48] sm:$0xf] %v2389
      %2414 = vst [vmem:[%s404 + $0x4c] sm:$0xf] %v2390
      %2415 = vst [vmem:[%s404 + $0x50] sm:$0xf] %v2391
      %2416 = vst [vmem:[%s404 + $0x54] sm:$0xf] %v2392
      %2417 = vst [vmem:[%s404 + $0x58] sm:$0xf] %v2393
      %2418 = vst [vmem:[%s404 + $0x5c] sm:$0xf] %v2394
      %v2419 = vadd.f32 %v2347, %v2350
      %v2420 = vadd.f32 %v2419, %v2353
      %v2421 = vadd.f32 %v2420, %v2356
      %v2422 = vadd.f32 %v2421, %v2359
      %v2423 = vadd.f32 %v2422, %v2362
      %v2424 = vadd.f32 %v2423, %v2365
      %v2425 = vadd.f32 %v2424, %v2368
      %v2426 = vadd.f32 %v2348, %v2351
      %v2427 = vadd.f32 %v2426, %v2354
      %v2428 = vadd.f32 %v2427, %v2357
      %v2429 = vadd.f32 %v2428, %v2360
      %v2430 = vadd.f32 %v2429, %v2363
      %v2431 = vadd.f32 %v2430, %v2366
      %v2432 = vadd.f32 %v2431, %v2369
      %v2433 = vadd.f32 %v2349, %v2352
      %v2434 = vadd.f32 %v2433, %v2355
      %v2435 = vadd.f32 %v2434, %v2358
      %v2436 = vadd.f32 %v2435, %v2361
      %v2437 = vadd.f32 %v2436, %v2364
      %v2438 = vadd.f32 %v2437, %v2367
      %v2439 = vadd.f32 %v2438, %v2370
      %v2440 = vadd.f32 %v2425, %v2432
      %v2441 = vadd.f32 %v2440, %v2439
      %v2442 = vrot.slane %v2441, 4
      %v2443 = vadd.f32 %v2441, %v2442
      %v2444 = vrot.slane %v2443, 2
      %v2445 = vadd.f32 %v2443, %v2444
      %v2446 = vrot.slane %v2445, 1
      %v2447 = vadd.f32 %v2445, %v2446
      %v2448 = vmul.f32 %v2347, %v2347
      %v2449 = vmul.f32 %v2348, %v2348
      %v2450 = vmul.f32 %v2349, %v2349
      %v2451 = vmul.f32 %v2350, %v2350
      %v2452 = vmul.f32 %v2351, %v2351
      %v2453 = vmul.f32 %v2352, %v2352
      %v2454 = vmul.f32 %v2353, %v2353
      %v2455 = vmul.f32 %v2354, %v2354
      %v2456 = vmul.f32 %v2355, %v2355
      %v2457 = vmul.f32 %v2356, %v2356
      %v2458 = vmul.f32 %v2357, %v2357
      %v2459 = vmul.f32 %v2358, %v2358
      %v2460 = vmul.f32 %v2359, %v2359
      %v2461 = vmul.f32 %v2360, %v2360
      %v2462 = vmul.f32 %v2361, %v2361
      %v2463 = vmul.f32 %v2362, %v2362
      %v2464 = vmul.f32 %v2363, %v2363
      %v2465 = vmul.f32 %v2364, %v2364
      %v2466 = vmul.f32 %v2365, %v2365
      %v2467 = vmul.f32 %v2366, %v2366
      %v2468 = vmul.f32 %v2367, %v2367
      %v2469 = vmul.f32 %v2368, %v2368
      %v2470 = vmul.f32 %v2369, %v2369
      %v2471 = vmul.f32 %v2370, %v2370
      %v2472 = vadd.f32 %v2448, %v2451
      %v2473 = vadd.f32 %v2472, %v2454
      %v2474 = vadd.f32 %v2473, %v2457
      %v2475 = vadd.f32 %v2474, %v2460
      %v2476 = vadd.f32 %v2475, %v2463
      %v2477 = vadd.f32 %v2476, %v2466
      %v2478 = vadd.f32 %v2477, %v2469
      %v2479 = vadd.f32 %v2449, %v2452
      %v2480 = vadd.f32 %v2479, %v2455
      %v2481 = vadd.f32 %v2480, %v2458
      %v2482 = vadd.f32 %v2481, %v2461
      %v2483 = vadd.f32 %v2482, %v2464
      %v2484 = vadd.f32 %v2483, %v2467
      %v2485 = vadd.f32 %v2484, %v2470
      %v2486 = vadd.f32 %v2450, %v2453
      %v2487 = vadd.f32 %v2486, %v2456
      %v2488 = vadd.f32 %v2487, %v2459
      %v2489 = vadd.f32 %v2488, %v2462
      %v2490 = vadd.f32 %v2489, %v2465
      %v2491 = vadd.f32 %v2490, %v2468
      %v2492 = vadd.f32 %v2491, %v2471
      %v2493 = vadd.f32 %v2478, %v2485
      %v2494 = vadd.f32 %v2493, %v2492
      %v2495 = vrot.slane %v2494, 4
      %v2496 = vadd.f32 %v2494, %v2495
      %v2497 = vrot.slane %v2496, 2
      %v2498 = vadd.f32 %v2496, %v2497
      %v2499 = vrot.slane %v2498, 1
      %v2500 = vadd.f32 %v2498, %v2499
      %vm2501 = vcmask 1040384
      %v2502 = vsel %vm2501, %v2447, %v2500
      %2503 = vst [vmem:[%s413] sm:$0x3] %v2502
      %s2504 = smul.u32 8, %s22
      %p2505 = scmp.lt.s32.totalorder %s21, 1
      %s2506 = scalar_select %p2505, %s21, 1
      %p2507 = scmp.lt.s32.totalorder %s2504, 15
      %s2508 = scalar_select %p2507, %s2504, 15
      %s2509 = smul.addr %s2508, 3
      %s2510 = smul.addr %s2506, 48
      %s2511 = sadd.s32 %s2509, %s2510
      %s2512 = smul.addr %s2511, 4
      %s2513 = scalar_lea.vmem %s4, %s2512
      %p2514 = scmp.lt.s32.totalorder %s21, 1
      %s2515 = scalar_select %p2514, %s21, 1
      %p2516 = scmp.lt.s32.totalorder %s22, 1
      %s2517 = scalar_select %p2516, %s22, 1
      %s2518 = smul.addr %s2515, 2
      %s2519 = sadd.s32 %s2517, %s2518
      %s2520 = smul.addr %s2519, 2
      %s2521 = scalar_lea.vmem %s5, %s2520
      // Predicated region
      $region37: #{double_conv.3} parent=35 // pred_check
        %p2522 = pneg %p170
      $region38: #{double_conv.3} parent=35 // pred_check_branch
        %2524 = sbr.rel (%p2522) target = $region40
      $region39: #{double_conv.3} parent=35 // pred_region
        %s2525 = smul.u32 8, %s22
      $region40: #{double_conv.3} parent=35 // pred_fallthru
        _
      // Predicated region
      $region41: #{double_conv.3} parent=35 // pred_check
        %p2526 = pneg %p198
      $region42: #{double_conv.3} parent=35 // pred_check_branch
        %2528 = sbr.rel (%p2526) target = $region44
      $region43: #{double_conv.3} parent=35 // pred_region
        _
      $region44: #{double_conv.3} parent=35 // pred_fallthru
        _
    $region36: #{double_conv.3} parent=5 // pred_fallthru
      _
    %p2529 = scmp.le.s32.totalorder 2, %s12
    // Predicated region
    $region45: #{double_conv.3} parent=5 // pred_check
      %p2530 = pneg %p2529
    $region46: #{double_conv.3} parent=5 // pred_check_branch
      %2532 = sbr.rel (%p2530) target = $region48
    $region47: #{double_conv.3} parent=5 // pred_region
      %s2533 = ssub.s32 %s12, 2
      // Predicated region
      $region49: #{double_conv.3} parent=47 // pred_check
        %p2534 = pneg %p176
      $region50: #{double_conv.3} parent=47 // pred_check_branch
        %2536 = sbr.rel (%p2534) target = $region52
      $region51: #{double_conv.3} parent=47 // pred_region
        %s2537 = smul.u32 8, %s24
        %p2538 = scmp.lt.s32.totalorder %s23, 1
        %s2539 = scalar_select %p2538, %s23, 1
        %p2540 = scmp.lt.s32.totalorder %s2537, 15
        %s2541 = scalar_select %p2540, %s2537, 15
        %s2542 = smul.addr %s2541, 3
        %s2543 = smul.addr %s2539, 48
        %s2544 = sadd.s32 %s2542, %s2543
        %s2545 = smul.addr %s2544, 4
        %s2546 = scalar_lea.vmem %s4, %s2545
      $region52: #{double_conv.3} parent=47 // pred_fallthru
        _
      // Predicated region
      $region53: #{double_conv.3} parent=47 // pred_check
        %p2547 = pneg %p204
      $region54: #{double_conv.3} parent=47 // pred_check_branch
        %2549 = sbr.rel (%p2547) target = $region56
      $region55: #{double_conv.3} parent=47 // pred_region
        %p2550 = scmp.lt.s32.totalorder %s23, 1
        %s2551 = scalar_select %p2550, %s23, 1
        %p2552 = scmp.lt.s32.totalorder %s24, 1
        %s2553 = scalar_select %p2552, %s24, 1
        %s2554 = smul.addr %s2551, 2
        %s2555 = sadd.s32 %s2553, %s2554
        %s2556 = smul.addr %s2555, 2
        %s2557 = scalar_lea.vmem %s5, %s2556
      $region56: #{double_conv.3} parent=47 // pred_fallthru
        _
    $region48: #{double_conv.3} parent=5 // pred_fallthru
      _
  $region6: #{double_conv.3} parent=0 // loop_footer
    %s16 = sadd.s32 1, %s12
  $region7: #{double_conv.3} parent=0 // loop_footer_branch
    %11 = sbr.rel target = $region3
  $region8: #{double_conv.3} parent=0 // loop_exit
    _

// kernel: double_conv.4
$region0: #{double_conv.4}
  #allocation0 [shape = 'u32[]', space=smem, size = 0x4, offset = 0x4, fixed_abs, tag = 'smem constant byte address 0x4 - core index']
  #allocation1 [shape = 'u32[72,128]{1,0:T(1,128)}', space=vmem, size = 0x9000, scoped, tag = 'internal scratch']
  #allocation2 [shape = 'f32[192,128]{1,0:T(8,128)}', space=vmem, size = 0x18000, scoped, tag = 'scratch operand']
  %s0 = inlined_call_operand.vmem [shape: bf16[2,16,24,128], index: 0, kind: input, shape index: {}, may-alias: {0,1,2}]
  %s1 = inlined_call_operand.vmem [shape: bf16[2,16,24,128], index: 1, kind: input, shape index: {}, may-alias: {0,1,2}]
  %s2 = inlined_call_operand.vmem [shape: bf16[2,16,24,128], index: 2, kind: input, shape index: {}, may-alias: {0,1,2}]
  %s3 = inlined_call_operand.vmem [shape: f32[1,128], index: 3, kind: input, shape index: {}]
  %s4 = inlined_call_operand.vmem [shape: f32[1,128], index: 4, kind: input, shape index: {}]
  %s5 = inlined_call_operand.vmem [shape: bf16[9,128,128], index: 5, kind: input, shape index: {}]
  %s6 = inlined_call_operand.vmem [shape: bf16[2,16,24,128], index: 6, kind: output, shape index: {0}]
  %s7 = inlined_call_operand.vmem [shape: f32[2,2,2,128], index: 7, kind: output, shape index: {1}]
  %8 = xla_tuple %s6, %s7
  %s9 = sld [smem:[#allocation0]]
  $region65: #{double_conv.4} parent=0
    _
  %s11 = ssub.s32 1, %s9
  %s12 = scalar_select 0, %s11, %s9
  loop: start=0, step=1, limit=6
  $region2: #{double_conv.4} parent=0 // loop_pre_header
    _
  $region3: #{double_conv.4} parent=0 // loop_header
    %s14 = sphi 0, %s18
    %p15 = scmp.ge.s32.totalorder %s14, 6
    %s21 = sphi 0, %s33
    %s22 = sphi 0, %s29
    %s23 = sphi 0, %s21
    %s24 = sphi 0, %s22
    %s25 = sphi 0, %s23
    %s26 = sphi 0, %s24
    %s46 = sphi 0, %s48
    %s49 = sphi 0, %s46
    %s50 = sphi 0, %s49
    %s66 = sphi 0, %s50
    %s74 = sphi 0, %s76
    %s77 = sphi 0, %s74
    %s78 = sphi 0, %s77
    %s94 = sphi 0, %s78
    %s110 = sphi 0, %s112
    %s113 = sphi 0, %s110
    %s114 = sphi 0, %s113
    %s130 = sphi 0, %s114
    %s134 = sphi 0, %s134
    %s136 = sphi 0, %s134
    %s137 = sphi 0, %s136
    %s151 = sphi 0, %s137
    %s155 = sphi 0, %s155
    %s157 = sphi 0, %s155
    %s158 = sphi 0, %s157
    %s172 = sphi 0, %s158
    %s176 = sphi 0, %s176
    %s178 = sphi 0, %s176
    %s179 = sphi 0, %s178
    %s193 = sphi 0, %s179
    %s201 = sphi 0, %s203
    %s204 = sphi 0, %s201
    %s205 = sphi 0, %s204
    %s221 = sphi 0, %s205
    %s229 = sphi 0, %s231
    %s232 = sphi 0, %s229
    %s233 = sphi 0, %s232
    %s249 = sphi 0, %s233
  $region4: #{double_conv.4} parent=0 // loop_header_branch
    %17 = sbr.rel (%p15) target = $region8
  $region5: #{double_conv.4} parent=0 // loop_body
    %s19 = ssub.s32 %s14, 1
    %s20 = ssub.s32 %s14, 2
    %s27 = sadd.s32 1, %s22
    %p28 = scmp.ge.s32.totalorder %s27, 2
    %s29 = scalar_select %p28, 0, %s27
    %s30 = sadd.s32 1, %s21
    %s31 = scalar_select %p28, %s30, %s21
    %p32 = scmp.ge.s32.totalorder %s31, 2
    %s33 = scalar_select %p32, 0, %s31
    %s34 = smul.u32 %s22, 8
    %s35 = ssub.s32 %s34, 1
    %p36 = scmp.gt.s32.totalorder %s35, 0
    %s37 = scalar_select %p36, %s35, 0
    %s38 = smul.u32 %s29, 8
    %s39 = ssub.s32 %s38, 1
    %p40 = scmp.gt.s32.totalorder %s39, 0
    %s41 = scalar_select %p40, %s39, 0
    %s42 = ssub.s32 %s21, %s33
    %s43 = ssub.s32 %s37, %s41
    %s44 = sor.u32 %s42, %s43
    %p45 = scmp.eq.s32.totalorder %s44, 0
    %s47 = sadd.s32 %s46, 1
    %s48 = scalar_select %p45, %s46, %s47
    %p51 = pneg %p45
    %p52 = scmp.eq.s32.totalorder %s14, 3
    %p53 = por %p51, %p52
    %p54 = scmp.ne.s32.totalorder %s46, %s49
    %p55 = scmp.eq.s32.totalorder %s14, 0
    %p56 = por %p54, %p55
    %p57 = scmp.ne.s32.totalorder %s46, %s49
    %p58 = scmp.eq.s32.totalorder %s19, 3
    %p59 = por %p57, %p58
    %p60 = scmp.ne.s32.totalorder %s49, %s50
    %p61 = scmp.eq.s32.totalorder %s19, 0
    %p62 = por %p60, %p61
    %p63 = scmp.ne.s32.totalorder %s49, %s50
    %p64 = scmp.eq.s32.totalorder %s20, 3
    %p65 = por %p63, %p64
    %p67 = scmp.ne.s32.totalorder %s50, %s66
    %p68 = scmp.eq.s32.totalorder %s20, 0
    %p69 = por %p67, %p68
    %s70 = ssub.s32 %s21, %s33
    %s71 = ssub.s32 %s22, %s29
    %s72 = sor.u32 %s70, %s71
    %p73 = scmp.eq.s32.totalorder %s72, 0
    %s75 = sadd.s32 %s74, 1
    %s76 = scalar_select %p73, %s74, %s75
    %p79 = pneg %p73
    %p80 = scmp.eq.s32.totalorder %s14, 3
    %p81 = por %p79, %p80
    %p82 = scmp.ne.s32.totalorder %s74, %s77
    %p83 = scmp.eq.s32.totalorder %s14, 0
    %p84 = por %p82, %p83
    %p85 = scmp.ne.s32.totalorder %s74, %s77
    %p86 = scmp.eq.s32.totalorder %s19, 3
    %p87 = por %p85, %p86
    %p88 = scmp.ne.s32.totalorder %s77, %s78
    %p89 = scmp.eq.s32.totalorder %s19, 0
    %p90 = por %p88, %p89
    %p91 = scmp.ne.s32.totalorder %s77, %s78
    %p92 = scmp.eq.s32.totalorder %s20, 3
    %p93 = por %p91, %p92
    %p95 = scmp.ne.s32.totalorder %s78, %s94
    %p96 = scmp.eq.s32.totalorder %s20, 0
    %p97 = por %p95, %p96
    %s98 = sadd.s32 %s22, 1
    %s99 = smul.u32 %s98, 8
    %p100 = scmp.lt.s32.totalorder %s99, 15
    %s101 = scalar_select %p100, %s99, 15
    %s102 = sadd.s32 %s29, 1
    %s103 = smul.u32 %s102, 8
    %p104 = scmp.lt.s32.totalorder %s103, 15
    %s105 = scalar_select %p104, %s103, 15
    %s106 = ssub.s32 %s21, %s33
    %s107 = ssub.s32 %s101, %s105
    %s108 = sor.u32 %s106, %s107
    %p109 = scmp.eq.s32.totalorder %s108, 0
    %s111 = sadd.s32 %s110, 1
    %s112 = scalar_select %p109, %s110, %s111
    %p115 = pneg %p109
    %p116 = scmp.eq.s32.totalorder %s14, 3
    %p117 = por %p115, %p116
    %p118 = scmp.ne.s32.totalorder %s110, %s113
    %p119 = scmp.eq.s32.totalorder %s14, 0
    %p120 = por %p118, %p119
    %p121 = scmp.ne.s32.totalorder %s110, %s113
    %p122 = scmp.eq.s32.totalorder %s19, 3
    %p123 = por %p121, %p122
    %p124 = scmp.ne.s32.totalorder %s113, %s114
    %p125 = scmp.eq.s32.totalorder %s19, 0
    %p126 = por %p124, %p125
    %p127 = scmp.ne.s32.totalorder %s113, %s114
    %p128 = scmp.eq.s32.totalorder %s20, 3
    %p129 = por %p127, %p128
    %p131 = scmp.ne.s32.totalorder %s114, %s130
    %p132 = scmp.eq.s32.totalorder %s20, 0
    %p133 = por %p131, %p132
    %s135 = sadd.s32 %s134, 1
    %p138 = scmp.eq.s32.totalorder %s14, 3
    %p139 = scmp.ne.s32.totalorder %s134, %s136
    %p140 = scmp.eq.s32.totalorder %s14, 0
    %p141 = por %p139, %p140
    %p142 = scmp.ne.s32.totalorder %s134, %s136
    %p143 = scmp.eq.s32.totalorder %s19, 3
    %p144 = por %p142, %p143
    %p145 = scmp.ne.s32.totalorder %s136, %s137
    %p146 = scmp.eq.s32.totalorder %s19, 0
    %p147 = por %p145, %p146
    %p148 = scmp.ne.s32.totalorder %s136, %s137
    %p149 = scmp.eq.s32.totalorder %s20, 3
    %p150 = por %p148, %p149
    %p152 = scmp.ne.s32.totalorder %s137, %s151
    %p153 = scmp.eq.s32.totalorder %s20, 0
    %p154 = por %p152, %p153
    %s156 = sadd.s32 %s155, 1
    %p159 = scmp.eq.s32.totalorder %s14, 3
    %p160 = scmp.ne.s32.totalorder %s155, %s157
    %p161 = scmp.eq.s32.totalorder %s14, 0
    %p162 = por %p160, %p161
    %p163 = scmp.ne.s32.totalorder %s155, %s157
    %p164 = scmp.eq.s32.totalorder %s19, 3
    %p165 = por %p163, %p164
    %p166 = scmp.ne.s32.totalorder %s157, %s158
    %p167 = scmp.eq.s32.totalorder %s19, 0
    %p168 = por %p166, %p167
    %p169 = scmp.ne.s32.totalorder %s157, %s158
    %p170 = scmp.eq.s32.totalorder %s20, 3
    %p171 = por %p169, %p170
    %p173 = scmp.ne.s32.totalorder %s158, %s172
    %p174 = scmp.eq.s32.totalorder %s20, 0
    %p175 = por %p173, %p174
    %s177 = sadd.s32 %s176, 1
    %p180 = scmp.eq.s32.totalorder %s14, 3
    %p181 = scmp.ne.s32.totalorder %s176, %s178
    %p182 = scmp.eq.s32.totalorder %s14, 0
    %p183 = por %p181, %p182
    %p184 = scmp.ne.s32.totalorder %s176, %s178
    %p185 = scmp.eq.s32.totalorder %s19, 3
    %p186 = por %p184, %p185
    %p187 = scmp.ne.s32.totalorder %s178, %s179
    %p188 = scmp.eq.s32.totalorder %s19, 0
    %p189 = por %p187, %p188
    %p190 = scmp.ne.s32.totalorder %s178, %s179
    %p191 = scmp.eq.s32.totalorder %s20, 3
    %p192 = por %p190, %p191
    %p194 = scmp.ne.s32.totalorder %s179, %s193
    %p195 = scmp.eq.s32.totalorder %s20, 0
    %p196 = por %p194, %p195
    %s197 = ssub.s32 %s21, %s33
    %s198 = ssub.s32 %s22, %s29
    %s199 = sor.u32 %s197, %s198
    %p200 = scmp.eq.s32.totalorder %s199, 0
    %s202 = sadd.s32 %s201, 1
    %s203 = scalar_select %p200, %s201, %s202
    %p206 = pneg %p200
    %p207 = scmp.eq.s32.totalorder %s14, 3
    %p208 = por %p206, %p207
    %p209 = scmp.ne.s32.totalorder %s201, %s204
    %p210 = scmp.eq.s32.totalorder %s14, 0
    %p211 = por %p209, %p210
    %p212 = scmp.ne.s32.totalorder %s201, %s204
    %p213 = scmp.eq.s32.totalorder %s19, 3
    %p214 = por %p212, %p213
    %p215 = scmp.ne.s32.totalorder %s204, %s205
    %p216 = scmp.eq.s32.totalorder %s19, 0
    %p217 = por %p215, %p216
    %p218 = scmp.ne.s32.totalorder %s204, %s205
    %p219 = scmp.eq.s32.totalorder %s20, 3
    %p220 = por %p218, %p219
    %p222 = scmp.ne.s32.totalorder %s205, %s221
    %p223 = scmp.eq.s32.totalorder %s20, 0
    %p224 = por %p222, %p223
    %s225 = ssub.s32 %s21, %s33
    %s226 = ssub.s32 %s22, %s29
    %s227 = sor.u32 %s225, %s226
    %p228 = scmp.eq.s32.totalorder %s227, 0
    %s230 = sadd.s32 %s229, 1
    %s231 = scalar_select %p228, %s229, %s230
    %p234 = pneg %p228
    %p235 = scmp.eq.s32.totalorder %s14, 3
    %p236 = por %p234, %p235
    %p237 = scmp.ne.s32.totalorder %s229, %s232
    %p238 = scmp.eq.s32.totalorder %s14, 0
    %p239 = por %p237, %p238
    %p240 = scmp.ne.s32.totalorder %s229, %s232
    %p241 = scmp.eq.s32.totalorder %s19, 3
    %p242 = por %p240, %p241
    %p243 = scmp.ne.s32.totalorder %s232, %s233
    %p244 = scmp.eq.s32.totalorder %s19, 0
    %p245 = por %p243, %p244
    %p246 = scmp.ne.s32.totalorder %s232, %s233
    %p247 = scmp.eq.s32.totalorder %s20, 3
    %p248 = por %p246, %p247
    %p250 = scmp.ne.s32.totalorder %s233, %s249
    %p251 = scmp.eq.s32.totalorder %s20, 0
    %p252 = por %p250, %p251
    %p253 = scmp.le.s32.totalorder 1, %s14
    %p254 = scmp.lt.s32.totalorder %s14, 5
    %p255 = pnand %p253, %p254
    %p256 = pneg %p255
    // Predicated region
    $region9: #{double_conv.4} parent=5 // pred_check
      _
    $region10: #{double_conv.4} parent=5 // pred_check_branch
      %258 = sbr.rel (%p255) target = $region12
    $region11: #{double_conv.4} parent=5 // pred_region
      %s259 = ssub.s32 %s14, 1
      // Predicated region
      $region13: #{double_conv.4} parent=11 // pred_check
        %p260 = pneg %p147
      $region14: #{double_conv.4} parent=11 // pred_check_branch
        %262 = sbr.rel (%p260) target = $region16
      $region15: #{double_conv.4} parent=11 // pred_region
        _
      $region16: #{double_conv.4} parent=11 // pred_fallthru
        _
      // Predicated region
      $region17: #{double_conv.4} parent=11 // pred_check
        %p263 = pneg %p168
      $region18: #{double_conv.4} parent=11 // pred_check_branch
        %265 = sbr.rel (%p263) target = $region20
      $region19: #{double_conv.4} parent=11 // pred_region
        _
      $region20: #{double_conv.4} parent=11 // pred_fallthru
        _
      // Predicated region
      $region21: #{double_conv.4} parent=11 // pred_check
        %p266 = pneg %p189
      $region22: #{double_conv.4} parent=11 // pred_check_branch
        %268 = sbr.rel (%p266) target = $region24
      $region23: #{double_conv.4} parent=11 // pred_region
        _
      $region24: #{double_conv.4} parent=11 // pred_fallthru
        _
    $region12: #{double_conv.4} parent=5 // pred_fallthru
      _
    %p269 = scmp.lt.s32.totalorder %s14, 4
    // Predicated region
    $region25: #{double_conv.4} parent=5 // pred_check
      %p270 = pneg %p269
    $region26: #{double_conv.4} parent=5 // pred_check_branch
      %272 = sbr.rel (%p270) target = $region28
    $region27: #{double_conv.4} parent=5 // pred_region
      // Predicated region
      $region29: #{double_conv.4} parent=27 // pred_check
        %p273 = pneg %p56
      $region30: #{double_conv.4} parent=27 // pred_check_branch
        %275 = sbr.rel (%p273) target = $region32
      $region31: #{double_conv.4} parent=27 // pred_region
        %s276 = smul.u32 %s22, 8
        %s277 = ssub.s32 %s276, 1
        %p278 = scmp.gt.s32.totalorder %s277, 0
        %s279 = scalar_select %p278, %s277, 0
        %p280 = scmp.lt.s32.totalorder %s21, 1
        %s281 = scalar_select %p280, %s21, 1
        %p282 = scmp.lt.s32.totalorder %s279, 15
        %s283 = scalar_select %p282, %s279, 15
        %s284 = smul.addr %s283, 3
        %s285 = smul.addr %s281, 48
        %s286 = sadd.s32 %s284, %s285
        %s287 = smul.addr %s286, 4
        %s288 = scalar_lea.vmem %s0, %s287
        %s289 = smul.u32 %s22, 8
        %s290 = ssub.s32 %s289, 1
        %p291 = scmp.gt.s32.totalorder %s290, 0
        %s292 = scalar_select %p291, %s290, 0
      $region32: #{double_conv.4} parent=27 // pred_fallthru
        _
      // Predicated region
      $region33: #{double_conv.4} parent=27 // pred_check
        %p293 = pneg %p84
      $region34: #{double_conv.4} parent=27 // pred_check_branch
        %295 = sbr.rel (%p293) target = $region36
      $region35: #{double_conv.4} parent=27 // pred_region
        %s296 = smul.u32 8, %s22
        %p297 = scmp.lt.s32.totalorder %s21, 1
        %s298 = scalar_select %p297, %s21, 1
        %p299 = scmp.lt.s32.totalorder %s296, 15
        %s300 = scalar_select %p299, %s296, 15
        %s301 = smul.addr %s300, 3
        %s302 = smul.addr %s298, 48
        %s303 = sadd.s32 %s301, %s302
        %s304 = smul.addr %s303, 4
        %s305 = scalar_lea.vmem %s1, %s304
        %s306 = smul.u32 8, %s22
      $region36: #{double_conv.4} parent=27 // pred_fallthru
        _
      // Predicated region
      $region37: #{double_conv.4} parent=27 // pred_check
        %p307 = pneg %p120
      $region38: #{double_conv.4} parent=27 // pred_check_branch
        %309 = sbr.rel (%p307) target = $region40
      $region39: #{double_conv.4} parent=27 // pred_region
        %s310 = sadd.s32 %s22, 1
        %s311 = smul.u32 %s310, 8
        %p312 = scmp.lt.s32.totalorder %s311, 15
        %s313 = scalar_select %p312, %s311, 15
        %p314 = scmp.lt.s32.totalorder %s21, 1
        %s315 = scalar_select %p314, %s21, 1
        %p316 = scmp.lt.s32.totalorder %s313, 15
        %s317 = scalar_select %p316, %s313, 15
        %s318 = smul.addr %s317, 3
        %s319 = smul.addr %s315, 48
        %s320 = sadd.s32 %s318, %s319
        %s321 = smul.addr %s320, 4
        %s322 = scalar_lea.vmem %s2, %s321
        %s323 = sadd.s32 %s22, 1
        %s324 = smul.u32 %s323, 8
        %p325 = scmp.lt.s32.totalorder %s324, 15
        %s326 = scalar_select %p325, %s324, 15
      $region40: #{double_conv.4} parent=27 // pred_fallthru
        _
    $region28: #{double_conv.4} parent=5 // pred_fallthru
      _
    %p327 = scmp.le.s32.totalorder 1, %s14
    %p328 = scmp.lt.s32.totalorder %s14, 5
    %p329 = pnand %p327, %p328
    %p330 = pneg %p329
    // Predicated region
    $region41: #{double_conv.4} parent=5 // pred_check
      _
    $region42: #{double_conv.4} parent=5 // pred_check_branch
      %332 = sbr.rel (%p329) target = $region44
    $region43: #{double_conv.4} parent=5 // pred_region
      %s333 = ssub.s32 %s14, 1
      %s334 = smul.u32 %s24, 8
      %s335 = ssub.s32 %s334, 1
      %p336 = scmp.gt.s32.totalorder %s335, 0
      %s337 = scalar_select %p336, %s335, 0
      %p338 = scmp.lt.s32.totalorder %s23, 1
      %s339 = scalar_select %p338, %s23, 1
      %p340 = scmp.lt.s32.totalorder %s337, 15
      %s341 = scalar_select %p340, %s337, 15
      %s342 = smul.addr %s341, 3
      %s343 = smul.addr %s339, 48
      %s344 = sadd.s32 %s342, %s343
      %s345 = smul.addr %s344, 4
      %s346 = scalar_lea.vmem %s0, %s345
      %p347 = pneg %p62
      %p348 = pneg %p59
      %s349 = smul.u32 8, %s24
      %p350 = scmp.lt.s32.totalorder %s23, 1
      %s351 = scalar_select %p350, %s23, 1
      %p352 = scmp.lt.s32.totalorder %s349, 15
      %s353 = scalar_select %p352, %s349, 15
      %s354 = smul.addr %s353, 3
      %s355 = smul.addr %s351, 48
      %s356 = sadd.s32 %s354, %s355
      %s357 = smul.addr %s356, 4
      %s358 = scalar_lea.vmem %s1, %s357
      %p359 = pneg %p90
      %p360 = pneg %p87
      %s361 = sadd.s32 %s24, 1
      %s362 = smul.u32 %s361, 8
      %p363 = scmp.lt.s32.totalorder %s362, 15
      %s364 = scalar_select %p363, %s362, 15
      %p365 = scmp.lt.s32.totalorder %s23, 1
      %s366 = scalar_select %p365, %s23, 1
      %p367 = scmp.lt.s32.totalorder %s364, 15
      %s368 = scalar_select %p367, %s364, 15
      %s369 = smul.addr %s368, 3
      %s370 = smul.addr %s366, 48
      %s371 = sadd.s32 %s369, %s370
      %s372 = smul.addr %s371, 4
      %s373 = scalar_lea.vmem %s2, %s372
      %p374 = pneg %p126
      %p375 = pneg %p123
      %p376 = pneg %p147
      %p377 = pneg %p144
      %p378 = pneg %p168
      %p379 = pneg %p165
      %p380 = pneg %p189
      %p381 = pneg %p186
      %p382 = pneg %p217
      %p383 = pneg %p214
      %s384 = smul.u32 8, %s24
      %p385 = scmp.lt.s32.totalorder %s23, 1
      %s386 = scalar_select %p385, %s23, 1
      %p387 = scmp.lt.s32.totalorder %s384, 15
      %s388 = scalar_select %p387, %s384, 15
      %s389 = smul.addr %s388, 3
      %s390 = smul.addr %s386, 48
      %s391 = sadd.s32 %s389, %s390
      %s392 = smul.addr %s391, 4
      %s393 = scalar_lea.vmem %s6, %s392
      %p394 = pneg %p245
      %p395 = pneg %p242
      %p396 = scmp.lt.s32.totalorder %s23, 1
      %s397 = scalar_select %p396, %s23, 1
      %p398 = scmp.lt.s32.totalorder %s24, 1
      %s399 = scalar_select %p398, %s24, 1
      %s400 = smul.addr %s397, 2
      %s401 = sadd.s32 %s399, %s400
      %s402 = smul.addr %s401, 2
      %s403 = scalar_lea.vmem %s7, %s402
      %s404 = smul.u32 %s24, 8
      %s405 = ssub.s32 %s404, 1
      %p406 = scmp.gt.s32.totalorder %s405, 0
      %s407 = scalar_select %p406, %s405, 0
      %p408 = scmp.lt.s32.totalorder %s23, 1
      %s409 = scalar_select %p408, %s23, 1
      %p410 = scmp.lt.s32.totalorder %s407, 15
      %s411 = scalar_select %p410, %s407, 15
      %s412 = smul.addr %s411, 3
      %s413 = smul.addr %s409, 48
      %s414 = sadd.s32 %s412, %s413
      %s415 = smul.addr %s414, 4
      %s416 = scalar_lea.vmem %s0, %s415
      %s417 = smul.u32 %s24, 8
      %s418 = ssub.s32 %s417, 1
      %p419 = scmp.gt.s32.totalorder %s418, 0
      %s420 = scalar_select %p419, %s418, 0
      %s421 = smul.u32 8, %s24
      %p422 = scmp.lt.s32.totalorder %s23, 1
      %s423 = scalar_select %p422, %s23, 1
      %p424 = scmp.lt.s32.totalorder %s421, 15
      %s425 = scalar_select %p424, %s421, 15
      %s426 = smul.addr %s425, 3
      %s427 = smul.addr %s423, 48
      %s428 = sadd.s32 %s426, %s427
      %s429 = smul.addr %s428, 4
      %s430 = scalar_lea.vmem %s1, %s429
      %s431 = smul.u32 8, %s24
      %s432 = sadd.s32 %s24, 1
      %s433 = smul.u32 %s432, 8
      %p434 = scmp.lt.s32.totalorder %s433, 15
      %s435 = scalar_select %p434, %s433, 15
      %p436 = scmp.lt.s32.totalorder %s23, 1
      %s437 = scalar_select %p436, %s23, 1
      %p438 = scmp.lt.s32.totalorder %s435, 15
      %s439 = scalar_select %p438, %s435, 15
      %s440 = smul.addr %s439, 3
      %s441 = smul.addr %s437, 48
      %s442 = sadd.s32 %s440, %s441
      %s443 = smul.addr %s442, 4
      %s444 = scalar_lea.vmem %s2, %s443
      %s445 = sadd.s32 %s24, 1
      %s446 = smul.u32 %s445, 8
      %p447 = scmp.lt.s32.totalorder %s446, 15
      %s448 = scalar_select %p447, %s446, 15
      %s449 = smul.u32 8, %s24
      %p450 = scmp.lt.s32.totalorder %s23, 1
      %s451 = scalar_select %p450, %s23, 1
      %p452 = scmp.lt.s32.totalorder %s449, 15
      %s453 = scalar_select %p452, %s449, 15
      %s454 = smul.addr %s453, 3
      %s455 = smul.addr %s451, 48
      %s456 = sadd.s32 %s454, %s455
      %s457 = smul.addr %s456, 4
      %s458 = scalar_lea.vmem %s6, %s457
      %s459 = smul.u32 8, %s24
      %p460 = scmp.lt.s32.totalorder %s23, 1
      %s461 = scalar_select %p460, %s23, 1
      %p462 = scmp.lt.s32.totalorder %s24, 1
      %s463 = scalar_select %p462, %s24, 1
      %s464 = smul.addr %s461, 2
      %s465 = sadd.s32 %s463, %s464
      %s466 = smul.addr %s465, 2
      %s467 = scalar_lea.vmem %s7, %s466
      %v469 = vld [vmem:[%s416] sm:$0xf]
      %v470 = vld [vmem:[%s416 + $0x4] sm:$0xf]
      %v471 = vld [vmem:[%s416 + $0x8] sm:$0xf]
      %v472 = vld [vmem:[%s430] sm:$0xf]
      %v473 = vld [vmem:[%s430 + $0x4] sm:$0xf]
      %v474 = vld [vmem:[%s430 + $0x8] sm:$0xf]
      %v475 = vld [vmem:[%s430 + $0xc] sm:$0xf]
      %v476 = vld [vmem:[%s430 + $0x10] sm:$0xf]
      %v477 = vld [vmem:[%s430 + $0x14] sm:$0xf]
      %v478 = vld [vmem:[%s430 + $0x18] sm:$0xf]
      %v479 = vld [vmem:[%s430 + $0x1c] sm:$0xf]
      %v480 = vld [vmem:[%s430 + $0x20] sm:$0xf]
      %v481 = vld [vmem:[%s430 + $0x24] sm:$0xf]
      %v482 = vld [vmem:[%s430 + $0x28] sm:$0xf]
      %v483 = vld [vmem:[%s430 + $0x2c] sm:$0xf]
      %v484 = vld [vmem:[%s430 + $0x30] sm:$0xf]
      %v485 = vld [vmem:[%s430 + $0x34] sm:$0xf]
      %v486 = vld [vmem:[%s430 + $0x38] sm:$0xf]
      %v487 = vld [vmem:[%s430 + $0x3c] sm:$0xf]
      %v488 = vld [vmem:[%s430 + $0x40] sm:$0xf]
      %v489 = vld [vmem:[%s430 + $0x44] sm:$0xf]
      %v490 = vld [vmem:[%s430 + $0x48] sm:$0xf]
      %v491 = vld [vmem:[%s430 + $0x4c] sm:$0xf]
      %v492 = vld [vmem:[%s430 + $0x50] sm:$0xf]
      %v493 = vld [vmem:[%s430 + $0x54] sm:$0xf]
      %v494 = vld [vmem:[%s430 + $0x58] sm:$0xf]
      %v495 = vld [vmem:[%s430 + $0x5c] sm:$0xf]
      %v496 = vld [vmem:[%s444] sm:$0xf]
      %v497 = vld [vmem:[%s444 + $0x4] sm:$0xf]
      %v498 = vld [vmem:[%s444 + $0x8] sm:$0xf]
      %v499 = vlaneseq
      %v500 = vshrl.u32 %v499, 7
      %v501 = vadd.s32 %v500, 8
      %v502 = vadd.s32 %v500, 16
      %vm503 = vcmp.ge.s32.totalorder %v500, 1
      %vm504 = vcmp.ge.s32.totalorder %v501, 1
      %vm505 = vcmp.ge.s32.totalorder %v502, 1
      %vm506 = vcmp.le.s32.totalorder %v500, 16
      %vm507 = vcmp.le.s32.totalorder %v501, 16
      %vm508 = vcmp.le.s32.totalorder %v502, 16
      %vm509 = vmand %vm503, %vm506
      %vm510 = vmand %vm504, %vm507
      %vm511 = vmand %vm505, %vm508
      %p512 = scmp.gt.s32.totalorder %s24, 0
      %s513 = scalar_select %p512, 1, 0
      %v514 = vstv %s513
      %vm515 = vcmp.eq.s32.totalorder %v514, 1
      %vm516 = vmand %vm509, %vm515
      %vm517 = vmand %vm510, %vm515
      %vm518 = vmand %vm511, %vm515
      %vm519 = vmand %vm509, 1
      %vm520 = vmand %vm510, 1
      %vm521 = vmand %vm511, 1
      %p522 = scmp.lt.s32.totalorder %s24, 1
      %s523 = scalar_select %p522, 1, 0
      %v524 = vstv %s523
      %vm525 = vcmp.eq.s32.totalorder %v524, 1
      %vm526 = vmand %vm516, 1
      %vm527 = vmand %vm517, 1
      %vm528 = vmand %vm518, 1
      %vm529 = vmand %vm519, %vm525
      %vm530 = vmand %vm520, %vm525
      %vm531 = vmand %vm521, %vm525
      %v532 = vunpack.c.l.bf16 %v469
      %v533 = vunpack.c.l.bf16 %v470
      %v534 = vunpack.c.l.bf16 %v471
      %v535 = vunpack.c.l.bf16 %v472
      %v536 = vunpack.c.l.bf16 %v473
      %v537 = vunpack.c.l.bf16 %v474
      %v538 = vunpack.c.l.bf16 %v475
      %v539 = vunpack.c.l.bf16 %v476
      %v540 = vunpack.c.l.bf16 %v477
      %v541 = vunpack.c.l.bf16 %v478
      %v542 = vunpack.c.l.bf16 %v479
      %v543 = vunpack.c.l.bf16 %v480
      %v544 = vunpack.c.l.bf16 %v481
      %v545 = vunpack.c.l.bf16 %v482
      %v546 = vunpack.c.l.bf16 %v483
      %v547 = vunpack.c.l.bf16 %v484
      %v548 = vunpack.c.l.bf16 %v485
      %v549 = vunpack.c.l.bf16 %v486
      %v550 = vunpack.c.l.bf16 %v487
      %v551 = vunpack.c.l.bf16 %v488
      %v552 = vunpack.c.l.bf16 %v489
      %v553 = vunpack.c.l.bf16 %v490
      %v554 = vunpack.c.l.bf16 %v491
      %v555 = vunpack.c.l.bf16 %v492
      %v556 = vunpack.c.l.bf16 %v493
      %v557 = vunpack.c.l.bf16 %v494
      %v558 = vunpack.c.l.bf16 %v495
      %v559 = vunpack.c.l.bf16 %v496
      %v560 = vunpack.c.l.bf16 %v497
      %v561 = vunpack.c.l.bf16 %v498
      %v562 = vld [vmem:[%s3] sm:$0x1]
      %v564 = vperm.slane %v562, 0
      %v566 = vmul.f32 %v532, %v564
      %v567 = vmul.f32 %v533, %v564
      %v568 = vmul.f32 %v534, %v564
      %v569 = vmul.f32 %v535, %v564
      %v570 = vmul.f32 %v536, %v564
      %v571 = vmul.f32 %v537, %v564
      %v572 = vmul.f32 %v538, %v564
      %v573 = vmul.f32 %v539, %v564
      %v574 = vmul.f32 %v540, %v564
      %v575 = vmul.f32 %v541, %v564
      %v576 = vmul.f32 %v542, %v564
      %v577 = vmul.f32 %v543, %v564
      %v578 = vmul.f32 %v544, %v564
      %v579 = vmul.f32 %v545, %v564
      %v580 = vmul.f32 %v546, %v564
      %v581 = vmul.f32 %v547, %v564
      %v582 = vmul.f32 %v548, %v564
      %v583 = vmul.f32 %v549, %v564
      %v584 = vmul.f32 %v550, %v564
      %v585 = vmul.f32 %v551, %v564
      %v586 = vmul.f32 %v552, %v564
      %v587 = vmul.f32 %v553, %v564
      %v588 = vmul.f32 %v554, %v564
      %v589 = vmul.f32 %v555, %v564
      %v590 = vmul.f32 %v556, %v564
      %v591 = vmul.f32 %v557, %v564
      %v592 = vmul.f32 %v558, %v564
      %v593 = vmul.f32 %v559, %v564
      %v594 = vmul.f32 %v560, %v564
      %v595 = vmul.f32 %v561, %v564
      %v596 = vld [vmem:[%s4] sm:$0x1]
      %v598 = vperm.slane %v596, 0
      %v600 = vadd.f32 %v566, %v598
      %v601 = vadd.f32 %v567, %v598
      %v602 = vadd.f32 %v568, %v598
      %v603 = vadd.f32 %v569, %v598
      %v604 = vadd.f32 %v570, %v598
      %v605 = vadd.f32 %v571, %v598
      %v606 = vadd.f32 %v572, %v598
      %v607 = vadd.f32 %v573, %v598
      %v608 = vadd.f32 %v574, %v598
      %v609 = vadd.f32 %v575, %v598
      %v610 = vadd.f32 %v576, %v598
      %v611 = vadd.f32 %v577, %v598
      %v612 = vadd.f32 %v578, %v598
      %v613 = vadd.f32 %v579, %v598
      %v614 = vadd.f32 %v580, %v598
      %v615 = vadd.f32 %v581, %v598
      %v616 = vadd.f32 %v582, %v598
      %v617 = vadd.f32 %v583, %v598
      %v618 = vadd.f32 %v584, %v598
      %v619 = vadd.f32 %v585, %v598
      %v620 = vadd.f32 %v586, %v598
      %v621 = vadd.f32 %v587, %v598
      %v622 = vadd.f32 %v588, %v598
      %v623 = vadd.f32 %v589, %v598
      %v624 = vadd.f32 %v590, %v598
      %v625 = vadd.f32 %v591, %v598
      %v626 = vadd.f32 %v592, %v598
      %v627 = vadd.f32 %v593, %v598
      %v628 = vadd.f32 %v594, %v598
      %v629 = vadd.f32 %v595, %v598
      %v630 = vmax.f32 %v600, 0.0
      %v631 = vmax.f32 %v601, 0.0
      %v632 = vmax.f32 %v602, 0.0
      %v633 = vmax.f32 %v603, 0.0
      %v634 = vmax.f32 %v604, 0.0
      %v635 = vmax.f32 %v605, 0.0
      %v636 = vmax.f32 %v606, 0.0
      %v637 = vmax.f32 %v607, 0.0
      %v638 = vmax.f32 %v608, 0.0
      %v639 = vmax.f32 %v609, 0.0
      %v640 = vmax.f32 %v610, 0.0
      %v641 = vmax.f32 %v611, 0.0
      %v642 = vmax.f32 %v612, 0.0
      %v643 = vmax.f32 %v613, 0.0
      %v644 = vmax.f32 %v614, 0.0
      %v645 = vmax.f32 %v615, 0.0
      %v646 = vmax.f32 %v616, 0.0
      %v647 = vmax.f32 %v617, 0.0
      %v648 = vmax.f32 %v618, 0.0
      %v649 = vmax.f32 %v619, 0.0
      %v650 = vmax.f32 %v620, 0.0
      %v651 = vmax.f32 %v621, 0.0
      %v652 = vmax.f32 %v622, 0.0
      %v653 = vmax.f32 %v623, 0.0
      %v654 = vmax.f32 %v624, 0.0
      %v655 = vmax.f32 %v625, 0.0
      %v656 = vmax.f32 %v626, 0.0
      %v657 = vmax.f32 %v627, 0.0
      %v658 = vmax.f32 %v628, 0.0
      %v659 = vmax.f32 %v629, 0.0
      %v660 = vsel %vm526, %v630, 0.0
      %v661 = vsel %vm527, %v631, 0.0
      %v662 = vsel %vm528, %v632, 0.0
      %v663 = vsel %vm519, %v633, 0.0
      %v664 = vsel %vm520, %v634, 0.0
      %v665 = vsel %vm521, %v635, 0.0
      %v666 = vsel %vm519, %v636, 0.0
      %v667 = vsel %vm520, %v637, 0.0
      %v668 = vsel %vm521, %v638, 0.0
      %v669 = vsel %vm519, %v639, 0.0
      %v670 = vsel %vm520, %v640, 0.0
      %v671 = vsel %vm521, %v641, 0.0
      %v672 = vsel %vm519, %v642, 0.0
      %v673 = vsel %vm520, %v643, 0.0
      %v674 = vsel %vm521, %v644, 0.0
      %v675 = vsel %vm519, %v645, 0.0
      %v676 = vsel %vm520, %v646, 0.0
      %v677 = vsel %vm521, %v647, 0.0
      %v678 = vsel %vm519, %v648, 0.0
      %v679 = vsel %vm520, %v649, 0.0
      %v680 = vsel %vm521, %v650, 0.0
      %v681 = vsel %vm519, %v651, 0.0
      %v682 = vsel %vm520, %v652, 0.0
      %v683 = vsel %vm521, %v653, 0.0
      %v684 = vsel %vm519, %v654, 0.0
      %v685 = vsel %vm520, %v655, 0.0
      %v686 = vsel %vm521, %v656, 0.0
      %v687 = vsel %vm529, %v657, 0.0
      %v688 = vsel %vm530, %v658, 0.0
      %v689 = vsel %vm531, %v659, 0.0
      %v690 = vpack.c.bf16 %v660, %v660
      %v691 = vpack.c.bf16 %v661, %v661
      %v692 = vpack.c.bf16 %v662, %v662
      %v693 = vpack.c.bf16 %v663, %v663
      %v694 = vpack.c.bf16 %v664, %v664
      %v695 = vpack.c.bf16 %v665, %v665
      %v696 = vpack.c.bf16 %v666, %v666
      %v697 = vpack.c.bf16 %v667, %v667
      %v698 = vpack.c.bf16 %v668, %v668
      %v699 = vpack.c.bf16 %v669, %v669
      %v700 = vpack.c.bf16 %v670, %v670
      %v701 = vpack.c.bf16 %v671, %v671
      %v702 = vpack.c.bf16 %v672, %v672
      %v703 = vpack.c.bf16 %v673, %v673
      %v704 = vpack.c.bf16 %v674, %v674
      %v705 = vpack.c.bf16 %v675, %v675
      %v706 = vpack.c.bf16 %v676, %v676
      %v707 = vpack.c.bf16 %v677, %v677
      %v708 = vpack.c.bf16 %v678, %v678
      %v709 = vpack.c.bf16 %v679, %v679
      %v710 = vpack.c.bf16 %v680, %v680
      %v711 = vpack.c.bf16 %v681, %v681
      %v712 = vpack.c.bf16 %v682, %v682
      %v713 = vpack.c.bf16 %v683, %v683
      %v714 = vpack.c.bf16 %v684, %v684
      %v715 = vpack.c.bf16 %v685, %v685
      %v716 = vpack.c.bf16 %v686, %v686
      %v717 = vpack.c.bf16 %v687, %v687
      %v718 = vpack.c.bf16 %v688, %v688
      %v719 = vpack.c.bf16 %v689, %v689
      %v750 = vunpack.c.l.b16 %v690
      %v751 = vunpack.c.l.b16 %v691
      %v752 = vunpack.c.l.b16 %v692
      %v753 = vunpack.c.l.b16 %v693
      %v754 = vunpack.c.l.b16 %v694
      %v755 = vunpack.c.l.b16 %v695
      %v756 = vunpack.c.l.b16 %v696
      %v757 = vunpack.c.l.b16 %v697
      %v758 = vunpack.c.l.b16 %v698
      %v759 = vunpack.c.l.b16 %v699
      %v760 = vunpack.c.l.b16 %v700
      %v761 = vunpack.c.l.b16 %v701
      %v762 = vunpack.c.l.b16 %v702
      %v763 = vunpack.c.l.b16 %v703
      %v764 = vunpack.c.l.b16 %v704
      %v765 = vunpack.c.l.b16 %v705
      %v766 = vunpack.c.l.b16 %v706
      %v767 = vunpack.c.l.b16 %v707
      %v768 = vunpack.c.l.b16 %v708
      %v769 = vunpack.c.l.b16 %v709
      %v770 = vunpack.c.l.b16 %v710
      %v771 = vunpack.c.l.b16 %v711
      %v772 = vunpack.c.l.b16 %v712
      %v773 = vunpack.c.l.b16 %v713
      %v774 = vunpack.c.l.b16 %v714
      %v775 = vunpack.c.l.b16 %v715
      %v776 = vunpack.c.l.b16 %v716
      %v777 = vunpack.c.l.b16 %v717
      %v778 = vunpack.c.l.b16 %v718
      %v779 = vunpack.c.l.b16 %v719
      %v780 = vpack.c.b16 %v751, %v750
      %v781 = vpack.c.b16 %v753, %v752
      %v782 = vpack.c.b16 %v755, %v754
      %v783 = vpack.c.b16 %v757, %v756
      %v784 = vpack.c.b16 %v759, %v758
      %v785 = vpack.c.b16 %v761, %v760
      %v786 = vpack.c.b16 %v763, %v762
      %v787 = vpack.c.b16 %v765, %v764
      %v788 = vpack.c.b16 %v767, %v766
      %v789 = vpack.c.b16 %v769, %v768
      %v790 = vpack.c.b16 %v771, %v770
      %v791 = vpack.c.b16 %v773, %v772
      %v792 = vpack.c.b16 %v775, %v774
      %v793 = vpack.c.b16 %v777, %v776
      %v794 = vpack.c.b16 %v779, %v778
      %vm795 = vsmask.f32 256
      %v797 = vshrl.u32 %v780, 16
      %v799 = vrot.slane %v797, 7
      %v800 = vshll.u32 %v780, 16
      %v802 = vor.u32 %v799, %v800
      %v804 = vshrl.u32 %v781, 16
      %v806 = vrot.slane %v804, 7
      %v807 = vshll.u32 %v781, 16
      %v809 = vor.u32 %v806, %v807
      %v810 = vsel %vm795, %v799, %v809
      %v812 = vshrl.u32 %v782, 16
      %v814 = vrot.slane %v812, 7
      %v815 = vshll.u32 %v782, 16
      %v817 = vor.u32 %v814, %v815
      %v818 = vsel %vm795, %v806, %v817
      %v820 = vshrl.u32 %v783, 16
      %v822 = vrot.slane %v820, 7
      %v823 = vshll.u32 %v783, 16
      %v825 = vor.u32 %v822, %v823
      %v826 = vsel %vm795, %v814, %v825
      %v828 = vshrl.u32 %v784, 16
      %v830 = vrot.slane %v828, 7
      %v831 = vshll.u32 %v784, 16
      %v833 = vor.u32 %v830, %v831
      %v834 = vsel %vm795, %v822, %v833
      %v836 = vshrl.u32 %v785, 16
      %v838 = vrot.slane %v836, 7
      %v839 = vshll.u32 %v785, 16
      %v841 = vor.u32 %v838, %v839
      %v842 = vsel %vm795, %v830, %v841
      %v844 = vshrl.u32 %v786, 16
      %v846 = vrot.slane %v844, 7
      %v847 = vshll.u32 %v786, 16
      %v849 = vor.u32 %v846, %v847
      %v850 = vsel %vm795, %v838, %v849
      %v852 = vshrl.u32 %v787, 16
      %v854 = vrot.slane %v852, 7
      %v855 = vshll.u32 %v787, 16
      %v857 = vor.u32 %v854, %v855
      %v858 = vsel %vm795, %v846, %v857
      %v860 = vshrl.u32 %v788, 16
      %v862 = vrot.slane %v860, 7
      %v863 = vshll.u32 %v788, 16
      %v865 = vor.u32 %v862, %v863
      %v866 = vsel %vm795, %v854, %v865
      %v868 = vshrl.u32 %v789, 16
      %v870 = vrot.slane %v868, 7
      %v871 = vshll.u32 %v789, 16
      %v873 = vor.u32 %v870, %v871
      %v874 = vsel %vm795, %v862, %v873
      %v876 = vshrl.u32 %v790, 16
      %v878 = vrot.slane %v876, 7
      %v879 = vshll.u32 %v790, 16
      %v881 = vor.u32 %v878, %v879
      %v882 = vsel %vm795, %v870, %v881
      %v884 = vshrl.u32 %v791, 16
      %v886 = vrot.slane %v884, 7
      %v887 = vshll.u32 %v791, 16
      %v889 = vor.u32 %v886, %v887
      %v890 = vsel %vm795, %v878, %v889
      %v892 = vshrl.u32 %v792, 16
      %v894 = vrot.slane %v892, 7
      %v895 = vshll.u32 %v792, 16
      %v897 = vor.u32 %v894, %v895
      %v898 = vsel %vm795, %v886, %v897
      %v900 = vshrl.u32 %v793, 16
      %v902 = vrot.slane %v900, 7
      %v903 = vshll.u32 %v793, 16
      %v905 = vor.u32 %v902, %v903
      %v906 = vsel %vm795, %v894, %v905
      %v908 = vshrl.u32 %v794, 16
      %v910 = vrot.slane %v908, 7
      %v911 = vshll.u32 %v794, 16
      %v913 = vor.u32 %v910, %v911
      %v914 = vsel %vm795, %v902, %v913
      %vm930 = vcmask 1040384
      %vm931 = vmand %vm930, %vm795
      %v932 = vsel %vm931, 0, %v802
      %vm933 = vsmask.f32 7424
      %v934 = vrot.slane %v800, 1
      %v935 = vor.u32 %v797, %v934
      %v936 = vrot.slane %v807, 1
      %v937 = vsel %vm933, %v935, %v936
      %v938 = vor.u32 %v804, %v936
      %v939 = vrot.slane %v815, 1
      %v940 = vsel %vm933, %v938, %v939
      %v941 = vor.u32 %v812, %v939
      %v942 = vrot.slane %v823, 1
      %v943 = vsel %vm933, %v941, %v942
      %v944 = vor.u32 %v820, %v942
      %v945 = vrot.slane %v831, 1
      %v946 = vsel %vm933, %v944, %v945
      %v947 = vor.u32 %v828, %v945
      %v948 = vrot.slane %v839, 1
      %v949 = vsel %vm933, %v947, %v948
      %v950 = vor.u32 %v836, %v948
      %v951 = vrot.slane %v847, 1
      %v952 = vsel %vm933, %v950, %v951
      %v953 = vor.u32 %v844, %v951
      %v954 = vrot.slane %v855, 1
      %v955 = vsel %vm933, %v953, %v954
      %v956 = vor.u32 %v852, %v954
      %v957 = vrot.slane %v863, 1
      %v958 = vsel %vm933, %v956, %v957
      %v959 = vor.u32 %v860, %v957
      %v960 = vrot.slane %v871, 1
      %v961 = vsel %vm933, %v959, %v960
      %v962 = vor.u32 %v868, %v960
      %v963 = vrot.slane %v879, 1
      %v964 = vsel %vm933, %v962, %v963
      %v965 = vor.u32 %v876, %v963
      %v966 = vrot.slane %v887, 1
      %v967 = vsel %vm933, %v965, %v966
      %v968 = vor.u32 %v884, %v966
      %v969 = vrot.slane %v895, 1
      %v970 = vsel %vm933, %v968, %v969
      %v971 = vor.u32 %v892, %v969
      %v972 = vrot.slane %v903, 1
      %v973 = vsel %vm933, %v971, %v972
      %v974 = vor.u32 %v900, %v972
      %v975 = vrot.slane %v911, 1
      %v976 = vsel %vm933, %v974, %v975
      %v977 = vor.u32 %v908, %v975
      %vm993 = vcmask 1047552
      %vm994 = vmand %vm993, %vm933
      %v995 = vsel %vm994, %v977, 0
      %v996 = vld [vmem:[%s5] sm:$0xf]
      %v997 = vld [vmem:[%s5 + $0x4] sm:$0xf]
      %v998 = vld [vmem:[%s5 + $0x8] sm:$0xf]
      %v999 = vld [vmem:[%s5 + $0xc] sm:$0xf]
      %v1000 = vld [vmem:[%s5 + $0x10] sm:$0xf]
      %v1001 = vld [vmem:[%s5 + $0x14] sm:$0xf]
      %v1002 = vld [vmem:[%s5 + $0x18] sm:$0xf]
      %v1003 = vld [vmem:[%s5 + $0x1c] sm:$0xf]
      %v1004 = vld [vmem:[%s5 + $0x20] sm:$0xf]
      %v1005 = vld [vmem:[%s5 + $0x24] sm:$0xf]
      %v1006 = vld [vmem:[%s5 + $0x28] sm:$0xf]
      %v1007 = vld [vmem:[%s5 + $0x2c] sm:$0xf]
      %v1008 = vld [vmem:[%s5 + $0x30] sm:$0xf]
      %v1009 = vld [vmem:[%s5 + $0x34] sm:$0xf]
      %v1010 = vld [vmem:[%s5 + $0x38] sm:$0xf]
      %v1011 = vld [vmem:[%s5 + $0x3c] sm:$0xf]
      %v1028 = vunpack.c.l.b16 %v996
      %v1029 = vunpack.c.l.b16 %v997
      %v1030 = vunpack.c.l.b16 %v998
      %v1031 = vunpack.c.l.b16 %v999
      %v1032 = vunpack.c.l.b16 %v1000
      %v1033 = vunpack.c.l.b16 %v1001
      %v1034 = vunpack.c.l.b16 %v1002
      %v1035 = vunpack.c.l.b16 %v1003
      %v1036 = vunpack.c.l.b16 %v1004
      %v1037 = vunpack.c.l.b16 %v1005
      %v1038 = vunpack.c.l.b16 %v1006
      %v1039 = vunpack.c.l.b16 %v1007
      %v1040 = vunpack.c.l.b16 %v1008
      %v1041 = vunpack.c.l.b16 %v1009
      %v1042 = vunpack.c.l.b16 %v1010
      %v1043 = vunpack.c.l.b16 %v1011
      %v1044 = vpack.c.b16 %v1029, %v1028
      %v1045 = vpack.c.b16 %v1031, %v1030
      %v1046 = vpack.c.b16 %v1033, %v1032
      %v1047 = vpack.c.b16 %v1035, %v1034
      %v1048 = vpack.c.b16 %v1037, %v1036
      %v1049 = vpack.c.b16 %v1039, %v1038
      %v1050 = vpack.c.b16 %v1041, %v1040
      %v1051 = vpack.c.b16 %v1043, %v1042
      %1060 = vmatpush.bf16.msra.mxu0 %v1051
      %1061 = vmatpush.bf16.msra.mxu0 %v1050
      %1062 = vmatpush.bf16.msra.mxu0 %v1049
      %1063 = vmatpush.bf16.msra.mxu0 %v1048
      %1064 = vmatpush.bf16.msra.mxu0 %v1047
      %1065 = vmatpush.bf16.msra.mxu0 %v1046
      %1066 = vmatpush.bf16.msra.mxu0 %v1045
      %1067 = vmatpush.bf16.msra.mxu0 %v1044
      %1068 = vmatmul.bf16.gmra.mxu0 %v932
      %v1069 = vpop.f32.mrf.mxu0
      %v1070 = vadd.f32 0.0, %v1069
      %v1071 = vpop.f32.mrf.mxu0
      %v1072 = vadd.f32 0.0, %v1071
      %1073 = vmatmul.bf16.gmra.mxu0 %v810
      %v1074 = vpop.f32.mrf.mxu0
      %v1075 = vadd.f32 0.0, %v1074
      %v1076 = vpop.f32.mrf.mxu0
      %v1077 = vadd.f32 0.0, %v1076
      %1078 = vmatmul.bf16.gmra.mxu0 %v818
      %v1079 = vpop.f32.mrf.mxu0
      %v1080 = vadd.f32 0.0, %v1079
      %v1081 = vpop.f32.mrf.mxu0
      %v1082 = vadd.f32 0.0, %v1081
      %1083 = vmatmul.bf16.gmra.mxu0 %v826
      %v1084 = vpop.f32.mrf.mxu0
      %v1085 = vadd.f32 0.0, %v1084
      %v1086 = vpop.f32.mrf.mxu0
      %v1087 = vadd.f32 0.0, %v1086
      %1088 = vmatmul.bf16.gmra.mxu0 %v834
      %v1089 = vpop.f32.mrf.mxu0
      %v1090 = vadd.f32 0.0, %v1089
      %v1091 = vpop.f32.mrf.mxu0
      %v1092 = vadd.f32 0.0, %v1091
      %1093 = vmatmul.bf16.gmra.mxu0 %v842
      %v1094 = vpop.f32.mrf.mxu0
      %v1095 = vadd.f32 0.0, %v1094
      %v1096 = vpop.f32.mrf.mxu0
      %v1097 = vadd.f32 0.0, %v1096
      %1098 = vmatmul.bf16.gmra.mxu0 %v850
      %v1099 = vpop.f32.mrf.mxu0
      %v1100 = vadd.f32 0.0, %v1099
      %v1101 = vpop.f32.mrf.mxu0
      %v1102 = vadd.f32 0.0, %v1101
      %1103 = vmatmul.bf16.gmra.mxu0 %v858
      %v1104 = vpop.f32.mrf.mxu0
      %v1105 = vadd.f32 0.0, %v1104
      %v1106 = vpop.f32.mrf.mxu0
      %v1107 = vadd.f32 0.0, %v1106
      %1108 = vmatmul.bf16.gmra.mxu0 %v866
      %v1109 = vpop.f32.mrf.mxu0
      %v1110 = vadd.f32 0.0, %v1109
      %v1111 = vpop.f32.mrf.mxu0
      %v1112 = vadd.f32 0.0, %v1111
      %1113 = vmatmul.bf16.gmra.mxu0 %v874
      %v1114 = vpop.f32.mrf.mxu0
      %v1115 = vadd.f32 0.0, %v1114
      %v1116 = vpop.f32.mrf.mxu0
      %v1117 = vadd.f32 0.0, %v1116
      %1118 = vmatmul.bf16.gmra.mxu0 %v882
      %v1119 = vpop.f32.mrf.mxu0
      %v1120 = vadd.f32 0.0, %v1119
      %v1121 = vpop.f32.mrf.mxu0
      %v1122 = vadd.f32 0.0, %v1121
      %1123 = vmatmul.bf16.gmra.mxu0 %v890
      %v1124 = vpop.f32.mrf.mxu0
      %v1125 = vadd.f32 0.0, %v1124
      %v1126 = vpop.f32.mrf.mxu0
      %v1127 = vadd.f32 0.0, %v1126
      %1128 = vdwg.mxu0
      %1129 = vst [vmem:[#allocation2] sm:$0xff] %v1070
      %1130 = vst [vmem:[#allocation2 + $0x8] sm:$0xff] %v1072
      %1131 = vst [vmem:[#allocation2 + $0x10] sm:$0xff] %v1075
      %1132 = vst [vmem:[#allocation2 + $0x18] sm:$0xff] %v1077
      %1133 = vst [vmem:[#allocation2 + $0x20] sm:$0xff] %v1080
      %1134 = vst [vmem:[#allocation2 + $0x28] sm:$0xff] %v1082
      %1135 = vst [vmem:[#allocation2 + $0x30] sm:$0xff] %v1085
      %1136 = vst [vmem:[#allocation2 + $0x38] sm:$0xff] %v1087
      %1137 = vst [vmem:[#allocation2 + $0x40] sm:$0xff] %v1090
      %1138 = vst [vmem:[#allocation2 + $0x48] sm:$0xff] %v1092
      %1139 = vst [vmem:[#allocation2 + $0x50] sm:$0xff] %v1095
      %1140 = vst [vmem:[#allocation2 + $0x58] sm:$0xff] %v1097
      %1141 = vst [vmem:[#allocation2 + $0x60] sm:$0xff] %v1100
      %1142 = vst [vmem:[#allocation2 + $0x68] sm:$0xff] %v1102
      %1143 = vst [vmem:[#allocation2 + $0x70] sm:$0xff] %v1105
      %1144 = vst [vmem:[#allocation2 + $0x78] sm:$0xff] %v1107
      %1145 = vst [vmem:[#allocation2 + $0x80] sm:$0xff] %v1110
      %1146 = vst [vmem:[#allocation2 + $0x88] sm:$0xff] %v1112
      %1147 = vst [vmem:[#allocation2 + $0x90] sm:$0xff] %v1115
      %1148 = vst [vmem:[#allocation2 + $0x98] sm:$0xff] %v1117
      %1149 = vst [vmem:[#allocation2 + $0xa0] sm:$0xff] %v1120
      %1150 = vst [vmem:[#allocation2 + $0xa8] sm:$0xff] %v1122
      %1151 = vst [vmem:[#allocation2 + $0xb0] sm:$0xff] %v1125
      %1152 = vst [vmem:[#allocation2 + $0xb8] sm:$0xff] %v1127
      %s1153 = scalar_lea.vmem %s5, 64
      %v1154 = vld [vmem:[%s1153] sm:$0xf]
      %v1155 = vld [vmem:[%s1153 + $0x4] sm:$0xf]
      %v1156 = vld [vmem:[%s1153 + $0x8] sm:$0xf]
      %v1157 = vld [vmem:[%s1153 + $0xc] sm:$0xf]
      %v1158 = vld [vmem:[%s1153 + $0x10] sm:$0xf]
      %v1159 = vld [vmem:[%s1153 + $0x14] sm:$0xf]
      %v1160 = vld [vmem:[%s1153 + $0x18] sm:$0xf]
      %v1161 = vld [vmem:[%s1153 + $0x1c] sm:$0xf]
      %v1162 = vld [vmem:[%s1153 + $0x20] sm:$0xf]
      %v1163 = vld [vmem:[%s1153 + $0x24] sm:$0xf]
      %v1164 = vld [vmem:[%s1153 + $0x28] sm:$0xf]
      %v1165 = vld [vmem:[%s1153 + $0x2c] sm:$0xf]
      %v1166 = vld [vmem:[%s1153 + $0x30] sm:$0xf]
      %v1167 = vld [vmem:[%s1153 + $0x34] sm:$0xf]
      %v1168 = vld [vmem:[%s1153 + $0x38] sm:$0xf]
      %v1169 = vld [vmem:[%s1153 + $0x3c] sm:$0xf]
      %v1198 = vunpack.c.l.b16 %v1154
      %v1199 = vunpack.c.l.b16 %v1155
      %v1200 = vunpack.c.l.b16 %v1156
      %v1201 = vunpack.c.l.b16 %v1157
      %v1202 = vunpack.c.l.b16 %v1158
      %v1203 = vunpack.c.l.b16 %v1159
      %v1204 = vunpack.c.l.b16 %v1160
      %v1205 = vunpack.c.l.b16 %v1161
      %v1206 = vunpack.c.l.b16 %v1162
      %v1207 = vunpack.c.l.b16 %v1163
      %v1208 = vunpack.c.l.b16 %v1164
      %v1209 = vunpack.c.l.b16 %v1165
      %v1210 = vunpack.c.l.b16 %v1166
      %v1211 = vunpack.c.l.b16 %v1167
      %v1212 = vunpack.c.l.b16 %v1168
      %v1213 = vunpack.c.l.b16 %v1169
      %v1214 = vpack.c.b16 %v1199, %v1198
      %v1215 = vpack.c.b16 %v1201, %v1200
      %v1216 = vpack.c.b16 %v1203, %v1202
      %v1217 = vpack.c.b16 %v1205, %v1204
      %v1218 = vpack.c.b16 %v1207, %v1206
      %v1219 = vpack.c.b16 %v1209, %v1208
      %v1220 = vpack.c.b16 %v1211, %v1210
      %v1221 = vpack.c.b16 %v1213, %v1212
      %1230 = vmatpush.bf16.msra.mxu0 %v1221
      %1231 = vmatpush.bf16.msra.mxu0 %v1220
      %1232 = vmatpush.bf16.msra.mxu0 %v1219
      %1233 = vmatpush.bf16.msra.mxu0 %v1218
      %1234 = vmatpush.bf16.msra.mxu0 %v1217
      %1235 = vmatpush.bf16.msra.mxu0 %v1216
      %1236 = vmatpush.bf16.msra.mxu0 %v1215
      %1237 = vmatpush.bf16.msra.mxu0 %v1214
      %1238 = vmatmul.bf16.gmra.mxu0 %v780
      %v1239 = vpop.f32.mrf.mxu0
      %v1240 = vadd.f32 0.0, %v1239
      %v1241 = vpop.f32.mrf.mxu0
      %v1242 = vadd.f32 0.0, %v1241
      %1243 = vmatmul.bf16.gmra.mxu0 %v781
      %v1244 = vpop.f32.mrf.mxu0
      %v1245 = vadd.f32 0.0, %v1244
      %v1246 = vpop.f32.mrf.mxu0
      %v1247 = vadd.f32 0.0, %v1246
      %1248 = vmatmul.bf16.gmra.mxu0 %v782
      %v1249 = vpop.f32.mrf.mxu0
      %v1250 = vadd.f32 0.0, %v1249
      %v1251 = vpop.f32.mrf.mxu0
      %v1252 = vadd.f32 0.0, %v1251
      %1253 = vmatmul.bf16.gmra.mxu0 %v783
      %v1254 = vpop.f32.mrf.mxu0
      %v1255 = vadd.f32 0.0, %v1254
      %v1256 = vpop.f32.mrf.mxu0
      %v1257 = vadd.f32 0.0, %v1256
      %1258 = vmatmul.bf16.gmra.mxu0 %v784
      %v1259 = vpop.f32.mrf.mxu0
      %v1260 = vadd.f32 0.0, %v1259
      %v1261 = vpop.f32.mrf.mxu0
      %v1262 = vadd.f32 0.0, %v1261
      %1263 = vmatmul.bf16.gmra.mxu0 %v785
      %v1264 = vpop.f32.mrf.mxu0
      %v1265 = vadd.f32 0.0, %v1264
      %v1266 = vpop.f32.mrf.mxu0
      %v1267 = vadd.f32 0.0, %v1266
      %1268 = vmatmul.bf16.gmra.mxu0 %v786
      %v1269 = vpop.f32.mrf.mxu0
      %v1270 = vadd.f32 0.0, %v1269
      %v1271 = vpop.f32.mrf.mxu0
      %v1272 = vadd.f32 0.0, %v1271
      %1273 = vmatmul.bf16.gmra.mxu0 %v787
      %v1274 = vpop.f32.mrf.mxu0
      %v1275 = vadd.f32 0.0, %v1274
      %v1276 = vpop.f32.mrf.mxu0
      %v1277 = vadd.f32 0.0, %v1276
      %1278 = vmatmul.bf16.gmra.mxu0 %v788
      %v1279 = vpop.f32.mrf.mxu0
      %v1280 = vadd.f32 0.0, %v1279
      %v1281 = vpop.f32.mrf.mxu0
      %v1282 = vadd.f32 0.0, %v1281
      %1283 = vmatmul.bf16.gmra.mxu0 %v789
      %v1284 = vpop.f32.mrf.mxu0
      %v1285 = vadd.f32 0.0, %v1284
      %v1286 = vpop.f32.mrf.mxu0
      %v1287 = vadd.f32 0.0, %v1286
      %1288 = vmatmul.bf16.gmra.mxu0 %v790
      %v1289 = vpop.f32.mrf.mxu0
      %v1290 = vadd.f32 0.0, %v1289
      %v1291 = vpop.f32.mrf.mxu0
      %v1292 = vadd.f32 0.0, %v1291
      %1293 = vmatmul.bf16.gmra.mxu0 %v791
      %v1294 = vpop.f32.mrf.mxu0
      %v1295 = vadd.f32 0.0, %v1294
      %v1296 = vpop.f32.mrf.mxu0
      %v1297 = vadd.f32 0.0, %v1296
      %1298 = vdwg.mxu0
      %v1299 = vld [vmem:[#allocation2] sm:$0xff]
      %v1300 = vld [vmem:[#allocation2 + $0x8] sm:$0xff]
      %v1301 = vld [vmem:[#allocation2 + $0x10] sm:$0xff]
      %v1302 = vld [vmem:[#allocation2 + $0x18] sm:$0xff]
      %v1303 = vld [vmem:[#allocation2 + $0x20] sm:$0xff]
      %v1304 = vld [vmem:[#allocation2 + $0x28] sm:$0xff]
      %v1305 = vld [vmem:[#allocation2 + $0x30] sm:$0xff]
      %v1306 = vld [vmem:[#allocation2 + $0x38] sm:$0xff]
      %v1307 = vld [vmem:[#allocation2 + $0x40] sm:$0xff]
      %v1308 = vld [vmem:[#allocation2 + $0x48] sm:$0xff]
      %v1309 = vld [vmem:[#allocation2 + $0x50] sm:$0xff]
      %v1310 = vld [vmem:[#allocation2 + $0x58] sm:$0xff]
      %v1311 = vld [vmem:[#allocation2 + $0x60] sm:$0xff]
      %v1312 = vld [vmem:[#allocation2 + $0x68] sm:$0xff]
      %v1313 = vld [vmem:[#allocation2 + $0x70] sm:$0xff]
      %v1314 = vld [vmem:[#allocation2 + $0x78] sm:$0xff]
      %v1315 = vld [vmem:[#allocation2 + $0x80] sm:$0xff]
      %v1316 = vld [vmem:[#allocation2 + $0x88] sm:$0xff]
      %v1317 = vld [vmem:[#allocation2 + $0x90] sm:$0xff]
      %v1318 = vld [vmem:[#allocation2 + $0x98] sm:$0xff]
      %v1319 = vld [vmem:[#allocation2 + $0xa0] sm:$0xff]
      %v1320 = vld [vmem:[#allocation2 + $0xa8] sm:$0xff]
      %v1321 = vld [vmem:[#allocation2 + $0xb0] sm:$0xff]
      %v1322 = vld [vmem:[#allocation2 + $0xb8] sm:$0xff]
      %v1323 = vadd.f32 %v1299, %v1240
      %v1324 = vadd.f32 %v1300, %v1242
      %v1325 = vadd.f32 %v1301, %v1245
      %v1326 = vadd.f32 %v1302, %v1247
      %v1327 = vadd.f32 %v1303, %v1250
      %v1328 = vadd.f32 %v1304, %v1252
      %v1329 = vadd.f32 %v1305, %v1255
      %v1330 = vadd.f32 %v1306, %v1257
      %v1331 = vadd.f32 %v1307, %v1260
      %v1332 = vadd.f32 %v1308, %v1262
      %v1333 = vadd.f32 %v1309, %v1265
      %v1334 = vadd.f32 %v1310, %v1267
      %v1335 = vadd.f32 %v1311, %v1270
      %v1336 = vadd.f32 %v1312, %v1272
      %v1337 = vadd.f32 %v1313, %v1275
      %v1338 = vadd.f32 %v1314, %v1277
      %v1339 = vadd.f32 %v1315, %v1280
      %v1340 = vadd.f32 %v1316, %v1282
      %v1341 = vadd.f32 %v1317, %v1285
      %v1342 = vadd.f32 %v1318, %v1287
      %v1343 = vadd.f32 %v1319, %v1290
      %v1344 = vadd.f32 %v1320, %v1292
      %v1345 = vadd.f32 %v1321, %v1295
      %v1346 = vadd.f32 %v1322, %v1297
      %1347 = vst [vmem:[#allocation2] sm:$0xff] %v1323
      %1348 = vst [vmem:[#allocation2 + $0x8] sm:$0xff] %v1324
      %1349 = vst [vmem:[#allocation2 + $0x10] sm:$0xff] %v1325
      %1350 = vst [vmem:[#allocation2 + $0x18] sm:$0xff] %v1326
      %1351 = vst [vmem:[#allocation2 + $0x20] sm:$0xff] %v1327
      %1352 = vst [vmem:[#allocation2 + $0x28] sm:$0xff] %v1328
      %1353 = vst [vmem:[#allocation2 + $0x30] sm:$0xff] %v1329
      %1354 = vst [vmem:[#allocation2 + $0x38] sm:$0xff] %v1330
      %1355 = vst [vmem:[#allocation2 + $0x40] sm:$0xff] %v1331
      %1356 = vst [vmem:[#allocation2 + $0x48] sm:$0xff] %v1332
      %1357 = vst [vmem:[#allocation2 + $0x50] sm:$0xff] %v1333
      %1358 = vst [vmem:[#allocation2 + $0x58] sm:$0xff] %v1334
      %1359 = vst [vmem:[#allocation2 + $0x60] sm:$0xff] %v1335
      %1360 = vst [vmem:[#allocation2 + $0x68] sm:$0xff] %v1336
      %1361 = vst [vmem:[#allocation2 + $0x70] sm:$0xff] %v1337
      %1362 = vst [vmem:[#allocation2 + $0x78] sm:$0xff] %v1338
      %1363 = vst [vmem:[#allocation2 + $0x80] sm:$0xff] %v1339
      %1364 = vst [vmem:[#allocation2 + $0x88] sm:$0xff] %v1340
      %1365 = vst [vmem:[#allocation2 + $0x90] sm:$0xff] %v1341
      %1366 = vst [vmem:[#allocation2 + $0x98] sm:$0xff] %v1342
      %1367 = vst [vmem:[#allocation2 + $0xa0] sm:$0xff] %v1343
      %1368 = vst [vmem:[#allocation2 + $0xa8] sm:$0xff] %v1344
      %1369 = vst [vmem:[#allocation2 + $0xb0] sm:$0xff] %v1345
      %1370 = vst [vmem:[#allocation2 + $0xb8] sm:$0xff] %v1346
      %s1371 = scalar_lea.vmem %s5, 128
      %v1372 = vld [vmem:[%s1371] sm:$0xf]
      %v1373 = vld [vmem:[%s1371 + $0x4] sm:$0xf]
      %v1374 = vld [vmem:[%s1371 + $0x8] sm:$0xf]
      %v1375 = vld [vmem:[%s1371 + $0xc] sm:$0xf]
      %v1376 = vld [vmem:[%s1371 + $0x10] sm:$0xf]
      %v1377 = vld [vmem:[%s1371 + $0x14] sm:$0xf]
      %v1378 = vld [vmem:[%s1371 + $0x18] sm:$0xf]
      %v1379 = vld [vmem:[%s1371 + $0x1c] sm:$0xf]
      %v1380 = vld [vmem:[%s1371 + $0x20] sm:$0xf]
      %v1381 = vld [vmem:[%s1371 + $0x24] sm:$0xf]
      %v1382 = vld [vmem:[%s1371 + $0x28] sm:$0xf]
      %v1383 = vld [vmem:[%s1371 + $0x2c] sm:$0xf]
      %v1384 = vld [vmem:[%s1371 + $0x30] sm:$0xf]
      %v1385 = vld [vmem:[%s1371 + $0x34] sm:$0xf]
      %v1386 = vld [vmem:[%s1371 + $0x38] sm:$0xf]
      %v1387 = vld [vmem:[%s1371 + $0x3c] sm:$0xf]
      %v1404 = vunpack.c.l.b16 %v1372
      %v1405 = vunpack.c.l.b16 %v1373
      %v1406 = vunpack.c.l.b16 %v1374
      %v1407 = vunpack.c.l.b16 %v1375
      %v1408 = vunpack.c.l.b16 %v1376
      %v1409 = vunpack.c.l.b16 %v1377
      %v1410 = vunpack.c.l.b16 %v1378
      %v1411 = vunpack.c.l.b16 %v1379
      %v1412 = vunpack.c.l.b16 %v1380
      %v1413 = vunpack.c.l.b16 %v1381
      %v1414 = vunpack.c.l.b16 %v1382
      %v1415 = vunpack.c.l.b16 %v1383
      %v1416 = vunpack.c.l.b16 %v1384
      %v1417 = vunpack.c.l.b16 %v1385
      %v1418 = vunpack.c.l.b16 %v1386
      %v1419 = vunpack.c.l.b16 %v1387
      %v1420 = vpack.c.b16 %v1405, %v1404
      %v1421 = vpack.c.b16 %v1407, %v1406
      %v1422 = vpack.c.b16 %v1409, %v1408
      %v1423 = vpack.c.b16 %v1411, %v1410
      %v1424 = vpack.c.b16 %v1413, %v1412
      %v1425 = vpack.c.b16 %v1415, %v1414
      %v1426 = vpack.c.b16 %v1417, %v1416
      %v1427 = vpack.c.b16 %v1419, %v1418
      %1436 = vmatpush.bf16.msra.mxu0 %v1427
      %1437 = vmatpush.bf16.msra.mxu0 %v1426
      %1438 = vmatpush.bf16.msra.mxu0 %v1425
      %1439 = vmatpush.bf16.msra.mxu0 %v1424
      %1440 = vmatpush.bf16.msra.mxu0 %v1423
      %1441 = vmatpush.bf16.msra.mxu0 %v1422
      %1442 = vmatpush.bf16.msra.mxu0 %v1421
      %1443 = vmatpush.bf16.msra.mxu0 %v1420
      %1444 = vmatmul.bf16.gmra.mxu0 %v937
      %v1445 = vpop.f32.mrf.mxu0
      %v1446 = vadd.f32 0.0, %v1445
      %v1447 = vpop.f32.mrf.mxu0
      %v1448 = vadd.f32 0.0, %v1447
      %1449 = vmatmul.bf16.gmra.mxu0 %v940
      %v1450 = vpop.f32.mrf.mxu0
      %v1451 = vadd.f32 0.0, %v1450
      %v1452 = vpop.f32.mrf.mxu0
      %v1453 = vadd.f32 0.0, %v1452
      %1454 = vmatmul.bf16.gmra.mxu0 %v943
      %v1455 = vpop.f32.mrf.mxu0
      %v1456 = vadd.f32 0.0, %v1455
      %v1457 = vpop.f32.mrf.mxu0
      %v1458 = vadd.f32 0.0, %v1457
      %1459 = vmatmul.bf16.gmra.mxu0 %v946
      %v1460 = vpop.f32.mrf.mxu0
      %v1461 = vadd.f32 0.0, %v1460
      %v1462 = vpop.f32.mrf.mxu0
      %v1463 = vadd.f32 0.0, %v1462
      %1464 = vmatmul.bf16.gmra.mxu0 %v949
      %v1465 = vpop.f32.mrf.mxu0
      %v1466 = vadd.f32 0.0, %v1465
      %v1467 = vpop.f32.mrf.mxu0
      %v1468 = vadd.f32 0.0, %v1467
      %1469 = vmatmul.bf16.gmra.mxu0 %v952
      %v1470 = vpop.f32.mrf.mxu0
      %v1471 = vadd.f32 0.0, %v1470
      %v1472 = vpop.f32.mrf.mxu0
      %v1473 = vadd.f32 0.0, %v1472
      %1474 = vmatmul.bf16.gmra.mxu0 %v955
      %v1475 = vpop.f32.mrf.mxu0
      %v1476 = vadd.f32 0.0, %v1475
      %v1477 = vpop.f32.mrf.mxu0
      %v1478 = vadd.f32 0.0, %v1477
      %1479 = vmatmul.bf16.gmra.mxu0 %v958
      %v1480 = vpop.f32.mrf.mxu0
      %v1481 = vadd.f32 0.0, %v1480
      %v1482 = vpop.f32.mrf.mxu0
      %v1483 = vadd.f32 0.0, %v1482
      %1484 = vmatmul.bf16.gmra.mxu0 %v961
      %v1485 = vpop.f32.mrf.mxu0
      %v1486 = vadd.f32 0.0, %v1485
      %v1487 = vpop.f32.mrf.mxu0
      %v1488 = vadd.f32 0.0, %v1487
      %1489 = vmatmul.bf16.gmra.mxu0 %v964
      %v1490 = vpop.f32.mrf.mxu0
      %v1491 = vadd.f32 0.0, %v1490
      %v1492 = vpop.f32.mrf.mxu0
      %v1493 = vadd.f32 0.0, %v1492
      %1494 = vmatmul.bf16.gmra.mxu0 %v967
      %v1495 = vpop.f32.mrf.mxu0
      %v1496 = vadd.f32 0.0, %v1495
      %v1497 = vpop.f32.mrf.mxu0
      %v1498 = vadd.f32 0.0, %v1497
      %1499 = vmatmul.bf16.gmra.mxu0 %v970
      %v1500 = vpop.f32.mrf.mxu0
      %v1501 = vadd.f32 0.0, %v1500
      %v1502 = vpop.f32.mrf.mxu0
      %v1503 = vadd.f32 0.0, %v1502
      %1504 = vdwg.mxu0
      %v1505 = vld [vmem:[#allocation2] sm:$0xff]
      %v1506 = vld [vmem:[#allocation2 + $0x8] sm:$0xff]
      %v1507 = vld [vmem:[#allocation2 + $0x10] sm:$0xff]
      %v1508 = vld [vmem:[#allocation2 + $0x18] sm:$0xff]
      %v1509 = vld [vmem:[#allocation2 + $0x20] sm:$0xff]
      %v1510 = vld [vmem:[#allocation2 + $0x28] sm:$0xff]
      %v1511 = vld [vmem:[#allocation2 + $0x30] sm:$0xff]
      %v1512 = vld [vmem:[#allocation2 + $0x38] sm:$0xff]
      %v1513 = vld [vmem:[#allocation2 + $0x40] sm:$0xff]
      %v1514 = vld [vmem:[#allocation2 + $0x48] sm:$0xff]
      %v1515 = vld [vmem:[#allocation2 + $0x50] sm:$0xff]
      %v1516 = vld [vmem:[#allocation2 + $0x58] sm:$0xff]
      %v1517 = vld [vmem:[#allocation2 + $0x60] sm:$0xff]
      %v1518 = vld [vmem:[#allocation2 + $0x68] sm:$0xff]
      %v1519 = vld [vmem:[#allocation2 + $0x70] sm:$0xff]
      %v1520 = vld [vmem:[#allocation2 + $0x78] sm:$0xff]
      %v1521 = vld [vmem:[#allocation2 + $0x80] sm:$0xff]
      %v1522 = vld [vmem:[#allocation2 + $0x88] sm:$0xff]
      %v1523 = vld [vmem:[#allocation2 + $0x90] sm:$0xff]
      %v1524 = vld [vmem:[#allocation2 + $0x98] sm:$0xff]
      %v1525 = vld [vmem:[#allocation2 + $0xa0] sm:$0xff]
      %v1526 = vld [vmem:[#allocation2 + $0xa8] sm:$0xff]
      %v1527 = vld [vmem:[#allocation2 + $0xb0] sm:$0xff]
      %v1528 = vld [vmem:[#allocation2 + $0xb8] sm:$0xff]
      %v1529 = vadd.f32 %v1505, %v1446
      %v1530 = vadd.f32 %v1506, %v1448
      %v1531 = vadd.f32 %v1507, %v1451
      %v1532 = vadd.f32 %v1508, %v1453
      %v1533 = vadd.f32 %v1509, %v1456
      %v1534 = vadd.f32 %v1510, %v1458
      %v1535 = vadd.f32 %v1511, %v1461
      %v1536 = vadd.f32 %v1512, %v1463
      %v1537 = vadd.f32 %v1513, %v1466
      %v1538 = vadd.f32 %v1514, %v1468
      %v1539 = vadd.f32 %v1515, %v1471
      %v1540 = vadd.f32 %v1516, %v1473
      %v1541 = vadd.f32 %v1517, %v1476
      %v1542 = vadd.f32 %v1518, %v1478
      %v1543 = vadd.f32 %v1519, %v1481
      %v1544 = vadd.f32 %v1520, %v1483
      %v1545 = vadd.f32 %v1521, %v1486
      %v1546 = vadd.f32 %v1522, %v1488
      %v1547 = vadd.f32 %v1523, %v1491
      %v1548 = vadd.f32 %v1524, %v1493
      %v1549 = vadd.f32 %v1525, %v1496
      %v1550 = vadd.f32 %v1526, %v1498
      %v1551 = vadd.f32 %v1527, %v1501
      %v1552 = vadd.f32 %v1528, %v1503
      %1553 = vst [vmem:[#allocation2] sm:$0xff] %v1529
      %1554 = vst [vmem:[#allocation2 + $0x8] sm:$0xff] %v1530
      %1555 = vst [vmem:[#allocation2 + $0x10] sm:$0xff] %v1531
      %1556 = vst [vmem:[#allocation2 + $0x18] sm:$0xff] %v1532
      %1557 = vst [vmem:[#allocation2 + $0x20] sm:$0xff] %v1533
      %1558 = vst [vmem:[#allocation2 + $0x28] sm:$0xff] %v1534
      %1559 = vst [vmem:[#allocation2 + $0x30] sm:$0xff] %v1535
      %1560 = vst [vmem:[#allocation2 + $0x38] sm:$0xff] %v1536
      %1561 = vst [vmem:[#allocation2 + $0x40] sm:$0xff] %v1537
      %1562 = vst [vmem:[#allocation2 + $0x48] sm:$0xff] %v1538
      %1563 = vst [vmem:[#allocation2 + $0x50] sm:$0xff] %v1539
      %1564 = vst [vmem:[#allocation2 + $0x58] sm:$0xff] %v1540
      %1565 = vst [vmem:[#allocation2 + $0x60] sm:$0xff] %v1541
      %1566 = vst [vmem:[#allocation2 + $0x68] sm:$0xff] %v1542
      %1567 = vst [vmem:[#allocation2 + $0x70] sm:$0xff] %v1543
      %1568 = vst [vmem:[#allocation2 + $0x78] sm:$0xff] %v1544
      %1569 = vst [vmem:[#allocation2 + $0x80] sm:$0xff] %v1545
      %1570 = vst [vmem:[#allocation2 + $0x88] sm:$0xff] %v1546
      %1571 = vst [vmem:[#allocation2 + $0x90] sm:$0xff] %v1547
      %1572 = vst [vmem:[#allocation2 + $0x98] sm:$0xff] %v1548
      %1573 = vst [vmem:[#allocation2 + $0xa0] sm:$0xff] %v1549
      %1574 = vst [vmem:[#allocation2 + $0xa8] sm:$0xff] %v1550
      %1575 = vst [vmem:[#allocation2 + $0xb0] sm:$0xff] %v1551
      %1576 = vst [vmem:[#allocation2 + $0xb8] sm:$0xff] %v1552
      %s1577 = scalar_lea.vmem %s5, 192
      %v1578 = vld [vmem:[%s1577] sm:$0xf]
      %v1579 = vld [vmem:[%s1577 + $0x4] sm:$0xf]
      %v1580 = vld [vmem:[%s1577 + $0x8] sm:$0xf]
      %v1581 = vld [vmem:[%s1577 + $0xc] sm:$0xf]
      %v1582 = vld [vmem:[%s1577 + $0x10] sm:$0xf]
      %v1583 = vld [vmem:[%s1577 + $0x14] sm:$0xf]
      %v1584 = vld [vmem:[%s1577 + $0x18] sm:$0xf]
      %v1585 = vld [vmem:[%s1577 + $0x1c] sm:$0xf]
      %v1586 = vld [vmem:[%s1577 + $0x20] sm:$0xf]
      %v1587 = vld [vmem:[%s1577 + $0x24] sm:$0xf]
      %v1588 = vld [vmem:[%s1577 + $0x28] sm:$0xf]
      %v1589 = vld [vmem:[%s1577 + $0x2c] sm:$0xf]
      %v1590 = vld [vmem:[%s1577 + $0x30] sm:$0xf]
      %v1591 = vld [vmem:[%s1577 + $0x34] sm:$0xf]
      %v1592 = vld [vmem:[%s1577 + $0x38] sm:$0xf]
      %v1593 = vld [vmem:[%s1577 + $0x3c] sm:$0xf]
      %vm1594 = vcmask 1043456
      %v1595 = vrot.slane %v810, 4
      %v1596 = vrot.slane %v818, 4
      %v1597 = vsel %vm1594, %v1595, %v1596
      %v1598 = vrot.slane %v826, 4
      %v1599 = vsel %vm1594, %v1596, %v1598
      %v1600 = vrot.slane %v834, 4
      %v1601 = vsel %vm1594, %v1598, %v1600
      %v1602 = vrot.slane %v842, 4
      %v1603 = vsel %vm1594, %v1600, %v1602
      %v1604 = vrot.slane %v850, 4
      %v1605 = vsel %vm1594, %v1602, %v1604
      %v1606 = vrot.slane %v858, 4
      %v1607 = vsel %vm1594, %v1604, %v1606
      %v1608 = vrot.slane %v866, 4
      %v1609 = vsel %vm1594, %v1606, %v1608
      %v1610 = vrot.slane %v874, 4
      %v1611 = vsel %vm1594, %v1608, %v1610
      %v1612 = vrot.slane %v882, 4
      %v1613 = vsel %vm1594, %v1610, %v1612
      %v1614 = vrot.slane %v890, 4
      %v1615 = vsel %vm1594, %v1612, %v1614
      %v1616 = vrot.slane %v898, 4
      %v1617 = vsel %vm1594, %v1614, %v1616
      %v1618 = vrot.slane %v906, 4
      %v1619 = vsel %vm1594, %v1616, %v1618
      %v1648 = vunpack.c.l.b16 %v1578
      %v1649 = vunpack.c.l.b16 %v1579
      %v1650 = vunpack.c.l.b16 %v1580
      %v1651 = vunpack.c.l.b16 %v1581
      %v1652 = vunpack.c.l.b16 %v1582
      %v1653 = vunpack.c.l.b16 %v1583
      %v1654 = vunpack.c.l.b16 %v1584
      %v1655 = vunpack.c.l.b16 %v1585
      %v1656 = vunpack.c.l.b16 %v1586
      %v1657 = vunpack.c.l.b16 %v1587
      %v1658 = vunpack.c.l.b16 %v1588
      %v1659 = vunpack.c.l.b16 %v1589
      %v1660 = vunpack.c.l.b16 %v1590
      %v1661 = vunpack.c.l.b16 %v1591
      %v1662 = vunpack.c.l.b16 %v1592
      %v1663 = vunpack.c.l.b16 %v1593
      %v1664 = vpack.c.b16 %v1649, %v1648
      %v1665 = vpack.c.b16 %v1651, %v1650
      %v1666 = vpack.c.b16 %v1653, %v1652
      %v1667 = vpack.c.b16 %v1655, %v1654
      %v1668 = vpack.c.b16 %v1657, %v1656
      %v1669 = vpack.c.b16 %v1659, %v1658
      %v1670 = vpack.c.b16 %v1661, %v1660
      %v1671 = vpack.c.b16 %v1663, %v1662
      %1680 = vmatpush.bf16.msra.mxu0 %v1671
      %1681 = vmatpush.bf16.msra.mxu0 %v1670
      %1682 = vmatpush.bf16.msra.mxu0 %v1669
      %1683 = vmatpush.bf16.msra.mxu0 %v1668
      %1684 = vmatpush.bf16.msra.mxu0 %v1667
      %1685 = vmatpush.bf16.msra.mxu0 %v1666
      %1686 = vmatpush.bf16.msra.mxu0 %v1665
      %1687 = vmatpush.bf16.msra.mxu0 %v1664
      %1688 = vmatmul.bf16.gmra.mxu0 %v1597
      %v1689 = vpop.f32.mrf.mxu0
      %v1690 = vadd.f32 0.0, %v1689
      %v1691 = vpop.f32.mrf.mxu0
      %v1692 = vadd.f32 0.0, %v1691
      %1693 = vmatmul.bf16.gmra.mxu0 %v1599
      %v1694 = vpop.f32.mrf.mxu0
      %v1695 = vadd.f32 0.0, %v1694
      %v1696 = vpop.f32.mrf.mxu0
      %v1697 = vadd.f32 0.0, %v1696
      %1698 = vmatmul.bf16.gmra.mxu0 %v1601
      %v1699 = vpop.f32.mrf.mxu0
      %v1700 = vadd.f32 0.0, %v1699
      %v1701 = vpop.f32.mrf.mxu0
      %v1702 = vadd.f32 0.0, %v1701
      %1703 = vmatmul.bf16.gmra.mxu0 %v1603
      %v1704 = vpop.f32.mrf.mxu0
      %v1705 = vadd.f32 0.0, %v1704
      %v1706 = vpop.f32.mrf.mxu0
      %v1707 = vadd.f32 0.0, %v1706
      %1708 = vmatmul.bf16.gmra.mxu0 %v1605
      %v1709 = vpop.f32.mrf.mxu0
      %v1710 = vadd.f32 0.0, %v1709
      %v1711 = vpop.f32.mrf.mxu0
      %v1712 = vadd.f32 0.0, %v1711
      %1713 = vmatmul.bf16.gmra.mxu0 %v1607
      %v1714 = vpop.f32.mrf.mxu0
      %v1715 = vadd.f32 0.0, %v1714
      %v1716 = vpop.f32.mrf.mxu0
      %v1717 = vadd.f32 0.0, %v1716
      %1718 = vmatmul.bf16.gmra.mxu0 %v1609
      %v1719 = vpop.f32.mrf.mxu0
      %v1720 = vadd.f32 0.0, %v1719
      %v1721 = vpop.f32.mrf.mxu0
      %v1722 = vadd.f32 0.0, %v1721
      %1723 = vmatmul.bf16.gmra.mxu0 %v1611
      %v1724 = vpop.f32.mrf.mxu0
      %v1725 = vadd.f32 0.0, %v1724
      %v1726 = vpop.f32.mrf.mxu0
      %v1727 = vadd.f32 0.0, %v1726
      %1728 = vmatmul.bf16.gmra.mxu0 %v1613
      %v1729 = vpop.f32.mrf.mxu0
      %v1730 = vadd.f32 0.0, %v1729
      %v1731 = vpop.f32.mrf.mxu0
      %v1732 = vadd.f32 0.0, %v1731
      %1733 = vmatmul.bf16.gmra.mxu0 %v1615
      %v1734 = vpop.f32.mrf.mxu0
      %v1735 = vadd.f32 0.0, %v1734
      %v1736 = vpop.f32.mrf.mxu0
      %v1737 = vadd.f32 0.0, %v1736
      %1738 = vmatmul.bf16.gmra.mxu0 %v1617
      %v1739 = vpop.f32.mrf.mxu0
      %v1740 = vadd.f32 0.0, %v1739
      %v1741 = vpop.f32.mrf.mxu0
      %v1742 = vadd.f32 0.0, %v1741
      %1743 = vmatmul.bf16.gmra.mxu0 %v1619
      %v1744 = vpop.f32.mrf.mxu0
      %v1745 = vadd.f32 0.0, %v1744
      %v1746 = vpop.f32.mrf.mxu0
      %v1747 = vadd.f32 0.0, %v1746
      %1748 = vdwg.mxu0
      %v1749 = vld [vmem:[#allocation2] sm:$0xff]
      %v1750 = vld [vmem:[#allocation2 + $0x8] sm:$0xff]
      %v1751 = vld [vmem:[#allocation2 + $0x10] sm:$0xff]
      %v1752 = vld [vmem:[#allocation2 + $0x18] sm:$0xff]
      %v1753 = vld [vmem:[#allocation2 + $0x20] sm:$0xff]
      %v1754 = vld [vmem:[#allocation2 + $0x28] sm:$0xff]
      %v1755 = vld [vmem:[#allocation2 + $0x30] sm:$0xff]
      %v1756 = vld [vmem:[#allocation2 + $0x38] sm:$0xff]
      %v1757 = vld [vmem:[#allocation2 + $0x40] sm:$0xff]
      %v1758 = vld [vmem:[#allocation2 + $0x48] sm:$0xff]
      %v1759 = vld [vmem:[#allocation2 + $0x50] sm:$0xff]
      %v1760 = vld [vmem:[#allocation2 + $0x58] sm:$0xff]
      %v1761 = vld [vmem:[#allocation2 + $0x60] sm:$0xff]
      %v1762 = vld [vmem:[#allocation2 + $0x68] sm:$0xff]
      %v1763 = vld [vmem:[#allocation2 + $0x70] sm:$0xff]
      %v1764 = vld [vmem:[#allocation2 + $0x78] sm:$0xff]
      %v1765 = vld [vmem:[#allocation2 + $0x80] sm:$0xff]
      %v1766 = vld [vmem:[#allocation2 + $0x88] sm:$0xff]
      %v1767 = vld [vmem:[#allocation2 + $0x90] sm:$0xff]
      %v1768 = vld [vmem:[#allocation2 + $0x98] sm:$0xff]
      %v1769 = vld [vmem:[#allocation2 + $0xa0] sm:$0xff]
      %v1770 = vld [vmem:[#allocation2 + $0xa8] sm:$0xff]
      %v1771 = vld [vmem:[#allocation2 + $0xb0] sm:$0xff]
      %v1772 = vld [vmem:[#allocation2 + $0xb8] sm:$0xff]
      %v1773 = vadd.f32 %v1749, %v1690
      %v1774 = vadd.f32 %v1750, %v1692
      %v1775 = vadd.f32 %v1751, %v1695
      %v1776 = vadd.f32 %v1752, %v1697
      %v1777 = vadd.f32 %v1753, %v1700
      %v1778 = vadd.f32 %v1754, %v1702
      %v1779 = vadd.f32 %v1755, %v1705
      %v1780 = vadd.f32 %v1756, %v1707
      %v1781 = vadd.f32 %v1757, %v1710
      %v1782 = vadd.f32 %v1758, %v1712
      %v1783 = vadd.f32 %v1759, %v1715
      %v1784 = vadd.f32 %v1760, %v1717
      %v1785 = vadd.f32 %v1761, %v1720
      %v1786 = vadd.f32 %v1762, %v1722
      %v1787 = vadd.f32 %v1763, %v1725
      %v1788 = vadd.f32 %v1764, %v1727
      %v1789 = vadd.f32 %v1765, %v1730
      %v1790 = vadd.f32 %v1766, %v1732
      %v1791 = vadd.f32 %v1767, %v1735
      %v1792 = vadd.f32 %v1768, %v1737
      %v1793 = vadd.f32 %v1769, %v1740
      %v1794 = vadd.f32 %v1770, %v1742
      %v1795 = vadd.f32 %v1771, %v1745
      %v1796 = vadd.f32 %v1772, %v1747
      %1797 = vst [vmem:[#allocation2] sm:$0xff] %v1773
      %1798 = vst [vmem:[#allocation2 + $0x8] sm:$0xff] %v1774
      %1799 = vst [vmem:[#allocation2 + $0x10] sm:$0xff] %v1775
      %1800 = vst [vmem:[#allocation2 + $0x18] sm:$0xff] %v1776
      %1801 = vst [vmem:[#allocation2 + $0x20] sm:$0xff] %v1777
      %1802 = vst [vmem:[#allocation2 + $0x28] sm:$0xff] %v1778
      %1803 = vst [vmem:[#allocation2 + $0x30] sm:$0xff] %v1779
      %1804 = vst [vmem:[#allocation2 + $0x38] sm:$0xff] %v1780
      %1805 = vst [vmem:[#allocation2 + $0x40] sm:$0xff] %v1781
      %1806 = vst [vmem:[#allocation2 + $0x48] sm:$0xff] %v1782
      %1807 = vst [vmem:[#allocation2 + $0x50] sm:$0xff] %v1783
      %1808 = vst [vmem:[#allocation2 + $0x58] sm:$0xff] %v1784
      %1809 = vst [vmem:[#allocation2 + $0x60] sm:$0xff] %v1785
      %1810 = vst [vmem:[#allocation2 + $0x68] sm:$0xff] %v1786
      %1811 = vst [vmem:[#allocation2 + $0x70] sm:$0xff] %v1787
      %1812 = vst [vmem:[#allocation2 + $0x78] sm:$0xff] %v1788
      %1813 = vst [vmem:[#allocation2 + $0x80] sm:$0xff] %v1789
      %1814 = vst [vmem:[#allocation2 + $0x88] sm:$0xff] %v1790
      %1815 = vst [vmem:[#allocation2 + $0x90] sm:$0xff] %v1791
      %1816 = vst [vmem:[#allocation2 + $0x98] sm:$0xff] %v1792
      %1817 = vst [vmem:[#allocation2 + $0xa0] sm:$0xff] %v1793
      %1818 = vst [vmem:[#allocation2 + $0xa8] sm:$0xff] %v1794
      %1819 = vst [vmem:[#allocation2 + $0xb0] sm:$0xff] %v1795
      %1820 = vst [vmem:[#allocation2 + $0xb8] sm:$0xff] %v1796
      %s1821 = scalar_lea.vmem %s5, 256
      %v1822 = vld [vmem:[%s1821] sm:$0xf]
      %v1823 = vld [vmem:[%s1821 + $0x4] sm:$0xf]
      %v1824 = vld [vmem:[%s1821 + $0x8] sm:$0xf]
      %v1825 = vld [vmem:[%s1821 + $0xc] sm:$0xf]
      %v1826 = vld [vmem:[%s1821 + $0x10] sm:$0xf]
      %v1827 = vld [vmem:[%s1821 + $0x14] sm:$0xf]
      %v1828 = vld [vmem:[%s1821 + $0x18] sm:$0xf]
      %v1829 = vld [vmem:[%s1821 + $0x1c] sm:$0xf]
      %v1830 = vld [vmem:[%s1821 + $0x20] sm:$0xf]
      %v1831 = vld [vmem:[%s1821 + $0x24] sm:$0xf]
      %v1832 = vld [vmem:[%s1821 + $0x28] sm:$0xf]
      %v1833 = vld [vmem:[%s1821 + $0x2c] sm:$0xf]
      %v1834 = vld [vmem:[%s1821 + $0x30] sm:$0xf]
      %v1835 = vld [vmem:[%s1821 + $0x34] sm:$0xf]
      %v1836 = vld [vmem:[%s1821 + $0x38] sm:$0xf]
      %v1837 = vld [vmem:[%s1821 + $0x3c] sm:$0xf]
      %v1838 = vpack.c.b16 %v754, %v753
      %v1839 = vpack.c.b16 %v756, %v755
      %v1840 = vpack.c.b16 %v758, %v757
      %v1841 = vpack.c.b16 %v760, %v759
      %v1842 = vpack.c.b16 %v762, %v761
      %v1843 = vpack.c.b16 %v764, %v763
      %v1844 = vpack.c.b16 %v766, %v765
      %v1845 = vpack.c.b16 %v768, %v767
      %v1846 = vpack.c.b16 %v770, %v769
      %v1847 = vpack.c.b16 %v772, %v771
      %v1848 = vpack.c.b16 %v774, %v773
      %v1849 = vpack.c.b16 %v776, %v775
      %v1878 = vunpack.c.l.b16 %v1822
      %v1879 = vunpack.c.l.b16 %v1823
      %v1880 = vunpack.c.l.b16 %v1824
      %v1881 = vunpack.c.l.b16 %v1825
      %v1882 = vunpack.c.l.b16 %v1826
      %v1883 = vunpack.c.l.b16 %v1827
      %v1884 = vunpack.c.l.b16 %v1828
      %v1885 = vunpack.c.l.b16 %v1829
      %v1886 = vunpack.c.l.b16 %v1830
      %v1887 = vunpack.c.l.b16 %v1831
      %v1888 = vunpack.c.l.b16 %v1832
      %v1889 = vunpack.c.l.b16 %v1833
      %v1890 = vunpack.c.l.b16 %v1834
      %v1891 = vunpack.c.l.b16 %v1835
      %v1892 = vunpack.c.l.b16 %v1836
      %v1893 = vunpack.c.l.b16 %v1837
      %v1894 = vpack.c.b16 %v1879, %v1878
      %v1895 = vpack.c.b16 %v1881, %v1880
      %v1896 = vpack.c.b16 %v1883, %v1882
      %v1897 = vpack.c.b16 %v1885, %v1884
      %v1898 = vpack.c.b16 %v1887, %v1886
      %v1899 = vpack.c.b16 %v1889, %v1888
      %v1900 = vpack.c.b16 %v1891, %v1890
      %v1901 = vpack.c.b16 %v1893, %v1892
      %1910 = vmatpush.bf16.msra.mxu0 %v1901
      %1911 = vmatpush.bf16.msra.mxu0 %v1900
      %1912 = vmatpush.bf16.msra.mxu0 %v1899
      %1913 = vmatpush.bf16.msra.mxu0 %v1898
      %1914 = vmatpush.bf16.msra.mxu0 %v1897
      %1915 = vmatpush.bf16.msra.mxu0 %v1896
      %1916 = vmatpush.bf16.msra.mxu0 %v1895
      %1917 = vmatpush.bf16.msra.mxu0 %v1894
      %1918 = vmatmul.bf16.gmra.mxu0 %v1838
      %v1919 = vpop.f32.mrf.mxu0
      %v1920 = vadd.f32 0.0, %v1919
      %v1921 = vpop.f32.mrf.mxu0
      %v1922 = vadd.f32 0.0, %v1921
      %1923 = vmatmul.bf16.gmra.mxu0 %v1839
      %v1924 = vpop.f32.mrf.mxu0
      %v1925 = vadd.f32 0.0, %v1924
      %v1926 = vpop.f32.mrf.mxu0
      %v1927 = vadd.f32 0.0, %v1926
      %1928 = vmatmul.bf16.gmra.mxu0 %v1840
      %v1929 = vpop.f32.mrf.mxu0
      %v1930 = vadd.f32 0.0, %v1929
      %v1931 = vpop.f32.mrf.mxu0
      %v1932 = vadd.f32 0.0, %v1931
      %1933 = vmatmul.bf16.gmra.mxu0 %v1841
      %v1934 = vpop.f32.mrf.mxu0
      %v1935 = vadd.f32 0.0, %v1934
      %v1936 = vpop.f32.mrf.mxu0
      %v1937 = vadd.f32 0.0, %v1936
      %1938 = vmatmul.bf16.gmra.mxu0 %v1842
      %v1939 = vpop.f32.mrf.mxu0
      %v1940 = vadd.f32 0.0, %v1939
      %v1941 = vpop.f32.mrf.mxu0
      %v1942 = vadd.f32 0.0, %v1941
      %1943 = vmatmul.bf16.gmra.mxu0 %v1843
      %v1944 = vpop.f32.mrf.mxu0
      %v1945 = vadd.f32 0.0, %v1944
      %v1946 = vpop.f32.mrf.mxu0
      %v1947 = vadd.f32 0.0, %v1946
      %1948 = vmatmul.bf16.gmra.mxu0 %v1844
      %v1949 = vpop.f32.mrf.mxu0
      %v1950 = vadd.f32 0.0, %v1949
      %v1951 = vpop.f32.mrf.mxu0
      %v1952 = vadd.f32 0.0, %v1951
      %1953 = vmatmul.bf16.gmra.mxu0 %v1845
      %v1954 = vpop.f32.mrf.mxu0
      %v1955 = vadd.f32 0.0, %v1954
      %v1956 = vpop.f32.mrf.mxu0
      %v1957 = vadd.f32 0.0, %v1956
      %1958 = vmatmul.bf16.gmra.mxu0 %v1846
      %v1959 = vpop.f32.mrf.mxu0
      %v1960 = vadd.f32 0.0, %v1959
      %v1961 = vpop.f32.mrf.mxu0
      %v1962 = vadd.f32 0.0, %v1961
      %1963 = vmatmul.bf16.gmra.mxu0 %v1847
      %v1964 = vpop.f32.mrf.mxu0
      %v1965 = vadd.f32 0.0, %v1964
      %v1966 = vpop.f32.mrf.mxu0
      %v1967 = vadd.f32 0.0, %v1966
      %1968 = vmatmul.bf16.gmra.mxu0 %v1848
      %v1969 = vpop.f32.mrf.mxu0
      %v1970 = vadd.f32 0.0, %v1969
      %v1971 = vpop.f32.mrf.mxu0
      %v1972 = vadd.f32 0.0, %v1971
      %1973 = vmatmul.bf16.gmra.mxu0 %v1849
      %v1974 = vpop.f32.mrf.mxu0
      %v1975 = vadd.f32 0.0, %v1974
      %v1976 = vpop.f32.mrf.mxu0
      %v1977 = vadd.f32 0.0, %v1976
      %1978 = vdwg.mxu0
      %v1979 = vld [vmem:[#allocation2] sm:$0xff]
      %v1980 = vld [vmem:[#allocation2 + $0x8] sm:$0xff]
      %v1981 = vld [vmem:[#allocation2 + $0x10] sm:$0xff]
      %v1982 = vld [vmem:[#allocation2 + $0x18] sm:$0xff]
      %v1983 = vld [vmem:[#allocation2 + $0x20] sm:$0xff]
      %v1984 = vld [vmem:[#allocation2 + $0x28] sm:$0xff]
      %v1985 = vld [vmem:[#allocation2 + $0x30] sm:$0xff]
      %v1986 = vld [vmem:[#allocation2 + $0x38] sm:$0xff]
      %v1987 = vld [vmem:[#allocation2 + $0x40] sm:$0xff]
      %v1988 = vld [vmem:[#allocation2 + $0x48] sm:$0xff]
      %v1989 = vld [vmem:[#allocation2 + $0x50] sm:$0xff]
      %v1990 = vld [vmem:[#allocation2 + $0x58] sm:$0xff]
      %v1991 = vld [vmem:[#allocation2 + $0x60] sm:$0xff]
      %v1992 = vld [vmem:[#allocation2 + $0x68] sm:$0xff]
      %v1993 = vld [vmem:[#allocation2 + $0x70] sm:$0xff]
      %v1994 = vld [vmem:[#allocation2 + $0x78] sm:$0xff]
      %v1995 = vld [vmem:[#allocation2 + $0x80] sm:$0xff]
      %v1996 = vld [vmem:[#allocation2 + $0x88] sm:$0xff]
      %v1997 = vld [vmem:[#allocation2 + $0x90] sm:$0xff]
      %v1998 = vld [vmem:[#allocation2 + $0x98] sm:$0xff]
      %v1999 = vld [vmem:[#allocation2 + $0xa0] sm:$0xff]
      %v2000 = vld [vmem:[#allocation2 + $0xa8] sm:$0xff]
      %v2001 = vld [vmem:[#allocation2 + $0xb0] sm:$0xff]
      %v2002 = vld [vmem:[#allocation2 + $0xb8] sm:$0xff]
      %v2003 = vadd.f32 %v1979, %v1920
      %v2004 = vadd.f32 %v1980, %v1922
      %v2005 = vadd.f32 %v1981, %v1925
      %v2006 = vadd.f32 %v1982, %v1927
      %v2007 = vadd.f32 %v1983, %v1930
      %v2008 = vadd.f32 %v1984, %v1932
      %v2009 = vadd.f32 %v1985, %v1935
      %v2010 = vadd.f32 %v1986, %v1937
      %v2011 = vadd.f32 %v1987, %v1940
      %v2012 = vadd.f32 %v1988, %v1942
      %v2013 = vadd.f32 %v1989, %v1945
      %v2014 = vadd.f32 %v1990, %v1947
      %v2015 = vadd.f32 %v1991, %v1950
      %v2016 = vadd.f32 %v1992, %v1952
      %v2017 = vadd.f32 %v1993, %v1955
      %v2018 = vadd.f32 %v1994, %v1957
      %v2019 = vadd.f32 %v1995, %v1960
      %v2020 = vadd.f32 %v1996, %v1962
      %v2021 = vadd.f32 %v1997, %v1965
      %v2022 = vadd.f32 %v1998, %v1967
      %v2023 = vadd.f32 %v1999, %v1970
      %v2024 = vadd.f32 %v2000, %v1972
      %v2025 = vadd.f32 %v2001, %v1975
      %v2026 = vadd.f32 %v2002, %v1977
      %2027 = vst [vmem:[#allocation2] sm:$0xff] %v2003
      %2028 = vst [vmem:[#allocation2 + $0x8] sm:$0xff] %v2004
      %2029 = vst [vmem:[#allocation2 + $0x10] sm:$0xff] %v2005
      %2030 = vst [vmem:[#allocation2 + $0x18] sm:$0xff] %v2006
      %2031 = vst [vmem:[#allocation2 + $0x20] sm:$0xff] %v2007
      %2032 = vst [vmem:[#allocation2 + $0x28] sm:$0xff] %v2008
      %2033 = vst [vmem:[#allocation2 + $0x30] sm:$0xff] %v2009
      %2034 = vst [vmem:[#allocation2 + $0x38] sm:$0xff] %v2010
      %2035 = vst [vmem:[#allocation2 + $0x40] sm:$0xff] %v2011
      %2036 = vst [vmem:[#allocation2 + $0x48] sm:$0xff] %v2012
      %2037 = vst [vmem:[#allocation2 + $0x50] sm:$0xff] %v2013
      %2038 = vst [vmem:[#allocation2 + $0x58] sm:$0xff] %v2014
      %2039 = vst [vmem:[#allocation2 + $0x60] sm:$0xff] %v2015
      %2040 = vst [vmem:[#allocation2 + $0x68] sm:$0xff] %v2016
      %2041 = vst [vmem:[#allocation2 + $0x70] sm:$0xff] %v2017
      %2042 = vst [vmem:[#allocation2 + $0x78] sm:$0xff] %v2018
      %2043 = vst [vmem:[#allocation2 + $0x80] sm:$0xff] %v2019
      %2044 = vst [vmem:[#allocation2 + $0x88] sm:$0xff] %v2020
      %2045 = vst [vmem:[#allocation2 + $0x90] sm:$0xff] %v2021
      %2046 = vst [vmem:[#allocation2 + $0x98] sm:$0xff] %v2022
      %2047 = vst [vmem:[#allocation2 + $0xa0] sm:$0xff] %v2023
      %2048 = vst [vmem:[#allocation2 + $0xa8] sm:$0xff] %v2024
      %2049 = vst [vmem:[#allocation2 + $0xb0] sm:$0xff] %v2025
      %2050 = vst [vmem:[#allocation2 + $0xb8] sm:$0xff] %v2026
      %s2051 = scalar_lea.vmem %s5, 320
      %v2052 = vld [vmem:[%s2051] sm:$0xf]
      %v2053 = vld [vmem:[%s2051 + $0x4] sm:$0xf]
      %v2054 = vld [vmem:[%s2051 + $0x8] sm:$0xf]
      %v2055 = vld [vmem:[%s2051 + $0xc] sm:$0xf]
      %v2056 = vld [vmem:[%s2051 + $0x10] sm:$0xf]
      %v2057 = vld [vmem:[%s2051 + $0x14] sm:$0xf]
      %v2058 = vld [vmem:[%s2051 + $0x18] sm:$0xf]
      %v2059 = vld [vmem:[%s2051 + $0x1c] sm:$0xf]
      %v2060 = vld [vmem:[%s2051 + $0x20] sm:$0xf]
      %v2061 = vld [vmem:[%s2051 + $0x24] sm:$0xf]
      %v2062 = vld [vmem:[%s2051 + $0x28] sm:$0xf]
      %v2063 = vld [vmem:[%s2051 + $0x2c] sm:$0xf]
      %v2064 = vld [vmem:[%s2051 + $0x30] sm:$0xf]
      %v2065 = vld [vmem:[%s2051 + $0x34] sm:$0xf]
      %v2066 = vld [vmem:[%s2051 + $0x38] sm:$0xf]
      %v2067 = vld [vmem:[%s2051 + $0x3c] sm:$0xf]
      %v2068 = vrot.slane %v940, 4
      %v2069 = vrot.slane %v943, 4
      %v2070 = vsel %vm1594, %v2068, %v2069
      %v2071 = vrot.slane %v946, 4
      %v2072 = vsel %vm1594, %v2069, %v2071
      %v2073 = vrot.slane %v949, 4
      %v2074 = vsel %vm1594, %v2071, %v2073
      %v2075 = vrot.slane %v952, 4
      %v2076 = vsel %vm1594, %v2073, %v2075
      %v2077 = vrot.slane %v955, 4
      %v2078 = vsel %vm1594, %v2075, %v2077
      %v2079 = vrot.slane %v958, 4
      %v2080 = vsel %vm1594, %v2077, %v2079
      %v2081 = vrot.slane %v961, 4
      %v2082 = vsel %vm1594, %v2079, %v2081
      %v2083 = vrot.slane %v964, 4
      %v2084 = vsel %vm1594, %v2081, %v2083
      %v2085 = vrot.slane %v967, 4
      %v2086 = vsel %vm1594, %v2083, %v2085
      %v2087 = vrot.slane %v970, 4
      %v2088 = vsel %vm1594, %v2085, %v2087
      %v2089 = vrot.slane %v973, 4
      %v2090 = vsel %vm1594, %v2087, %v2089
      %v2091 = vrot.slane %v976, 4
      %v2092 = vsel %vm1594, %v2089, %v2091
      %v2121 = vunpack.c.l.b16 %v2052
      %v2122 = vunpack.c.l.b16 %v2053
      %v2123 = vunpack.c.l.b16 %v2054
      %v2124 = vunpack.c.l.b16 %v2055
      %v2125 = vunpack.c.l.b16 %v2056
      %v2126 = vunpack.c.l.b16 %v2057
      %v2127 = vunpack.c.l.b16 %v2058
      %v2128 = vunpack.c.l.b16 %v2059
      %v2129 = vunpack.c.l.b16 %v2060
      %v2130 = vunpack.c.l.b16 %v2061
      %v2131 = vunpack.c.l.b16 %v2062
      %v2132 = vunpack.c.l.b16 %v2063
      %v2133 = vunpack.c.l.b16 %v2064
      %v2134 = vunpack.c.l.b16 %v2065
      %v2135 = vunpack.c.l.b16 %v2066
      %v2136 = vunpack.c.l.b16 %v2067
      %v2137 = vpack.c.b16 %v2122, %v2121
      %v2138 = vpack.c.b16 %v2124, %v2123
      %v2139 = vpack.c.b16 %v2126, %v2125
      %v2140 = vpack.c.b16 %v2128, %v2127
      %v2141 = vpack.c.b16 %v2130, %v2129
      %v2142 = vpack.c.b16 %v2132, %v2131
      %v2143 = vpack.c.b16 %v2134, %v2133
      %v2144 = vpack.c.b16 %v2136, %v2135
      %2153 = vmatpush.bf16.msra.mxu0 %v2144
      %2154 = vmatpush.bf16.msra.mxu0 %v2143
      %2155 = vmatpush.bf16.msra.mxu0 %v2142
      %2156 = vmatpush.bf16.msra.mxu0 %v2141
      %2157 = vmatpush.bf16.msra.mxu0 %v2140
      %2158 = vmatpush.bf16.msra.mxu0 %v2139
      %2159 = vmatpush.bf16.msra.mxu0 %v2138
      %2160 = vmatpush.bf16.msra.mxu0 %v2137
      %2161 = vmatmul.bf16.gmra.mxu0 %v2070
      %v2162 = vpop.f32.mrf.mxu0
      %v2163 = vadd.f32 0.0, %v2162
      %v2164 = vpop.f32.mrf.mxu0
      %v2165 = vadd.f32 0.0, %v2164
      %2166 = vmatmul.bf16.gmra.mxu0 %v2072
      %v2167 = vpop.f32.mrf.mxu0
      %v2168 = vadd.f32 0.0, %v2167
      %v2169 = vpop.f32.mrf.mxu0
      %v2170 = vadd.f32 0.0, %v2169
      %2171 = vmatmul.bf16.gmra.mxu0 %v2074
      %v2172 = vpop.f32.mrf.mxu0
      %v2173 = vadd.f32 0.0, %v2172
      %v2174 = vpop.f32.mrf.mxu0
      %v2175 = vadd.f32 0.0, %v2174
      %2176 = vmatmul.bf16.gmra.mxu0 %v2076
      %v2177 = vpop.f32.mrf.mxu0
      %v2178 = vadd.f32 0.0, %v2177
      %v2179 = vpop.f32.mrf.mxu0
      %v2180 = vadd.f32 0.0, %v2179
      %2181 = vmatmul.bf16.gmra.mxu0 %v2078
      %v2182 = vpop.f32.mrf.mxu0
      %v2183 = vadd.f32 0.0, %v2182
      %v2184 = vpop.f32.mrf.mxu0
      %v2185 = vadd.f32 0.0, %v2184
      %2186 = vmatmul.bf16.gmra.mxu0 %v2080
      %v2187 = vpop.f32.mrf.mxu0
      %v2188 = vadd.f32 0.0, %v2187
      %v2189 = vpop.f32.mrf.mxu0
      %v2190 = vadd.f32 0.0, %v2189
      %2191 = vmatmul.bf16.gmra.mxu0 %v2082
      %v2192 = vpop.f32.mrf.mxu0
      %v2193 = vadd.f32 0.0, %v2192
      %v2194 = vpop.f32.mrf.mxu0
      %v2195 = vadd.f32 0.0, %v2194
      %2196 = vmatmul.bf16.gmra.mxu0 %v2084
      %v2197 = vpop.f32.mrf.mxu0
      %v2198 = vadd.f32 0.0, %v2197
      %v2199 = vpop.f32.mrf.mxu0
      %v2200 = vadd.f32 0.0, %v2199
      %2201 = vmatmul.bf16.gmra.mxu0 %v2086
      %v2202 = vpop.f32.mrf.mxu0
      %v2203 = vadd.f32 0.0, %v2202
      %v2204 = vpop.f32.mrf.mxu0
      %v2205 = vadd.f32 0.0, %v2204
      %2206 = vmatmul.bf16.gmra.mxu0 %v2088
      %v2207 = vpop.f32.mrf.mxu0
      %v2208 = vadd.f32 0.0, %v2207
      %v2209 = vpop.f32.mrf.mxu0
      %v2210 = vadd.f32 0.0, %v2209
      %2211 = vmatmul.bf16.gmra.mxu0 %v2090
      %v2212 = vpop.f32.mrf.mxu0
      %v2213 = vadd.f32 0.0, %v2212
      %v2214 = vpop.f32.mrf.mxu0
      %v2215 = vadd.f32 0.0, %v2214
      %2216 = vmatmul.bf16.gmra.mxu0 %v2092
      %v2217 = vpop.f32.mrf.mxu0
      %v2218 = vadd.f32 0.0, %v2217
      %v2219 = vpop.f32.mrf.mxu0
      %v2220 = vadd.f32 0.0, %v2219
      %2221 = vdwg.mxu0
      %v2222 = vld [vmem:[#allocation2] sm:$0xff]
      %v2223 = vld [vmem:[#allocation2 + $0x8] sm:$0xff]
      %v2224 = vld [vmem:[#allocation2 + $0x10] sm:$0xff]
      %v2225 = vld [vmem:[#allocation2 + $0x18] sm:$0xff]
      %v2226 = vld [vmem:[#allocation2 + $0x20] sm:$0xff]
      %v2227 = vld [vmem:[#allocation2 + $0x28] sm:$0xff]
      %v2228 = vld [vmem:[#allocation2 + $0x30] sm:$0xff]
      %v2229 = vld [vmem:[#allocation2 + $0x38] sm:$0xff]
      %v2230 = vld [vmem:[#allocation2 + $0x40] sm:$0xff]
      %v2231 = vld [vmem:[#allocation2 + $0x48] sm:$0xff]
      %v2232 = vld [vmem:[#allocation2 + $0x50] sm:$0xff]
      %v2233 = vld [vmem:[#allocation2 + $0x58] sm:$0xff]
      %v2234 = vld [vmem:[#allocation2 + $0x60] sm:$0xff]
      %v2235 = vld [vmem:[#allocation2 + $0x68] sm:$0xff]
      %v2236 = vld [vmem:[#allocation2 + $0x70] sm:$0xff]
      %v2237 = vld [vmem:[#allocation2 + $0x78] sm:$0xff]
      %v2238 = vld [vmem:[#allocation2 + $0x80] sm:$0xff]
      %v2239 = vld [vmem:[#allocation2 + $0x88] sm:$0xff]
      %v2240 = vld [vmem:[#allocation2 + $0x90] sm:$0xff]
      %v2241 = vld [vmem:[#allocation2 + $0x98] sm:$0xff]
      %v2242 = vld [vmem:[#allocation2 + $0xa0] sm:$0xff]
      %v2243 = vld [vmem:[#allocation2 + $0xa8] sm:$0xff]
      %v2244 = vld [vmem:[#allocation2 + $0xb0] sm:$0xff]
      %v2245 = vld [vmem:[#allocation2 + $0xb8] sm:$0xff]
      %v2246 = vadd.f32 %v2222, %v2163
      %v2247 = vadd.f32 %v2223, %v2165
      %v2248 = vadd.f32 %v2224, %v2168
      %v2249 = vadd.f32 %v2225, %v2170
      %v2250 = vadd.f32 %v2226, %v2173
      %v2251 = vadd.f32 %v2227, %v2175
      %v2252 = vadd.f32 %v2228, %v2178
      %v2253 = vadd.f32 %v2229, %v2180
      %v2254 = vadd.f32 %v2230, %v2183
      %v2255 = vadd.f32 %v2231, %v2185
      %v2256 = vadd.f32 %v2232, %v2188
      %v2257 = vadd.f32 %v2233, %v2190
      %v2258 = vadd.f32 %v2234, %v2193
      %v2259 = vadd.f32 %v2235, %v2195
      %v2260 = vadd.f32 %v2236, %v2198
      %v2261 = vadd.f32 %v2237, %v2200
      %v2262 = vadd.f32 %v2238, %v2203
      %v2263 = vadd.f32 %v2239, %v2205
      %v2264 = vadd.f32 %v2240, %v2208
      %v2265 = vadd.f32 %v2241, %v2210
      %v2266 = vadd.f32 %v2242, %v2213
      %v2267 = vadd.f32 %v2243, %v2215
      %v2268 = vadd.f32 %v2244, %v2218
      %v2269 = vadd.f32 %v2245, %v2220
      %2270 = vst [vmem:[#allocation2] sm:$0xff] %v2246
      %2271 = vst [vmem:[#allocation2 + $0x8] sm:$0xff] %v2247
      %2272 = vst [vmem:[#allocation2 + $0x10] sm:$0xff] %v2248
      %2273 = vst [vmem:[#allocation2 + $0x18] sm:$0xff] %v2249
      %2274 = vst [vmem:[#allocation2 + $0x20] sm:$0xff] %v2250
      %2275 = vst [vmem:[#allocation2 + $0x28] sm:$0xff] %v2251
      %2276 = vst [vmem:[#allocation2 + $0x30] sm:$0xff] %v2252
      %2277 = vst [vmem:[#allocation2 + $0x38] sm:$0xff] %v2253
      %2278 = vst [vmem:[#allocation2 + $0x40] sm:$0xff] %v2254
      %2279 = vst [vmem:[#allocation2 + $0x48] sm:$0xff] %v2255
      %2280 = vst [vmem:[#allocation2 + $0x50] sm:$0xff] %v2256
      %2281 = vst [vmem:[#allocation2 + $0x58] sm:$0xff] %v2257
      %2282 = vst [vmem:[#allocation2 + $0x60] sm:$0xff] %v2258
      %2283 = vst [vmem:[#allocation2 + $0x68] sm:$0xff] %v2259
      %2284 = vst [vmem:[#allocation2 + $0x70] sm:$0xff] %v2260
      %2285 = vst [vmem:[#allocation2 + $0x78] sm:$0xff] %v2261
      %2286 = vst [vmem:[#allocation2 + $0x80] sm:$0xff] %v2262
      %2287 = vst [vmem:[#allocation2 + $0x88] sm:$0xff] %v2263
      %2288 = vst [vmem:[#allocation2 + $0x90] sm:$0xff] %v2264
      %2289 = vst [vmem:[#allocation2 + $0x98] sm:$0xff] %v2265
      %2290 = vst [vmem:[#allocation2 + $0xa0] sm:$0xff] %v2266
      %2291 = vst [vmem:[#allocation2 + $0xa8] sm:$0xff] %v2267
      %2292 = vst [vmem:[#allocation2 + $0xb0] sm:$0xff] %v2268
      %2293 = vst [vmem:[#allocation2 + $0xb8] sm:$0xff] %v2269
      %s2294 = scalar_lea.vmem %s5, 384
      %v2295 = vld [vmem:[%s2294] sm:$0xf]
      %v2296 = vld [vmem:[%s2294 + $0x4] sm:$0xf]
      %v2297 = vld [vmem:[%s2294 + $0x8] sm:$0xf]
      %v2298 = vld [vmem:[%s2294 + $0xc] sm:$0xf]
      %v2299 = vld [vmem:[%s2294 + $0x10] sm:$0xf]
      %v2300 = vld [vmem:[%s2294 + $0x14] sm:$0xf]
      %v2301 = vld [vmem:[%s2294 + $0x18] sm:$0xf]
      %v2302 = vld [vmem:[%s2294 + $0x1c] sm:$0xf]
      %v2303 = vld [vmem:[%s2294 + $0x20] sm:$0xf]
      %v2304 = vld [vmem:[%s2294 + $0x24] sm:$0xf]
      %v2305 = vld [vmem:[%s2294 + $0x28] sm:$0xf]
      %v2306 = vld [vmem:[%s2294 + $0x2c] sm:$0xf]
      %v2307 = vld [vmem:[%s2294 + $0x30] sm:$0xf]
      %v2308 = vld [vmem:[%s2294 + $0x34] sm:$0xf]
      %v2309 = vld [vmem:[%s2294 + $0x38] sm:$0xf]
      %v2310 = vld [vmem:[%s2294 + $0x3c] sm:$0xf]
      %v2327 = vunpack.c.l.b16 %v2295
      %v2328 = vunpack.c.l.b16 %v2296
      %v2329 = vunpack.c.l.b16 %v2297
      %v2330 = vunpack.c.l.b16 %v2298
      %v2331 = vunpack.c.l.b16 %v2299
      %v2332 = vunpack.c.l.b16 %v2300
      %v2333 = vunpack.c.l.b16 %v2301
      %v2334 = vunpack.c.l.b16 %v2302
      %v2335 = vunpack.c.l.b16 %v2303
      %v2336 = vunpack.c.l.b16 %v2304
      %v2337 = vunpack.c.l.b16 %v2305
      %v2338 = vunpack.c.l.b16 %v2306
      %v2339 = vunpack.c.l.b16 %v2307
      %v2340 = vunpack.c.l.b16 %v2308
      %v2341 = vunpack.c.l.b16 %v2309
      %v2342 = vunpack.c.l.b16 %v2310
      %v2343 = vpack.c.b16 %v2328, %v2327
      %v2344 = vpack.c.b16 %v2330, %v2329
      %v2345 = vpack.c.b16 %v2332, %v2331
      %v2346 = vpack.c.b16 %v2334, %v2333
      %v2347 = vpack.c.b16 %v2336, %v2335
      %v2348 = vpack.c.b16 %v2338, %v2337
      %v2349 = vpack.c.b16 %v2340, %v2339
      %v2350 = vpack.c.b16 %v2342, %v2341
      %2359 = vmatpush.bf16.msra.mxu0 %v2350
      %2360 = vmatpush.bf16.msra.mxu0 %v2349
      %2361 = vmatpush.bf16.msra.mxu0 %v2348
      %2362 = vmatpush.bf16.msra.mxu0 %v2347
      %2363 = vmatpush.bf16.msra.mxu0 %v2346
      %2364 = vmatpush.bf16.msra.mxu0 %v2345
      %2365 = vmatpush.bf16.msra.mxu0 %v2344
      %2366 = vmatpush.bf16.msra.mxu0 %v2343
      %2367 = vmatmul.bf16.gmra.mxu0 %v826
      %v2368 = vpop.f32.mrf.mxu0
      %v2369 = vadd.f32 0.0, %v2368
      %v2370 = vpop.f32.mrf.mxu0
      %v2371 = vadd.f32 0.0, %v2370
      %2372 = vmatmul.bf16.gmra.mxu0 %v834
      %v2373 = vpop.f32.mrf.mxu0
      %v2374 = vadd.f32 0.0, %v2373
      %v2375 = vpop.f32.mrf.mxu0
      %v2376 = vadd.f32 0.0, %v2375
      %2377 = vmatmul.bf16.gmra.mxu0 %v842
      %v2378 = vpop.f32.mrf.mxu0
      %v2379 = vadd.f32 0.0, %v2378
      %v2380 = vpop.f32.mrf.mxu0
      %v2381 = vadd.f32 0.0, %v2380
      %2382 = vmatmul.bf16.gmra.mxu0 %v850
      %v2383 = vpop.f32.mrf.mxu0
      %v2384 = vadd.f32 0.0, %v2383
      %v2385 = vpop.f32.mrf.mxu0
      %v2386 = vadd.f32 0.0, %v2385
      %2387 = vmatmul.bf16.gmra.mxu0 %v858
      %v2388 = vpop.f32.mrf.mxu0
      %v2389 = vadd.f32 0.0, %v2388
      %v2390 = vpop.f32.mrf.mxu0
      %v2391 = vadd.f32 0.0, %v2390
      %2392 = vmatmul.bf16.gmra.mxu0 %v866
      %v2393 = vpop.f32.mrf.mxu0
      %v2394 = vadd.f32 0.0, %v2393
      %v2395 = vpop.f32.mrf.mxu0
      %v2396 = vadd.f32 0.0, %v2395
      %2397 = vmatmul.bf16.gmra.mxu0 %v874
      %v2398 = vpop.f32.mrf.mxu0
      %v2399 = vadd.f32 0.0, %v2398
      %v2400 = vpop.f32.mrf.mxu0
      %v2401 = vadd.f32 0.0, %v2400
      %2402 = vmatmul.bf16.gmra.mxu0 %v882
      %v2403 = vpop.f32.mrf.mxu0
      %v2404 = vadd.f32 0.0, %v2403
      %v2405 = vpop.f32.mrf.mxu0
      %v2406 = vadd.f32 0.0, %v2405
      %2407 = vmatmul.bf16.gmra.mxu0 %v890
      %v2408 = vpop.f32.mrf.mxu0
      %v2409 = vadd.f32 0.0, %v2408
      %v2410 = vpop.f32.mrf.mxu0
      %v2411 = vadd.f32 0.0, %v2410
      %2412 = vmatmul.bf16.gmra.mxu0 %v898
      %v2413 = vpop.f32.mrf.mxu0
      %v2414 = vadd.f32 0.0, %v2413
      %v2415 = vpop.f32.mrf.mxu0
      %v2416 = vadd.f32 0.0, %v2415
      %2417 = vmatmul.bf16.gmra.mxu0 %v906
      %v2418 = vpop.f32.mrf.mxu0
      %v2419 = vadd.f32 0.0, %v2418
      %v2420 = vpop.f32.mrf.mxu0
      %v2421 = vadd.f32 0.0, %v2420
      %2422 = vmatmul.bf16.gmra.mxu0 %v914
      %v2423 = vpop.f32.mrf.mxu0
      %v2424 = vadd.f32 0.0, %v2423
      %v2425 = vpop.f32.mrf.mxu0
      %v2426 = vadd.f32 0.0, %v2425
      %2427 = vdwg.mxu0
      %v2428 = vld [vmem:[#allocation2] sm:$0xff]
      %v2429 = vld [vmem:[#allocation2 + $0x8] sm:$0xff]
      %v2430 = vld [vmem:[#allocation2 + $0x10] sm:$0xff]
      %v2431 = vld [vmem:[#allocation2 + $0x18] sm:$0xff]
      %v2432 = vld [vmem:[#allocation2 + $0x20] sm:$0xff]
      %v2433 = vld [vmem:[#allocation2 + $0x28] sm:$0xff]
      %v2434 = vld [vmem:[#allocation2 + $0x30] sm:$0xff]
      %v2435 = vld [vmem:[#allocation2 + $0x38] sm:$0xff]
      %v2436 = vld [vmem:[#allocation2 + $0x40] sm:$0xff]
      %v2437 = vld [vmem:[#allocation2 + $0x48] sm:$0xff]
      %v2438 = vld [vmem:[#allocation2 + $0x50] sm:$0xff]
      %v2439 = vld [vmem:[#allocation2 + $0x58] sm:$0xff]
      %v2440 = vld [vmem:[#allocation2 + $0x60] sm:$0xff]
      %v2441 = vld [vmem:[#allocation2 + $0x68] sm:$0xff]
      %v2442 = vld [vmem:[#allocation2 + $0x70] sm:$0xff]
      %v2443 = vld [vmem:[#allocation2 + $0x78] sm:$0xff]
      %v2444 = vld [vmem:[#allocation2 + $0x80] sm:$0xff]
      %v2445 = vld [vmem:[#allocation2 + $0x88] sm:$0xff]
      %v2446 = vld [vmem:[#allocation2 + $0x90] sm:$0xff]
      %v2447 = vld [vmem:[#allocation2 + $0x98] sm:$0xff]
      %v2448 = vld [vmem:[#allocation2 + $0xa0] sm:$0xff]
      %v2449 = vld [vmem:[#allocation2 + $0xa8] sm:$0xff]
      %v2450 = vld [vmem:[#allocation2 + $0xb0] sm:$0xff]
      %v2451 = vld [vmem:[#allocation2 + $0xb8] sm:$0xff]
      %v2452 = vadd.f32 %v2428, %v2369
      %v2453 = vadd.f32 %v2429, %v2371
      %v2454 = vadd.f32 %v2430, %v2374
      %v2455 = vadd.f32 %v2431, %v2376
      %v2456 = vadd.f32 %v2432, %v2379
      %v2457 = vadd.f32 %v2433, %v2381
      %v2458 = vadd.f32 %v2434, %v2384
      %v2459 = vadd.f32 %v2435, %v2386
      %v2460 = vadd.f32 %v2436, %v2389
      %v2461 = vadd.f32 %v2437, %v2391
      %v2462 = vadd.f32 %v2438, %v2394
      %v2463 = vadd.f32 %v2439, %v2396
      %v2464 = vadd.f32 %v2440, %v2399
      %v2465 = vadd.f32 %v2441, %v2401
      %v2466 = vadd.f32 %v2442, %v2404
      %v2467 = vadd.f32 %v2443, %v2406
      %v2468 = vadd.f32 %v2444, %v2409
      %v2469 = vadd.f32 %v2445, %v2411
      %v2470 = vadd.f32 %v2446, %v2414
      %v2471 = vadd.f32 %v2447, %v2416
      %v2472 = vadd.f32 %v2448, %v2419
      %v2473 = vadd.f32 %v2449, %v2421
      %v2474 = vadd.f32 %v2450, %v2424
      %v2475 = vadd.f32 %v2451, %v2426
      %2476 = vst [vmem:[#allocation2] sm:$0xff] %v2452
      %2477 = vst [vmem:[#allocation2 + $0x8] sm:$0xff] %v2453
      %2478 = vst [vmem:[#allocation2 + $0x10] sm:$0xff] %v2454
      %2479 = vst [vmem:[#allocation2 + $0x18] sm:$0xff] %v2455
      %2480 = vst [vmem:[#allocation2 + $0x20] sm:$0xff] %v2456
      %2481 = vst [vmem:[#allocation2 + $0x28] sm:$0xff] %v2457
      %2482 = vst [vmem:[#allocation2 + $0x30] sm:$0xff] %v2458
      %2483 = vst [vmem:[#allocation2 + $0x38] sm:$0xff] %v2459
      %2484 = vst [vmem:[#allocation2 + $0x40] sm:$0xff] %v2460
      %2485 = vst [vmem:[#allocation2 + $0x48] sm:$0xff] %v2461
      %2486 = vst [vmem:[#allocation2 + $0x50] sm:$0xff] %v2462
      %2487 = vst [vmem:[#allocation2 + $0x58] sm:$0xff] %v2463
      %2488 = vst [vmem:[#allocation2 + $0x60] sm:$0xff] %v2464
      %2489 = vst [vmem:[#allocation2 + $0x68] sm:$0xff] %v2465
      %2490 = vst [vmem:[#allocation2 + $0x70] sm:$0xff] %v2466
      %2491 = vst [vmem:[#allocation2 + $0x78] sm:$0xff] %v2467
      %2492 = vst [vmem:[#allocation2 + $0x80] sm:$0xff] %v2468
      %2493 = vst [vmem:[#allocation2 + $0x88] sm:$0xff] %v2469
      %2494 = vst [vmem:[#allocation2 + $0x90] sm:$0xff] %v2470
      %2495 = vst [vmem:[#allocation2 + $0x98] sm:$0xff] %v2471
      %2496 = vst [vmem:[#allocation2 + $0xa0] sm:$0xff] %v2472
      %2497 = vst [vmem:[#allocation2 + $0xa8] sm:$0xff] %v2473
      %2498 = vst [vmem:[#allocation2 + $0xb0] sm:$0xff] %v2474
      %2499 = vst [vmem:[#allocation2 + $0xb8] sm:$0xff] %v2475
      %s2500 = scalar_lea.vmem %s5, 448
      %v2501 = vld [vmem:[%s2500] sm:$0xf]
      %v2502 = vld [vmem:[%s2500 + $0x4] sm:$0xf]
      %v2503 = vld [vmem:[%s2500 + $0x8] sm:$0xf]
      %v2504 = vld [vmem:[%s2500 + $0xc] sm:$0xf]
      %v2505 = vld [vmem:[%s2500 + $0x10] sm:$0xf]
      %v2506 = vld [vmem:[%s2500 + $0x14] sm:$0xf]
      %v2507 = vld [vmem:[%s2500 + $0x18] sm:$0xf]
      %v2508 = vld [vmem:[%s2500 + $0x1c] sm:$0xf]
      %v2509 = vld [vmem:[%s2500 + $0x20] sm:$0xf]
      %v2510 = vld [vmem:[%s2500 + $0x24] sm:$0xf]
      %v2511 = vld [vmem:[%s2500 + $0x28] sm:$0xf]
      %v2512 = vld [vmem:[%s2500 + $0x2c] sm:$0xf]
      %v2513 = vld [vmem:[%s2500 + $0x30] sm:$0xf]
      %v2514 = vld [vmem:[%s2500 + $0x34] sm:$0xf]
      %v2515 = vld [vmem:[%s2500 + $0x38] sm:$0xf]
      %v2516 = vld [vmem:[%s2500 + $0x3c] sm:$0xf]
      %v2536 = vunpack.c.l.b16 %v2501
      %v2537 = vunpack.c.l.b16 %v2502
      %v2538 = vunpack.c.l.b16 %v2503
      %v2539 = vunpack.c.l.b16 %v2504
      %v2540 = vunpack.c.l.b16 %v2505
      %v2541 = vunpack.c.l.b16 %v2506
      %v2542 = vunpack.c.l.b16 %v2507
      %v2543 = vunpack.c.l.b16 %v2508
      %v2544 = vunpack.c.l.b16 %v2509
      %v2545 = vunpack.c.l.b16 %v2510
      %v2546 = vunpack.c.l.b16 %v2511
      %v2547 = vunpack.c.l.b16 %v2512
      %v2548 = vunpack.c.l.b16 %v2513
      %v2549 = vunpack.c.l.b16 %v2514
      %v2550 = vunpack.c.l.b16 %v2515
      %v2551 = vunpack.c.l.b16 %v2516
      %v2552 = vpack.c.b16 %v2537, %v2536
      %v2553 = vpack.c.b16 %v2539, %v2538
      %v2554 = vpack.c.b16 %v2541, %v2540
      %v2555 = vpack.c.b16 %v2543, %v2542
      %v2556 = vpack.c.b16 %v2545, %v2544
      %v2557 = vpack.c.b16 %v2547, %v2546
      %v2558 = vpack.c.b16 %v2549, %v2548
      %v2559 = vpack.c.b16 %v2551, %v2550
      %2568 = vmatpush.bf16.msra.mxu0 %v2559
      %2569 = vmatpush.bf16.msra.mxu0 %v2558
      %2570 = vmatpush.bf16.msra.mxu0 %v2557
      %2571 = vmatpush.bf16.msra.mxu0 %v2556
      %2572 = vmatpush.bf16.msra.mxu0 %v2555
      %2573 = vmatpush.bf16.msra.mxu0 %v2554
      %2574 = vmatpush.bf16.msra.mxu0 %v2553
      %2575 = vmatpush.bf16.msra.mxu0 %v2552
      %2576 = vmatmul.bf16.gmra.mxu0 %v783
      %v2577 = vpop.f32.mrf.mxu0
      %v2578 = vadd.f32 0.0, %v2577
      %v2579 = vpop.f32.mrf.mxu0
      %v2580 = vadd.f32 0.0, %v2579
      %2581 = vmatmul.bf16.gmra.mxu0 %v784
      %v2582 = vpop.f32.mrf.mxu0
      %v2583 = vadd.f32 0.0, %v2582
      %v2584 = vpop.f32.mrf.mxu0
      %v2585 = vadd.f32 0.0, %v2584
      %2586 = vmatmul.bf16.gmra.mxu0 %v785
      %v2587 = vpop.f32.mrf.mxu0
      %v2588 = vadd.f32 0.0, %v2587
      %v2589 = vpop.f32.mrf.mxu0
      %v2590 = vadd.f32 0.0, %v2589
      %2591 = vmatmul.bf16.gmra.mxu0 %v786
      %v2592 = vpop.f32.mrf.mxu0
      %v2593 = vadd.f32 0.0, %v2592
      %v2594 = vpop.f32.mrf.mxu0
      %v2595 = vadd.f32 0.0, %v2594
      %2596 = vmatmul.bf16.gmra.mxu0 %v787
      %v2597 = vpop.f32.mrf.mxu0
      %v2598 = vadd.f32 0.0, %v2597
      %v2599 = vpop.f32.mrf.mxu0
      %v2600 = vadd.f32 0.0, %v2599
      %2601 = vmatmul.bf16.gmra.mxu0 %v788
      %v2602 = vpop.f32.mrf.mxu0
      %v2603 = vadd.f32 0.0, %v2602
      %v2604 = vpop.f32.mrf.mxu0
      %v2605 = vadd.f32 0.0, %v2604
      %2606 = vmatmul.bf16.gmra.mxu0 %v789
      %v2607 = vpop.f32.mrf.mxu0
      %v2608 = vadd.f32 0.0, %v2607
      %v2609 = vpop.f32.mrf.mxu0
      %v2610 = vadd.f32 0.0, %v2609
      %2611 = vmatmul.bf16.gmra.mxu0 %v790
      %v2612 = vpop.f32.mrf.mxu0
      %v2613 = vadd.f32 0.0, %v2612
      %v2614 = vpop.f32.mrf.mxu0
      %v2615 = vadd.f32 0.0, %v2614
      %2616 = vmatmul.bf16.gmra.mxu0 %v791
      %v2617 = vpop.f32.mrf.mxu0
      %v2618 = vadd.f32 0.0, %v2617
      %v2619 = vpop.f32.mrf.mxu0
      %v2620 = vadd.f32 0.0, %v2619
      %2621 = vmatmul.bf16.gmra.mxu0 %v792
      %v2622 = vpop.f32.mrf.mxu0
      %v2623 = vadd.f32 0.0, %v2622
      %v2624 = vpop.f32.mrf.mxu0
      %v2625 = vadd.f32 0.0, %v2624
      %2626 = vmatmul.bf16.gmra.mxu0 %v793
      %v2627 = vpop.f32.mrf.mxu0
      %v2628 = vadd.f32 0.0, %v2627
      %v2629 = vpop.f32.mrf.mxu0
      %v2630 = vadd.f32 0.0, %v2629
      %2631 = vmatmul.bf16.gmra.mxu0 %v794
      %v2632 = vpop.f32.mrf.mxu0
      %v2633 = vadd.f32 0.0, %v2632
      %v2634 = vpop.f32.mrf.mxu0
      %v2635 = vadd.f32 0.0, %v2634
      %2636 = vdwg.mxu0
      %v2637 = vld [vmem:[#allocation2] sm:$0xff]
      %v2638 = vld [vmem:[#allocation2 + $0x8] sm:$0xff]
      %v2639 = vld [vmem:[#allocation2 + $0x10] sm:$0xff]
      %v2640 = vld [vmem:[#allocation2 + $0x18] sm:$0xff]
      %v2641 = vld [vmem:[#allocation2 + $0x20] sm:$0xff]
      %v2642 = vld [vmem:[#allocation2 + $0x28] sm:$0xff]
      %v2643 = vld [vmem:[#allocation2 + $0x30] sm:$0xff]
      %v2644 = vld [vmem:[#allocation2 + $0x38] sm:$0xff]
      %v2645 = vld [vmem:[#allocation2 + $0x40] sm:$0xff]
      %v2646 = vld [vmem:[#allocation2 + $0x48] sm:$0xff]
      %v2647 = vld [vmem:[#allocation2 + $0x50] sm:$0xff]
      %v2648 = vld [vmem:[#allocation2 + $0x58] sm:$0xff]
      %v2649 = vld [vmem:[#allocation2 + $0x60] sm:$0xff]
      %v2650 = vld [vmem:[#allocation2 + $0x68] sm:$0xff]
      %v2651 = vld [vmem:[#allocation2 + $0x70] sm:$0xff]
      %v2652 = vld [vmem:[#allocation2 + $0x78] sm:$0xff]
      %v2653 = vld [vmem:[#allocation2 + $0x80] sm:$0xff]
      %v2654 = vld [vmem:[#allocation2 + $0x88] sm:$0xff]
      %v2655 = vld [vmem:[#allocation2 + $0x90] sm:$0xff]
      %v2656 = vld [vmem:[#allocation2 + $0x98] sm:$0xff]
      %v2657 = vld [vmem:[#allocation2 + $0xa0] sm:$0xff]
      %v2658 = vld [vmem:[#allocation2 + $0xa8] sm:$0xff]
      %v2659 = vld [vmem:[#allocation2 + $0xb0] sm:$0xff]
      %v2660 = vld [vmem:[#allocation2 + $0xb8] sm:$0xff]
      %v2661 = vadd.f32 %v2637, %v2578
      %v2662 = vadd.f32 %v2638, %v2580
      %v2663 = vadd.f32 %v2639, %v2583
      %v2664 = vadd.f32 %v2640, %v2585
      %v2665 = vadd.f32 %v2641, %v2588
      %v2666 = vadd.f32 %v2642, %v2590
      %v2667 = vadd.f32 %v2643, %v2593
      %v2668 = vadd.f32 %v2644, %v2595
      %v2669 = vadd.f32 %v2645, %v2598
      %v2670 = vadd.f32 %v2646, %v2600
      %v2671 = vadd.f32 %v2647, %v2603
      %v2672 = vadd.f32 %v2648, %v2605
      %v2673 = vadd.f32 %v2649, %v2608
      %v2674 = vadd.f32 %v2650, %v2610
      %v2675 = vadd.f32 %v2651, %v2613
      %v2676 = vadd.f32 %v2652, %v2615
      %v2677 = vadd.f32 %v2653, %v2618
      %v2678 = vadd.f32 %v2654, %v2620
      %v2679 = vadd.f32 %v2655, %v2623
      %v2680 = vadd.f32 %v2656, %v2625
      %v2681 = vadd.f32 %v2657, %v2628
      %v2682 = vadd.f32 %v2658, %v2630
      %v2683 = vadd.f32 %v2659, %v2633
      %v2684 = vadd.f32 %v2660, %v2635
      %2685 = vst [vmem:[#allocation2] sm:$0xff] %v2661
      %2686 = vst [vmem:[#allocation2 + $0x8] sm:$0xff] %v2662
      %2687 = vst [vmem:[#allocation2 + $0x10] sm:$0xff] %v2663
      %2688 = vst [vmem:[#allocation2 + $0x18] sm:$0xff] %v2664
      %2689 = vst [vmem:[#allocation2 + $0x20] sm:$0xff] %v2665
      %2690 = vst [vmem:[#allocation2 + $0x28] sm:$0xff] %v2666
      %2691 = vst [vmem:[#allocation2 + $0x30] sm:$0xff] %v2667
      %2692 = vst [vmem:[#allocation2 + $0x38] sm:$0xff] %v2668
      %2693 = vst [vmem:[#allocation2 + $0x40] sm:$0xff] %v2669
      %2694 = vst [vmem:[#allocation2 + $0x48] sm:$0xff] %v2670
      %2695 = vst [vmem:[#allocation2 + $0x50] sm:$0xff] %v2671
      %2696 = vst [vmem:[#allocation2 + $0x58] sm:$0xff] %v2672
      %2697 = vst [vmem:[#allocation2 + $0x60] sm:$0xff] %v2673
      %2698 = vst [vmem:[#allocation2 + $0x68] sm:$0xff] %v2674
      %2699 = vst [vmem:[#allocation2 + $0x70] sm:$0xff] %v2675
      %2700 = vst [vmem:[#allocation2 + $0x78] sm:$0xff] %v2676
      %2701 = vst [vmem:[#allocation2 + $0x80] sm:$0xff] %v2677
      %2702 = vst [vmem:[#allocation2 + $0x88] sm:$0xff] %v2678
      %2703 = vst [vmem:[#allocation2 + $0x90] sm:$0xff] %v2679
      %2704 = vst [vmem:[#allocation2 + $0x98] sm:$0xff] %v2680
      %2705 = vst [vmem:[#allocation2 + $0xa0] sm:$0xff] %v2681
      %2706 = vst [vmem:[#allocation2 + $0xa8] sm:$0xff] %v2682
      %2707 = vst [vmem:[#allocation2 + $0xb0] sm:$0xff] %v2683
      %2708 = vst [vmem:[#allocation2 + $0xb8] sm:$0xff] %v2684
      %s2709 = scalar_lea.vmem %s5, 512
      %v2710 = vld [vmem:[%s2709] sm:$0xf]
      %v2711 = vld [vmem:[%s2709 + $0x4] sm:$0xf]
      %v2712 = vld [vmem:[%s2709 + $0x8] sm:$0xf]
      %v2713 = vld [vmem:[%s2709 + $0xc] sm:$0xf]
      %v2714 = vld [vmem:[%s2709 + $0x10] sm:$0xf]
      %v2715 = vld [vmem:[%s2709 + $0x14] sm:$0xf]
      %v2716 = vld [vmem:[%s2709 + $0x18] sm:$0xf]
      %v2717 = vld [vmem:[%s2709 + $0x1c] sm:$0xf]
      %v2718 = vld [vmem:[%s2709 + $0x20] sm:$0xf]
      %v2719 = vld [vmem:[%s2709 + $0x24] sm:$0xf]
      %v2720 = vld [vmem:[%s2709 + $0x28] sm:$0xf]
      %v2721 = vld [vmem:[%s2709 + $0x2c] sm:$0xf]
      %v2722 = vld [vmem:[%s2709 + $0x30] sm:$0xf]
      %v2723 = vld [vmem:[%s2709 + $0x34] sm:$0xf]
      %v2724 = vld [vmem:[%s2709 + $0x38] sm:$0xf]
      %v2725 = vld [vmem:[%s2709 + $0x3c] sm:$0xf]
      %v2742 = vunpack.c.l.b16 %v2710
      %v2743 = vunpack.c.l.b16 %v2711
      %v2744 = vunpack.c.l.b16 %v2712
      %v2745 = vunpack.c.l.b16 %v2713
      %v2746 = vunpack.c.l.b16 %v2714
      %v2747 = vunpack.c.l.b16 %v2715
      %v2748 = vunpack.c.l.b16 %v2716
      %v2749 = vunpack.c.l.b16 %v2717
      %v2750 = vunpack.c.l.b16 %v2718
      %v2751 = vunpack.c.l.b16 %v2719
      %v2752 = vunpack.c.l.b16 %v2720
      %v2753 = vunpack.c.l.b16 %v2721
      %v2754 = vunpack.c.l.b16 %v2722
      %v2755 = vunpack.c.l.b16 %v2723
      %v2756 = vunpack.c.l.b16 %v2724
      %v2757 = vunpack.c.l.b16 %v2725
      %v2758 = vpack.c.b16 %v2743, %v2742
      %v2759 = vpack.c.b16 %v2745, %v2744
      %v2760 = vpack.c.b16 %v2747, %v2746
      %v2761 = vpack.c.b16 %v2749, %v2748
      %v2762 = vpack.c.b16 %v2751, %v2750
      %v2763 = vpack.c.b16 %v2753, %v2752
      %v2764 = vpack.c.b16 %v2755, %v2754
      %v2765 = vpack.c.b16 %v2757, %v2756
      %2774 = vmatpush.bf16.msra.mxu0 %v2765
      %2775 = vmatpush.bf16.msra.mxu0 %v2764
      %2776 = vmatpush.bf16.msra.mxu0 %v2763
      %2777 = vmatpush.bf16.msra.mxu0 %v2762
      %2778 = vmatpush.bf16.msra.mxu0 %v2761
      %2779 = vmatpush.bf16.msra.mxu0 %v2760
      %2780 = vmatpush.bf16.msra.mxu0 %v2759
      %2781 = vmatpush.bf16.msra.mxu0 %v2758
      %2782 = vmatmul.bf16.gmra.mxu0 %v946
      %v2783 = vpop.f32.mrf.mxu0
      %v2784 = vadd.f32 0.0, %v2783
      %v2785 = vpop.f32.mrf.mxu0
      %v2786 = vadd.f32 0.0, %v2785
      %2787 = vmatmul.bf16.gmra.mxu0 %v949
      %v2788 = vpop.f32.mrf.mxu0
      %v2789 = vadd.f32 0.0, %v2788
      %v2790 = vpop.f32.mrf.mxu0
      %v2791 = vadd.f32 0.0, %v2790
      %2792 = vmatmul.bf16.gmra.mxu0 %v952
      %v2793 = vpop.f32.mrf.mxu0
      %v2794 = vadd.f32 0.0, %v2793
      %v2795 = vpop.f32.mrf.mxu0
      %v2796 = vadd.f32 0.0, %v2795
      %2797 = vmatmul.bf16.gmra.mxu0 %v955
      %v2798 = vpop.f32.mrf.mxu0
      %v2799 = vadd.f32 0.0, %v2798
      %v2800 = vpop.f32.mrf.mxu0
      %v2801 = vadd.f32 0.0, %v2800
      %2802 = vmatmul.bf16.gmra.mxu0 %v958
      %v2803 = vpop.f32.mrf.mxu0
      %v2804 = vadd.f32 0.0, %v2803
      %v2805 = vpop.f32.mrf.mxu0
      %v2806 = vadd.f32 0.0, %v2805
      %2807 = vmatmul.bf16.gmra.mxu0 %v961
      %v2808 = vpop.f32.mrf.mxu0
      %v2809 = vadd.f32 0.0, %v2808
      %v2810 = vpop.f32.mrf.mxu0
      %v2811 = vadd.f32 0.0, %v2810
      %2812 = vmatmul.bf16.gmra.mxu0 %v964
      %v2813 = vpop.f32.mrf.mxu0
      %v2814 = vadd.f32 0.0, %v2813
      %v2815 = vpop.f32.mrf.mxu0
      %v2816 = vadd.f32 0.0, %v2815
      %2817 = vmatmul.bf16.gmra.mxu0 %v967
      %v2818 = vpop.f32.mrf.mxu0
      %v2819 = vadd.f32 0.0, %v2818
      %v2820 = vpop.f32.mrf.mxu0
      %v2821 = vadd.f32 0.0, %v2820
      %2822 = vmatmul.bf16.gmra.mxu0 %v970
      %v2823 = vpop.f32.mrf.mxu0
      %v2824 = vadd.f32 0.0, %v2823
      %v2825 = vpop.f32.mrf.mxu0
      %v2826 = vadd.f32 0.0, %v2825
      %2827 = vmatmul.bf16.gmra.mxu0 %v973
      %v2828 = vpop.f32.mrf.mxu0
      %v2829 = vadd.f32 0.0, %v2828
      %v2830 = vpop.f32.mrf.mxu0
      %v2831 = vadd.f32 0.0, %v2830
      %2832 = vmatmul.bf16.gmra.mxu0 %v976
      %v2833 = vpop.f32.mrf.mxu0
      %v2834 = vadd.f32 0.0, %v2833
      %v2835 = vpop.f32.mrf.mxu0
      %v2836 = vadd.f32 0.0, %v2835
      %2837 = vmatmul.bf16.gmra.mxu0 %v995
      %v2838 = vpop.f32.mrf.mxu0
      %v2839 = vadd.f32 0.0, %v2838
      %v2840 = vpop.f32.mrf.mxu0
      %v2841 = vadd.f32 0.0, %v2840
      %2842 = vdwg.mxu0
      %v2843 = vld [vmem:[#allocation2] sm:$0xff]
      %v2844 = vld [vmem:[#allocation2 + $0x8] sm:$0xff]
      %v2845 = vld [vmem:[#allocation2 + $0x10] sm:$0xff]
      %v2846 = vld [vmem:[#allocation2 + $0x18] sm:$0xff]
      %v2847 = vld [vmem:[#allocation2 + $0x20] sm:$0xff]
      %v2848 = vld [vmem:[#allocation2 + $0x28] sm:$0xff]
      %v2849 = vld [vmem:[#allocation2 + $0x30] sm:$0xff]
      %v2850 = vld [vmem:[#allocation2 + $0x38] sm:$0xff]
      %v2851 = vld [vmem:[#allocation2 + $0x40] sm:$0xff]
      %v2852 = vld [vmem:[#allocation2 + $0x48] sm:$0xff]
      %v2853 = vld [vmem:[#allocation2 + $0x50] sm:$0xff]
      %v2854 = vld [vmem:[#allocation2 + $0x58] sm:$0xff]
      %v2855 = vld [vmem:[#allocation2 + $0x60] sm:$0xff]
      %v2856 = vld [vmem:[#allocation2 + $0x68] sm:$0xff]
      %v2857 = vld [vmem:[#allocation2 + $0x70] sm:$0xff]
      %v2858 = vld [vmem:[#allocation2 + $0x78] sm:$0xff]
      %v2859 = vld [vmem:[#allocation2 + $0x80] sm:$0xff]
      %v2860 = vld [vmem:[#allocation2 + $0x88] sm:$0xff]
      %v2861 = vld [vmem:[#allocation2 + $0x90] sm:$0xff]
      %v2862 = vld [vmem:[#allocation2 + $0x98] sm:$0xff]
      %v2863 = vld [vmem:[#allocation2 + $0xa0] sm:$0xff]
      %v2864 = vld [vmem:[#allocation2 + $0xa8] sm:$0xff]
      %v2865 = vld [vmem:[#allocation2 + $0xb0] sm:$0xff]
      %v2866 = vld [vmem:[#allocation2 + $0xb8] sm:$0xff]
      %v2867 = vadd.f32 %v2843, %v2784
      %v2868 = vadd.f32 %v2844, %v2786
      %v2869 = vadd.f32 %v2845, %v2789
      %v2870 = vadd.f32 %v2846, %v2791
      %v2871 = vadd.f32 %v2847, %v2794
      %v2872 = vadd.f32 %v2848, %v2796
      %v2873 = vadd.f32 %v2849, %v2799
      %v2874 = vadd.f32 %v2850, %v2801
      %v2875 = vadd.f32 %v2851, %v2804
      %v2876 = vadd.f32 %v2852, %v2806
      %v2877 = vadd.f32 %v2853, %v2809
      %v2878 = vadd.f32 %v2854, %v2811
      %v2879 = vadd.f32 %v2855, %v2814
      %v2880 = vadd.f32 %v2856, %v2816
      %v2881 = vadd.f32 %v2857, %v2819
      %v2882 = vadd.f32 %v2858, %v2821
      %v2883 = vadd.f32 %v2859, %v2824
      %v2884 = vadd.f32 %v2860, %v2826
      %v2885 = vadd.f32 %v2861, %v2829
      %v2886 = vadd.f32 %v2862, %v2831
      %v2887 = vadd.f32 %v2863, %v2834
      %v2888 = vadd.f32 %v2864, %v2836
      %v2889 = vadd.f32 %v2865, %v2839
      %v2890 = vadd.f32 %v2866, %v2841
      %2891 = vst [vmem:[#allocation2] sm:$0xff] %v2867
      %2892 = vst [vmem:[#allocation2 + $0x8] sm:$0xff] %v2868
      %2893 = vst [vmem:[#allocation2 + $0x10] sm:$0xff] %v2869
      %2894 = vst [vmem:[#allocation2 + $0x18] sm:$0xff] %v2870
      %2895 = vst [vmem:[#allocation2 + $0x20] sm:$0xff] %v2871
      %2896 = vst [vmem:[#allocation2 + $0x28] sm:$0xff] %v2872
      %2897 = vst [vmem:[#allocation2 + $0x30] sm:$0xff] %v2873
      %2898 = vst [vmem:[#allocation2 + $0x38] sm:$0xff] %v2874
      %2899 = vst [vmem:[#allocation2 + $0x40] sm:$0xff] %v2875
      %2900 = vst [vmem:[#allocation2 + $0x48] sm:$0xff] %v2876
      %2901 = vst [vmem:[#allocation2 + $0x50] sm:$0xff] %v2877
      %2902 = vst [vmem:[#allocation2 + $0x58] sm:$0xff] %v2878
      %2903 = vst [vmem:[#allocation2 + $0x60] sm:$0xff] %v2879
      %2904 = vst [vmem:[#allocation2 + $0x68] sm:$0xff] %v2880
      %2905 = vst [vmem:[#allocation2 + $0x70] sm:$0xff] %v2881
      %2906 = vst [vmem:[#allocation2 + $0x78] sm:$0xff] %v2882
      %2907 = vst [vmem:[#allocation2 + $0x80] sm:$0xff] %v2883
      %2908 = vst [vmem:[#allocation2 + $0x88] sm:$0xff] %v2884
      %2909 = vst [vmem:[#allocation2 + $0x90] sm:$0xff] %v2885
      %2910 = vst [vmem:[#allocation2 + $0x98] sm:$0xff] %v2886
      %2911 = vst [vmem:[#allocation2 + $0xa0] sm:$0xff] %v2887
      %2912 = vst [vmem:[#allocation2 + $0xa8] sm:$0xff] %v2888
      %2913 = vst [vmem:[#allocation2 + $0xb0] sm:$0xff] %v2889
      %2914 = vst [vmem:[#allocation2 + $0xb8] sm:$0xff] %v2890
      %v2915 = vld [vmem:[#allocation2] sm:$0xff]
      %v2916 = vld [vmem:[#allocation2 + $0x8] sm:$0xff]
      %v2917 = vld [vmem:[#allocation2 + $0x10] sm:$0xff]
      %v2918 = vld [vmem:[#allocation2 + $0x18] sm:$0xff]
      %v2919 = vld [vmem:[#allocation2 + $0x20] sm:$0xff]
      %v2920 = vld [vmem:[#allocation2 + $0x28] sm:$0xff]
      %v2921 = vld [vmem:[#allocation2 + $0x30] sm:$0xff]
      %v2922 = vld [vmem:[#allocation2 + $0x38] sm:$0xff]
      %v2923 = vld [vmem:[#allocation2 + $0x40] sm:$0xff]
      %v2924 = vld [vmem:[#allocation2 + $0x48] sm:$0xff]
      %v2925 = vld [vmem:[#allocation2 + $0x50] sm:$0xff]
      %v2926 = vld [vmem:[#allocation2 + $0x58] sm:$0xff]
      %v2927 = vld [vmem:[#allocation2 + $0x60] sm:$0xff]
      %v2928 = vld [vmem:[#allocation2 + $0x68] sm:$0xff]
      %v2929 = vld [vmem:[#allocation2 + $0x70] sm:$0xff]
      %v2930 = vld [vmem:[#allocation2 + $0x78] sm:$0xff]
      %v2931 = vld [vmem:[#allocation2 + $0x80] sm:$0xff]
      %v2932 = vld [vmem:[#allocation2 + $0x88] sm:$0xff]
      %v2933 = vld [vmem:[#allocation2 + $0x90] sm:$0xff]
      %v2934 = vld [vmem:[#allocation2 + $0x98] sm:$0xff]
      %v2935 = vld [vmem:[#allocation2 + $0xa0] sm:$0xff]
      %v2936 = vld [vmem:[#allocation2 + $0xa8] sm:$0xff]
      %v2937 = vld [vmem:[#allocation2 + $0xb0] sm:$0xff]
      %v2938 = vld [vmem:[#allocation2 + $0xb8] sm:$0xff]
      %v2939 = vsel %vm509, %v2915, 0.0
      %v2940 = vsel %vm510, %v2916, 0.0
      %v2941 = vsel %vm511, %v2917, 0.0
      %v2942 = vsel %vm509, %v2918, 0.0
      %v2943 = vsel %vm510, %v2919, 0.0
      %v2944 = vsel %vm511, %v2920, 0.0
      %v2945 = vsel %vm509, %v2921, 0.0
      %v2946 = vsel %vm510, %v2922, 0.0
      %v2947 = vsel %vm511, %v2923, 0.0
      %v2948 = vsel %vm509, %v2924, 0.0
      %v2949 = vsel %vm510, %v2925, 0.0
      %v2950 = vsel %vm511, %v2926, 0.0
      %v2951 = vsel %vm509, %v2927, 0.0
      %v2952 = vsel %vm510, %v2928, 0.0
      %v2953 = vsel %vm511, %v2929, 0.0
      %v2954 = vsel %vm509, %v2930, 0.0
      %v2955 = vsel %vm510, %v2931, 0.0
      %v2956 = vsel %vm511, %v2932, 0.0
      %v2957 = vsel %vm509, %v2933, 0.0
      %v2958 = vsel %vm510, %v2934, 0.0
      %v2959 = vsel %vm511, %v2935, 0.0
      %v2960 = vsel %vm509, %v2936, 0.0
      %v2961 = vsel %vm510, %v2937, 0.0
      %v2962 = vsel %vm511, %v2938, 0.0
      %v2963 = vpack.c.bf16 %v2939, %v2939
      %v2964 = vpack.c.bf16 %v2940, %v2940
      %v2965 = vpack.c.bf16 %v2941, %v2941
      %v2966 = vpack.c.bf16 %v2942, %v2942
      %v2967 = vpack.c.bf16 %v2943, %v2943
      %v2968 = vpack.c.bf16 %v2944, %v2944
      %v2969 = vpack.c.bf16 %v2945, %v2945
      %v2970 = vpack.c.bf16 %v2946, %v2946
      %v2971 = vpack.c.bf16 %v2947, %v2947
      %v2972 = vpack.c.bf16 %v2948, %v2948
      %v2973 = vpack.c.bf16 %v2949, %v2949
      %v2974 = vpack.c.bf16 %v2950, %v2950
      %v2975 = vpack.c.bf16 %v2951, %v2951
      %v2976 = vpack.c.bf16 %v2952, %v2952
      %v2977 = vpack.c.bf16 %v2953, %v2953
      %v2978 = vpack.c.bf16 %v2954, %v2954
      %v2979 = vpack.c.bf16 %v2955, %v2955
      %v2980 = vpack.c.bf16 %v2956, %v2956
      %v2981 = vpack.c.bf16 %v2957, %v2957
      %v2982 = vpack.c.bf16 %v2958, %v2958
      %v2983 = vpack.c.bf16 %v2959, %v2959
      %v2984 = vpack.c.bf16 %v2960, %v2960
      %v2985 = vpack.c.bf16 %v2961, %v2961
      %v2986 = vpack.c.bf16 %v2962, %v2962
      %2987 = vst [vmem:[%s458] sm:$0xf] %v2963
      %2988 = vst [vmem:[%s458 + $0x4] sm:$0xf] %v2964
      %2989 = vst [vmem:[%s458 + $0x8] sm:$0xf] %v2965
      %2990 = vst [vmem:[%s458 + $0xc] sm:$0xf] %v2966
      %2991 = vst [vmem:[%s458 + $0x10] sm:$0xf] %v2967
      %2992 = vst [vmem:[%s458 + $0x14] sm:$0xf] %v2968
      %2993 = vst [vmem:[%s458 + $0x18] sm:$0xf] %v2969
      %2994 = vst [vmem:[%s458 + $0x1c] sm:$0xf] %v2970
      %2995 = vst [vmem:[%s458 + $0x20] sm:$0xf] %v2971
      %2996 = vst [vmem:[%s458 + $0x24] sm:$0xf] %v2972
      %2997 = vst [vmem:[%s458 + $0x28] sm:$0xf] %v2973
      %2998 = vst [vmem:[%s458 + $0x2c] sm:$0xf] %v2974
      %2999 = vst [vmem:[%s458 + $0x30] sm:$0xf] %v2975
      %3000 = vst [vmem:[%s458 + $0x34] sm:$0xf] %v2976
      %3001 = vst [vmem:[%s458 + $0x38] sm:$0xf] %v2977
      %3002 = vst [vmem:[%s458 + $0x3c] sm:$0xf] %v2978
      %3003 = vst [vmem:[%s458 + $0x40] sm:$0xf] %v2979
      %3004 = vst [vmem:[%s458 + $0x44] sm:$0xf] %v2980
      %3005 = vst [vmem:[%s458 + $0x48] sm:$0xf] %v2981
      %3006 = vst [vmem:[%s458 + $0x4c] sm:$0xf] %v2982
      %3007 = vst [vmem:[%s458 + $0x50] sm:$0xf] %v2983
      %3008 = vst [vmem:[%s458 + $0x54] sm:$0xf] %v2984
      %3009 = vst [vmem:[%s458 + $0x58] sm:$0xf] %v2985
      %3010 = vst [vmem:[%s458 + $0x5c] sm:$0xf] %v2986
      %v3011 = vadd.f32 %v2939, %v2942
      %v3012 = vadd.f32 %v3011, %v2945
      %v3013 = vadd.f32 %v3012, %v2948
      %v3014 = vadd.f32 %v3013, %v2951
      %v3015 = vadd.f32 %v3014, %v2954
      %v3016 = vadd.f32 %v3015, %v2957
      %v3017 = vadd.f32 %v3016, %v2960
      %v3018 = vadd.f32 %v2940, %v2943
      %v3019 = vadd.f32 %v3018, %v2946
      %v3020 = vadd.f32 %v3019, %v2949
      %v3021 = vadd.f32 %v3020, %v2952
      %v3022 = vadd.f32 %v3021, %v2955
      %v3023 = vadd.f32 %v3022, %v2958
      %v3024 = vadd.f32 %v3023, %v2961
      %v3025 = vadd.f32 %v2941, %v2944
      %v3026 = vadd.f32 %v3025, %v2947
      %v3027 = vadd.f32 %v3026, %v2950
      %v3028 = vadd.f32 %v3027, %v2953
      %v3029 = vadd.f32 %v3028, %v2956
      %v3030 = vadd.f32 %v3029, %v2959
      %v3031 = vadd.f32 %v3030, %v2962
      %v3032 = vadd.f32 %v3017, %v3024
      %v3033 = vadd.f32 %v3032, %v3031
      %v3034 = vrot.slane %v3033, 4
      %v3035 = vadd.f32 %v3033, %v3034
      %v3036 = vrot.slane %v3035, 2
      %v3037 = vadd.f32 %v3035, %v3036
      %v3038 = vrot.slane %v3037, 1
      %v3039 = vadd.f32 %v3037, %v3038
      %v3040 = vmul.f32 %v2939, %v2939
      %v3041 = vmul.f32 %v2940, %v2940
      %v3042 = vmul.f32 %v2941, %v2941
      %v3043 = vmul.f32 %v2942, %v2942
      %v3044 = vmul.f32 %v2943, %v2943
      %v3045 = vmul.f32 %v2944, %v2944
      %v3046 = vmul.f32 %v2945, %v2945
      %v3047 = vmul.f32 %v2946, %v2946
      %v3048 = vmul.f32 %v2947, %v2947
      %v3049 = vmul.f32 %v2948, %v2948
      %v3050 = vmul.f32 %v2949, %v2949
      %v3051 = vmul.f32 %v2950, %v2950
      %v3052 = vmul.f32 %v2951, %v2951
      %v3053 = vmul.f32 %v2952, %v2952
      %v3054 = vmul.f32 %v2953, %v2953
      %v3055 = vmul.f32 %v2954, %v2954
      %v3056 = vmul.f32 %v2955, %v2955
      %v3057 = vmul.f32 %v2956, %v2956
      %v3058 = vmul.f32 %v2957, %v2957
      %v3059 = vmul.f32 %v2958, %v2958
      %v3060 = vmul.f32 %v2959, %v2959
      %v3061 = vmul.f32 %v2960, %v2960
      %v3062 = vmul.f32 %v2961, %v2961
      %v3063 = vmul.f32 %v2962, %v2962
      %v3064 = vadd.f32 %v3040, %v3043
      %v3065 = vadd.f32 %v3064, %v3046
      %v3066 = vadd.f32 %v3065, %v3049
      %v3067 = vadd.f32 %v3066, %v3052
      %v3068 = vadd.f32 %v3067, %v3055
      %v3069 = vadd.f32 %v3068, %v3058
      %v3070 = vadd.f32 %v3069, %v3061
      %v3071 = vadd.f32 %v3041, %v3044
      %v3072 = vadd.f32 %v3071, %v3047
      %v3073 = vadd.f32 %v3072, %v3050
      %v3074 = vadd.f32 %v3073, %v3053
      %v3075 = vadd.f32 %v3074, %v3056
      %v3076 = vadd.f32 %v3075, %v3059
      %v3077 = vadd.f32 %v3076, %v3062
      %v3078 = vadd.f32 %v3042, %v3045
      %v3079 = vadd.f32 %v3078, %v3048
      %v3080 = vadd.f32 %v3079, %v3051
      %v3081 = vadd.f32 %v3080, %v3054
      %v3082 = vadd.f32 %v3081, %v3057
      %v3083 = vadd.f32 %v3082, %v3060
      %v3084 = vadd.f32 %v3083, %v3063
      %v3085 = vadd.f32 %v3070, %v3077
      %v3086 = vadd.f32 %v3085, %v3084
      %v3087 = vrot.slane %v3086, 4
      %v3088 = vadd.f32 %v3086, %v3087
      %v3089 = vrot.slane %v3088, 2
      %v3090 = vadd.f32 %v3088, %v3089
      %v3091 = vrot.slane %v3090, 1
      %v3092 = vadd.f32 %v3090, %v3091
      %vm3093 = vcmask 1040384
      %v3094 = vsel %vm3093, %v3039, %v3092
      %3095 = vst [vmem:[%s467] sm:$0x3] %v3094
      %s3096 = smul.u32 8, %s24
      %p3097 = scmp.lt.s32.totalorder %s23, 1
      %s3098 = scalar_select %p3097, %s23, 1
      %p3099 = scmp.lt.s32.totalorder %s3096, 15
      %s3100 = scalar_select %p3099, %s3096, 15
      %s3101 = smul.addr %s3100, 3
      %s3102 = smul.addr %s3098, 48
      %s3103 = sadd.s32 %s3101, %s3102
      %s3104 = smul.addr %s3103, 4
      %s3105 = scalar_lea.vmem %s6, %s3104
      %p3106 = scmp.lt.s32.totalorder %s23, 1
      %s3107 = scalar_select %p3106, %s23, 1
      %p3108 = scmp.lt.s32.totalorder %s24, 1
      %s3109 = scalar_select %p3108, %s24, 1
      %s3110 = smul.addr %s3107, 2
      %s3111 = sadd.s32 %s3109, %s3110
      %s3112 = smul.addr %s3111, 2
      %s3113 = scalar_lea.vmem %s7, %s3112
      // Predicated region
      $region45: #{double_conv.4} parent=43 // pred_check
        %p3114 = pneg %p214
      $region46: #{double_conv.4} parent=43 // pred_check_branch
        %3116 = sbr.rel (%p3114) target = $region48
      $region47: #{double_conv.4} parent=43 // pred_region
        %s3117 = smul.u32 8, %s24
      $region48: #{double_conv.4} parent=43 // pred_fallthru
        _
      // Predicated region
      $region49: #{double_conv.4} parent=43 // pred_check
        %p3118 = pneg %p242
      $region50: #{double_conv.4} parent=43 // pred_check_branch
        %3120 = sbr.rel (%p3118) target = $region52
      $region51: #{double_conv.4} parent=43 // pred_region
        _
      $region52: #{double_conv.4} parent=43 // pred_fallthru
        _
    $region44: #{double_conv.4} parent=5 // pred_fallthru
      _
    %p3121 = scmp.le.s32.totalorder 2, %s14
    // Predicated region
    $region53: #{double_conv.4} parent=5 // pred_check
      %p3122 = pneg %p3121
    $region54: #{double_conv.4} parent=5 // pred_check_branch
      %3124 = sbr.rel (%p3122) target = $region56
    $region55: #{double_conv.4} parent=5 // pred_region
      %s3125 = ssub.s32 %s14, 2
      // Predicated region
      $region57: #{double_conv.4} parent=55 // pred_check
        %p3126 = pneg %p220
      $region58: #{double_conv.4} parent=55 // pred_check_branch
        %3128 = sbr.rel (%p3126) target = $region60
      $region59: #{double_conv.4} parent=55 // pred_region
        %s3129 = smul.u32 8, %s26
        %p3130 = scmp.lt.s32.totalorder %s25, 1
        %s3131 = scalar_select %p3130, %s25, 1
        %p3132 = scmp.lt.s32.totalorder %s3129, 15
        %s3133 = scalar_select %p3132, %s3129, 15
        %s3134 = smul.addr %s3133, 3
        %s3135 = smul.addr %s3131, 48
        %s3136 = sadd.s32 %s3134, %s3135
        %s3137 = smul.addr %s3136, 4
        %s3138 = scalar_lea.vmem %s6, %s3137
      $region60: #{double_conv.4} parent=55 // pred_fallthru
        _
      // Predicated region
      $region61: #{double_conv.4} parent=55 // pred_check
        %p3139 = pneg %p248
      $region62: #{double_conv.4} parent=55 // pred_check_branch
        %3141 = sbr.rel (%p3139) target = $region64
      $region63: #{double_conv.4} parent=55 // pred_region
        %p3142 = scmp.lt.s32.totalorder %s25, 1
        %s3143 = scalar_select %p3142, %s25, 1
        %p3144 = scmp.lt.s32.totalorder %s26, 1
        %s3145 = scalar_select %p3144, %s26, 1
        %s3146 = smul.addr %s3143, 2
        %s3147 = sadd.s32 %s3145, %s3146
        %s3148 = smul.addr %s3147, 2
        %s3149 = scalar_lea.vmem %s7, %s3148
      $region64: #{double_conv.4} parent=55 // pred_fallthru
        _
    $region56: #{double_conv.4} parent=5 // pred_fallthru
      _
  $region6: #{double_conv.4} parent=0 // loop_footer
    %s18 = sadd.s32 1, %s14
  $region7: #{double_conv.4} parent=0 // loop_footer_branch
    %13 = sbr.rel target = $region3
  $region8: #{double_conv.4} parent=0 // loop_exit
    _

</llo_original>
